<compile_context>
chip_gen: v7x
topology: tpu7x:2x2x1
jax: 0.10.0
libtpu: 0.0.40
codegen_flags: <defaults>
</compile_context>

<pallas_src>
import math
import functools

import jax
import jax.numpy as jnp
from jax import lax
from jax.experimental import pallas as pl
from jax.experimental.pallas import tpu as pltpu

GROUPS = 32
EPS = 1e-5  # torch.nn.GroupNorm default


# --------------------------------------------------------------------------------------
# Kernel 1: GroupNorm statistics (HW-tiled, two-stage reduction) -> per-channel affine.
# Grid = (N, HW // ts); the HW axis is a reduction ("arbitrary").
# --------------------------------------------------------------------------------------
def _gn_stats_kernel(x_ref, gamma_ref, beta_ref, mcg_ref, mgc_ref,
                     scale_ref, shift_ref, sum_scr, sq_scr, *, groups, eps, hw):
    t = pl.program_id(1)

    @pl.when(t == 0)
    def _():
        sum_scr[...] = jnp.zeros_like(sum_scr)
        sq_scr[...] = jnp.zeros_like(sq_scr)

    x = x_ref[...].astype(jnp.float32)                        # (ts, C) token-major tile
    sum_scr[...] += jnp.sum(x, axis=0, keepdims=True)         # (1, C)
    sq_scr[...] += jnp.sum(x * x, axis=0, keepdims=True)      # (1, C)

    @pl.when(t == pl.num_programs(1) - 1)
    def _():
        c = x.shape[1]
        cnt = jnp.float32(hw * (c // groups))                 # elements per group
        mcg = mcg_ref[...]                                    # (C, G) channel->group mask
        mgc = mgc_ref[...]                                    # (G, C) group->channel mask
        mean_c = jnp.dot(jnp.dot(sum_scr[...], mcg, preferred_element_type=jnp.float32),
                         mgc, preferred_element_type=jnp.float32) / cnt      # (1, C)
        ex2_c = jnp.dot(jnp.dot(sq_scr[...], mcg, preferred_element_type=jnp.float32),
                        mgc, preferred_element_type=jnp.float32) / cnt       # (1, C)
        # E[x^2] - mean^2 in f32 is adequate for GroupNorm inputs; clamp for safety.
        var_c = jnp.maximum(ex2_c - mean_c * mean_c, 0.0)
        rstd = lax.rsqrt(var_c + eps)
        scale = gamma_ref[...] * rstd
        scale_ref[...] = scale
        shift_ref[...] = beta_ref[...] - mean_c * scale


# --------------------------------------------------------------------------------------
# Kernel 2: fused GroupNorm affine + K/V projection over HW tiles (bf16 MXU, f32 accum).
# (Q projection is fused into the flash kernel, so Q never round-trips through HBM.)
# --------------------------------------------------------------------------------------
def _kv_proj_kernel(x_ref, scale_ref, shift_ref, wkv_ref, bkv_ref, k_ref, v_ref):
    x = x_ref[...].astype(jnp.float32)                        # (tp, C)
    c = x.shape[1]
    y = (x * scale_ref[...] + shift_ref[...]).astype(jnp.bfloat16)   # GroupNorm as affine
    kv = jnp.dot(y, wkv_ref[...], preferred_element_type=jnp.float32) + bkv_ref[...]
    k_ref[...] = kv[:, :c].astype(k_ref.dtype)
    v_ref[...] = kv[:, c:].astype(v_ref.dtype)


# --------------------------------------------------------------------------------------
# Kernel 3: fused Q projection + flash attention (online softmax) + output projection
#           + residual add, storing channel-major (C, tq) blocks (transpose fused).
# Grid = (N, n_q, n_kv); kv axis innermost ("arbitrary").
# kv_resident=True  -> k_ref/v_ref are full per-sample (HW, C) VMEM-resident slabs, sliced here.
# kv_resident=False -> k_ref/v_ref are streamed (tkv, C) tiles (fallback for huge HW on v7x).
# --------------------------------------------------------------------------------------
def _flash_attn_kernel(x_ref, scale_ref, shift_ref, wq_ref, bq_ref,
                       k_ref, v_ref, wo_ref, bo_ref, o_ref,
                       q_scr, m_scr, l_scr, acc_scr, *, tkv, kv_resident):
    ki = pl.program_id(2)

    @pl.when(ki == 0)
    def _():
        # GroupNorm affine + Q projection (1/sqrt(C) folded into Wq/bq), computed once per
        # (n, qi) from the already-resident residual/x tile and reused across all kv steps.
        y = x_ref[...].astype(jnp.float32) * scale_ref[...] + shift_ref[...]
        q = jnp.dot(y.astype(jnp.bfloat16), wq_ref[...],
                    preferred_element_type=jnp.float32) + bq_ref[...]
        q_scr[...] = q.astype(jnp.bfloat16)
        m_scr[...] = jnp.full_like(m_scr, -jnp.inf)
        l_scr[...] = jnp.zeros_like(l_scr)
        acc_scr[...] = jnp.zeros_like(acc_scr)

    if kv_resident:
        off = pl.multiple_of(ki * tkv, tkv)
        k = k_ref[pl.ds(off, tkv), :]                         # (tkv, C) slice of resident K
        v = v_ref[pl.ds(off, tkv), :]
    else:
        k = k_ref[...]                                        # (tkv, C) streamed tile
        v = v_ref[...]

    # s[i, j] = sum_c q[i, c] * k[j, c]  (contract on C; no explicit transpose needed)
    s = lax.dot_general(q_scr[...], k, (((1,), (1,)), ((), ())),
                        preferred_element_type=jnp.float32)   # (tq, tkv) f32

    m_prev = m_scr[...]
    m_new = jnp.maximum(m_prev, jnp.max(s, axis=-1, keepdims=True))
    alpha = jnp.exp(m_prev - m_new)
    p = jnp.exp(s - m_new)
    l_scr[...] = alpha * l_scr[...] + jnp.sum(p, axis=-1, keepdims=True)
    acc_scr[...] = alpha * acc_scr[...] + jnp.dot(
        p.astype(jnp.bfloat16), v, preferred_element_type=jnp.float32)       # (tq, C)
    m_scr[...] = m_new

    @pl.when(ki == pl.num_programs(2) - 1)
    def _():
        inv_l = pl.reciprocal(l_scr[...], approx=True)        # EUP slot, effectively free
        o_tok = acc_scr[...] * inv_l                          # (tq, C) f32
        o = jnp.dot(o_tok.astype(jnp.bfloat16), wo_ref[...],
                    preferred_element_type=jnp.float32) + bo_ref[...]
        o = o + x_ref[...].astype(jnp.float32)                # residual (raw x tokens)
        # Fold the token-major -> channel-major transpose into the store (XLU, epilogue only).
        o_ref[...] = o.T.astype(o_ref.dtype)                  # (C, tq)


# --------------------------------------------------------------------------------------
# Wrapper
# --------------------------------------------------------------------------------------
def _pick_tile(n, cap):
    for t in (cap, 512, 256, 128, 64, 32, 16, 8):
        if t <= n and t <= cap and n % t == 0 and t % 8 == 0:
            return t
    return n  # fall back to the full dimension (always a legal block)


def _vmem_capacity_bytes():
    # Trace-time hardware query; conservative 64 MiB (v7x floor) fallback if unavailable.
    try:
        cap = getattr(pltpu.get_tpu_info(), "vmem_capacity_bytes", None)
        if cap:
            return int(cap)
    except Exception:
        pass
    return 64 << 20


def _cp(sem, working_bytes, capacity):
    # Clamp to ~85% of physical VMEM (headroom for Mosaic internal scratch / semaphores);
    # give the pipeline 16 MiB of slack on top of the explicit tile budget.
    lim = int(min(max(working_bytes + (16 << 20), 32 << 20), int(0.85 * capacity)))
    return pltpu.CompilerParams(dimension_semantics=sem, vmem_limit_bytes=lim)


def vae_attention_block(x, params, *, force_streamed_kv=False):
    """x: (N, C, H, W) float32, NCHW like PyTorch."""
    N, C, H, W = x.shape
    HW = H * W
    assert C % GROUPS == 0, "GroupNorm(32, C) requires C % 32 == 0"

    vmem_cap = _vmem_capacity_bytes()
    f32b, bf16b = 4, 2

    ts = _pick_tile(HW, 512)     # GN stats HW tile
    tp = _pick_tile(HW, 512)     # K/V projection HW tile
    tq = _pick_tile(HW, 256)     # flash q tile
    tkv = _pick_tile(HW, 512)    # flash kv tile (fills the 256-wide MXU on v6e/v7x)

    # HBM-side layout change (XLA): NCHW -> token-major (N, HW, C).  Reused by all 3 stages
    # (GN stats, K/V projection, Q source + residual), so doing it once in XLA is cheapest.
    x_tok = x.reshape(N, C, HW).transpose(0, 2, 1)

    # Parameter prep (once, outside the grid).  nn.Linear computes t @ W.T + b; the 1/sqrt(C)
    # attention scale is folded into the Q weights/bias.
    inv_sqrt_c = 1.0 / math.sqrt(C)
    wq = (params["wq"].T * inv_sqrt_c).astype(jnp.bfloat16)                   # (C, C)
    bq = (params["bq"] * inv_sqrt_c).reshape(1, C).astype(jnp.float32)
    wkv = jnp.concatenate([params["wk"].T, params["wv"].T], axis=1).astype(jnp.bfloat16)  # (C, 2C)
    bkv = jnp.concatenate([params["bk"], params["bv"]]).reshape(1, 2 * C).astype(jnp.float32)
    wo = params["wo"].T.astype(jnp.bfloat16)                                  # (C, C)
    bo = params["bo"].reshape(1, C).astype(jnp.float32)
    gamma = params["gamma"].reshape(1, C).astype(jnp.float32)
    beta = params["beta"].reshape(1, C).astype(jnp.float32)

    # Group-membership masks for the tiny group reduction in the stats kernel.
    ch_group = jnp.arange(C) // (C // GROUPS)
    m_cg = (ch_group[:, None] == jnp.arange(GROUPS)[None, :]).astype(jnp.float32)  # (C, G)
    m_gc = m_cg.T                                                                   # (G, C)

    # ---- stage 1: GroupNorm stats (HW-tiled two-stage reduction) -> scale/shift --------
    stage1_bytes = (2 * ts * C * f32b + 2 * (C * GROUPS + GROUPS * C) * f32b
                    + 12 * C * f32b)
    scale, shift = pl.pallas_call(
        functools.partial(_gn_stats_kernel, groups=GROUPS, eps=EPS, hw=HW),
        out_shape=(jax.ShapeDtypeStruct((N, 1, C), jnp.float32),
                   jax.ShapeDtypeStruct((N, 1, C), jnp.float32)),
        grid=(N, HW // ts),
        in_specs=[
            pl.BlockSpec((None, ts, C), lambda n, t: (n, t, 0)),   # x HW tile (token-major)
            pl.BlockSpec((1, C), lambda n, t: (0, 0)),             # gamma
            pl.BlockSpec((1, C), lambda n, t: (0, 0)),             # beta
            pl.BlockSpec((C, GROUPS), lambda n, t: (0, 0)),        # channel->group mask
            pl.BlockSpec((GROUPS, C), lambda n, t: (0, 0)),        # group->channel mask
        ],
        out_specs=(pl.BlockSpec((None, 1, C), lambda n, t: (n, 0, 0)),
                   pl.BlockSpec((None, 1, C), lambda n, t: (n, 0, 0))),
        scratch_shapes=[pltpu.VMEM((1, C), jnp.float32),   # running sum
                        pltpu.VMEM((1, C), jnp.float32)],  # running sum of squares
        compiler_params=_cp(("parallel", "arbitrary"), stage1_bytes, vmem_cap),
    )(x_tok, gamma, beta, m_cg, m_gc)

    # ---- stage 2: fused GroupNorm affine + K/V projection -------------------------------
    stage2_bytes = (2 * tp * C * f32b + 2 * 2 * tp * C * bf16b
                    + 2 * C * (2 * C) * bf16b + 12 * C * f32b)
    k, v = pl.pallas_call(
        _kv_proj_kernel,
        out_shape=(jax.ShapeDtypeStruct((N, HW, C), jnp.bfloat16),
                   jax.ShapeDtypeStruct((N, HW, C), jnp.bfloat16)),
        grid=(N, HW // tp),
        in_specs=[
            pl.BlockSpec((None, tp, C), lambda n, t: (n, t, 0)),    # x tile
            pl.BlockSpec((None, 1, C), lambda n, t: (n, 0, 0)),     # GN scale (per sample)
            pl.BlockSpec((None, 1, C), lambda n, t: (n, 0, 0)),     # GN shift
            pl.BlockSpec((C, 2 * C), lambda n, t: (0, 0)),          # fused K/V weights (bf16)
            pl.BlockSpec((1, 2 * C), lambda n, t: (0, 0)),          # fused K/V bias
        ],
        out_specs=(pl.BlockSpec((None, tp, C), lambda n, t: (n, t, 0)),
                   pl.BlockSpec((None, tp, C), lambda n, t: (n, t, 0))),
        compiler_params=_cp(("parallel", "parallel"), stage2_bytes, vmem_cap),
    )(x_tok, scale, shift, wkv, bkv)

    # ---- stage 3: Q proj + flash attention + output projection + residual ---------------
    stage3_fixed = (2 * tq * C * f32b            # x/residual tile, double buffered
                    + 2 * C * tq * f32b          # (C, tq) output tile, double buffered
                    + 2 * 2 * C * C * bf16b      # Wq + Wo, double buffered
                    + 16 * C * f32b              # scale/shift/bq/bo
                    + tq * C * (bf16b + f32b)    # q + acc scratch
                    + 4 * tq * f32b)             # m + l scratch
    kv_res_bytes = 2 * 2 * HW * C * bf16b        # K and V resident, double buffered
    kv_str_bytes = 2 * 2 * tkv * C * bf16b
    kv_resident = (not force_streamed_kv) and \
        (stage3_fixed + kv_res_bytes <= int(0.70 * vmem_cap))
    stage3_bytes = stage3_fixed + (kv_res_bytes if kv_resident else kv_str_bytes)

    if kv_resident:
        # K/V per-sample resident: DMA'd from HBM once per sample, sliced per kv step.
        k_spec = pl.BlockSpec((None, HW, C), lambda n, qi, ki: (n, 0, 0))
        v_spec = pl.BlockSpec((None, HW, C), lambda n, qi, ki: (n, 0, 0))
    else:
        # Fallback (huge HW on small-VMEM generations): stream kv tiles per (qi, ki).
        k_spec = pl.BlockSpec((None, tkv, C), lambda n, qi, ki: (n, ki, 0))
        v_spec = pl.BlockSpec((None, tkv, C), lambda n, qi, ki: (n, ki, 0))

    out_chw = pl.pallas_call(
        functools.partial(_flash_attn_kernel, tkv=tkv, kv_resident=kv_resident),
        out_shape=jax.ShapeDtypeStruct((N, C, HW), x.dtype),
        grid=(N, HW // tq, HW // tkv),
        in_specs=[
            pl.BlockSpec((None, tq, C), lambda n, qi, ki: (n, qi, 0)),   # x tokens (Q src + residual)
            pl.BlockSpec((None, 1, C), lambda n, qi, ki: (n, 0, 0)),     # GN scale
            pl.BlockSpec((None, 1, C), lambda n, qi, ki: (n, 0, 0)),     # GN shift
            pl.BlockSpec((C, C), lambda n, qi, ki: (0, 0)),              # Wq^T * 1/sqrt(C) (bf16)
            pl.BlockSpec((1, C), lambda n, qi, ki: (0, 0)),              # bq * 1/sqrt(C)
            k_spec,
            v_spec,
            pl.BlockSpec((C, C), lambda n, qi, ki: (0, 0)),              # Wo^T (bf16)
            pl.BlockSpec((1, C), lambda n, qi, ki: (0, 0)),              # bo
        ],
        out_specs=pl.BlockSpec((None, C, tq), lambda n, qi, ki: (n, 0, qi)),
        scratch_shapes=[
            pltpu.VMEM((tq, C), jnp.bfloat16),   # q tile (resident across kv steps)
            pltpu.VMEM((tq, 1), jnp.float32),    # running max m
            pltpu.VMEM((tq, 1), jnp.float32),    # running sum l
            pltpu.VMEM((tq, C), jnp.float32),    # output accumulator
        ],
        compiler_params=_cp(("parallel", "parallel", "arbitrary"), stage3_bytes, vmem_cap),
    )(x_tok, scale, shift, wq, bq, k, v, wo, bo)

    # Output is already channel-major (N, C, HW): reshape to NCHW is free (no data movement).
    return out_chw.reshape(N, C, H, W)


# --------------------------------------------------------------------------------------
# Pure-JAX reference (PyTorch semantics) and test harness
# --------------------------------------------------------------------------------------
def reference(x, params):
    N, C, H, W = x.shape
    xg = x.reshape(N, GROUPS, (C // GROUPS) * H * W)
    mean = xg.mean(-1, keepdims=True)
    var = xg.var(-1, keepdims=True)
    xn = ((xg - mean) / jnp.sqrt(var + EPS)).reshape(N, C, H, W)
    xn = xn * params["gamma"][None, :, None, None] + params["beta"][None, :, None, None]
    t = xn.reshape(N, C, H * W).transpose(0, 2, 1)            # (N, S, D)
    q = t @ params["wq"].T + params["bq"]
    k = t @ params["wk"].T + params["bk"]
    v = t @ params["wv"].T + params["bv"]
    s = (q @ k.transpose(0, 2, 1)) / math.sqrt(C)
    a = jax.nn.softmax(s, axis=-1)
    o = a @ v
    o = o @ params["wo"].T + params["bo"]
    o = o.transpose(0, 2, 1).reshape(N, C, H, W)
    return o + x


def make_params(key, channels):
    ks = jax.random.split(key, 6)
    scale = 0.05
    return {
        "gamma": 1.0 + 0.1 * jax.random.normal(ks[0], (channels,), jnp.float32),
        "beta": 0.1 * jax.random.normal(ks[1], (channels,), jnp.float32),
        "wq": scale * jax.random.normal(ks[2], (channels, channels), jnp.float32),
        "wk": scale * jax.random.normal(ks[3], (channels, channels), jnp.float32),
        "wv": scale * jax.random.normal(ks[4], (channels, channels), jnp.float32),
        "wo": scale * jax.random.normal(ks[5], (channels, channels), jnp.float32),
        "bq": jnp.zeros((channels,), jnp.float32) + 0.01,
        "bk": jnp.zeros((channels,), jnp.float32) - 0.01,
        "bv": jnp.zeros((channels,), jnp.float32) + 0.02,
        "bo": jnp.zeros((channels,), jnp.float32) - 0.02,
    }


if __name__ == "__main__":
    # GroupNorm(32, channels) requires channels % 32 == 0 -> smallest interesting: 64.
    # HW = 1024 so the flash grid exercises multiple q tiles (256) and kv steps (512),
    # and the GN stats kernel exercises multi-tile accumulation (ts = 512).
    N, C, H, W = 2, 64, 32, 32
    key = jax.random.PRNGKey(0)
    kx, kp = jax.random.split(key)
    x = jax.random.normal(kx, (N, C, H, W), jnp.float32)
    params = make_params(kp, C)

    ref = reference(x, params)

    # Main (resident-K/V) path.
    out = jax.jit(vae_attention_block)(x, params)
    out = jax.block_until_ready(out)
    assert out.shape == (N, C, H, W)
    err = float(jnp.max(jnp.abs(out - ref)))
    assert jnp.allclose(out, ref, rtol=1e-2, atol=1e-2), \
        f"resident-KV path mismatch vs reference (max abs err {err})"

    # Streamed-K/V fallback path (used when resident K/V would exceed the VMEM budget).
    out2 = jax.jit(functools.partial(vae_attention_block, force_streamed_kv=True))(x, params)
    out2 = jax.block_until_ready(out2)
    err2 = float(jnp.max(jnp.abs(out2 - ref)))
    assert jnp.allclose(out2, ref, rtol=1e-2, atol=1e-2), \
        f"streamed-KV path mismatch vs reference (max abs err {err2})"

    print("KERNEL_OK")
</pallas_src>

<mosaic_0001>
module attributes {stable_mosaic.version = 11 : i64} {
  func.func @_gn_stats_kernel(%arg0: i32, %arg1: i32, %arg2: memref<1x512x64xf32, #tpu.memory_space<vmem>>, %arg3: memref<1x64xf32, #tpu.memory_space<vmem>>, %arg4: memref<1x64xf32, #tpu.memory_space<vmem>>, %arg5: memref<64x32xf32, #tpu.memory_space<vmem>>, %arg6: memref<32x64xf32, #tpu.memory_space<vmem>>, %arg7: memref<1x1x64xf32, #tpu.memory_space<vmem>>, %arg8: memref<1x1x64xf32, #tpu.memory_space<vmem>>, %arg9: memref<1x64xf32, #tpu.memory_space<vmem>>, %arg10: memref<1x64xf32, #tpu.memory_space<vmem>>) attributes {dimension_semantics = [#tpu.dimension_semantics<parallel>, #tpu.dimension_semantics<arbitrary>], iteration_bounds = array<i64: 2, 2>, scalar_prefetch = 0 : i64, scratch_operands = 2 : i64, tpu.core_type = #tpu.core_type<tc>, window_params = [{transform_indices = @transform_0, window_bounds = array<i64: 1, 512, 64>}, {pipeline_mode = #tpu.pipeline_mode<synchronous>, transform_indices = @transform_1, window_bounds = array<i64: 1, 64>}, {pipeline_mode = #tpu.pipeline_mode<synchronous>, transform_indices = @transform_2, window_bounds = array<i64: 1, 64>}, {pipeline_mode = #tpu.pipeline_mode<synchronous>, transform_indices = @transform_3, window_bounds = array<i64: 64, 32>}, {pipeline_mode = #tpu.pipeline_mode<synchronous>, transform_indices = @transform_4, window_bounds = array<i64: 32, 64>}, {transform_indices = @transform_5, window_bounds = array<i64: 1, 1, 64>}, {transform_indices = @transform_6, window_bounds = array<i64: 1, 1, 64>}]} {
    %c0_i32 = arith.constant 0 : i32
    %0 = arith.cmpi eq, %arg1, %c0_i32 : i32
    %1 = arith.extui %0 : i1 to i32
    %c0_i32_0 = arith.constant 0 : i32
    %2 = arith.cmpi ne, %1, %c0_i32_0 : i32
    scf.if %2 {
      %cst_13 = arith.constant 0.000000e+00 : f32
      %19 = vector.broadcast %cst_13 : f32 to vector<1x64xf32>
      %c0_14 = arith.constant 0 : index
      %c0_15 = arith.constant 0 : index
      %20 = vector.load %arg9[%c0_14, %c0_15] : memref<1x64xf32, #tpu.memory_space<vmem>>, vector<1x64xf32>
      tpu.vector_store %arg9[%c0_14, %c0_15], %19 {strides = array<i32>} : memref<1x64xf32, #tpu.memory_space<vmem>>, vector<1x64xf32>,
      %cst_16 = arith.constant 0.000000e+00 : f32
      %21 = vector.broadcast %cst_16 : f32 to vector<1x64xf32>
      %c0_17 = arith.constant 0 : index
      %c0_18 = arith.constant 0 : index
      %22 = vector.load %arg10[%c0_17, %c0_18] : memref<1x64xf32, #tpu.memory_space<vmem>>, vector<1x64xf32>
      tpu.vector_store %arg10[%c0_17, %c0_18], %21 {strides = array<i32>} : memref<1x64xf32, #tpu.memory_space<vmem>>, vector<1x64xf32>,
    } else {
    }
    %c0 = arith.constant 0 : index
    %c0_1 = arith.constant 0 : index
    %c0_2 = arith.constant 0 : index
    %3 = vector.load %arg2[%c0, %c0_1, %c0_2] : memref<1x512x64xf32, #tpu.memory_space<vmem>>, vector<1x512x64xf32>
    %4 = vector.shape_cast %3 : vector<1x512x64xf32> to vector<512x64xf32>
    %c0_3 = arith.constant 0 : index
    %c0_4 = arith.constant 0 : index
    %5 = vector.load %arg9[%c0_3, %c0_4] : memref<1x64xf32, #tpu.memory_space<vmem>>, vector<1x64xf32>
    %cst = arith.constant dense<0.000000e+00> : vector<64xf32>
    %6 = vector.multi_reduction <add>, %4, %cst [0] : vector<512x64xf32> to vector<64xf32>
    %7 = vector.shape_cast %6 : vector<64xf32> to vector<1x64xf32>
    %8 = arith.addf %5, %7 : vector<1x64xf32>
    %c0_5 = arith.constant 0 : index
    %c0_6 = arith.constant 0 : index
    %9 = vector.load %arg9[%c0_5, %c0_6] : memref<1x64xf32, #tpu.memory_space<vmem>>, vector<1x64xf32>
    tpu.vector_store %arg9[%c0_5, %c0_6], %8 {strides = array<i32>} : memref<1x64xf32, #tpu.memory_space<vmem>>, vector<1x64xf32>,
    %c0_7 = arith.constant 0 : index
    %c0_8 = arith.constant 0 : index
    %10 = vector.load %arg10[%c0_7, %c0_8] : memref<1x64xf32, #tpu.memory_space<vmem>>, vector<1x64xf32>
    %11 = arith.mulf %4, %4 : vector<512x64xf32>
    %cst_9 = arith.constant dense<0.000000e+00> : vector<64xf32>
    %12 = vector.multi_reduction <add>, %11, %cst_9 [0] : vector<512x64xf32> to vector<64xf32>
    %13 = vector.shape_cast %12 : vector<64xf32> to vector<1x64xf32>
    %14 = arith.addf %10, %13 : vector<1x64xf32>
    %c0_10 = arith.constant 0 : index
    %c0_11 = arith.constant 0 : index
    %15 = vector.load %arg10[%c0_10, %c0_11] : memref<1x64xf32, #tpu.memory_space<vmem>>, vector<1x64xf32>
    tpu.vector_store %arg10[%c0_10, %c0_11], %14 {strides = array<i32>} : memref<1x64xf32, #tpu.memory_space<vmem>>, vector<1x64xf32>,
    %c1_i32 = arith.constant 1 : i32
    %16 = arith.cmpi eq, %arg1, %c1_i32 : i32
    %17 = arith.extui %16 : i1 to i32
    %c0_i32_12 = arith.constant 0 : i32
    %18 = arith.cmpi ne, %17, %c0_i32_12 : i32
    scf.if %18 {
      %c0_13 = arith.constant 0 : index
      %c0_14 = arith.constant 0 : index
      %19 = vector.load %arg5[%c0_13, %c0_14] : memref<64x32xf32, #tpu.memory_space<vmem>>, vector<64x32xf32>
      %c0_15 = arith.constant 0 : index
      %c0_16 = arith.constant 0 : index
      %20 = vector.load %arg6[%c0_15, %c0_16] : memref<32x64xf32, #tpu.memory_space<vmem>>, vector<32x64xf32>
      %c0_17 = arith.constant 0 : index
      %c0_18 = arith.constant 0 : index
      %21 = vector.load %arg9[%c0_17, %c0_18] : memref<1x64xf32, #tpu.memory_space<vmem>>, vector<1x64xf32>
      %cst_19 = arith.constant dense<0.000000e+00> : vector<1x32xf32>
      %22 = tpu.matmul %21, %19, %cst_19 {dimension_numbers = #tpu.dot_dimension_numbers<[1], [0], [0], [1], [0, 0, 1, 1], [], []>} : vector<1x64xf32>, vector<64x32xf32>, vector<1x32xf32> -> vector<1x32xf32>
      %cst_20 = arith.constant dense<0.000000e+00> : vector<1x64xf32>
      %23 = tpu.matmul %22, %20, %cst_20 {dimension_numbers = #tpu.dot_dimension_numbers<[1], [0], [0], [1], [0, 0, 1, 1], [], []>} : vector<1x32xf32>, vector<32x64xf32>, vector<1x64xf32> -> vector<1x64xf32>
      %cst_21 = arith.constant 2.048000e+03 : f32
      %24 = vector.broadcast %cst_21 : f32 to vector<1x64xf32>
      %25 = arith.divf %23, %24 : vector<1x64xf32>
      %c0_22 = arith.constant 0 : index
      %c0_23 = arith.constant 0 : index
      %26 = vector.load %arg10[%c0_22, %c0_23] : memref<1x64xf32, #tpu.memory_space<vmem>>, vector<1x64xf32>
      %cst_24 = arith.constant dense<0.000000e+00> : vector<1x32xf32>
      %27 = tpu.matmul %26, %19, %cst_24 {dimension_numbers = #tpu.dot_dimension_numbers<[1], [0], [0], [1], [0, 0, 1, 1], [], []>} : vector<1x64xf32>, vector<64x32xf32>, vector<1x32xf32> -> vector<1x32xf32>
      %cst_25 = arith.constant dense<0.000000e+00> : vector<1x64xf32>
      %28 = tpu.matmul %27, %20, %cst_25 {dimension_numbers = #tpu.dot_dimension_numbers<[1], [0], [0], [1], [0, 0, 1, 1], [], []>} : vector<1x32xf32>, vector<32x64xf32>, vector<1x64xf32> -> vector<1x64xf32>
      %cst_26 = arith.constant 2.048000e+03 : f32
      %29 = vector.broadcast %cst_26 : f32 to vector<1x64xf32>
      %30 = arith.divf %28, %29 : vector<1x64xf32>
      %31 = arith.mulf %25, %25 : vector<1x64xf32>
      %32 = arith.subf %30, %31 : vector<1x64xf32>
      %cst_27 = arith.constant 0.000000e+00 : f32
      %33 = vector.broadcast %cst_27 : f32 to vector<1x64xf32>
      %34 = arith.maximumf %32, %33 : vector<1x64xf32>
      %cst_28 = arith.constant 9.99999974E-6 : f32
      %35 = vector.broadcast %cst_28 : f32 to vector<1x64xf32>
      %36 = arith.addf %34, %35 : vector<1x64xf32>
      %37 = math.rsqrt %36 : vector<1x64xf32>
      %c0_29 = arith.constant 0 : index
      %c0_30 = arith.constant 0 : index
      %38 = vector.load %arg3[%c0_29, %c0_30] : memref<1x64xf32, #tpu.memory_space<vmem>>, vector<1x64xf32>
      %39 = arith.mulf %38, %37 : vector<1x64xf32>
      %c0_31 = arith.constant 0 : index
      %c0_32 = arith.constant 0 : index
      %c0_33 = arith.constant 0 : index
      %40 = vector.load %arg7[%c0_31, %c0_32, %c0_33] : memref<1x1x64xf32, #tpu.memory_space<vmem>>, vector<1x1x64xf32>
      %41 = vector.shape_cast %40 : vector<1x1x64xf32> to vector<1x64xf32>
      %42 = vector.shape_cast %39 : vector<1x64xf32> to vector<1x1x64xf32>
      tpu.vector_store %arg7[%c0_31, %c0_32, %c0_33], %42 {strides = array<i32>} : memref<1x1x64xf32, #tpu.memory_space<vmem>>, vector<1x1x64xf32>,
      %c0_34 = arith.constant 0 : index
      %c0_35 = arith.constant 0 : index
      %43 = vector.load %arg4[%c0_34, %c0_35] : memref<1x64xf32, #tpu.memory_space<vmem>>, vector<1x64xf32>
      %44 = arith.mulf %25, %39 : vector<1x64xf32>
      %45 = arith.subf %43, %44 : vector<1x64xf32>
      %c0_36 = arith.constant 0 : index
      %c0_37 = arith.constant 0 : index
      %c0_38 = arith.constant 0 : index
      %46 = vector.load %arg8[%c0_36, %c0_37, %c0_38] : memref<1x1x64xf32, #tpu.memory_space<vmem>>, vector<1x1x64xf32>
      %47 = vector.shape_cast %46 : vector<1x1x64xf32> to vector<1x64xf32>
      %48 = vector.shape_cast %45 : vector<1x64xf32> to vector<1x1x64xf32>
      tpu.vector_store %arg8[%c0_36, %c0_37, %c0_38], %48 {strides = array<i32>} : memref<1x1x64xf32, #tpu.memory_space<vmem>>, vector<1x1x64xf32>,
    } else {
    }
    return
  }
  func.func @transform_0(%arg0: i32, %arg1: i32) -> (i32, i32, i32) {
    %c0_i32 = arith.constant 0 : i32
    %c0_i32_0 = arith.constant 0 : i32
    return %arg0, %arg1, %c0_i32 : i32, i32, i32
  }
  func.func @transform_1(%arg0: i32, %arg1: i32) -> (i32, i32) {
    %c0_i32 = arith.constant 0 : i32
    %c0_i32_0 = arith.constant 0 : i32
    %c0_i32_1 = arith.constant 0 : i32
    return %c0_i32, %c0_i32_0 : i32, i32
  }
  func.func @transform_2(%arg0: i32, %arg1: i32) -> (i32, i32) {
    %c0_i32 = arith.constant 0 : i32
    %c0_i32_0 = arith.constant 0 : i32
    %c0_i32_1 = arith.constant 0 : i32
    return %c0_i32, %c0_i32_0 : i32, i32
  }
  func.func @transform_3(%arg0: i32, %arg1: i32) -> (i32, i32) {
    %c0_i32 = arith.constant 0 : i32
    %c0_i32_0 = arith.constant 0 : i32
    %c0_i32_1 = arith.constant 0 : i32
    return %c0_i32, %c0_i32_0 : i32, i32
  }
  func.func @transform_4(%arg0: i32, %arg1: i32) -> (i32, i32) {
    %c0_i32 = arith.constant 0 : i32
    %c0_i32_0 = arith.constant 0 : i32
    %c0_i32_1 = arith.constant 0 : i32
    return %c0_i32, %c0_i32_0 : i32, i32
  }
  func.func @transform_5(%arg0: i32, %arg1: i32) -> (i32, i32, i32) {
    %c0_i32 = arith.constant 0 : i32
    %c0_i32_0 = arith.constant 0 : i32
    %c0_i32_1 = arith.constant 0 : i32
    return %arg0, %c0_i32, %c0_i32_0 : i32, i32, i32
  }
  func.func @transform_6(%arg0: i32, %arg1: i32) -> (i32, i32, i32) {
    %c0_i32 = arith.constant 0 : i32
    %c0_i32_0 = arith.constant 0 : i32
    %c0_i32_1 = arith.constant 0 : i32
    return %arg0, %c0_i32, %c0_i32_0 : i32, i32, i32
  }
}

module attributes {stable_mosaic.version = 11 : i64} {
  func.func @_kv_proj_kernel(%arg0: i32, %arg1: i32, %arg2: memref<1x512x64xf32, #tpu.memory_space<vmem>>, %arg3: memref<1x1x64xf32, #tpu.memory_space<vmem>>, %arg4: memref<1x1x64xf32, #tpu.memory_space<vmem>>, %arg5: memref<64x128xbf16, #tpu.memory_space<vmem>>, %arg6: memref<1x128xf32, #tpu.memory_space<vmem>>, %arg7: memref<1x512x64xbf16, #tpu.memory_space<vmem>>, %arg8: memref<1x512x64xbf16, #tpu.memory_space<vmem>>) attributes {dimension_semantics = [#tpu.dimension_semantics<parallel>, #tpu.dimension_semantics<parallel>], iteration_bounds = array<i64: 2, 2>, scalar_prefetch = 0 : i64, scratch_operands = 0 : i64, tpu.core_type = #tpu.core_type<tc>, window_params = [{transform_indices = @transform_0, window_bounds = array<i64: 1, 512, 64>}, {transform_indices = @transform_1, window_bounds = array<i64: 1, 1, 64>}, {transform_indices = @transform_2, window_bounds = array<i64: 1, 1, 64>}, {pipeline_mode = #tpu.pipeline_mode<synchronous>, transform_indices = @transform_3, window_bounds = array<i64: 64, 128>}, {pipeline_mode = #tpu.pipeline_mode<synchronous>, transform_indices = @transform_4, window_bounds = array<i64: 1, 128>}, {transform_indices = @transform_5, window_bounds = array<i64: 1, 512, 64>}, {transform_indices = @transform_6, window_bounds = array<i64: 1, 512, 64>}]} {
    %c0 = arith.constant 0 : index
    %c0_0 = arith.constant 0 : index
    %c0_1 = arith.constant 0 : index
    %0 = vector.load %arg2[%c0, %c0_0, %c0_1] : memref<1x512x64xf32, #tpu.memory_space<vmem>>, vector<1x512x64xf32>
    %1 = vector.shape_cast %0 : vector<1x512x64xf32> to vector<512x64xf32>
    %c0_2 = arith.constant 0 : index
    %c0_3 = arith.constant 0 : index
    %c0_4 = arith.constant 0 : index
    %2 = vector.load %arg3[%c0_2, %c0_3, %c0_4] : memref<1x1x64xf32, #tpu.memory_space<vmem>>, vector<1x1x64xf32>
    %3 = vector.shape_cast %2 : vector<1x1x64xf32> to vector<1x64xf32>
    %4 = vector.broadcast %3 : vector<1x64xf32> to vector<512x64xf32>
    %5 = arith.mulf %1, %4 : vector<512x64xf32>
    %c0_5 = arith.constant 0 : index
    %c0_6 = arith.constant 0 : index
    %c0_7 = arith.constant 0 : index
    %6 = vector.load %arg4[%c0_5, %c0_6, %c0_7] : memref<1x1x64xf32, #tpu.memory_space<vmem>>, vector<1x1x64xf32>
    %7 = vector.shape_cast %6 : vector<1x1x64xf32> to vector<1x64xf32>
    %8 = vector.broadcast %7 : vector<1x64xf32> to vector<512x64xf32>
    %9 = arith.addf %5, %8 : vector<512x64xf32>
    %10 = arith.truncf %9 : vector<512x64xf32> to vector<512x64xbf16>
    %c0_8 = arith.constant 0 : index
    %c0_9 = arith.constant 0 : index
    %11 = vector.load %arg5[%c0_8, %c0_9] : memref<64x128xbf16, #tpu.memory_space<vmem>>, vector<64x128xbf16>
    %cst = arith.constant dense<0.000000e+00> : vector<512x128xf32>
    %12 = tpu.matmul %10, %11, %cst {dimension_numbers = #tpu.dot_dimension_numbers<[1], [0], [0], [1], [0, 0, 1, 1], [], []>} : vector<512x64xbf16>, vector<64x128xbf16>, vector<512x128xf32> -> vector<512x128xf32>
    %c0_10 = arith.constant 0 : index
    %c0_11 = arith.constant 0 : index
    %13 = vector.load %arg6[%c0_10, %c0_11] : memref<1x128xf32, #tpu.memory_space<vmem>>, vector<1x128xf32>
    %14 = vector.broadcast %13 : vector<1x128xf32> to vector<512x128xf32>
    %15 = arith.addf %12, %14 : vector<512x128xf32>
    %16 = vector.extract_strided_slice %15 {offsets = [0, 0], sizes = [512, 64], strides = [1, 1]} : vector<512x128xf32> to vector<512x64xf32>
    %17 = arith.truncf %16 : vector<512x64xf32> to vector<512x64xbf16>
    %c0_12 = arith.constant 0 : index
    %c0_13 = arith.constant 0 : index
    %c0_14 = arith.constant 0 : index
    %18 = vector.load %arg7[%c0_12, %c0_13, %c0_14] : memref<1x512x64xbf16, #tpu.memory_space<vmem>>, vector<1x512x64xbf16>
    %19 = vector.shape_cast %18 : vector<1x512x64xbf16> to vector<512x64xbf16>
    %20 = vector.shape_cast %17 : vector<512x64xbf16> to vector<1x512x64xbf16>
    tpu.vector_store %arg7[%c0_12, %c0_13, %c0_14], %20 {strides = array<i32>} : memref<1x512x64xbf16, #tpu.memory_space<vmem>>, vector<1x512x64xbf16>,
    %21 = vector.extract_strided_slice %15 {offsets = [0, 64], sizes = [512, 64], strides = [1, 1]} : vector<512x128xf32> to vector<512x64xf32>
    %22 = arith.truncf %21 : vector<512x64xf32> to vector<512x64xbf16>
    %c0_15 = arith.constant 0 : index
    %c0_16 = arith.constant 0 : index
    %c0_17 = arith.constant 0 : index
    %23 = vector.load %arg8[%c0_15, %c0_16, %c0_17] : memref<1x512x64xbf16, #tpu.memory_space<vmem>>, vector<1x512x64xbf16>
    %24 = vector.shape_cast %23 : vector<1x512x64xbf16> to vector<512x64xbf16>
    %25 = vector.shape_cast %22 : vector<512x64xbf16> to vector<1x512x64xbf16>
    tpu.vector_store %arg8[%c0_15, %c0_16, %c0_17], %25 {strides = array<i32>} : memref<1x512x64xbf16, #tpu.memory_space<vmem>>, vector<1x512x64xbf16>,
    return
  }
  func.func @transform_0(%arg0: i32, %arg1: i32) -> (i32, i32, i32) {
    %c0_i32 = arith.constant 0 : i32
    %c0_i32_0 = arith.constant 0 : i32
    return %arg0, %arg1, %c0_i32 : i32, i32, i32
  }
  func.func @transform_1(%arg0: i32, %arg1: i32) -> (i32, i32, i32) {
    %c0_i32 = arith.constant 0 : i32
    %c0_i32_0 = arith.constant 0 : i32
    %c0_i32_1 = arith.constant 0 : i32
    return %arg0, %c0_i32, %c0_i32_0 : i32, i32, i32
  }
  func.func @transform_2(%arg0: i32, %arg1: i32) -> (i32, i32, i32) {
    %c0_i32 = arith.constant 0 : i32
    %c0_i32_0 = arith.constant 0 : i32
    %c0_i32_1 = arith.constant 0 : i32
    return %arg0, %c0_i32, %c0_i32_0 : i32, i32, i32
  }
  func.func @transform_3(%arg0: i32, %arg1: i32) -> (i32, i32) {
    %c0_i32 = arith.constant 0 : i32
    %c0_i32_0 = arith.constant 0 : i32
    %c0_i32_1 = arith.constant 0 : i32
    return %c0_i32, %c0_i32_0 : i32, i32
  }
  func.func @transform_4(%arg0: i32, %arg1: i32) -> (i32, i32) {
    %c0_i32 = arith.constant 0 : i32
    %c0_i32_0 = arith.constant 0 : i32
    %c0_i32_1 = arith.constant 0 : i32
    return %c0_i32, %c0_i32_0 : i32, i32
  }
  func.func @transform_5(%arg0: i32, %arg1: i32) -> (i32, i32, i32) {
    %c0_i32 = arith.constant 0 : i32
    %c0_i32_0 = arith.constant 0 : i32
    return %arg0, %arg1, %c0_i32 : i32, i32, i32
  }
  func.func @transform_6(%arg0: i32, %arg1: i32) -> (i32, i32, i32) {
    %c0_i32 = arith.constant 0 : i32
    %c0_i32_0 = arith.constant 0 : i32
    return %arg0, %arg1, %c0_i32 : i32, i32, i32
  }
}

module attributes {stable_mosaic.version = 11 : i64} {
  func.func @_flash_attn_kernel(%arg0: i32, %arg1: i32, %arg2: i32, %arg3: memref<1x256x64xf32, #tpu.memory_space<vmem>>, %arg4: memref<1x1x64xf32, #tpu.memory_space<vmem>>, %arg5: memref<1x1x64xf32, #tpu.memory_space<vmem>>, %arg6: memref<64x64xbf16, #tpu.memory_space<vmem>>, %arg7: memref<1x64xf32, #tpu.memory_space<vmem>>, %arg8: memref<1x1024x64xbf16, #tpu.memory_space<vmem>>, %arg9: memref<1x1024x64xbf16, #tpu.memory_space<vmem>>, %arg10: memref<64x64xbf16, #tpu.memory_space<vmem>>, %arg11: memref<1x64xf32, #tpu.memory_space<vmem>>, %arg12: memref<1x64x256xf32, #tpu.memory_space<vmem>>, %arg13: memref<256x64xbf16, #tpu.memory_space<vmem>>, %arg14: memref<256x1xf32, #tpu.memory_space<vmem>>, %arg15: memref<256x1xf32, #tpu.memory_space<vmem>>, %arg16: memref<256x64xf32, #tpu.memory_space<vmem>>) attributes {dimension_semantics = [#tpu.dimension_semantics<parallel>, #tpu.dimension_semantics<parallel>, #tpu.dimension_semantics<arbitrary>], iteration_bounds = array<i64: 2, 4, 2>, scalar_prefetch = 0 : i64, scratch_operands = 4 : i64, tpu.core_type = #tpu.core_type<tc>, window_params = [{transform_indices = @transform_0, window_bounds = array<i64: 1, 256, 64>}, {transform_indices = @transform_1, window_bounds = array<i64: 1, 1, 64>}, {transform_indices = @transform_2, window_bounds = array<i64: 1, 1, 64>}, {pipeline_mode = #tpu.pipeline_mode<synchronous>, transform_indices = @transform_3, window_bounds = array<i64: 64, 64>}, {pipeline_mode = #tpu.pipeline_mode<synchronous>, transform_indices = @transform_4, window_bounds = array<i64: 1, 64>}, {transform_indices = @transform_5, window_bounds = array<i64: 1, 1024, 64>}, {transform_indices = @transform_6, window_bounds = array<i64: 1, 1024, 64>}, {pipeline_mode = #tpu.pipeline_mode<synchronous>, transform_indices = @transform_7, window_bounds = array<i64: 64, 64>}, {pipeline_mode = #tpu.pipeline_mode<synchronous>, transform_indices = @transform_8, window_bounds = array<i64: 1, 64>}, {transform_indices = @transform_9, window_bounds = array<i64: 1, 64, 256>}]} {
    %c0_i32 = arith.constant 0 : i32
    %0 = arith.cmpi eq, %arg2, %c0_i32 : i32
    %1 = arith.extui %0 : i1 to i32
    %c0_i32_0 = arith.constant 0 : i32
    %2 = arith.cmpi ne, %1, %c0_i32_0 : i32
    scf.if %2 {
      %c0_22 = arith.constant 0 : index
      %c0_23 = arith.constant 0 : index
      %c0_24 = arith.constant 0 : index
      %39 = vector.load %arg3[%c0_22, %c0_23, %c0_24] : memref<1x256x64xf32, #tpu.memory_space<vmem>>, vector<1x256x64xf32>
      %40 = vector.shape_cast %39 : vector<1x256x64xf32> to vector<256x64xf32>
      %c0_25 = arith.constant 0 : index
      %c0_26 = arith.constant 0 : index
      %c0_27 = arith.constant 0 : index
      %41 = vector.load %arg4[%c0_25, %c0_26, %c0_27] : memref<1x1x64xf32, #tpu.memory_space<vmem>>, vector<1x1x64xf32>
      %42 = vector.shape_cast %41 : vector<1x1x64xf32> to vector<1x64xf32>
      %43 = vector.broadcast %42 : vector<1x64xf32> to vector<256x64xf32>
      %44 = arith.mulf %40, %43 : vector<256x64xf32>
      %c0_28 = arith.constant 0 : index
      %c0_29 = arith.constant 0 : index
      %c0_30 = arith.constant 0 : index
      %45 = vector.load %arg5[%c0_28, %c0_29, %c0_30] : memref<1x1x64xf32, #tpu.memory_space<vmem>>, vector<1x1x64xf32>
      %46 = vector.shape_cast %45 : vector<1x1x64xf32> to vector<1x64xf32>
      %47 = vector.broadcast %46 : vector<1x64xf32> to vector<256x64xf32>
      %48 = arith.addf %44, %47 : vector<256x64xf32>
      %49 = arith.truncf %48 : vector<256x64xf32> to vector<256x64xbf16>
      %c0_31 = arith.constant 0 : index
      %c0_32 = arith.constant 0 : index
      %50 = vector.load %arg6[%c0_31, %c0_32] : memref<64x64xbf16, #tpu.memory_space<vmem>>, vector<64x64xbf16>
      %cst_33 = arith.constant dense<0.000000e+00> : vector<256x64xf32>
      %51 = tpu.matmul %49, %50, %cst_33 {dimension_numbers = #tpu.dot_dimension_numbers<[1], [0], [0], [1], [0, 0, 1, 1], [], []>} : vector<256x64xbf16>, vector<64x64xbf16>, vector<256x64xf32> -> vector<256x64xf32>
      %c0_34 = arith.constant 0 : index
      %c0_35 = arith.constant 0 : index
      %52 = vector.load %arg7[%c0_34, %c0_35] : memref<1x64xf32, #tpu.memory_space<vmem>>, vector<1x64xf32>
      %53 = vector.broadcast %52 : vector<1x64xf32> to vector<256x64xf32>
      %54 = arith.addf %51, %53 : vector<256x64xf32>
      %55 = arith.truncf %54 : vector<256x64xf32> to vector<256x64xbf16>
      %c0_36 = arith.constant 0 : index
      %c0_37 = arith.constant 0 : index
      %56 = vector.load %arg13[%c0_36, %c0_37] : memref<256x64xbf16, #tpu.memory_space<vmem>>, vector<256x64xbf16>
      tpu.vector_store %arg13[%c0_36, %c0_37], %55 {strides = array<i32>} : memref<256x64xbf16, #tpu.memory_space<vmem>>, vector<256x64xbf16>,
      %cst_38 = arith.constant 0xFF800000 : f32
      %57 = vector.broadcast %cst_38 : f32 to vector<256x1xf32>
      %c0_39 = arith.constant 0 : index
      %c0_40 = arith.constant 0 : index
      %58 = vector.load %arg14[%c0_39, %c0_40] : memref<256x1xf32, #tpu.memory_space<vmem>>, vector<256x1xf32>
      tpu.vector_store %arg14[%c0_39, %c0_40], %57 {strides = array<i32>} : memref<256x1xf32, #tpu.memory_space<vmem>>, vector<256x1xf32>,
      %cst_41 = arith.constant 0.000000e+00 : f32
      %59 = vector.broadcast %cst_41 : f32 to vector<256x1xf32>
      %c0_42 = arith.constant 0 : index
      %c0_43 = arith.constant 0 : index
      %60 = vector.load %arg15[%c0_42, %c0_43] : memref<256x1xf32, #tpu.memory_space<vmem>>, vector<256x1xf32>
      tpu.vector_store %arg15[%c0_42, %c0_43], %59 {strides = array<i32>} : memref<256x1xf32, #tpu.memory_space<vmem>>, vector<256x1xf32>,
      %cst_44 = arith.constant 0.000000e+00 : f32
      %61 = vector.broadcast %cst_44 : f32 to vector<256x64xf32>
      %c0_45 = arith.constant 0 : index
      %c0_46 = arith.constant 0 : index
      %62 = vector.load %arg16[%c0_45, %c0_46] : memref<256x64xf32, #tpu.memory_space<vmem>>, vector<256x64xf32>
      tpu.vector_store %arg16[%c0_45, %c0_46], %61 {strides = array<i32>} : memref<256x64xf32, #tpu.memory_space<vmem>>, vector<256x64xf32>,
    } else {
    }
    %c512_i32 = arith.constant 512 : i32
    %3 = arith.muli %arg2, %c512_i32 : i32
    %4 = tpu.assume_multiple %3, 512 : i32
    %c0 = arith.constant 0 : index
    %5 = arith.index_cast %4 : i32 to index
    %c0_1 = arith.constant 0 : index
    %6 = vector.load %arg8[%c0, %5, %c0_1] : memref<1x1024x64xbf16, #tpu.memory_space<vmem>>, vector<1x512x64xbf16>
    %7 = vector.shape_cast %6 : vector<1x512x64xbf16> to vector<512x64xbf16>
    %c0_2 = arith.constant 0 : index
    %8 = arith.index_cast %4 : i32 to index
    %c0_3 = arith.constant 0 : index
    %9 = vector.load %arg9[%c0_2, %8, %c0_3] : memref<1x1024x64xbf16, #tpu.memory_space<vmem>>, vector<1x512x64xbf16>
    %10 = vector.shape_cast %9 : vector<1x512x64xbf16> to vector<512x64xbf16>
    %c0_4 = arith.constant 0 : index
    %c0_5 = arith.constant 0 : index
    %11 = vector.load %arg13[%c0_4, %c0_5] : memref<256x64xbf16, #tpu.memory_space<vmem>>, vector<256x64xbf16>
    %cst = arith.constant dense<0.000000e+00> : vector<256x512xf32>
    %12 = tpu.matmul %11, %7, %cst {dimension_numbers = #tpu.dot_dimension_numbers<[1], [1], [0], [0], [0, 0, 1, 0], [], []>} : vector<256x64xbf16>, vector<512x64xbf16>, vector<256x512xf32> -> vector<256x512xf32>
    %c0_6 = arith.constant 0 : index
    %c0_7 = arith.constant 0 : index
    %13 = vector.load %arg14[%c0_6, %c0_7] : memref<256x1xf32, #tpu.memory_space<vmem>>, vector<256x1xf32>
    %cst_8 = arith.constant dense<0xFF800000> : vector<256xf32>
    %14 = vector.multi_reduction <maximumf>, %12, %cst_8 [1] : vector<256x512xf32> to vector<256xf32>
    %15 = vector.shape_cast %14 : vector<256xf32> to vector<256x1xf32>
    %16 = arith.maximumf %13, %15 : vector<256x1xf32>
    %17 = arith.subf %13, %16 : vector<256x1xf32>
    %18 = math.exp %17 : vector<256x1xf32>
    %19 = vector.broadcast %16 : vector<256x1xf32> to vector<256x512xf32>
    %20 = arith.subf %12, %19 : vector<256x512xf32>
    %21 = math.exp %20 : vector<256x512xf32>
    %c0_9 = arith.constant 0 : index
    %c0_10 = arith.constant 0 : index
    %22 = vector.load %arg15[%c0_9, %c0_10] : memref<256x1xf32, #tpu.memory_space<vmem>>, vector<256x1xf32>
    %23 = arith.mulf %18, %22 : vector<256x1xf32>
    %cst_11 = arith.constant dense<0.000000e+00> : vector<256xf32>
    %24 = vector.multi_reduction <add>, %21, %cst_11 [1] : vector<256x512xf32> to vector<256xf32>
    %25 = vector.shape_cast %24 : vector<256xf32> to vector<256x1xf32>
    %26 = arith.addf %23, %25 : vector<256x1xf32>
    %c0_12 = arith.constant 0 : index
    %c0_13 = arith.constant 0 : index
    %27 = vector.load %arg15[%c0_12, %c0_13] : memref<256x1xf32, #tpu.memory_space<vmem>>, vector<256x1xf32>
    tpu.vector_store %arg15[%c0_12, %c0_13], %26 {strides = array<i32>} : memref<256x1xf32, #tpu.memory_space<vmem>>, vector<256x1xf32>,
    %c0_14 = arith.constant 0 : index
    %c0_15 = arith.constant 0 : index
    %28 = vector.load %arg16[%c0_14, %c0_15] : memref<256x64xf32, #tpu.memory_space<vmem>>, vector<256x64xf32>
    %29 = vector.broadcast %18 : vector<256x1xf32> to vector<256x64xf32>
    %30 = arith.mulf %29, %28 : vector<256x64xf32>
    %31 = arith.truncf %21 : vector<256x512xf32> to vector<256x512xbf16>
    %cst_16 = arith.constant dense<0.000000e+00> : vector<256x64xf32>
    %32 = tpu.matmul %31, %10, %cst_16 {dimension_numbers = #tpu.dot_dimension_numbers<[1], [0], [0], [1], [0, 0, 1, 1], [], []>} : vector<256x512xbf16>, vector<512x64xbf16>, vector<256x64xf32> -> vector<256x64xf32>
    %33 = arith.addf %30, %32 : vector<256x64xf32>
    %c0_17 = arith.constant 0 : index
    %c0_18 = arith.constant 0 : index
    %34 = vector.load %arg16[%c0_17, %c0_18] : memref<256x64xf32, #tpu.memory_space<vmem>>, vector<256x64xf32>
    tpu.vector_store %arg16[%c0_17, %c0_18], %33 {strides = array<i32>} : memref<256x64xf32, #tpu.memory_space<vmem>>, vector<256x64xf32>,
    %c0_19 = arith.constant 0 : index
    %c0_20 = arith.constant 0 : index
    %35 = vector.load %arg14[%c0_19, %c0_20] : memref<256x1xf32, #tpu.memory_space<vmem>>, vector<256x1xf32>
    tpu.vector_store %arg14[%c0_19, %c0_20], %16 {strides = array<i32>} : memref<256x1xf32, #tpu.memory_space<vmem>>, vector<256x1xf32>,
    %c1_i32 = arith.constant 1 : i32
    %36 = arith.cmpi eq, %arg2, %c1_i32 : i32
    %37 = arith.extui %36 : i1 to i32
    %c0_i32_21 = arith.constant 0 : i32
    %38 = arith.cmpi ne, %37, %c0_i32_21 : i32
    scf.if %38 {
      %c0_22 = arith.constant 0 : index
      %c0_23 = arith.constant 0 : index
      %39 = vector.load %arg15[%c0_22, %c0_23] : memref<256x1xf32, #tpu.memory_space<vmem>>, vector<256x1xf32>
      %40 = tpu.reciprocal %39 {approx = true} : vector<256x1xf32> -> vector<256x1xf32>
      %c0_24 = arith.constant 0 : index
      %c0_25 = arith.constant 0 : index
      %41 = vector.load %arg16[%c0_24, %c0_25] : memref<256x64xf32, #tpu.memory_space<vmem>>, vector<256x64xf32>
      %42 = vector.broadcast %40 : vector<256x1xf32> to vector<256x64xf32>
      %43 = arith.mulf %41, %42 : vector<256x64xf32>
      %44 = arith.truncf %43 : vector<256x64xf32> to vector<256x64xbf16>
      %c0_26 = arith.constant 0 : index
      %c0_27 = arith.constant 0 : index
      %45 = vector.load %arg10[%c0_26, %c0_27] : memref<64x64xbf16, #tpu.memory_space<vmem>>, vector<64x64xbf16>
      %cst_28 = arith.constant dense<0.000000e+00> : vector<256x64xf32>
      %46 = tpu.matmul %44, %45, %cst_28 {dimension_numbers = #tpu.dot_dimension_numbers<[1], [0], [0], [1], [0, 0, 1, 1], [], []>} : vector<256x64xbf16>, vector<64x64xbf16>, vector<256x64xf32> -> vector<256x64xf32>
      %c0_29 = arith.constant 0 : index
      %c0_30 = arith.constant 0 : index
      %47 = vector.load %arg11[%c0_29, %c0_30] : memref<1x64xf32, #tpu.memory_space<vmem>>, vector<1x64xf32>
      %48 = vector.broadcast %47 : vector<1x64xf32> to vector<256x64xf32>
      %49 = arith.addf %46, %48 : vector<256x64xf32>
      %c0_31 = arith.constant 0 : index
      %c0_32 = arith.constant 0 : index
      %c0_33 = arith.constant 0 : index
      %50 = vector.load %arg3[%c0_31, %c0_32, %c0_33] : memref<1x256x64xf32, #tpu.memory_space<vmem>>, vector<1x256x64xf32>
      %51 = vector.shape_cast %50 : vector<1x256x64xf32> to vector<256x64xf32>
      %52 = arith.addf %49, %51 : vector<256x64xf32>
      %53 = tpu.transpose %52, [1, 0] : vector<256x64xf32> -> vector<64x256xf32>
      %c0_34 = arith.constant 0 : index
      %c0_35 = arith.constant 0 : index
      %c0_36 = arith.constant 0 : index
      %54 = vector.load %arg12[%c0_34, %c0_35, %c0_36] : memref<1x64x256xf32, #tpu.memory_space<vmem>>, vector<1x64x256xf32>
      %55 = vector.shape_cast %54 : vector<1x64x256xf32> to vector<64x256xf32>
      %56 = vector.shape_cast %53 : vector<64x256xf32> to vector<1x64x256xf32>
      tpu.vector_store %arg12[%c0_34, %c0_35, %c0_36], %56 {strides = array<i32>} : memref<1x64x256xf32, #tpu.memory_space<vmem>>, vector<1x64x256xf32>,
    } else {
    }
    return
  }
  func.func @transform_0(%arg0: i32, %arg1: i32, %arg2: i32) -> (i32, i32, i32) {
    %c0_i32 = arith.constant 0 : i32
    %c0_i32_0 = arith.constant 0 : i32
    return %arg0, %arg1, %c0_i32 : i32, i32, i32
  }
  func.func @transform_1(%arg0: i32, %arg1: i32, %arg2: i32) -> (i32, i32, i32) {
    %c0_i32 = arith.constant 0 : i32
    %c0_i32_0 = arith.constant 0 : i32
    %c0_i32_1 = arith.constant 0 : i32
    return %arg0, %c0_i32, %c0_i32_0 : i32, i32, i32
  }
  func.func @transform_2(%arg0: i32, %arg1: i32, %arg2: i32) -> (i32, i32, i32) {
    %c0_i32 = arith.constant 0 : i32
    %c0_i32_0 = arith.constant 0 : i32
    %c0_i32_1 = arith.constant 0 : i32
    return %arg0, %c0_i32, %c0_i32_0 : i32, i32, i32
  }
  func.func @transform_3(%arg0: i32, %arg1: i32, %arg2: i32) -> (i32, i32) {
    %c0_i32 = arith.constant 0 : i32
    %c0_i32_0 = arith.constant 0 : i32
    %c0_i32_1 = arith.constant 0 : i32
    return %c0_i32, %c0_i32_0 : i32, i32
  }
  func.func @transform_4(%arg0: i32, %arg1: i32, %arg2: i32) -> (i32, i32) {
    %c0_i32 = arith.constant 0 : i32
    %c0_i32_0 = arith.constant 0 : i32
    %c0_i32_1 = arith.constant 0 : i32
    return %c0_i32, %c0_i32_0 : i32, i32
  }
  func.func @transform_5(%arg0: i32, %arg1: i32, %arg2: i32) -> (i32, i32, i32) {
    %c0_i32 = arith.constant 0 : i32
    %c0_i32_0 = arith.constant 0 : i32
    %c0_i32_1 = arith.constant 0 : i32
    return %arg0, %c0_i32, %c0_i32_0 : i32, i32, i32
  }
  func.func @transform_6(%arg0: i32, %arg1: i32, %arg2: i32) -> (i32, i32, i32) {
    %c0_i32 = arith.constant 0 : i32
    %c0_i32_0 = arith.constant 0 : i32
    %c0_i32_1 = arith.constant 0 : i32
    return %arg0, %c0_i32, %c0_i32_0 : i32, i32, i32
  }
  func.func @transform_7(%arg0: i32, %arg1: i32, %arg2: i32) -> (i32, i32) {
    %c0_i32 = arith.constant 0 : i32
    %c0_i32_0 = arith.constant 0 : i32
    %c0_i32_1 = arith.constant 0 : i32
    return %c0_i32, %c0_i32_0 : i32, i32
  }
  func.func @transform_8(%arg0: i32, %arg1: i32, %arg2: i32) -> (i32, i32) {
    %c0_i32 = arith.constant 0 : i32
    %c0_i32_0 = arith.constant 0 : i32
    %c0_i32_1 = arith.constant 0 : i32
    return %c0_i32, %c0_i32_0 : i32, i32
  }
  func.func @transform_9(%arg0: i32, %arg1: i32, %arg2: i32) -> (i32, i32, i32) {
    %c0_i32 = arith.constant 0 : i32
    %c0_i32_0 = arith.constant 0 : i32
    return %arg0, %c0_i32, %arg1 : i32, i32, i32
  }
}

</mosaic_0001>

<llo_original>
// kernel: vae_attention_block.3
$region0: #{vae_attention_block.3}
  #allocation0 [shape = 'u32[]', space=smem, size = 0x4, offset = 0x4, fixed_abs, tag = 'smem constant byte address 0x4 - core index']
  #allocation1 [shape = 'u32[144,128]{1,0:T(1,128)}', space=vmem, size = 0x12000, scoped, tag = 'internal scratch']
  #allocation2 [shape = 'f32[1,64]{1,0:T(1,128)}', space=vmem, size = 0x200, scoped, tag = 'scratch operand']
  #allocation3 [shape = 'f32[1,64]{1,0:T(1,128)}', space=vmem, size = 0x200, scoped, tag = 'scratch operand']
  %s0 = inlined_call_operand.hbm [shape: f32[2,1024,64], index: 0, kind: input, shape index: {}]
  %s1 = inlined_call_operand.vmem [shape: f32[1,64], index: 1, kind: input, shape index: {}]
  %s2 = inlined_call_operand.vmem [shape: f32[1,64], index: 2, kind: input, shape index: {}]
  %s3 = inlined_call_operand.vmem [shape: f32[64,32], index: 3, kind: input, shape index: {}]
  %s4 = inlined_call_operand.vmem [shape: f32[32,64], index: 4, kind: input, shape index: {}]
  %s5 = inlined_call_operand.vmem [shape: f32[2,1,64], index: 5, kind: output, shape index: {0}]
  %s6 = inlined_call_operand.vmem [shape: f32[2,1,64], index: 6, kind: output, shape index: {1}]
  %7 = xla_tuple %s5, %s6
  %s8 = sld [smem:[#allocation0]]
  $region73: #{vae_attention_block.3} parent=0
    _
  %s10 = ssub.s32 1, %s8
  %s11 = scalar_select 0, %s10, %s8
  $region1: #{vae_attention_block.3} parent=0
    #allocation4 [shape = 'u8[524288]{0}', space=vmem, size = 0x80000, scoped, tag = 'input window, operand 0']
    #allocation5 [shape = 's32[2]{0}', space=sflag, size = 0x8, scoped, tag = 'scoped memory for vae_attention_block.3']
    %12 = vsyncpa [#allocation5], 0
    %s13 = scalar_lea.sflag [#allocation5], 1
    %14 = vsyncpa %s13, 0
    loop: start=0, step=1, limit=6
    $region2: #{vae_attention_block.3} parent=1 // loop_pre_header
      _
    $region3: #{vae_attention_block.3} parent=1 // loop_header
      %s16 = sphi 0, %s20
      %p17 = scmp.ge.s32.totalorder %s16, 6
      %s23 = sphi 0, %s35
      %s24 = sphi 0, %s31
      %s25 = sphi 0, %s23
      %s26 = sphi 0, %s24
      %s27 = sphi 0, %s25
      %s28 = sphi 0, %s26
      %s40 = sphi 0, %s42
      %s43 = sphi 0, %s40
      %s44 = sphi 0, %s43
      %s60 = sphi 0, %s44
      %s64 = sphi 0, %s64
      %s66 = sphi 0, %s64
      %s67 = sphi 0, %s66
      %s81 = sphi 0, %s67
      %s85 = sphi 0, %s85
      %s87 = sphi 0, %s85
      %s88 = sphi 0, %s87
      %s102 = sphi 0, %s88
      %s106 = sphi 0, %s106
      %s108 = sphi 0, %s106
      %s109 = sphi 0, %s108
      %s123 = sphi 0, %s109
      %s127 = sphi 0, %s127
      %s129 = sphi 0, %s127
      %s130 = sphi 0, %s129
      %s144 = sphi 0, %s130
      %s150 = sphi 0, %s152
      %s153 = sphi 0, %s150
      %s154 = sphi 0, %s153
      %s170 = sphi 0, %s154
      %s176 = sphi 0, %s178
      %s179 = sphi 0, %s176
      %s180 = sphi 0, %s179
      %s196 = sphi 0, %s180
    $region4: #{vae_attention_block.3} parent=1 // loop_header_branch
      %19 = sbr.rel (%p17) target = $region8
    $region5: #{vae_attention_block.3} parent=1 // loop_body
      %s21 = ssub.s32 %s16, 1
      %s22 = ssub.s32 %s16, 2
      %s29 = sadd.s32 1, %s24
      %p30 = scmp.ge.s32.totalorder %s29, 2
      %s31 = scalar_select %p30, 0, %s29
      %s32 = sadd.s32 1, %s23
      %s33 = scalar_select %p30, %s32, %s23
      %p34 = scmp.ge.s32.totalorder %s33, 2
      %s35 = scalar_select %p34, 0, %s33
      %s36 = ssub.s32 %s23, %s35
      %s37 = ssub.s32 %s24, %s31
      %s38 = sor.u32 %s36, %s37
      %p39 = scmp.eq.s32.totalorder %s38, 0
      %s41 = sadd.s32 %s40, 1
      %s42 = scalar_select %p39, %s40, %s41
      %p45 = pneg %p39
      %p46 = scmp.eq.s32.totalorder %s16, 3
      %p47 = por %p45, %p46
      %p48 = scmp.ne.s32.totalorder %s40, %s43
      %p49 = scmp.eq.s32.totalorder %s16, 0
      %p50 = por %p48, %p49
      %p51 = scmp.ne.s32.totalorder %s40, %s43
      %p52 = scmp.eq.s32.totalorder %s21, 3
      %p53 = por %p51, %p52
      %p54 = scmp.ne.s32.totalorder %s43, %s44
      %p55 = scmp.eq.s32.totalorder %s21, 0
      %p56 = por %p54, %p55
      %p57 = scmp.ne.s32.totalorder %s43, %s44
      %p58 = scmp.eq.s32.totalorder %s22, 3
      %p59 = por %p57, %p58
      %p61 = scmp.ne.s32.totalorder %s44, %s60
      %p62 = scmp.eq.s32.totalorder %s22, 0
      %p63 = por %p61, %p62
      %s65 = sadd.s32 %s64, 1
      %p68 = scmp.eq.s32.totalorder %s16, 3
      %p69 = scmp.ne.s32.totalorder %s64, %s66
      %p70 = scmp.eq.s32.totalorder %s16, 0
      %p71 = por %p69, %p70
      %p72 = scmp.ne.s32.totalorder %s64, %s66
      %p73 = scmp.eq.s32.totalorder %s21, 3
      %p74 = por %p72, %p73
      %p75 = scmp.ne.s32.totalorder %s66, %s67
      %p76 = scmp.eq.s32.totalorder %s21, 0
      %p77 = por %p75, %p76
      %p78 = scmp.ne.s32.totalorder %s66, %s67
      %p79 = scmp.eq.s32.totalorder %s22, 3
      %p80 = por %p78, %p79
      %p82 = scmp.ne.s32.totalorder %s67, %s81
      %p83 = scmp.eq.s32.totalorder %s22, 0
      %p84 = por %p82, %p83
      %s86 = sadd.s32 %s85, 1
      %p89 = scmp.eq.s32.totalorder %s16, 3
      %p90 = scmp.ne.s32.totalorder %s85, %s87
      %p91 = scmp.eq.s32.totalorder %s16, 0
      %p92 = por %p90, %p91
      %p93 = scmp.ne.s32.totalorder %s85, %s87
      %p94 = scmp.eq.s32.totalorder %s21, 3
      %p95 = por %p93, %p94
      %p96 = scmp.ne.s32.totalorder %s87, %s88
      %p97 = scmp.eq.s32.totalorder %s21, 0
      %p98 = por %p96, %p97
      %p99 = scmp.ne.s32.totalorder %s87, %s88
      %p100 = scmp.eq.s32.totalorder %s22, 3
      %p101 = por %p99, %p100
      %p103 = scmp.ne.s32.totalorder %s88, %s102
      %p104 = scmp.eq.s32.totalorder %s22, 0
      %p105 = por %p103, %p104
      %s107 = sadd.s32 %s106, 1
      %p110 = scmp.eq.s32.totalorder %s16, 3
      %p111 = scmp.ne.s32.totalorder %s106, %s108
      %p112 = scmp.eq.s32.totalorder %s16, 0
      %p113 = por %p111, %p112
      %p114 = scmp.ne.s32.totalorder %s106, %s108
      %p115 = scmp.eq.s32.totalorder %s21, 3
      %p116 = por %p114, %p115
      %p117 = scmp.ne.s32.totalorder %s108, %s109
      %p118 = scmp.eq.s32.totalorder %s21, 0
      %p119 = por %p117, %p118
      %p120 = scmp.ne.s32.totalorder %s108, %s109
      %p121 = scmp.eq.s32.totalorder %s22, 3
      %p122 = por %p120, %p121
      %p124 = scmp.ne.s32.totalorder %s109, %s123
      %p125 = scmp.eq.s32.totalorder %s22, 0
      %p126 = por %p124, %p125
      %s128 = sadd.s32 %s127, 1
      %p131 = scmp.eq.s32.totalorder %s16, 3
      %p132 = scmp.ne.s32.totalorder %s127, %s129
      %p133 = scmp.eq.s32.totalorder %s16, 0
      %p134 = por %p132, %p133
      %p135 = scmp.ne.s32.totalorder %s127, %s129
      %p136 = scmp.eq.s32.totalorder %s21, 3
      %p137 = por %p135, %p136
      %p138 = scmp.ne.s32.totalorder %s129, %s130
      %p139 = scmp.eq.s32.totalorder %s21, 0
      %p140 = por %p138, %p139
      %p141 = scmp.ne.s32.totalorder %s129, %s130
      %p142 = scmp.eq.s32.totalorder %s22, 3
      %p143 = por %p141, %p142
      %p145 = scmp.ne.s32.totalorder %s130, %s144
      %p146 = scmp.eq.s32.totalorder %s22, 0
      %p147 = por %p145, %p146
      %s148 = ssub.s32 %s23, %s35
      %p149 = scmp.eq.s32.totalorder %s148, 0
      %s151 = sadd.s32 %s150, 1
      %s152 = scalar_select %p149, %s150, %s151
      %p155 = pneg %p149
      %p156 = scmp.eq.s32.totalorder %s16, 3
      %p157 = por %p155, %p156
      %p158 = scmp.ne.s32.totalorder %s150, %s153
      %p159 = scmp.eq.s32.totalorder %s16, 0
      %p160 = por %p158, %p159
      %p161 = scmp.ne.s32.totalorder %s150, %s153
      %p162 = scmp.eq.s32.totalorder %s21, 3
      %p163 = por %p161, %p162
      %p164 = scmp.ne.s32.totalorder %s153, %s154
      %p165 = scmp.eq.s32.totalorder %s21, 0
      %p166 = por %p164, %p165
      %p167 = scmp.ne.s32.totalorder %s153, %s154
      %p168 = scmp.eq.s32.totalorder %s22, 3
      %p169 = por %p167, %p168
      %p171 = scmp.ne.s32.totalorder %s154, %s170
      %p172 = scmp.eq.s32.totalorder %s22, 0
      %p173 = por %p171, %p172
      %s174 = ssub.s32 %s23, %s35
      %p175 = scmp.eq.s32.totalorder %s174, 0
      %s177 = sadd.s32 %s176, 1
      %s178 = scalar_select %p175, %s176, %s177
      %p181 = pneg %p175
      %p182 = scmp.eq.s32.totalorder %s16, 3
      %p183 = por %p181, %p182
      %p184 = scmp.ne.s32.totalorder %s176, %s179
      %p185 = scmp.eq.s32.totalorder %s16, 0
      %p186 = por %p184, %p185
      %p187 = scmp.ne.s32.totalorder %s176, %s179
      %p188 = scmp.eq.s32.totalorder %s21, 3
      %p189 = por %p187, %p188
      %p190 = scmp.ne.s32.totalorder %s179, %s180
      %p191 = scmp.eq.s32.totalorder %s21, 0
      %p192 = por %p190, %p191
      %p193 = scmp.ne.s32.totalorder %s179, %s180
      %p194 = scmp.eq.s32.totalorder %s22, 3
      %p195 = por %p193, %p194
      %p197 = scmp.ne.s32.totalorder %s180, %s196
      %p198 = scmp.eq.s32.totalorder %s22, 0
      %p199 = por %p197, %p198
      %p200 = scmp.le.s32.totalorder 1, %s16
      %p201 = scmp.lt.s32.totalorder %s16, 5
      %p202 = pnand %p200, %p201
      %p203 = pneg %p202
      // Predicated region
      $region9: #{vae_attention_block.3} parent=5 // pred_check
        _
      $region10: #{vae_attention_block.3} parent=5 // pred_check_branch
        %205 = sbr.rel (%p202) target = $region12
      $region11: #{vae_attention_block.3} parent=5 // pred_region
        %s206 = ssub.s32 %s16, 1
        // Predicated region
        $region13: #{vae_attention_block.3} parent=11 // pred_check
          %p207 = pneg %p77
        $region14: #{vae_attention_block.3} parent=11 // pred_check_branch
          %209 = sbr.rel (%p207) target = $region16
        $region15: #{vae_attention_block.3} parent=11 // pred_region
          _
        $region16: #{vae_attention_block.3} parent=11 // pred_fallthru
          _
        // Predicated region
        $region17: #{vae_attention_block.3} parent=11 // pred_check
          %p210 = pneg %p98
        $region18: #{vae_attention_block.3} parent=11 // pred_check_branch
          %212 = sbr.rel (%p210) target = $region20
        $region19: #{vae_attention_block.3} parent=11 // pred_region
          _
        $region20: #{vae_attention_block.3} parent=11 // pred_fallthru
          _
        // Predicated region
        $region21: #{vae_attention_block.3} parent=11 // pred_check
          %p213 = pneg %p119
        $region22: #{vae_attention_block.3} parent=11 // pred_check_branch
          %215 = sbr.rel (%p213) target = $region24
        $region23: #{vae_attention_block.3} parent=11 // pred_region
          _
        $region24: #{vae_attention_block.3} parent=11 // pred_fallthru
          _
        // Predicated region
        $region25: #{vae_attention_block.3} parent=11 // pred_check
          %p216 = pneg %p140
        $region26: #{vae_attention_block.3} parent=11 // pred_check_branch
          %218 = sbr.rel (%p216) target = $region28
        $region27: #{vae_attention_block.3} parent=11 // pred_region
          _
        $region28: #{vae_attention_block.3} parent=11 // pred_fallthru
          _
      $region12: #{vae_attention_block.3} parent=5 // pred_fallthru
        _
      %p219 = scmp.lt.s32.totalorder %s16, 4
      // Predicated region
      $region29: #{vae_attention_block.3} parent=5 // pred_check
        %p220 = pneg %p219
      $region30: #{vae_attention_block.3} parent=5 // pred_check_branch
        %222 = sbr.rel (%p220) target = $region32
      $region31: #{vae_attention_block.3} parent=5 // pred_region
        // Predicated region
        $region33: #{vae_attention_block.3} parent=31 // pred_check
          %p223 = pneg %p50
        $region34: #{vae_attention_block.3} parent=31 // pred_check_branch
          %225 = sbr.rel (%p223) target = $region36
        $region35: #{vae_attention_block.3} parent=31 // pred_region
          %s226 = sand.u32 %s40, 1
          %s227 = scalar_lea.sflag [#allocation5], %s226
          %s228 = sand.u32 %s40, 1
          %s229 = smul.addr %s228, 512
          %s230 = scalar_lea.vmem [#allocation4], %s229
          %s231 = smul.u32 64, %s24
          %s233 = ssub.s32 8192, 8192
          %234 = vsyncadd %s227, %s233
          %s235 = smul.addr %s23, 128
          %s236 = sadd.s32 %s231, %s235
          %s237 = smul.addr %s236, 128
          %s238 = scalar_lea.hbm %s0, %s237
          %s239 = sshll.u32 %s230, 4
          %s240 = int_to_ptr.vmem [resolvable:$true] %s239
          %245 = dma.hbm_to_vmem [thread:$0]  %s238, 8192, %s240, %s227, 128, 128, 8
        $region36: #{vae_attention_block.3} parent=31 // pred_fallthru
          _
      $region32: #{vae_attention_block.3} parent=5 // pred_fallthru
        _
      %p246 = scmp.le.s32.totalorder 1, %s16
      %p247 = scmp.lt.s32.totalorder %s16, 5
      %p248 = pnand %p246, %p247
      %p249 = pneg %p248
      // Predicated region
      $region37: #{vae_attention_block.3} parent=5 // pred_check
        _
      $region38: #{vae_attention_block.3} parent=5 // pred_check_branch
        %251 = sbr.rel (%p248) target = $region40
      $region39: #{vae_attention_block.3} parent=5 // pred_region
        %s252 = ssub.s32 %s16, 1
        %s253 = sand.u32 %s43, 1
        %s254 = scalar_lea.sflag [#allocation5], %s253
        %s255 = sand.u32 %s43, 1
        %s256 = smul.addr %s255, 512
        %s257 = scalar_lea.vmem [#allocation4], %s256
        // Predicated region
        $region41: #{vae_attention_block.3} parent=39 // pred_check
          %p258 = pneg %p56
        $region42: #{vae_attention_block.3} parent=39 // pred_check_branch
          %260 = sbr.rel (%p258) target = $region44
        $region43: #{vae_attention_block.3} parent=39 // pred_region
          %261 = dma.done %s254, 8192
        $region44: #{vae_attention_block.3} parent=39 // pred_fallthru
          _
        %s262 = sand.u32 %s43, 1
        %s263 = scalar_lea.sflag [#allocation5], %s262
        %s264 = sand.u32 %s43, 1
        %s265 = smul.addr %s264, 512
        %s266 = scalar_lea.vmem [#allocation4], %s265
        %p267 = pneg %p56
        %p268 = pneg %p53
        %p269 = pneg %p77
        %p270 = pneg %p74
        %p271 = pneg %p98
        %p272 = pneg %p95
        %p273 = pneg %p119
        %p274 = pneg %p116
        %p275 = pneg %p140
        %p276 = pneg %p137
        %p277 = pneg %p166
        %p278 = pneg %p163
        %p279 = scmp.lt.s32.totalorder %s25, 1
        %s280 = scalar_select %p279, %s25, 1
        %s281 = scalar_lea.vmem %s5, %s280
        %p282 = pneg %p192
        %p283 = pneg %p189
        %p284 = scmp.lt.s32.totalorder %s25, 1
        %s285 = scalar_select %p284, %s25, 1
        %s286 = scalar_lea.vmem %s6, %s285
        %s287 = smul.u32 64, %s26
        %p288 = scmp.lt.s32.totalorder %s25, 1
        %s289 = scalar_select %p288, %s25, 1
        %s290 = scalar_lea.vmem %s5, %s289
        %p291 = scmp.lt.s32.totalorder %s25, 1
        %s292 = scalar_select %p291, %s25, 1
        %s293 = scalar_lea.vmem %s6, %s292
        %p294 = scmp.eq.s32.totalorder %s26, 0
        // Predicated region
        $region45: #{vae_attention_block.3} parent=39 // pred_check
          %p295 = pneg %p294
        $region46: #{vae_attention_block.3} parent=39 // pred_check_branch
          %297 = sbr.rel (%p295) target = $region48
        $region47: #{vae_attention_block.3} parent=39 // pred_region
          %vm298 = vcmask 516096
          %299 = vst.msk [vmem:[#allocation2] sm:$0x1] %vm298, 0.0
          %300 = vst.msk [vmem:[#allocation3] sm:$0x1] %vm298, 0.0
        $region48: #{vae_attention_block.3} parent=39 // pred_fallthru
          _
        %v301 = vld [vmem:[%s257] sm:$0xff]
        %v302 = vld [vmem:[%s257 + $0x8] sm:$0xff]
        %v303 = vld [vmem:[%s257 + $0x10] sm:$0xff]
        %v304 = vld [vmem:[%s257 + $0x18] sm:$0xff]
        %v305 = vld [vmem:[%s257 + $0x20] sm:$0xff]
        %v306 = vld [vmem:[%s257 + $0x28] sm:$0xff]
        %v307 = vld [vmem:[%s257 + $0x30] sm:$0xff]
        %v308 = vld [vmem:[%s257 + $0x38] sm:$0xff]
        %v309 = vld [vmem:[%s257 + $0x40] sm:$0xff]
        %v310 = vld [vmem:[%s257 + $0x48] sm:$0xff]
        %v311 = vld [vmem:[%s257 + $0x50] sm:$0xff]
        %v312 = vld [vmem:[%s257 + $0x58] sm:$0xff]
        %v313 = vld [vmem:[%s257 + $0x60] sm:$0xff]
        %v314 = vld [vmem:[%s257 + $0x68] sm:$0xff]
        %v315 = vld [vmem:[%s257 + $0x70] sm:$0xff]
        %v316 = vld [vmem:[%s257 + $0x78] sm:$0xff]
        %v317 = vld [vmem:[%s257 + $0x80] sm:$0xff]
        %v318 = vld [vmem:[%s257 + $0x88] sm:$0xff]
        %v319 = vld [vmem:[%s257 + $0x90] sm:$0xff]
        %v320 = vld [vmem:[%s257 + $0x98] sm:$0xff]
        %v321 = vld [vmem:[%s257 + $0xa0] sm:$0xff]
        %v322 = vld [vmem:[%s257 + $0xa8] sm:$0xff]
        %v323 = vld [vmem:[%s257 + $0xb0] sm:$0xff]
        %v324 = vld [vmem:[%s257 + $0xb8] sm:$0xff]
        %v325 = vld [vmem:[%s257 + $0xc0] sm:$0xff]
        %v326 = vld [vmem:[%s257 + $0xc8] sm:$0xff]
        %v327 = vld [vmem:[%s257 + $0xd0] sm:$0xff]
        %v328 = vld [vmem:[%s257 + $0xd8] sm:$0xff]
        %v329 = vld [vmem:[%s257 + $0xe0] sm:$0xff]
        %v330 = vld [vmem:[%s257 + $0xe8] sm:$0xff]
        %v331 = vld [vmem:[%s257 + $0xf0] sm:$0xff]
        %v332 = vld [vmem:[%s257 + $0xf8] sm:$0xff]
        %v333 = vld [vmem:[%s257 + $0x100] sm:$0xff]
        %v334 = vld [vmem:[%s257 + $0x108] sm:$0xff]
        %v335 = vld [vmem:[%s257 + $0x110] sm:$0xff]
        %v336 = vld [vmem:[%s257 + $0x118] sm:$0xff]
        %v337 = vld [vmem:[%s257 + $0x120] sm:$0xff]
        %v338 = vld [vmem:[%s257 + $0x128] sm:$0xff]
        %v339 = vld [vmem:[%s257 + $0x130] sm:$0xff]
        %v340 = vld [vmem:[%s257 + $0x138] sm:$0xff]
        %v341 = vld [vmem:[%s257 + $0x140] sm:$0xff]
        %v342 = vld [vmem:[%s257 + $0x148] sm:$0xff]
        %v343 = vld [vmem:[%s257 + $0x150] sm:$0xff]
        %v344 = vld [vmem:[%s257 + $0x158] sm:$0xff]
        %v345 = vld [vmem:[%s257 + $0x160] sm:$0xff]
        %v346 = vld [vmem:[%s257 + $0x168] sm:$0xff]
        %v347 = vld [vmem:[%s257 + $0x170] sm:$0xff]
        %v348 = vld [vmem:[%s257 + $0x178] sm:$0xff]
        %v349 = vld [vmem:[%s257 + $0x180] sm:$0xff]
        %v350 = vld [vmem:[%s257 + $0x188] sm:$0xff]
        %v351 = vld [vmem:[%s257 + $0x190] sm:$0xff]
        %v352 = vld [vmem:[%s257 + $0x198] sm:$0xff]
        %v353 = vld [vmem:[%s257 + $0x1a0] sm:$0xff]
        %v354 = vld [vmem:[%s257 + $0x1a8] sm:$0xff]
        %v355 = vld [vmem:[%s257 + $0x1b0] sm:$0xff]
        %v356 = vld [vmem:[%s257 + $0x1b8] sm:$0xff]
        %v357 = vld [vmem:[%s257 + $0x1c0] sm:$0xff]
        %v358 = vld [vmem:[%s257 + $0x1c8] sm:$0xff]
        %v359 = vld [vmem:[%s257 + $0x1d0] sm:$0xff]
        %v360 = vld [vmem:[%s257 + $0x1d8] sm:$0xff]
        %v361 = vld [vmem:[%s257 + $0x1e0] sm:$0xff]
        %v362 = vld [vmem:[%s257 + $0x1e8] sm:$0xff]
        %v363 = vld [vmem:[%s257 + $0x1f0] sm:$0xff]
        %v364 = vld [vmem:[%s257 + $0x1f8] sm:$0xff]
        %v365 = vld [vmem:[#allocation2] sm:$0x1]
        %vm366 = vcmask 523264
        %v367 = vsel %vm366, %v301, 0.0
        %v368 = vsel %vm366, %v302, 0.0
        %v369 = vadd.f32 %v367, %v368
        %v370 = vsel %vm366, %v303, 0.0
        %v371 = vadd.f32 %v369, %v370
        %v372 = vsel %vm366, %v304, 0.0
        %v373 = vadd.f32 %v371, %v372
        %v374 = vsel %vm366, %v305, 0.0
        %v375 = vadd.f32 %v373, %v374
        %v376 = vsel %vm366, %v306, 0.0
        %v377 = vadd.f32 %v375, %v376
        %v378 = vsel %vm366, %v307, 0.0
        %v379 = vadd.f32 %v377, %v378
        %v380 = vsel %vm366, %v308, 0.0
        %v381 = vadd.f32 %v379, %v380
        %v382 = vsel %vm366, %v309, 0.0
        %v383 = vadd.f32 %v381, %v382
        %v384 = vsel %vm366, %v310, 0.0
        %v385 = vadd.f32 %v383, %v384
        %v386 = vsel %vm366, %v311, 0.0
        %v387 = vadd.f32 %v385, %v386
        %v388 = vsel %vm366, %v312, 0.0
        %v389 = vadd.f32 %v387, %v388
        %v390 = vsel %vm366, %v313, 0.0
        %v391 = vadd.f32 %v389, %v390
        %v392 = vsel %vm366, %v314, 0.0
        %v393 = vadd.f32 %v391, %v392
        %v394 = vsel %vm366, %v315, 0.0
        %v395 = vadd.f32 %v393, %v394
        %v396 = vsel %vm366, %v316, 0.0
        %v397 = vadd.f32 %v395, %v396
        %v398 = vsel %vm366, %v317, 0.0
        %v399 = vadd.f32 %v397, %v398
        %v400 = vsel %vm366, %v318, 0.0
        %v401 = vadd.f32 %v399, %v400
        %v402 = vsel %vm366, %v319, 0.0
        %v403 = vadd.f32 %v401, %v402
        %v404 = vsel %vm366, %v320, 0.0
        %v405 = vadd.f32 %v403, %v404
        %v406 = vsel %vm366, %v321, 0.0
        %v407 = vadd.f32 %v405, %v406
        %v408 = vsel %vm366, %v322, 0.0
        %v409 = vadd.f32 %v407, %v408
        %v410 = vsel %vm366, %v323, 0.0
        %v411 = vadd.f32 %v409, %v410
        %v412 = vsel %vm366, %v324, 0.0
        %v413 = vadd.f32 %v411, %v412
        %v414 = vsel %vm366, %v325, 0.0
        %v415 = vadd.f32 %v413, %v414
        %v416 = vsel %vm366, %v326, 0.0
        %v417 = vadd.f32 %v415, %v416
        %v418 = vsel %vm366, %v327, 0.0
        %v419 = vadd.f32 %v417, %v418
        %v420 = vsel %vm366, %v328, 0.0
        %v421 = vadd.f32 %v419, %v420
        %v422 = vsel %vm366, %v329, 0.0
        %v423 = vadd.f32 %v421, %v422
        %v424 = vsel %vm366, %v330, 0.0
        %v425 = vadd.f32 %v423, %v424
        %v426 = vsel %vm366, %v331, 0.0
        %v427 = vadd.f32 %v425, %v426
        %v428 = vsel %vm366, %v332, 0.0
        %v429 = vadd.f32 %v427, %v428
        %v430 = vsel %vm366, %v333, 0.0
        %v431 = vadd.f32 %v429, %v430
        %v432 = vsel %vm366, %v334, 0.0
        %v433 = vadd.f32 %v431, %v432
        %v434 = vsel %vm366, %v335, 0.0
        %v435 = vadd.f32 %v433, %v434
        %v436 = vsel %vm366, %v336, 0.0
        %v437 = vadd.f32 %v435, %v436
        %v438 = vsel %vm366, %v337, 0.0
        %v439 = vadd.f32 %v437, %v438
        %v440 = vsel %vm366, %v338, 0.0
        %v441 = vadd.f32 %v439, %v440
        %v442 = vsel %vm366, %v339, 0.0
        %v443 = vadd.f32 %v441, %v442
        %v444 = vsel %vm366, %v340, 0.0
        %v445 = vadd.f32 %v443, %v444
        %v446 = vsel %vm366, %v341, 0.0
        %v447 = vadd.f32 %v445, %v446
        %v448 = vsel %vm366, %v342, 0.0
        %v449 = vadd.f32 %v447, %v448
        %v450 = vsel %vm366, %v343, 0.0
        %v451 = vadd.f32 %v449, %v450
        %v452 = vsel %vm366, %v344, 0.0
        %v453 = vadd.f32 %v451, %v452
        %v454 = vsel %vm366, %v345, 0.0
        %v455 = vadd.f32 %v453, %v454
        %v456 = vsel %vm366, %v346, 0.0
        %v457 = vadd.f32 %v455, %v456
        %v458 = vsel %vm366, %v347, 0.0
        %v459 = vadd.f32 %v457, %v458
        %v460 = vsel %vm366, %v348, 0.0
        %v461 = vadd.f32 %v459, %v460
        %v462 = vsel %vm366, %v349, 0.0
        %v463 = vadd.f32 %v461, %v462
        %v464 = vsel %vm366, %v350, 0.0
        %v465 = vadd.f32 %v463, %v464
        %v466 = vsel %vm366, %v351, 0.0
        %v467 = vadd.f32 %v465, %v466
        %v468 = vsel %vm366, %v352, 0.0
        %v469 = vadd.f32 %v467, %v468
        %v470 = vsel %vm366, %v353, 0.0
        %v471 = vadd.f32 %v469, %v470
        %v472 = vsel %vm366, %v354, 0.0
        %v473 = vadd.f32 %v471, %v472
        %v474 = vsel %vm366, %v355, 0.0
        %v475 = vadd.f32 %v473, %v474
        %v476 = vsel %vm366, %v356, 0.0
        %v477 = vadd.f32 %v475, %v476
        %v478 = vsel %vm366, %v357, 0.0
        %v479 = vadd.f32 %v477, %v478
        %v480 = vsel %vm366, %v358, 0.0
        %v481 = vadd.f32 %v479, %v480
        %v482 = vsel %vm366, %v359, 0.0
        %v483 = vadd.f32 %v481, %v482
        %v484 = vsel %vm366, %v360, 0.0
        %v485 = vadd.f32 %v483, %v484
        %v486 = vsel %vm366, %v361, 0.0
        %v487 = vadd.f32 %v485, %v486
        %v488 = vsel %vm366, %v362, 0.0
        %v489 = vadd.f32 %v487, %v488
        %v490 = vsel %vm366, %v363, 0.0
        %v491 = vadd.f32 %v489, %v490
        %v492 = vsel %vm366, %v364, 0.0
        %v493 = vadd.f32 %v491, %v492
        %v494 = vrot.slane %v493, 4
        %v495 = vadd.f32 %v493, %v494
        %v496 = vrot.slane %v495, 2
        %v497 = vadd.f32 %v495, %v496
        %v498 = vrot.slane %v497, 1
        %v499 = vadd.f32 %v497, %v498
        %v500 = vadd.f32 %v365, %v499
        %vm501 = vcmask 516096
        %502 = vst.msk [vmem:[#allocation2] sm:$0x1] %vm501, %v500
        %v503 = vld [vmem:[#allocation3] sm:$0x1]
        %v504 = vmul.f32 %v301, %v301
        %v505 = vmul.f32 %v302, %v302
        %v506 = vmul.f32 %v303, %v303
        %v507 = vmul.f32 %v304, %v304
        %v508 = vmul.f32 %v305, %v305
        %v509 = vmul.f32 %v306, %v306
        %v510 = vmul.f32 %v307, %v307
        %v511 = vmul.f32 %v308, %v308
        %v512 = vmul.f32 %v309, %v309
        %v513 = vmul.f32 %v310, %v310
        %v514 = vmul.f32 %v311, %v311
        %v515 = vmul.f32 %v312, %v312
        %v516 = vmul.f32 %v313, %v313
        %v517 = vmul.f32 %v314, %v314
        %v518 = vmul.f32 %v315, %v315
        %v519 = vmul.f32 %v316, %v316
        %v520 = vmul.f32 %v317, %v317
        %v521 = vmul.f32 %v318, %v318
        %v522 = vmul.f32 %v319, %v319
        %v523 = vmul.f32 %v320, %v320
        %v524 = vmul.f32 %v321, %v321
        %v525 = vmul.f32 %v322, %v322
        %v526 = vmul.f32 %v323, %v323
        %v527 = vmul.f32 %v324, %v324
        %v528 = vmul.f32 %v325, %v325
        %v529 = vmul.f32 %v326, %v326
        %v530 = vmul.f32 %v327, %v327
        %v531 = vmul.f32 %v328, %v328
        %v532 = vmul.f32 %v329, %v329
        %v533 = vmul.f32 %v330, %v330
        %v534 = vmul.f32 %v331, %v331
        %v535 = vmul.f32 %v332, %v332
        %v536 = vmul.f32 %v333, %v333
        %v537 = vmul.f32 %v334, %v334
        %v538 = vmul.f32 %v335, %v335
        %v539 = vmul.f32 %v336, %v336
        %v540 = vmul.f32 %v337, %v337
        %v541 = vmul.f32 %v338, %v338
        %v542 = vmul.f32 %v339, %v339
        %v543 = vmul.f32 %v340, %v340
        %v544 = vmul.f32 %v341, %v341
        %v545 = vmul.f32 %v342, %v342
        %v546 = vmul.f32 %v343, %v343
        %v547 = vmul.f32 %v344, %v344
        %v548 = vmul.f32 %v345, %v345
        %v549 = vmul.f32 %v346, %v346
        %v550 = vmul.f32 %v347, %v347
        %v551 = vmul.f32 %v348, %v348
        %v552 = vmul.f32 %v349, %v349
        %v553 = vmul.f32 %v350, %v350
        %v554 = vmul.f32 %v351, %v351
        %v555 = vmul.f32 %v352, %v352
        %v556 = vmul.f32 %v353, %v353
        %v557 = vmul.f32 %v354, %v354
        %v558 = vmul.f32 %v355, %v355
        %v559 = vmul.f32 %v356, %v356
        %v560 = vmul.f32 %v357, %v357
        %v561 = vmul.f32 %v358, %v358
        %v562 = vmul.f32 %v359, %v359
        %v563 = vmul.f32 %v360, %v360
        %v564 = vmul.f32 %v361, %v361
        %v565 = vmul.f32 %v362, %v362
        %v566 = vmul.f32 %v363, %v363
        %v567 = vmul.f32 %v364, %v364
        %v568 = vsel %vm366, %v504, 0.0
        %v569 = vsel %vm366, %v505, 0.0
        %v570 = vadd.f32 %v568, %v569
        %v571 = vsel %vm366, %v506, 0.0
        %v572 = vadd.f32 %v570, %v571
        %v573 = vsel %vm366, %v507, 0.0
        %v574 = vadd.f32 %v572, %v573
        %v575 = vsel %vm366, %v508, 0.0
        %v576 = vadd.f32 %v574, %v575
        %v577 = vsel %vm366, %v509, 0.0
        %v578 = vadd.f32 %v576, %v577
        %v579 = vsel %vm366, %v510, 0.0
        %v580 = vadd.f32 %v578, %v579
        %v581 = vsel %vm366, %v511, 0.0
        %v582 = vadd.f32 %v580, %v581
        %v583 = vsel %vm366, %v512, 0.0
        %v584 = vadd.f32 %v582, %v583
        %v585 = vsel %vm366, %v513, 0.0
        %v586 = vadd.f32 %v584, %v585
        %v587 = vsel %vm366, %v514, 0.0
        %v588 = vadd.f32 %v586, %v587
        %v589 = vsel %vm366, %v515, 0.0
        %v590 = vadd.f32 %v588, %v589
        %v591 = vsel %vm366, %v516, 0.0
        %v592 = vadd.f32 %v590, %v591
        %v593 = vsel %vm366, %v517, 0.0
        %v594 = vadd.f32 %v592, %v593
        %v595 = vsel %vm366, %v518, 0.0
        %v596 = vadd.f32 %v594, %v595
        %v597 = vsel %vm366, %v519, 0.0
        %v598 = vadd.f32 %v596, %v597
        %v599 = vsel %vm366, %v520, 0.0
        %v600 = vadd.f32 %v598, %v599
        %v601 = vsel %vm366, %v521, 0.0
        %v602 = vadd.f32 %v600, %v601
        %v603 = vsel %vm366, %v522, 0.0
        %v604 = vadd.f32 %v602, %v603
        %v605 = vsel %vm366, %v523, 0.0
        %v606 = vadd.f32 %v604, %v605
        %v607 = vsel %vm366, %v524, 0.0
        %v608 = vadd.f32 %v606, %v607
        %v609 = vsel %vm366, %v525, 0.0
        %v610 = vadd.f32 %v608, %v609
        %v611 = vsel %vm366, %v526, 0.0
        %v612 = vadd.f32 %v610, %v611
        %v613 = vsel %vm366, %v527, 0.0
        %v614 = vadd.f32 %v612, %v613
        %v615 = vsel %vm366, %v528, 0.0
        %v616 = vadd.f32 %v614, %v615
        %v617 = vsel %vm366, %v529, 0.0
        %v618 = vadd.f32 %v616, %v617
        %v619 = vsel %vm366, %v530, 0.0
        %v620 = vadd.f32 %v618, %v619
        %v621 = vsel %vm366, %v531, 0.0
        %v622 = vadd.f32 %v620, %v621
        %v623 = vsel %vm366, %v532, 0.0
        %v624 = vadd.f32 %v622, %v623
        %v625 = vsel %vm366, %v533, 0.0
        %v626 = vadd.f32 %v624, %v625
        %v627 = vsel %vm366, %v534, 0.0
        %v628 = vadd.f32 %v626, %v627
        %v629 = vsel %vm366, %v535, 0.0
        %v630 = vadd.f32 %v628, %v629
        %v631 = vsel %vm366, %v536, 0.0
        %v632 = vadd.f32 %v630, %v631
        %v633 = vsel %vm366, %v537, 0.0
        %v634 = vadd.f32 %v632, %v633
        %v635 = vsel %vm366, %v538, 0.0
        %v636 = vadd.f32 %v634, %v635
        %v637 = vsel %vm366, %v539, 0.0
        %v638 = vadd.f32 %v636, %v637
        %v639 = vsel %vm366, %v540, 0.0
        %v640 = vadd.f32 %v638, %v639
        %v641 = vsel %vm366, %v541, 0.0
        %v642 = vadd.f32 %v640, %v641
        %v643 = vsel %vm366, %v542, 0.0
        %v644 = vadd.f32 %v642, %v643
        %v645 = vsel %vm366, %v543, 0.0
        %v646 = vadd.f32 %v644, %v645
        %v647 = vsel %vm366, %v544, 0.0
        %v648 = vadd.f32 %v646, %v647
        %v649 = vsel %vm366, %v545, 0.0
        %v650 = vadd.f32 %v648, %v649
        %v651 = vsel %vm366, %v546, 0.0
        %v652 = vadd.f32 %v650, %v651
        %v653 = vsel %vm366, %v547, 0.0
        %v654 = vadd.f32 %v652, %v653
        %v655 = vsel %vm366, %v548, 0.0
        %v656 = vadd.f32 %v654, %v655
        %v657 = vsel %vm366, %v549, 0.0
        %v658 = vadd.f32 %v656, %v657
        %v659 = vsel %vm366, %v550, 0.0
        %v660 = vadd.f32 %v658, %v659
        %v661 = vsel %vm366, %v551, 0.0
        %v662 = vadd.f32 %v660, %v661
        %v663 = vsel %vm366, %v552, 0.0
        %v664 = vadd.f32 %v662, %v663
        %v665 = vsel %vm366, %v553, 0.0
        %v666 = vadd.f32 %v664, %v665
        %v667 = vsel %vm366, %v554, 0.0
        %v668 = vadd.f32 %v666, %v667
        %v669 = vsel %vm366, %v555, 0.0
        %v670 = vadd.f32 %v668, %v669
        %v671 = vsel %vm366, %v556, 0.0
        %v672 = vadd.f32 %v670, %v671
        %v673 = vsel %vm366, %v557, 0.0
        %v674 = vadd.f32 %v672, %v673
        %v675 = vsel %vm366, %v558, 0.0
        %v676 = vadd.f32 %v674, %v675
        %v677 = vsel %vm366, %v559, 0.0
        %v678 = vadd.f32 %v676, %v677
        %v679 = vsel %vm366, %v560, 0.0
        %v680 = vadd.f32 %v678, %v679
        %v681 = vsel %vm366, %v561, 0.0
        %v682 = vadd.f32 %v680, %v681
        %v683 = vsel %vm366, %v562, 0.0
        %v684 = vadd.f32 %v682, %v683
        %v685 = vsel %vm366, %v563, 0.0
        %v686 = vadd.f32 %v684, %v685
        %v687 = vsel %vm366, %v564, 0.0
        %v688 = vadd.f32 %v686, %v687
        %v689 = vsel %vm366, %v565, 0.0
        %v690 = vadd.f32 %v688, %v689
        %v691 = vsel %vm366, %v566, 0.0
        %v692 = vadd.f32 %v690, %v691
        %v693 = vsel %vm366, %v567, 0.0
        %v694 = vadd.f32 %v692, %v693
        %v695 = vrot.slane %v694, 4
        %v696 = vadd.f32 %v694, %v695
        %v697 = vrot.slane %v696, 2
        %v698 = vadd.f32 %v696, %v697
        %v699 = vrot.slane %v698, 1
        %v700 = vadd.f32 %v698, %v699
        %v701 = vadd.f32 %v503, %v700
        %702 = vst.msk [vmem:[#allocation3] sm:$0x1] %vm501, %v701
        %p703 = scmp.eq.s32.totalorder %s26, 1
        // Predicated region
        $region49: #{vae_attention_block.3} parent=39 // pred_check
          %p704 = pneg %p703
        $region50: #{vae_attention_block.3} parent=39 // pred_check_branch
          %706 = sbr.rel (%p704) target = $region52
        $region51: #{vae_attention_block.3} parent=39 // pred_region
          %v707 = vld [vmem:[%s3] sm:$0xff]
          %v708 = vld [vmem:[%s3 + $0x8] sm:$0xff]
          %v709 = vld [vmem:[%s3 + $0x10] sm:$0xff]
          %v710 = vld [vmem:[%s3 + $0x18] sm:$0xff]
          %v711 = vld [vmem:[%s3 + $0x20] sm:$0xff]
          %v712 = vld [vmem:[%s3 + $0x28] sm:$0xff]
          %v713 = vld [vmem:[%s3 + $0x30] sm:$0xff]
          %v714 = vld [vmem:[%s3 + $0x38] sm:$0xff]
          %v715 = vld [vmem:[%s4] sm:$0xff]
          %v716 = vld [vmem:[%s4 + $0x8] sm:$0xff]
          %v717 = vld [vmem:[%s4 + $0x10] sm:$0xff]
          %v718 = vld [vmem:[%s4 + $0x18] sm:$0xff]
          %v719 = vld [vmem:[#allocation2] sm:$0x1]
          %v721 = vsel %vm366, %v719, 0
          %723 = vmatprep.subr.mxu0 0.0
          %724 = vmatpush1.msra.mxu0 %v707
          %725 = vmatprep.subr.mxu0 0.0
          %726 = vmatpush1.msra.mxu0 %v708
          %727 = vmatprep.subr.mxu0 0.0
          %728 = vmatpush1.msra.mxu0 %v709
          %729 = vmatprep.subr.mxu0 0.0
          %730 = vmatpush1.msra.mxu0 %v710
          %731 = vmatprep.subr.mxu0 0.0
          %732 = vmatpush1.msra.mxu0 %v711
          %733 = vmatprep.subr.mxu0 0.0
          %734 = vmatpush1.msra.mxu0 %v712
          %735 = vmatprep.subr.mxu0 0.0
          %736 = vmatpush1.msra.mxu0 %v713
          %737 = vmatprep.subr.mxu0 0.0
          %738 = vmatpush1.msra.mxu0 %v714
          %739 = vmatprep.subr.mxu0 0.0
          %740 = vmatpush1.msra.mxu0 0.0
          %741 = vmatprep.subr.mxu0 0.0
          %742 = vmatpush1.msra.mxu0 0.0
          %743 = vmatprep.subr.mxu0 0.0
          %744 = vmatpush1.msra.mxu0 0.0
          %745 = vmatprep.subr.mxu0 0.0
          %746 = vmatpush1.msra.mxu0 0.0
          %747 = vmatprep.subr.mxu0 0.0
          %748 = vmatpush1.msra.mxu0 0.0
          %749 = vmatprep.subr.mxu0 0.0
          %750 = vmatpush1.msra.mxu0 0.0
          %751 = vmatprep.subr.mxu0 0.0
          %752 = vmatpush1.msra.mxu0 0.0
          %753 = vmatprep.subr.mxu0 0.0
          %754 = vmatpush1.msra.mxu0 0.0
          %755 = vmatprep.subr.mxu0 0.0
          %756 = vmatpush1.msra.mxu0 0.0
          %757 = vmatprep.subr.mxu0 0.0
          %758 = vmatpush1.msra.mxu0 0.0
          %759 = vmatprep.subr.mxu0 0.0
          %760 = vmatpush1.msra.mxu0 0.0
          %761 = vmatprep.subr.mxu0 0.0
          %762 = vmatpush1.msra.mxu0 0.0
          %763 = vmatprep.subr.mxu0 0.0
          %764 = vmatpush1.msra.mxu0 0.0
          %765 = vmatprep.subr.mxu0 0.0
          %766 = vmatpush1.msra.mxu0 0.0
          %767 = vmatprep.subr.mxu0 0.0
          %768 = vmatpush1.msra.mxu0 0.0
          %769 = vmatprep.subr.mxu0 0.0
          %770 = vmatpush1.msra.mxu0 0.0
          %771 = vmatprep.subr.mxu0 0.0
          %772 = vmatpush1.msra.mxu0 0.0
          %773 = vmatprep.subr.mxu0 0.0
          %774 = vmatpush1.msra.mxu0 0.0
          %775 = vmatprep.subr.mxu0 0.0
          %776 = vmatpush1.msra.mxu0 0.0
          %777 = vmatprep.subr.mxu0 0.0
          %778 = vmatpush1.msra.mxu0 0.0
          %779 = vmatprep.subr.mxu0 0.0
          %780 = vmatpush1.msra.mxu0 0.0
          %781 = vmatprep.subr.mxu0 0.0
          %782 = vmatpush1.msra.mxu0 0.0
          %783 = vmatprep.subr.mxu0 0.0
          %784 = vmatpush1.msra.mxu0 0.0
          %785 = vmatprep.subr.mxu0 0.0
          %786 = vmatpush1.msra.mxu0 0.0
          %787 = vmatprep.mubr.f32.mxu0 0.0
          %788 = vmatmul.mubr.f32.gmra.mrb[0].mxu0 %v721
          %v789 = vpop.f32.mrb[0].mxu0
          %v790 = vadd.f32 0.0, %v789
          %v791 = vpop.f32.mrb[0].mxu0
          %792 = vdwg.mxu0
          %vm793 = vcmask 261120
          %v795 = vsel %vm793, %v790, 0
          %797 = vmatprep.subr.mxu0 0.0
          %798 = vmatpush1.msra.mxu0 %v715
          %799 = vmatprep.subr.mxu0 0.0
          %800 = vmatpush1.msra.mxu0 %v716
          %801 = vmatprep.subr.mxu0 0.0
          %802 = vmatpush1.msra.mxu0 %v717
          %803 = vmatprep.subr.mxu0 0.0
          %804 = vmatpush1.msra.mxu0 %v718
          %805 = vmatprep.subr.mxu0 0.0
          %806 = vmatpush1.msra.mxu0 0.0
          %807 = vmatprep.subr.mxu0 0.0
          %808 = vmatpush1.msra.mxu0 0.0
          %809 = vmatprep.subr.mxu0 0.0
          %810 = vmatpush1.msra.mxu0 0.0
          %811 = vmatprep.subr.mxu0 0.0
          %812 = vmatpush1.msra.mxu0 0.0
          %813 = vmatprep.subr.mxu0 0.0
          %814 = vmatpush1.msra.mxu0 0.0
          %815 = vmatprep.subr.mxu0 0.0
          %816 = vmatpush1.msra.mxu0 0.0
          %817 = vmatprep.subr.mxu0 0.0
          %818 = vmatpush1.msra.mxu0 0.0
          %819 = vmatprep.subr.mxu0 0.0
          %820 = vmatpush1.msra.mxu0 0.0
          %821 = vmatprep.subr.mxu0 0.0
          %822 = vmatpush1.msra.mxu0 0.0
          %823 = vmatprep.subr.mxu0 0.0
          %824 = vmatpush1.msra.mxu0 0.0
          %825 = vmatprep.subr.mxu0 0.0
          %826 = vmatpush1.msra.mxu0 0.0
          %827 = vmatprep.subr.mxu0 0.0
          %828 = vmatpush1.msra.mxu0 0.0
          %829 = vmatprep.subr.mxu0 0.0
          %830 = vmatpush1.msra.mxu0 0.0
          %831 = vmatprep.subr.mxu0 0.0
          %832 = vmatpush1.msra.mxu0 0.0
          %833 = vmatprep.subr.mxu0 0.0
          %834 = vmatpush1.msra.mxu0 0.0
          %835 = vmatprep.subr.mxu0 0.0
          %836 = vmatpush1.msra.mxu0 0.0
          %837 = vmatprep.subr.mxu0 0.0
          %838 = vmatpush1.msra.mxu0 0.0
          %839 = vmatprep.subr.mxu0 0.0
          %840 = vmatpush1.msra.mxu0 0.0
          %841 = vmatprep.subr.mxu0 0.0
          %842 = vmatpush1.msra.mxu0 0.0
          %843 = vmatprep.subr.mxu0 0.0
          %844 = vmatpush1.msra.mxu0 0.0
          %845 = vmatprep.subr.mxu0 0.0
          %846 = vmatpush1.msra.mxu0 0.0
          %847 = vmatprep.subr.mxu0 0.0
          %848 = vmatpush1.msra.mxu0 0.0
          %849 = vmatprep.subr.mxu0 0.0
          %850 = vmatpush1.msra.mxu0 0.0
          %851 = vmatprep.subr.mxu0 0.0
          %852 = vmatpush1.msra.mxu0 0.0
          %853 = vmatprep.subr.mxu0 0.0
          %854 = vmatpush1.msra.mxu0 0.0
          %855 = vmatprep.subr.mxu0 0.0
          %856 = vmatpush1.msra.mxu0 0.0
          %857 = vmatprep.subr.mxu0 0.0
          %858 = vmatpush1.msra.mxu0 0.0
          %859 = vmatprep.subr.mxu0 0.0
          %860 = vmatpush1.msra.mxu0 0.0
          %861 = vmatprep.mubr.f32.mxu0 0.0
          %862 = vmatmul.mubr.f32.gmra.mrb[0].mxu0 %v795
          %v863 = vpop.f32.mrb[0].mxu0
          %v864 = vadd.f32 0.0, %v863
          %v865 = vpop.f32.mrb[0].mxu0
          %866 = vdwg.mxu0
          %v867 = vrcp.pop 2048.0
          %v868 = vmul.f32 %v864, %v867
          %v869 = vld [vmem:[#allocation3] sm:$0x1]
          %v871 = vsel %vm366, %v869, 0
          %873 = vmatprep.subr.mxu0 0.0
          %874 = vmatpush1.msra.mxu0 %v707
          %875 = vmatprep.subr.mxu0 0.0
          %876 = vmatpush1.msra.mxu0 %v708
          %877 = vmatprep.subr.mxu0 0.0
          %878 = vmatpush1.msra.mxu0 %v709
          %879 = vmatprep.subr.mxu0 0.0
          %880 = vmatpush1.msra.mxu0 %v710
          %881 = vmatprep.subr.mxu0 0.0
          %882 = vmatpush1.msra.mxu0 %v711
          %883 = vmatprep.subr.mxu0 0.0
          %884 = vmatpush1.msra.mxu0 %v712
          %885 = vmatprep.subr.mxu0 0.0
          %886 = vmatpush1.msra.mxu0 %v713
          %887 = vmatprep.subr.mxu0 0.0
          %888 = vmatpush1.msra.mxu0 %v714
          %889 = vmatprep.subr.mxu0 0.0
          %890 = vmatpush1.msra.mxu0 0.0
          %891 = vmatprep.subr.mxu0 0.0
          %892 = vmatpush1.msra.mxu0 0.0
          %893 = vmatprep.subr.mxu0 0.0
          %894 = vmatpush1.msra.mxu0 0.0
          %895 = vmatprep.subr.mxu0 0.0
          %896 = vmatpush1.msra.mxu0 0.0
          %897 = vmatprep.subr.mxu0 0.0
          %898 = vmatpush1.msra.mxu0 0.0
          %899 = vmatprep.subr.mxu0 0.0
          %900 = vmatpush1.msra.mxu0 0.0
          %901 = vmatprep.subr.mxu0 0.0
          %902 = vmatpush1.msra.mxu0 0.0
          %903 = vmatprep.subr.mxu0 0.0
          %904 = vmatpush1.msra.mxu0 0.0
          %905 = vmatprep.subr.mxu0 0.0
          %906 = vmatpush1.msra.mxu0 0.0
          %907 = vmatprep.subr.mxu0 0.0
          %908 = vmatpush1.msra.mxu0 0.0
          %909 = vmatprep.subr.mxu0 0.0
          %910 = vmatpush1.msra.mxu0 0.0
          %911 = vmatprep.subr.mxu0 0.0
          %912 = vmatpush1.msra.mxu0 0.0
          %913 = vmatprep.subr.mxu0 0.0
          %914 = vmatpush1.msra.mxu0 0.0
          %915 = vmatprep.subr.mxu0 0.0
          %916 = vmatpush1.msra.mxu0 0.0
          %917 = vmatprep.subr.mxu0 0.0
          %918 = vmatpush1.msra.mxu0 0.0
          %919 = vmatprep.subr.mxu0 0.0
          %920 = vmatpush1.msra.mxu0 0.0
          %921 = vmatprep.subr.mxu0 0.0
          %922 = vmatpush1.msra.mxu0 0.0
          %923 = vmatprep.subr.mxu0 0.0
          %924 = vmatpush1.msra.mxu0 0.0
          %925 = vmatprep.subr.mxu0 0.0
          %926 = vmatpush1.msra.mxu0 0.0
          %927 = vmatprep.subr.mxu0 0.0
          %928 = vmatpush1.msra.mxu0 0.0
          %929 = vmatprep.subr.mxu0 0.0
          %930 = vmatpush1.msra.mxu0 0.0
          %931 = vmatprep.subr.mxu0 0.0
          %932 = vmatpush1.msra.mxu0 0.0
          %933 = vmatprep.subr.mxu0 0.0
          %934 = vmatpush1.msra.mxu0 0.0
          %935 = vmatprep.subr.mxu0 0.0
          %936 = vmatpush1.msra.mxu0 0.0
          %937 = vmatprep.mubr.f32.mxu0 0.0
          %938 = vmatmul.mubr.f32.gmra.mrb[0].mxu0 %v871
          %v939 = vpop.f32.mrb[0].mxu0
          %v940 = vadd.f32 0.0, %v939
          %v941 = vpop.f32.mrb[0].mxu0
          %942 = vdwg.mxu0
          %v944 = vsel %vm793, %v940, 0
          %946 = vmatprep.subr.mxu0 0.0
          %947 = vmatpush1.msra.mxu0 %v715
          %948 = vmatprep.subr.mxu0 0.0
          %949 = vmatpush1.msra.mxu0 %v716
          %950 = vmatprep.subr.mxu0 0.0
          %951 = vmatpush1.msra.mxu0 %v717
          %952 = vmatprep.subr.mxu0 0.0
          %953 = vmatpush1.msra.mxu0 %v718
          %954 = vmatprep.subr.mxu0 0.0
          %955 = vmatpush1.msra.mxu0 0.0
          %956 = vmatprep.subr.mxu0 0.0
          %957 = vmatpush1.msra.mxu0 0.0
          %958 = vmatprep.subr.mxu0 0.0
          %959 = vmatpush1.msra.mxu0 0.0
          %960 = vmatprep.subr.mxu0 0.0
          %961 = vmatpush1.msra.mxu0 0.0
          %962 = vmatprep.subr.mxu0 0.0
          %963 = vmatpush1.msra.mxu0 0.0
          %964 = vmatprep.subr.mxu0 0.0
          %965 = vmatpush1.msra.mxu0 0.0
          %966 = vmatprep.subr.mxu0 0.0
          %967 = vmatpush1.msra.mxu0 0.0
          %968 = vmatprep.subr.mxu0 0.0
          %969 = vmatpush1.msra.mxu0 0.0
          %970 = vmatprep.subr.mxu0 0.0
          %971 = vmatpush1.msra.mxu0 0.0
          %972 = vmatprep.subr.mxu0 0.0
          %973 = vmatpush1.msra.mxu0 0.0
          %974 = vmatprep.subr.mxu0 0.0
          %975 = vmatpush1.msra.mxu0 0.0
          %976 = vmatprep.subr.mxu0 0.0
          %977 = vmatpush1.msra.mxu0 0.0
          %978 = vmatprep.subr.mxu0 0.0
          %979 = vmatpush1.msra.mxu0 0.0
          %980 = vmatprep.subr.mxu0 0.0
          %981 = vmatpush1.msra.mxu0 0.0
          %982 = vmatprep.subr.mxu0 0.0
          %983 = vmatpush1.msra.mxu0 0.0
          %984 = vmatprep.subr.mxu0 0.0
          %985 = vmatpush1.msra.mxu0 0.0
          %986 = vmatprep.subr.mxu0 0.0
          %987 = vmatpush1.msra.mxu0 0.0
          %988 = vmatprep.subr.mxu0 0.0
          %989 = vmatpush1.msra.mxu0 0.0
          %990 = vmatprep.subr.mxu0 0.0
          %991 = vmatpush1.msra.mxu0 0.0
          %992 = vmatprep.subr.mxu0 0.0
          %993 = vmatpush1.msra.mxu0 0.0
          %994 = vmatprep.subr.mxu0 0.0
          %995 = vmatpush1.msra.mxu0 0.0
          %996 = vmatprep.subr.mxu0 0.0
          %997 = vmatpush1.msra.mxu0 0.0
          %998 = vmatprep.subr.mxu0 0.0
          %999 = vmatpush1.msra.mxu0 0.0
          %1000 = vmatprep.subr.mxu0 0.0
          %1001 = vmatpush1.msra.mxu0 0.0
          %1002 = vmatprep.subr.mxu0 0.0
          %1003 = vmatpush1.msra.mxu0 0.0
          %1004 = vmatprep.subr.mxu0 0.0
          %1005 = vmatpush1.msra.mxu0 0.0
          %1006 = vmatprep.subr.mxu0 0.0
          %1007 = vmatpush1.msra.mxu0 0.0
          %1008 = vmatprep.subr.mxu0 0.0
          %1009 = vmatpush1.msra.mxu0 0.0
          %1010 = vmatprep.mubr.f32.mxu0 0.0
          %1011 = vmatmul.mubr.f32.gmra.mrb[0].mxu0 %v944
          %v1012 = vpop.f32.mrb[0].mxu0
          %v1013 = vadd.f32 0.0, %v1012
          %v1014 = vpop.f32.mrb[0].mxu0
          %1015 = vdwg.mxu0
          %v1016 = vmul.f32 %v1013, %v867
          %v1017 = vmul.f32 %v868, %v868
          %v1018 = vsub.f32 %v1016, %v1017
          %v1019 = vmax.f32 %v1018, 0.0
          %v1020 = vadd.f32 %v1019, 1e-05
          %v1021 = vrsqrt.pop %v1020
          %v1022 = vld [vmem:[%s1] sm:$0x1]
          %v1023 = vmul.f32 %v1022, %v1021
          %1024 = vst.msk [vmem:[%s290] sm:$0x1] %vm501, %v1023
          %v1025 = vld [vmem:[%s2] sm:$0x1]
          %v1026 = vmul.f32 %v868, %v1023
          %v1027 = vsub.f32 %v1025, %v1026
          %1028 = vst.msk [vmem:[%s293] sm:$0x1] %vm501, %v1027
        $region52: #{vae_attention_block.3} parent=39 // pred_fallthru
          _
        %p1029 = scmp.lt.s32.totalorder %s25, 1
        %s1030 = scalar_select %p1029, %s25, 1
        %s1031 = scalar_lea.vmem %s5, %s1030
        %p1032 = scmp.lt.s32.totalorder %s25, 1
        %s1033 = scalar_select %p1032, %s25, 1
        %s1034 = scalar_lea.vmem %s6, %s1033
        // Predicated region
        $region53: #{vae_attention_block.3} parent=39 // pred_check
          %p1035 = pneg %p163
        $region54: #{vae_attention_block.3} parent=39 // pred_check_branch
          %1037 = sbr.rel (%p1035) target = $region56
        $region55: #{vae_attention_block.3} parent=39 // pred_region
          _
        $region56: #{vae_attention_block.3} parent=39 // pred_fallthru
          _
        // Predicated region
        $region57: #{vae_attention_block.3} parent=39 // pred_check
          %p1038 = pneg %p189
        $region58: #{vae_attention_block.3} parent=39 // pred_check_branch
          %1040 = sbr.rel (%p1038) target = $region60
        $region59: #{vae_attention_block.3} parent=39 // pred_region
          _
        $region60: #{vae_attention_block.3} parent=39 // pred_fallthru
          _
      $region40: #{vae_attention_block.3} parent=5 // pred_fallthru
        _
      %p1041 = scmp.le.s32.totalorder 2, %s16
      // Predicated region
      $region61: #{vae_attention_block.3} parent=5 // pred_check
        %p1042 = pneg %p1041
      $region62: #{vae_attention_block.3} parent=5 // pred_check_branch
        %1044 = sbr.rel (%p1042) target = $region64
      $region63: #{vae_attention_block.3} parent=5 // pred_region
        %s1045 = ssub.s32 %s16, 2
        // Predicated region
        $region65: #{vae_attention_block.3} parent=63 // pred_check
          %p1046 = pneg %p169
        $region66: #{vae_attention_block.3} parent=63 // pred_check_branch
          %1048 = sbr.rel (%p1046) target = $region68
        $region67: #{vae_attention_block.3} parent=63 // pred_region
          %p1049 = scmp.lt.s32.totalorder %s27, 1
          %s1050 = scalar_select %p1049, %s27, 1
          %s1051 = scalar_lea.vmem %s5, %s1050
        $region68: #{vae_attention_block.3} parent=63 // pred_fallthru
          _
        // Predicated region
        $region69: #{vae_attention_block.3} parent=63 // pred_check
          %p1052 = pneg %p195
        $region70: #{vae_attention_block.3} parent=63 // pred_check_branch
          %1054 = sbr.rel (%p1052) target = $region72
        $region71: #{vae_attention_block.3} parent=63 // pred_region
          %p1055 = scmp.lt.s32.totalorder %s27, 1
          %s1056 = scalar_select %p1055, %s27, 1
          %s1057 = scalar_lea.vmem %s6, %s1056
        $region72: #{vae_attention_block.3} parent=63 // pred_fallthru
          _
      $region64: #{vae_attention_block.3} parent=5 // pred_fallthru
        _
    $region6: #{vae_attention_block.3} parent=1 // loop_footer
      %s20 = sadd.s32 1, %s16
    $region7: #{vae_attention_block.3} parent=1 // loop_footer_branch
      %15 = sbr.rel target = $region3
    $region8: #{vae_attention_block.3} parent=1 // loop_exit
      _
    %1058 = vsyncpa [#allocation5], 1
    %s1059 = scalar_lea.sflag [#allocation5], 1
    %1060 = vsyncpa %s1059, 1

// kernel: vae_attention_block.4
$region0: #{vae_attention_block.4}
  #allocation0 [shape = 'u32[]', space=smem, size = 0x4, offset = 0x4, fixed_abs, tag = 'smem constant byte address 0x4 - core index']
  #allocation1 [shape = 'u32[144,128]{1,0:T(1,128)}', space=vmem, size = 0x12000, scoped, tag = 'internal scratch']
  %s0 = inlined_call_operand.vmem [shape: f32[2,1024,64], index: 0, kind: input, shape index: {}]
  %s1 = inlined_call_operand.vmem [shape: f32[2,1,64], index: 1, kind: input, shape index: {}]
  %s2 = inlined_call_operand.vmem [shape: f32[2,1,64], index: 2, kind: input, shape index: {}]
  %s3 = inlined_call_operand.vmem [shape: bf16[64,128], index: 3, kind: input, shape index: {}]
  %s4 = inlined_call_operand.vmem [shape: f32[1,128], index: 4, kind: input, shape index: {}]
  %s5 = inlined_call_operand.vmem [shape: bf16[2,1024,64], index: 5, kind: output, shape index: {0}]
  %s6 = inlined_call_operand.vmem [shape: bf16[2,1024,64], index: 6, kind: output, shape index: {1}]
  %7 = xla_tuple %s5, %s6
  %s8 = sld [smem:[#allocation0]]
  $region61: #{vae_attention_block.4} parent=0
    _
  %s10 = ssub.s32 1, %s8
  %s11 = scalar_select 0, %s10, %s8
  loop: start=0, step=1, limit=6
  $region2: #{vae_attention_block.4} parent=0 // loop_pre_header
    _
  $region3: #{vae_attention_block.4} parent=0 // loop_header
    %s13 = sphi 0, %s17
    %p14 = scmp.ge.s32.totalorder %s13, 6
    %s20 = sphi 0, %s32
    %s21 = sphi 0, %s28
    %s22 = sphi 0, %s20
    %s23 = sphi 0, %s21
    %s24 = sphi 0, %s22
    %s25 = sphi 0, %s23
    %s37 = sphi 0, %s39
    %s40 = sphi 0, %s37
    %s41 = sphi 0, %s40
    %s57 = sphi 0, %s41
    %s63 = sphi 0, %s65
    %s66 = sphi 0, %s63
    %s67 = sphi 0, %s66
    %s83 = sphi 0, %s67
    %s89 = sphi 0, %s91
    %s92 = sphi 0, %s89
    %s93 = sphi 0, %s92
    %s109 = sphi 0, %s93
    %s113 = sphi 0, %s113
    %s115 = sphi 0, %s113
    %s116 = sphi 0, %s115
    %s130 = sphi 0, %s116
    %s134 = sphi 0, %s134
    %s136 = sphi 0, %s134
    %s137 = sphi 0, %s136
    %s151 = sphi 0, %s137
    %s159 = sphi 0, %s161
    %s162 = sphi 0, %s159
    %s163 = sphi 0, %s162
    %s179 = sphi 0, %s163
    %s187 = sphi 0, %s189
    %s190 = sphi 0, %s187
    %s191 = sphi 0, %s190
    %s207 = sphi 0, %s191
  $region4: #{vae_attention_block.4} parent=0 // loop_header_branch
    %16 = sbr.rel (%p14) target = $region8
  $region5: #{vae_attention_block.4} parent=0 // loop_body
    %s18 = ssub.s32 %s13, 1
    %s19 = ssub.s32 %s13, 2
    %s26 = sadd.s32 1, %s21
    %p27 = scmp.ge.s32.totalorder %s26, 2
    %s28 = scalar_select %p27, 0, %s26
    %s29 = sadd.s32 1, %s20
    %s30 = scalar_select %p27, %s29, %s20
    %p31 = scmp.ge.s32.totalorder %s30, 2
    %s32 = scalar_select %p31, 0, %s30
    %s33 = ssub.s32 %s20, %s32
    %s34 = ssub.s32 %s21, %s28
    %s35 = sor.u32 %s33, %s34
    %p36 = scmp.eq.s32.totalorder %s35, 0
    %s38 = sadd.s32 %s37, 1
    %s39 = scalar_select %p36, %s37, %s38
    %p42 = pneg %p36
    %p43 = scmp.eq.s32.totalorder %s13, 3
    %p44 = por %p42, %p43
    %p45 = scmp.ne.s32.totalorder %s37, %s40
    %p46 = scmp.eq.s32.totalorder %s13, 0
    %p47 = por %p45, %p46
    %p48 = scmp.ne.s32.totalorder %s37, %s40
    %p49 = scmp.eq.s32.totalorder %s18, 3
    %p50 = por %p48, %p49
    %p51 = scmp.ne.s32.totalorder %s40, %s41
    %p52 = scmp.eq.s32.totalorder %s18, 0
    %p53 = por %p51, %p52
    %p54 = scmp.ne.s32.totalorder %s40, %s41
    %p55 = scmp.eq.s32.totalorder %s19, 3
    %p56 = por %p54, %p55
    %p58 = scmp.ne.s32.totalorder %s41, %s57
    %p59 = scmp.eq.s32.totalorder %s19, 0
    %p60 = por %p58, %p59
    %s61 = ssub.s32 %s20, %s32
    %p62 = scmp.eq.s32.totalorder %s61, 0
    %s64 = sadd.s32 %s63, 1
    %s65 = scalar_select %p62, %s63, %s64
    %p68 = pneg %p62
    %p69 = scmp.eq.s32.totalorder %s13, 3
    %p70 = por %p68, %p69
    %p71 = scmp.ne.s32.totalorder %s63, %s66
    %p72 = scmp.eq.s32.totalorder %s13, 0
    %p73 = por %p71, %p72
    %p74 = scmp.ne.s32.totalorder %s63, %s66
    %p75 = scmp.eq.s32.totalorder %s18, 3
    %p76 = por %p74, %p75
    %p77 = scmp.ne.s32.totalorder %s66, %s67
    %p78 = scmp.eq.s32.totalorder %s18, 0
    %p79 = por %p77, %p78
    %p80 = scmp.ne.s32.totalorder %s66, %s67
    %p81 = scmp.eq.s32.totalorder %s19, 3
    %p82 = por %p80, %p81
    %p84 = scmp.ne.s32.totalorder %s67, %s83
    %p85 = scmp.eq.s32.totalorder %s19, 0
    %p86 = por %p84, %p85
    %s87 = ssub.s32 %s20, %s32
    %p88 = scmp.eq.s32.totalorder %s87, 0
    %s90 = sadd.s32 %s89, 1
    %s91 = scalar_select %p88, %s89, %s90
    %p94 = pneg %p88
    %p95 = scmp.eq.s32.totalorder %s13, 3
    %p96 = por %p94, %p95
    %p97 = scmp.ne.s32.totalorder %s89, %s92
    %p98 = scmp.eq.s32.totalorder %s13, 0
    %p99 = por %p97, %p98
    %p100 = scmp.ne.s32.totalorder %s89, %s92
    %p101 = scmp.eq.s32.totalorder %s18, 3
    %p102 = por %p100, %p101
    %p103 = scmp.ne.s32.totalorder %s92, %s93
    %p104 = scmp.eq.s32.totalorder %s18, 0
    %p105 = por %p103, %p104
    %p106 = scmp.ne.s32.totalorder %s92, %s93
    %p107 = scmp.eq.s32.totalorder %s19, 3
    %p108 = por %p106, %p107
    %p110 = scmp.ne.s32.totalorder %s93, %s109
    %p111 = scmp.eq.s32.totalorder %s19, 0
    %p112 = por %p110, %p111
    %s114 = sadd.s32 %s113, 1
    %p117 = scmp.eq.s32.totalorder %s13, 3
    %p118 = scmp.ne.s32.totalorder %s113, %s115
    %p119 = scmp.eq.s32.totalorder %s13, 0
    %p120 = por %p118, %p119
    %p121 = scmp.ne.s32.totalorder %s113, %s115
    %p122 = scmp.eq.s32.totalorder %s18, 3
    %p123 = por %p121, %p122
    %p124 = scmp.ne.s32.totalorder %s115, %s116
    %p125 = scmp.eq.s32.totalorder %s18, 0
    %p126 = por %p124, %p125
    %p127 = scmp.ne.s32.totalorder %s115, %s116
    %p128 = scmp.eq.s32.totalorder %s19, 3
    %p129 = por %p127, %p128
    %p131 = scmp.ne.s32.totalorder %s116, %s130
    %p132 = scmp.eq.s32.totalorder %s19, 0
    %p133 = por %p131, %p132
    %s135 = sadd.s32 %s134, 1
    %p138 = scmp.eq.s32.totalorder %s13, 3
    %p139 = scmp.ne.s32.totalorder %s134, %s136
    %p140 = scmp.eq.s32.totalorder %s13, 0
    %p141 = por %p139, %p140
    %p142 = scmp.ne.s32.totalorder %s134, %s136
    %p143 = scmp.eq.s32.totalorder %s18, 3
    %p144 = por %p142, %p143
    %p145 = scmp.ne.s32.totalorder %s136, %s137
    %p146 = scmp.eq.s32.totalorder %s18, 0
    %p147 = por %p145, %p146
    %p148 = scmp.ne.s32.totalorder %s136, %s137
    %p149 = scmp.eq.s32.totalorder %s19, 3
    %p150 = por %p148, %p149
    %p152 = scmp.ne.s32.totalorder %s137, %s151
    %p153 = scmp.eq.s32.totalorder %s19, 0
    %p154 = por %p152, %p153
    %s155 = ssub.s32 %s20, %s32
    %s156 = ssub.s32 %s21, %s28
    %s157 = sor.u32 %s155, %s156
    %p158 = scmp.eq.s32.totalorder %s157, 0
    %s160 = sadd.s32 %s159, 1
    %s161 = scalar_select %p158, %s159, %s160
    %p164 = pneg %p158
    %p165 = scmp.eq.s32.totalorder %s13, 3
    %p166 = por %p164, %p165
    %p167 = scmp.ne.s32.totalorder %s159, %s162
    %p168 = scmp.eq.s32.totalorder %s13, 0
    %p169 = por %p167, %p168
    %p170 = scmp.ne.s32.totalorder %s159, %s162
    %p171 = scmp.eq.s32.totalorder %s18, 3
    %p172 = por %p170, %p171
    %p173 = scmp.ne.s32.totalorder %s162, %s163
    %p174 = scmp.eq.s32.totalorder %s18, 0
    %p175 = por %p173, %p174
    %p176 = scmp.ne.s32.totalorder %s162, %s163
    %p177 = scmp.eq.s32.totalorder %s19, 3
    %p178 = por %p176, %p177
    %p180 = scmp.ne.s32.totalorder %s163, %s179
    %p181 = scmp.eq.s32.totalorder %s19, 0
    %p182 = por %p180, %p181
    %s183 = ssub.s32 %s20, %s32
    %s184 = ssub.s32 %s21, %s28
    %s185 = sor.u32 %s183, %s184
    %p186 = scmp.eq.s32.totalorder %s185, 0
    %s188 = sadd.s32 %s187, 1
    %s189 = scalar_select %p186, %s187, %s188
    %p192 = pneg %p186
    %p193 = scmp.eq.s32.totalorder %s13, 3
    %p194 = por %p192, %p193
    %p195 = scmp.ne.s32.totalorder %s187, %s190
    %p196 = scmp.eq.s32.totalorder %s13, 0
    %p197 = por %p195, %p196
    %p198 = scmp.ne.s32.totalorder %s187, %s190
    %p199 = scmp.eq.s32.totalorder %s18, 3
    %p200 = por %p198, %p199
    %p201 = scmp.ne.s32.totalorder %s190, %s191
    %p202 = scmp.eq.s32.totalorder %s18, 0
    %p203 = por %p201, %p202
    %p204 = scmp.ne.s32.totalorder %s190, %s191
    %p205 = scmp.eq.s32.totalorder %s19, 3
    %p206 = por %p204, %p205
    %p208 = scmp.ne.s32.totalorder %s191, %s207
    %p209 = scmp.eq.s32.totalorder %s19, 0
    %p210 = por %p208, %p209
    %p211 = scmp.le.s32.totalorder 1, %s13
    %p212 = scmp.lt.s32.totalorder %s13, 5
    %p213 = pnand %p211, %p212
    %p214 = pneg %p213
    // Predicated region
    $region9: #{vae_attention_block.4} parent=5 // pred_check
      _
    $region10: #{vae_attention_block.4} parent=5 // pred_check_branch
      %216 = sbr.rel (%p213) target = $region12
    $region11: #{vae_attention_block.4} parent=5 // pred_region
      %s217 = ssub.s32 %s13, 1
      // Predicated region
      $region13: #{vae_attention_block.4} parent=11 // pred_check
        %p218 = pneg %p126
      $region14: #{vae_attention_block.4} parent=11 // pred_check_branch
        %220 = sbr.rel (%p218) target = $region16
      $region15: #{vae_attention_block.4} parent=11 // pred_region
        _
      $region16: #{vae_attention_block.4} parent=11 // pred_fallthru
        _
      // Predicated region
      $region17: #{vae_attention_block.4} parent=11 // pred_check
        %p221 = pneg %p147
      $region18: #{vae_attention_block.4} parent=11 // pred_check_branch
        %223 = sbr.rel (%p221) target = $region20
      $region19: #{vae_attention_block.4} parent=11 // pred_region
        _
      $region20: #{vae_attention_block.4} parent=11 // pred_fallthru
        _
    $region12: #{vae_attention_block.4} parent=5 // pred_fallthru
      _
    %p224 = scmp.lt.s32.totalorder %s13, 4
    // Predicated region
    $region21: #{vae_attention_block.4} parent=5 // pred_check
      %p225 = pneg %p224
    $region22: #{vae_attention_block.4} parent=5 // pred_check_branch
      %227 = sbr.rel (%p225) target = $region24
    $region23: #{vae_attention_block.4} parent=5 // pred_region
      // Predicated region
      $region25: #{vae_attention_block.4} parent=23 // pred_check
        %p228 = pneg %p47
      $region26: #{vae_attention_block.4} parent=23 // pred_check_branch
        %230 = sbr.rel (%p228) target = $region28
      $region27: #{vae_attention_block.4} parent=23 // pred_region
        %s231 = smul.u32 64, %s21
        %p232 = scmp.lt.s32.totalorder %s20, 1
        %s233 = scalar_select %p232, %s20, 1
        %p234 = scmp.lt.s32.totalorder %s231, 127
        %s235 = scalar_select %p234, %s231, 127
        %s236 = smul.addr %s233, 128
        %s237 = sadd.s32 %s235, %s236
        %s238 = smul.addr %s237, 8
        %s239 = scalar_lea.vmem %s0, %s238
        %s240 = smul.u32 64, %s21
      $region28: #{vae_attention_block.4} parent=23 // pred_fallthru
        _
      // Predicated region
      $region29: #{vae_attention_block.4} parent=23 // pred_check
        %p241 = pneg %p73
      $region30: #{vae_attention_block.4} parent=23 // pred_check_branch
        %243 = sbr.rel (%p241) target = $region32
      $region31: #{vae_attention_block.4} parent=23 // pred_region
        %p244 = scmp.lt.s32.totalorder %s20, 1
        %s245 = scalar_select %p244, %s20, 1
        %s246 = scalar_lea.vmem %s1, %s245
      $region32: #{vae_attention_block.4} parent=23 // pred_fallthru
        _
      // Predicated region
      $region33: #{vae_attention_block.4} parent=23 // pred_check
        %p247 = pneg %p99
      $region34: #{vae_attention_block.4} parent=23 // pred_check_branch
        %249 = sbr.rel (%p247) target = $region36
      $region35: #{vae_attention_block.4} parent=23 // pred_region
        %p250 = scmp.lt.s32.totalorder %s20, 1
        %s251 = scalar_select %p250, %s20, 1
        %s252 = scalar_lea.vmem %s2, %s251
      $region36: #{vae_attention_block.4} parent=23 // pred_fallthru
        _
    $region24: #{vae_attention_block.4} parent=5 // pred_fallthru
      _
    %p253 = scmp.le.s32.totalorder 1, %s13
    %p254 = scmp.lt.s32.totalorder %s13, 5
    %p255 = pnand %p253, %p254
    %p256 = pneg %p255
    // Predicated region
    $region37: #{vae_attention_block.4} parent=5 // pred_check
      _
    $region38: #{vae_attention_block.4} parent=5 // pred_check_branch
      %258 = sbr.rel (%p255) target = $region40
    $region39: #{vae_attention_block.4} parent=5 // pred_region
      %s259 = ssub.s32 %s13, 1
      %s260 = smul.u32 64, %s23
      %p261 = scmp.lt.s32.totalorder %s22, 1
      %s262 = scalar_select %p261, %s22, 1
      %p263 = scmp.lt.s32.totalorder %s260, 127
      %s264 = scalar_select %p263, %s260, 127
      %s265 = smul.addr %s262, 128
      %s266 = sadd.s32 %s264, %s265
      %s267 = smul.addr %s266, 8
      %s268 = scalar_lea.vmem %s0, %s267
      %p269 = pneg %p53
      %p270 = pneg %p50
      %p271 = scmp.lt.s32.totalorder %s22, 1
      %s272 = scalar_select %p271, %s22, 1
      %s273 = scalar_lea.vmem %s1, %s272
      %p274 = pneg %p79
      %p275 = pneg %p76
      %p276 = scmp.lt.s32.totalorder %s22, 1
      %s277 = scalar_select %p276, %s22, 1
      %s278 = scalar_lea.vmem %s2, %s277
      %p279 = pneg %p105
      %p280 = pneg %p102
      %p281 = pneg %p126
      %p282 = pneg %p123
      %p283 = pneg %p147
      %p284 = pneg %p144
      %p285 = pneg %p175
      %p286 = pneg %p172
      %s287 = smul.u32 64, %s23
      %p288 = scmp.lt.s32.totalorder %s22, 1
      %s289 = scalar_select %p288, %s22, 1
      %p290 = scmp.lt.s32.totalorder %s287, 127
      %s291 = scalar_select %p290, %s287, 127
      %s292 = smul.addr %s289, 128
      %s293 = sadd.s32 %s291, %s292
      %s294 = smul.addr %s293, 4
      %s295 = scalar_lea.vmem %s5, %s294
      %p296 = pneg %p203
      %p297 = pneg %p200
      %s298 = smul.u32 64, %s23
      %p299 = scmp.lt.s32.totalorder %s22, 1
      %s300 = scalar_select %p299, %s22, 1
      %p301 = scmp.lt.s32.totalorder %s298, 127
      %s302 = scalar_select %p301, %s298, 127
      %s303 = smul.addr %s300, 128
      %s304 = sadd.s32 %s302, %s303
      %s305 = smul.addr %s304, 4
      %s306 = scalar_lea.vmem %s6, %s305
      %s307 = smul.u32 64, %s23
      %p308 = scmp.lt.s32.totalorder %s22, 1
      %s309 = scalar_select %p308, %s22, 1
      %p310 = scmp.lt.s32.totalorder %s307, 127
      %s311 = scalar_select %p310, %s307, 127
      %s312 = smul.addr %s309, 128
      %s313 = sadd.s32 %s311, %s312
      %s314 = smul.addr %s313, 8
      %s315 = scalar_lea.vmem %s0, %s314
      %s316 = smul.u32 64, %s23
      %p317 = scmp.lt.s32.totalorder %s22, 1
      %s318 = scalar_select %p317, %s22, 1
      %s319 = scalar_lea.vmem %s1, %s318
      %p320 = scmp.lt.s32.totalorder %s22, 1
      %s321 = scalar_select %p320, %s22, 1
      %s322 = scalar_lea.vmem %s2, %s321
      %s323 = smul.u32 64, %s23
      %p324 = scmp.lt.s32.totalorder %s22, 1
      %s325 = scalar_select %p324, %s22, 1
      %p326 = scmp.lt.s32.totalorder %s323, 127
      %s327 = scalar_select %p326, %s323, 127
      %s328 = smul.addr %s325, 128
      %s329 = sadd.s32 %s327, %s328
      %s330 = smul.addr %s329, 4
      %s331 = scalar_lea.vmem %s5, %s330
      %s332 = smul.u32 64, %s23
      %s333 = smul.u32 64, %s23
      %p334 = scmp.lt.s32.totalorder %s22, 1
      %s335 = scalar_select %p334, %s22, 1
      %p336 = scmp.lt.s32.totalorder %s333, 127
      %s337 = scalar_select %p336, %s333, 127
      %s338 = smul.addr %s335, 128
      %s339 = sadd.s32 %s337, %s338
      %s340 = smul.addr %s339, 4
      %s341 = scalar_lea.vmem %s6, %s340
      %s342 = smul.u32 64, %s23
      %v344 = vld [vmem:[%s315] sm:$0xff]
      %v345 = vld [vmem:[%s315 + $0x8] sm:$0xff]
      %v346 = vld [vmem:[%s315 + $0x10] sm:$0xff]
      %v347 = vld [vmem:[%s315 + $0x18] sm:$0xff]
      %v348 = vld [vmem:[%s315 + $0x20] sm:$0xff]
      %v349 = vld [vmem:[%s315 + $0x28] sm:$0xff]
      %v350 = vld [vmem:[%s315 + $0x30] sm:$0xff]
      %v351 = vld [vmem:[%s315 + $0x38] sm:$0xff]
      %v352 = vld [vmem:[%s315 + $0x40] sm:$0xff]
      %v353 = vld [vmem:[%s315 + $0x48] sm:$0xff]
      %v354 = vld [vmem:[%s315 + $0x50] sm:$0xff]
      %v355 = vld [vmem:[%s315 + $0x58] sm:$0xff]
      %v356 = vld [vmem:[%s315 + $0x60] sm:$0xff]
      %v357 = vld [vmem:[%s315 + $0x68] sm:$0xff]
      %v358 = vld [vmem:[%s315 + $0x70] sm:$0xff]
      %v359 = vld [vmem:[%s315 + $0x78] sm:$0xff]
      %v360 = vld [vmem:[%s315 + $0x80] sm:$0xff]
      %v361 = vld [vmem:[%s315 + $0x88] sm:$0xff]
      %v362 = vld [vmem:[%s315 + $0x90] sm:$0xff]
      %v363 = vld [vmem:[%s315 + $0x98] sm:$0xff]
      %v364 = vld [vmem:[%s315 + $0xa0] sm:$0xff]
      %v365 = vld [vmem:[%s315 + $0xa8] sm:$0xff]
      %v366 = vld [vmem:[%s315 + $0xb0] sm:$0xff]
      %v367 = vld [vmem:[%s315 + $0xb8] sm:$0xff]
      %v368 = vld [vmem:[%s315 + $0xc0] sm:$0xff]
      %v369 = vld [vmem:[%s315 + $0xc8] sm:$0xff]
      %v370 = vld [vmem:[%s315 + $0xd0] sm:$0xff]
      %v371 = vld [vmem:[%s315 + $0xd8] sm:$0xff]
      %v372 = vld [vmem:[%s315 + $0xe0] sm:$0xff]
      %v373 = vld [vmem:[%s315 + $0xe8] sm:$0xff]
      %v374 = vld [vmem:[%s315 + $0xf0] sm:$0xff]
      %v375 = vld [vmem:[%s315 + $0xf8] sm:$0xff]
      %v376 = vld [vmem:[%s315 + $0x100] sm:$0xff]
      %v377 = vld [vmem:[%s315 + $0x108] sm:$0xff]
      %v378 = vld [vmem:[%s315 + $0x110] sm:$0xff]
      %v379 = vld [vmem:[%s315 + $0x118] sm:$0xff]
      %v380 = vld [vmem:[%s315 + $0x120] sm:$0xff]
      %v381 = vld [vmem:[%s315 + $0x128] sm:$0xff]
      %v382 = vld [vmem:[%s315 + $0x130] sm:$0xff]
      %v383 = vld [vmem:[%s315 + $0x138] sm:$0xff]
      %v384 = vld [vmem:[%s315 + $0x140] sm:$0xff]
      %v385 = vld [vmem:[%s315 + $0x148] sm:$0xff]
      %v386 = vld [vmem:[%s315 + $0x150] sm:$0xff]
      %v387 = vld [vmem:[%s315 + $0x158] sm:$0xff]
      %v388 = vld [vmem:[%s315 + $0x160] sm:$0xff]
      %v389 = vld [vmem:[%s315 + $0x168] sm:$0xff]
      %v390 = vld [vmem:[%s315 + $0x170] sm:$0xff]
      %v391 = vld [vmem:[%s315 + $0x178] sm:$0xff]
      %v392 = vld [vmem:[%s315 + $0x180] sm:$0xff]
      %v393 = vld [vmem:[%s315 + $0x188] sm:$0xff]
      %v394 = vld [vmem:[%s315 + $0x190] sm:$0xff]
      %v395 = vld [vmem:[%s315 + $0x198] sm:$0xff]
      %v396 = vld [vmem:[%s315 + $0x1a0] sm:$0xff]
      %v397 = vld [vmem:[%s315 + $0x1a8] sm:$0xff]
      %v398 = vld [vmem:[%s315 + $0x1b0] sm:$0xff]
      %v399 = vld [vmem:[%s315 + $0x1b8] sm:$0xff]
      %v400 = vld [vmem:[%s315 + $0x1c0] sm:$0xff]
      %v401 = vld [vmem:[%s315 + $0x1c8] sm:$0xff]
      %v402 = vld [vmem:[%s315 + $0x1d0] sm:$0xff]
      %v403 = vld [vmem:[%s315 + $0x1d8] sm:$0xff]
      %v404 = vld [vmem:[%s315 + $0x1e0] sm:$0xff]
      %v405 = vld [vmem:[%s315 + $0x1e8] sm:$0xff]
      %v406 = vld [vmem:[%s315 + $0x1f0] sm:$0xff]
      %v407 = vld [vmem:[%s315 + $0x1f8] sm:$0xff]
      %v408 = vld [vmem:[%s319] sm:$0x1]
      %v410 = vlaneseq
      %v411 = vshrl.u32 %v410, 7
      %v412 = vsub.s32 0, %v411
      %v413 = vrot.slane %v408, %v412
      %v415 = vmul.f32 %v344, %v413
      %v416 = vmul.f32 %v345, %v413
      %v417 = vmul.f32 %v346, %v413
      %v418 = vmul.f32 %v347, %v413
      %v419 = vmul.f32 %v348, %v413
      %v420 = vmul.f32 %v349, %v413
      %v421 = vmul.f32 %v350, %v413
      %v422 = vmul.f32 %v351, %v413
      %v423 = vmul.f32 %v352, %v413
      %v424 = vmul.f32 %v353, %v413
      %v425 = vmul.f32 %v354, %v413
      %v426 = vmul.f32 %v355, %v413
      %v427 = vmul.f32 %v356, %v413
      %v428 = vmul.f32 %v357, %v413
      %v429 = vmul.f32 %v358, %v413
      %v430 = vmul.f32 %v359, %v413
      %v431 = vmul.f32 %v360, %v413
      %v432 = vmul.f32 %v361, %v413
      %v433 = vmul.f32 %v362, %v413
      %v434 = vmul.f32 %v363, %v413
      %v435 = vmul.f32 %v364, %v413
      %v436 = vmul.f32 %v365, %v413
      %v437 = vmul.f32 %v366, %v413
      %v438 = vmul.f32 %v367, %v413
      %v439 = vmul.f32 %v368, %v413
      %v440 = vmul.f32 %v369, %v413
      %v441 = vmul.f32 %v370, %v413
      %v442 = vmul.f32 %v371, %v413
      %v443 = vmul.f32 %v372, %v413
      %v444 = vmul.f32 %v373, %v413
      %v445 = vmul.f32 %v374, %v413
      %v446 = vmul.f32 %v375, %v413
      %v447 = vmul.f32 %v376, %v413
      %v448 = vmul.f32 %v377, %v413
      %v449 = vmul.f32 %v378, %v413
      %v450 = vmul.f32 %v379, %v413
      %v451 = vmul.f32 %v380, %v413
      %v452 = vmul.f32 %v381, %v413
      %v453 = vmul.f32 %v382, %v413
      %v454 = vmul.f32 %v383, %v413
      %v455 = vmul.f32 %v384, %v413
      %v456 = vmul.f32 %v385, %v413
      %v457 = vmul.f32 %v386, %v413
      %v458 = vmul.f32 %v387, %v413
      %v459 = vmul.f32 %v388, %v413
      %v460 = vmul.f32 %v389, %v413
      %v461 = vmul.f32 %v390, %v413
      %v462 = vmul.f32 %v391, %v413
      %v463 = vmul.f32 %v392, %v413
      %v464 = vmul.f32 %v393, %v413
      %v465 = vmul.f32 %v394, %v413
      %v466 = vmul.f32 %v395, %v413
      %v467 = vmul.f32 %v396, %v413
      %v468 = vmul.f32 %v397, %v413
      %v469 = vmul.f32 %v398, %v413
      %v470 = vmul.f32 %v399, %v413
      %v471 = vmul.f32 %v400, %v413
      %v472 = vmul.f32 %v401, %v413
      %v473 = vmul.f32 %v402, %v413
      %v474 = vmul.f32 %v403, %v413
      %v475 = vmul.f32 %v404, %v413
      %v476 = vmul.f32 %v405, %v413
      %v477 = vmul.f32 %v406, %v413
      %v478 = vmul.f32 %v407, %v413
      %v479 = vld [vmem:[%s322] sm:$0x1]
      %v481 = vlaneseq
      %v482 = vshrl.u32 %v481, 7
      %v483 = vsub.s32 0, %v482
      %v484 = vrot.slane %v479, %v483
      %v486 = vadd.f32 %v415, %v484
      %v487 = vadd.f32 %v416, %v484
      %v488 = vadd.f32 %v417, %v484
      %v489 = vadd.f32 %v418, %v484
      %v490 = vadd.f32 %v419, %v484
      %v491 = vadd.f32 %v420, %v484
      %v492 = vadd.f32 %v421, %v484
      %v493 = vadd.f32 %v422, %v484
      %v494 = vadd.f32 %v423, %v484
      %v495 = vadd.f32 %v424, %v484
      %v496 = vadd.f32 %v425, %v484
      %v497 = vadd.f32 %v426, %v484
      %v498 = vadd.f32 %v427, %v484
      %v499 = vadd.f32 %v428, %v484
      %v500 = vadd.f32 %v429, %v484
      %v501 = vadd.f32 %v430, %v484
      %v502 = vadd.f32 %v431, %v484
      %v503 = vadd.f32 %v432, %v484
      %v504 = vadd.f32 %v433, %v484
      %v505 = vadd.f32 %v434, %v484
      %v506 = vadd.f32 %v435, %v484
      %v507 = vadd.f32 %v436, %v484
      %v508 = vadd.f32 %v437, %v484
      %v509 = vadd.f32 %v438, %v484
      %v510 = vadd.f32 %v439, %v484
      %v511 = vadd.f32 %v440, %v484
      %v512 = vadd.f32 %v441, %v484
      %v513 = vadd.f32 %v442, %v484
      %v514 = vadd.f32 %v443, %v484
      %v515 = vadd.f32 %v444, %v484
      %v516 = vadd.f32 %v445, %v484
      %v517 = vadd.f32 %v446, %v484
      %v518 = vadd.f32 %v447, %v484
      %v519 = vadd.f32 %v448, %v484
      %v520 = vadd.f32 %v449, %v484
      %v521 = vadd.f32 %v450, %v484
      %v522 = vadd.f32 %v451, %v484
      %v523 = vadd.f32 %v452, %v484
      %v524 = vadd.f32 %v453, %v484
      %v525 = vadd.f32 %v454, %v484
      %v526 = vadd.f32 %v455, %v484
      %v527 = vadd.f32 %v456, %v484
      %v528 = vadd.f32 %v457, %v484
      %v529 = vadd.f32 %v458, %v484
      %v530 = vadd.f32 %v459, %v484
      %v531 = vadd.f32 %v460, %v484
      %v532 = vadd.f32 %v461, %v484
      %v533 = vadd.f32 %v462, %v484
      %v534 = vadd.f32 %v463, %v484
      %v535 = vadd.f32 %v464, %v484
      %v536 = vadd.f32 %v465, %v484
      %v537 = vadd.f32 %v466, %v484
      %v538 = vadd.f32 %v467, %v484
      %v539 = vadd.f32 %v468, %v484
      %v540 = vadd.f32 %v469, %v484
      %v541 = vadd.f32 %v470, %v484
      %v542 = vadd.f32 %v471, %v484
      %v543 = vadd.f32 %v472, %v484
      %v544 = vadd.f32 %v473, %v484
      %v545 = vadd.f32 %v474, %v484
      %v546 = vadd.f32 %v475, %v484
      %v547 = vadd.f32 %v476, %v484
      %v548 = vadd.f32 %v477, %v484
      %v549 = vadd.f32 %v478, %v484
      %v550 = vpack.c.bf16 %v487, %v486
      %v551 = vpack.c.bf16 %v489, %v488
      %v552 = vpack.c.bf16 %v491, %v490
      %v553 = vpack.c.bf16 %v493, %v492
      %v554 = vpack.c.bf16 %v495, %v494
      %v555 = vpack.c.bf16 %v497, %v496
      %v556 = vpack.c.bf16 %v499, %v498
      %v557 = vpack.c.bf16 %v501, %v500
      %v558 = vpack.c.bf16 %v503, %v502
      %v559 = vpack.c.bf16 %v505, %v504
      %v560 = vpack.c.bf16 %v507, %v506
      %v561 = vpack.c.bf16 %v509, %v508
      %v562 = vpack.c.bf16 %v511, %v510
      %v563 = vpack.c.bf16 %v513, %v512
      %v564 = vpack.c.bf16 %v515, %v514
      %v565 = vpack.c.bf16 %v517, %v516
      %v566 = vpack.c.bf16 %v519, %v518
      %v567 = vpack.c.bf16 %v521, %v520
      %v568 = vpack.c.bf16 %v523, %v522
      %v569 = vpack.c.bf16 %v525, %v524
      %v570 = vpack.c.bf16 %v527, %v526
      %v571 = vpack.c.bf16 %v529, %v528
      %v572 = vpack.c.bf16 %v531, %v530
      %v573 = vpack.c.bf16 %v533, %v532
      %v574 = vpack.c.bf16 %v535, %v534
      %v575 = vpack.c.bf16 %v537, %v536
      %v576 = vpack.c.bf16 %v539, %v538
      %v577 = vpack.c.bf16 %v541, %v540
      %v578 = vpack.c.bf16 %v543, %v542
      %v579 = vpack.c.bf16 %v545, %v544
      %v580 = vpack.c.bf16 %v547, %v546
      %v581 = vpack.c.bf16 %v549, %v548
      %v582 = vld [vmem:[%s3] sm:$0xf]
      %v583 = vld [vmem:[%s3 + $0x4] sm:$0xf]
      %v584 = vld [vmem:[%s3 + $0x8] sm:$0xf]
      %v585 = vld [vmem:[%s3 + $0xc] sm:$0xf]
      %v586 = vld [vmem:[%s3 + $0x10] sm:$0xf]
      %v587 = vld [vmem:[%s3 + $0x14] sm:$0xf]
      %v588 = vld [vmem:[%s3 + $0x18] sm:$0xf]
      %v589 = vld [vmem:[%s3 + $0x1c] sm:$0xf]
      %v590 = vld [vmem:[%s4] sm:$0x1]
      %v592 = vlaneseq
      %v593 = vshrl.u32 %v592, 7
      %v594 = vsub.s32 0, %v593
      %v595 = vrot.slane %v590, %v594
      %v605 = vunpack.c.l.b16 %v582
      %v606 = vunpack.c.l.b16 %v583
      %v607 = vunpack.c.l.b16 %v584
      %v608 = vunpack.c.l.b16 %v585
      %v609 = vunpack.c.l.b16 %v586
      %v610 = vunpack.c.l.b16 %v587
      %v611 = vunpack.c.l.b16 %v588
      %v612 = vunpack.c.l.b16 %v589
      %v613 = vpack.c.b16 %v606, %v605
      %v614 = vpack.c.b16 %v608, %v607
      %v615 = vpack.c.b16 %v610, %v609
      %v616 = vpack.c.b16 %v612, %v611
      %vm621 = vcmask 523264
      %v623 = vsel %vm621, %v550, 0
      %v626 = vsel %vm621, %v551, 0
      %v629 = vsel %vm621, %v552, 0
      %v632 = vsel %vm621, %v553, 0
      %v635 = vsel %vm621, %v554, 0
      %v638 = vsel %vm621, %v555, 0
      %v641 = vsel %vm621, %v556, 0
      %v644 = vsel %vm621, %v557, 0
      %v647 = vsel %vm621, %v558, 0
      %v650 = vsel %vm621, %v559, 0
      %v653 = vsel %vm621, %v560, 0
      %v656 = vsel %vm621, %v561, 0
      %v659 = vsel %vm621, %v562, 0
      %v662 = vsel %vm621, %v563, 0
      %v665 = vsel %vm621, %v564, 0
      %v668 = vsel %vm621, %v565, 0
      %v671 = vsel %vm621, %v566, 0
      %v674 = vsel %vm621, %v567, 0
      %v677 = vsel %vm621, %v568, 0
      %v680 = vsel %vm621, %v569, 0
      %v683 = vsel %vm621, %v570, 0
      %v686 = vsel %vm621, %v571, 0
      %v689 = vsel %vm621, %v572, 0
      %v692 = vsel %vm621, %v573, 0
      %v695 = vsel %vm621, %v574, 0
      %v698 = vsel %vm621, %v575, 0
      %v701 = vsel %vm621, %v576, 0
      %v704 = vsel %vm621, %v577, 0
      %v707 = vsel %vm621, %v578, 0
      %v710 = vsel %vm621, %v579, 0
      %v713 = vsel %vm621, %v580, 0
      %v716 = vsel %vm621, %v581, 0
      %718 = vmatprep.subr.bf16.mxu0 0
      %719 = vmatpush1.bf16.msra.mxu0 %v613
      %720 = vmatprep.subr.bf16.mxu0 0
      %721 = vmatpush1.bf16.msra.mxu0 %v614
      %722 = vmatprep.subr.bf16.mxu0 0
      %723 = vmatpush1.bf16.msra.mxu0 %v615
      %724 = vmatprep.subr.bf16.mxu0 0
      %725 = vmatpush1.bf16.msra.mxu0 %v616
      %726 = vmatprep.subr.bf16.mxu0 0
      %727 = vmatpush1.bf16.msra.mxu0 0
      %728 = vmatprep.subr.bf16.mxu0 0
      %729 = vmatpush1.bf16.msra.mxu0 0
      %730 = vmatprep.subr.bf16.mxu0 0
      %731 = vmatpush1.bf16.msra.mxu0 0
      %732 = vmatprep.subr.bf16.mxu0 0
      %733 = vmatpush1.bf16.msra.mxu0 0
      %734 = vmatprep.subr.bf16.mxu0 0
      %735 = vmatpush1.bf16.msra.mxu0 0
      %736 = vmatprep.subr.bf16.mxu0 0
      %737 = vmatpush1.bf16.msra.mxu0 0
      %738 = vmatprep.subr.bf16.mxu0 0
      %739 = vmatpush1.bf16.msra.mxu0 0
      %740 = vmatprep.subr.bf16.mxu0 0
      %741 = vmatpush1.bf16.msra.mxu0 0
      %742 = vmatprep.subr.bf16.mxu0 0
      %743 = vmatpush1.bf16.msra.mxu0 0
      %744 = vmatprep.subr.bf16.mxu0 0
      %745 = vmatpush1.bf16.msra.mxu0 0
      %746 = vmatprep.subr.bf16.mxu0 0
      %747 = vmatpush1.bf16.msra.mxu0 0
      %748 = vmatprep.subr.bf16.mxu0 0
      %749 = vmatpush1.bf16.msra.mxu0 0
      %750 = vmatprep.mubr.bf16.mxu0 0
      %751 = vmatmul.mubr.bf16.gmra.mrb[0].mxu0 %v623
      %v752 = vpop.f32.mrb[0].mxu0
      %v753 = vadd.f32 %v595, %v752
      %v754 = vpop.f32.mrb[0].mxu0
      %v755 = vpop.f32.mrb[0].mxu0
      %v756 = vadd.f32 %v595, %v755
      %v757 = vpop.f32.mrb[0].mxu0
      %758 = vmatprep.mubr.bf16.mxu0 0
      %759 = vmatmul.mubr.bf16.gmra.mrb[0].mxu0 %v626
      %v760 = vpop.f32.mrb[0].mxu0
      %v761 = vadd.f32 %v595, %v760
      %v762 = vpop.f32.mrb[0].mxu0
      %v763 = vpop.f32.mrb[0].mxu0
      %v764 = vadd.f32 %v595, %v763
      %v765 = vpop.f32.mrb[0].mxu0
      %766 = vmatprep.mubr.bf16.mxu0 0
      %767 = vmatmul.mubr.bf16.gmra.mrb[0].mxu0 %v629
      %v768 = vpop.f32.mrb[0].mxu0
      %v769 = vadd.f32 %v595, %v768
      %v770 = vpop.f32.mrb[0].mxu0
      %v771 = vpop.f32.mrb[0].mxu0
      %v772 = vadd.f32 %v595, %v771
      %v773 = vpop.f32.mrb[0].mxu0
      %774 = vmatprep.mubr.bf16.mxu0 0
      %775 = vmatmul.mubr.bf16.gmra.mrb[0].mxu0 %v632
      %v776 = vpop.f32.mrb[0].mxu0
      %v777 = vadd.f32 %v595, %v776
      %v778 = vpop.f32.mrb[0].mxu0
      %v779 = vpop.f32.mrb[0].mxu0
      %v780 = vadd.f32 %v595, %v779
      %v781 = vpop.f32.mrb[0].mxu0
      %782 = vmatprep.mubr.bf16.mxu0 0
      %783 = vmatmul.mubr.bf16.gmra.mrb[0].mxu0 %v635
      %v784 = vpop.f32.mrb[0].mxu0
      %v785 = vadd.f32 %v595, %v784
      %v786 = vpop.f32.mrb[0].mxu0
      %v787 = vpop.f32.mrb[0].mxu0
      %v788 = vadd.f32 %v595, %v787
      %v789 = vpop.f32.mrb[0].mxu0
      %790 = vmatprep.mubr.bf16.mxu0 0
      %791 = vmatmul.mubr.bf16.gmra.mrb[0].mxu0 %v638
      %v792 = vpop.f32.mrb[0].mxu0
      %v793 = vadd.f32 %v595, %v792
      %v794 = vpop.f32.mrb[0].mxu0
      %v795 = vpop.f32.mrb[0].mxu0
      %v796 = vadd.f32 %v595, %v795
      %v797 = vpop.f32.mrb[0].mxu0
      %798 = vmatprep.mubr.bf16.mxu0 0
      %799 = vmatmul.mubr.bf16.gmra.mrb[0].mxu0 %v641
      %v800 = vpop.f32.mrb[0].mxu0
      %v801 = vadd.f32 %v595, %v800
      %v802 = vpop.f32.mrb[0].mxu0
      %v803 = vpop.f32.mrb[0].mxu0
      %v804 = vadd.f32 %v595, %v803
      %v805 = vpop.f32.mrb[0].mxu0
      %806 = vmatprep.mubr.bf16.mxu0 0
      %807 = vmatmul.mubr.bf16.gmra.mrb[0].mxu0 %v644
      %v808 = vpop.f32.mrb[0].mxu0
      %v809 = vadd.f32 %v595, %v808
      %v810 = vpop.f32.mrb[0].mxu0
      %v811 = vpop.f32.mrb[0].mxu0
      %v812 = vadd.f32 %v595, %v811
      %v813 = vpop.f32.mrb[0].mxu0
      %814 = vmatprep.mubr.bf16.mxu0 0
      %815 = vmatmul.mubr.bf16.gmra.mrb[0].mxu0 %v647
      %v816 = vpop.f32.mrb[0].mxu0
      %v817 = vadd.f32 %v595, %v816
      %v818 = vpop.f32.mrb[0].mxu0
      %v819 = vpop.f32.mrb[0].mxu0
      %v820 = vadd.f32 %v595, %v819
      %v821 = vpop.f32.mrb[0].mxu0
      %822 = vmatprep.mubr.bf16.mxu0 0
      %823 = vmatmul.mubr.bf16.gmra.mrb[0].mxu0 %v650
      %v824 = vpop.f32.mrb[0].mxu0
      %v825 = vadd.f32 %v595, %v824
      %v826 = vpop.f32.mrb[0].mxu0
      %v827 = vpop.f32.mrb[0].mxu0
      %v828 = vadd.f32 %v595, %v827
      %v829 = vpop.f32.mrb[0].mxu0
      %830 = vmatprep.mubr.bf16.mxu0 0
      %831 = vmatmul.mubr.bf16.gmra.mrb[0].mxu0 %v653
      %v832 = vpop.f32.mrb[0].mxu0
      %v833 = vadd.f32 %v595, %v832
      %v834 = vpop.f32.mrb[0].mxu0
      %v835 = vpop.f32.mrb[0].mxu0
      %v836 = vadd.f32 %v595, %v835
      %v837 = vpop.f32.mrb[0].mxu0
      %838 = vmatprep.mubr.bf16.mxu0 0
      %839 = vmatmul.mubr.bf16.gmra.mrb[0].mxu0 %v656
      %v840 = vpop.f32.mrb[0].mxu0
      %v841 = vadd.f32 %v595, %v840
      %v842 = vpop.f32.mrb[0].mxu0
      %v843 = vpop.f32.mrb[0].mxu0
      %v844 = vadd.f32 %v595, %v843
      %v845 = vpop.f32.mrb[0].mxu0
      %846 = vmatprep.mubr.bf16.mxu0 0
      %847 = vmatmul.mubr.bf16.gmra.mrb[0].mxu0 %v659
      %v848 = vpop.f32.mrb[0].mxu0
      %v849 = vadd.f32 %v595, %v848
      %v850 = vpop.f32.mrb[0].mxu0
      %v851 = vpop.f32.mrb[0].mxu0
      %v852 = vadd.f32 %v595, %v851
      %v853 = vpop.f32.mrb[0].mxu0
      %854 = vmatprep.mubr.bf16.mxu0 0
      %855 = vmatmul.mubr.bf16.gmra.mrb[0].mxu0 %v662
      %v856 = vpop.f32.mrb[0].mxu0
      %v857 = vadd.f32 %v595, %v856
      %v858 = vpop.f32.mrb[0].mxu0
      %v859 = vpop.f32.mrb[0].mxu0
      %v860 = vadd.f32 %v595, %v859
      %v861 = vpop.f32.mrb[0].mxu0
      %862 = vmatprep.mubr.bf16.mxu0 0
      %863 = vmatmul.mubr.bf16.gmra.mrb[0].mxu0 %v665
      %v864 = vpop.f32.mrb[0].mxu0
      %v865 = vadd.f32 %v595, %v864
      %v866 = vpop.f32.mrb[0].mxu0
      %v867 = vpop.f32.mrb[0].mxu0
      %v868 = vadd.f32 %v595, %v867
      %v869 = vpop.f32.mrb[0].mxu0
      %870 = vmatprep.mubr.bf16.mxu0 0
      %871 = vmatmul.mubr.bf16.gmra.mrb[0].mxu0 %v668
      %v872 = vpop.f32.mrb[0].mxu0
      %v873 = vadd.f32 %v595, %v872
      %v874 = vpop.f32.mrb[0].mxu0
      %v875 = vpop.f32.mrb[0].mxu0
      %v876 = vadd.f32 %v595, %v875
      %v877 = vpop.f32.mrb[0].mxu0
      %878 = vmatprep.mubr.bf16.mxu0 0
      %879 = vmatmul.mubr.bf16.gmra.mrb[0].mxu0 %v671
      %v880 = vpop.f32.mrb[0].mxu0
      %v881 = vadd.f32 %v595, %v880
      %v882 = vpop.f32.mrb[0].mxu0
      %v883 = vpop.f32.mrb[0].mxu0
      %v884 = vadd.f32 %v595, %v883
      %v885 = vpop.f32.mrb[0].mxu0
      %886 = vmatprep.mubr.bf16.mxu0 0
      %887 = vmatmul.mubr.bf16.gmra.mrb[0].mxu0 %v674
      %v888 = vpop.f32.mrb[0].mxu0
      %v889 = vadd.f32 %v595, %v888
      %v890 = vpop.f32.mrb[0].mxu0
      %v891 = vpop.f32.mrb[0].mxu0
      %v892 = vadd.f32 %v595, %v891
      %v893 = vpop.f32.mrb[0].mxu0
      %894 = vmatprep.mubr.bf16.mxu0 0
      %895 = vmatmul.mubr.bf16.gmra.mrb[0].mxu0 %v677
      %v896 = vpop.f32.mrb[0].mxu0
      %v897 = vadd.f32 %v595, %v896
      %v898 = vpop.f32.mrb[0].mxu0
      %v899 = vpop.f32.mrb[0].mxu0
      %v900 = vadd.f32 %v595, %v899
      %v901 = vpop.f32.mrb[0].mxu0
      %902 = vmatprep.mubr.bf16.mxu0 0
      %903 = vmatmul.mubr.bf16.gmra.mrb[0].mxu0 %v680
      %v904 = vpop.f32.mrb[0].mxu0
      %v905 = vadd.f32 %v595, %v904
      %v906 = vpop.f32.mrb[0].mxu0
      %v907 = vpop.f32.mrb[0].mxu0
      %v908 = vadd.f32 %v595, %v907
      %v909 = vpop.f32.mrb[0].mxu0
      %910 = vmatprep.mubr.bf16.mxu0 0
      %911 = vmatmul.mubr.bf16.gmra.mrb[0].mxu0 %v683
      %v912 = vpop.f32.mrb[0].mxu0
      %v913 = vadd.f32 %v595, %v912
      %v914 = vpop.f32.mrb[0].mxu0
      %v915 = vpop.f32.mrb[0].mxu0
      %v916 = vadd.f32 %v595, %v915
      %v917 = vpop.f32.mrb[0].mxu0
      %918 = vmatprep.mubr.bf16.mxu0 0
      %919 = vmatmul.mubr.bf16.gmra.mrb[0].mxu0 %v686
      %v920 = vpop.f32.mrb[0].mxu0
      %v921 = vadd.f32 %v595, %v920
      %v922 = vpop.f32.mrb[0].mxu0
      %v923 = vpop.f32.mrb[0].mxu0
      %v924 = vadd.f32 %v595, %v923
      %v925 = vpop.f32.mrb[0].mxu0
      %926 = vmatprep.mubr.bf16.mxu0 0
      %927 = vmatmul.mubr.bf16.gmra.mrb[0].mxu0 %v689
      %v928 = vpop.f32.mrb[0].mxu0
      %v929 = vadd.f32 %v595, %v928
      %v930 = vpop.f32.mrb[0].mxu0
      %v931 = vpop.f32.mrb[0].mxu0
      %v932 = vadd.f32 %v595, %v931
      %v933 = vpop.f32.mrb[0].mxu0
      %934 = vmatprep.mubr.bf16.mxu0 0
      %935 = vmatmul.mubr.bf16.gmra.mrb[0].mxu0 %v692
      %v936 = vpop.f32.mrb[0].mxu0
      %v937 = vadd.f32 %v595, %v936
      %v938 = vpop.f32.mrb[0].mxu0
      %v939 = vpop.f32.mrb[0].mxu0
      %v940 = vadd.f32 %v595, %v939
      %v941 = vpop.f32.mrb[0].mxu0
      %942 = vmatprep.mubr.bf16.mxu0 0
      %943 = vmatmul.mubr.bf16.gmra.mrb[0].mxu0 %v695
      %v944 = vpop.f32.mrb[0].mxu0
      %v945 = vadd.f32 %v595, %v944
      %v946 = vpop.f32.mrb[0].mxu0
      %v947 = vpop.f32.mrb[0].mxu0
      %v948 = vadd.f32 %v595, %v947
      %v949 = vpop.f32.mrb[0].mxu0
      %950 = vmatprep.mubr.bf16.mxu0 0
      %951 = vmatmul.mubr.bf16.gmra.mrb[0].mxu0 %v698
      %v952 = vpop.f32.mrb[0].mxu0
      %v953 = vadd.f32 %v595, %v952
      %v954 = vpop.f32.mrb[0].mxu0
      %v955 = vpop.f32.mrb[0].mxu0
      %v956 = vadd.f32 %v595, %v955
      %v957 = vpop.f32.mrb[0].mxu0
      %958 = vmatprep.mubr.bf16.mxu0 0
      %959 = vmatmul.mubr.bf16.gmra.mrb[0].mxu0 %v701
      %v960 = vpop.f32.mrb[0].mxu0
      %v961 = vadd.f32 %v595, %v960
      %v962 = vpop.f32.mrb[0].mxu0
      %v963 = vpop.f32.mrb[0].mxu0
      %v964 = vadd.f32 %v595, %v963
      %v965 = vpop.f32.mrb[0].mxu0
      %966 = vmatprep.mubr.bf16.mxu0 0
      %967 = vmatmul.mubr.bf16.gmra.mrb[0].mxu0 %v704
      %v968 = vpop.f32.mrb[0].mxu0
      %v969 = vadd.f32 %v595, %v968
      %v970 = vpop.f32.mrb[0].mxu0
      %v971 = vpop.f32.mrb[0].mxu0
      %v972 = vadd.f32 %v595, %v971
      %v973 = vpop.f32.mrb[0].mxu0
      %974 = vmatprep.mubr.bf16.mxu0 0
      %975 = vmatmul.mubr.bf16.gmra.mrb[0].mxu0 %v707
      %v976 = vpop.f32.mrb[0].mxu0
      %v977 = vadd.f32 %v595, %v976
      %v978 = vpop.f32.mrb[0].mxu0
      %v979 = vpop.f32.mrb[0].mxu0
      %v980 = vadd.f32 %v595, %v979
      %v981 = vpop.f32.mrb[0].mxu0
      %982 = vmatprep.mubr.bf16.mxu0 0
      %983 = vmatmul.mubr.bf16.gmra.mrb[0].mxu0 %v710
      %v984 = vpop.f32.mrb[0].mxu0
      %v985 = vadd.f32 %v595, %v984
      %v986 = vpop.f32.mrb[0].mxu0
      %v987 = vpop.f32.mrb[0].mxu0
      %v988 = vadd.f32 %v595, %v987
      %v989 = vpop.f32.mrb[0].mxu0
      %990 = vmatprep.mubr.bf16.mxu0 0
      %991 = vmatmul.mubr.bf16.gmra.mrb[0].mxu0 %v713
      %v992 = vpop.f32.mrb[0].mxu0
      %v993 = vadd.f32 %v595, %v992
      %v994 = vpop.f32.mrb[0].mxu0
      %v995 = vpop.f32.mrb[0].mxu0
      %v996 = vadd.f32 %v595, %v995
      %v997 = vpop.f32.mrb[0].mxu0
      %998 = vmatprep.mubr.bf16.mxu0 0
      %999 = vmatmul.mubr.bf16.gmra.mrb[0].mxu0 %v716
      %v1000 = vpop.f32.mrb[0].mxu0
      %v1001 = vadd.f32 %v595, %v1000
      %v1002 = vpop.f32.mrb[0].mxu0
      %v1003 = vpop.f32.mrb[0].mxu0
      %v1004 = vadd.f32 %v595, %v1003
      %v1005 = vpop.f32.mrb[0].mxu0
      %1006 = vdwg.mxu0
      %v1007 = vpack.c.bf16 %v756, %v753
      %v1008 = vpack.c.bf16 %v764, %v761
      %v1009 = vpack.c.bf16 %v772, %v769
      %v1010 = vpack.c.bf16 %v780, %v777
      %v1011 = vpack.c.bf16 %v788, %v785
      %v1012 = vpack.c.bf16 %v796, %v793
      %v1013 = vpack.c.bf16 %v804, %v801
      %v1014 = vpack.c.bf16 %v812, %v809
      %v1015 = vpack.c.bf16 %v820, %v817
      %v1016 = vpack.c.bf16 %v828, %v825
      %v1017 = vpack.c.bf16 %v836, %v833
      %v1018 = vpack.c.bf16 %v844, %v841
      %v1019 = vpack.c.bf16 %v852, %v849
      %v1020 = vpack.c.bf16 %v860, %v857
      %v1021 = vpack.c.bf16 %v868, %v865
      %v1022 = vpack.c.bf16 %v876, %v873
      %v1023 = vpack.c.bf16 %v884, %v881
      %v1024 = vpack.c.bf16 %v892, %v889
      %v1025 = vpack.c.bf16 %v900, %v897
      %v1026 = vpack.c.bf16 %v908, %v905
      %v1027 = vpack.c.bf16 %v916, %v913
      %v1028 = vpack.c.bf16 %v924, %v921
      %v1029 = vpack.c.bf16 %v932, %v929
      %v1030 = vpack.c.bf16 %v940, %v937
      %v1031 = vpack.c.bf16 %v948, %v945
      %v1032 = vpack.c.bf16 %v956, %v953
      %v1033 = vpack.c.bf16 %v964, %v961
      %v1034 = vpack.c.bf16 %v972, %v969
      %v1035 = vpack.c.bf16 %v980, %v977
      %v1036 = vpack.c.bf16 %v988, %v985
      %v1037 = vpack.c.bf16 %v996, %v993
      %v1038 = vpack.c.bf16 %v1004, %v1001
      %v1071 = vunpack.c.l.b16 %v1007
      %v1072 = vunpack.c.h.b16 %v1007
      %v1073 = vunpack.c.l.b16 %v1008
      %v1074 = vunpack.c.h.b16 %v1008
      %v1075 = vunpack.c.l.b16 %v1009
      %v1076 = vunpack.c.h.b16 %v1009
      %v1077 = vunpack.c.l.b16 %v1010
      %v1078 = vunpack.c.h.b16 %v1010
      %v1079 = vunpack.c.l.b16 %v1011
      %v1080 = vunpack.c.h.b16 %v1011
      %v1081 = vunpack.c.l.b16 %v1012
      %v1082 = vunpack.c.h.b16 %v1012
      %v1083 = vunpack.c.l.b16 %v1013
      %v1084 = vunpack.c.h.b16 %v1013
      %v1085 = vunpack.c.l.b16 %v1014
      %v1086 = vunpack.c.h.b16 %v1014
      %v1087 = vunpack.c.l.b16 %v1015
      %v1088 = vunpack.c.h.b16 %v1015
      %v1089 = vunpack.c.l.b16 %v1016
      %v1090 = vunpack.c.h.b16 %v1016
      %v1091 = vunpack.c.l.b16 %v1017
      %v1092 = vunpack.c.h.b16 %v1017
      %v1093 = vunpack.c.l.b16 %v1018
      %v1094 = vunpack.c.h.b16 %v1018
      %v1095 = vunpack.c.l.b16 %v1019
      %v1096 = vunpack.c.h.b16 %v1019
      %v1097 = vunpack.c.l.b16 %v1020
      %v1098 = vunpack.c.h.b16 %v1020
      %v1099 = vunpack.c.l.b16 %v1021
      %v1100 = vunpack.c.h.b16 %v1021
      %v1101 = vunpack.c.l.b16 %v1022
      %v1102 = vunpack.c.h.b16 %v1022
      %v1103 = vunpack.c.l.b16 %v1023
      %v1104 = vunpack.c.h.b16 %v1023
      %v1105 = vunpack.c.l.b16 %v1024
      %v1106 = vunpack.c.h.b16 %v1024
      %v1107 = vunpack.c.l.b16 %v1025
      %v1108 = vunpack.c.h.b16 %v1025
      %v1109 = vunpack.c.l.b16 %v1026
      %v1110 = vunpack.c.h.b16 %v1026
      %v1111 = vunpack.c.l.b16 %v1027
      %v1112 = vunpack.c.h.b16 %v1027
      %v1113 = vunpack.c.l.b16 %v1028
      %v1114 = vunpack.c.h.b16 %v1028
      %v1115 = vunpack.c.l.b16 %v1029
      %v1116 = vunpack.c.h.b16 %v1029
      %v1117 = vunpack.c.l.b16 %v1030
      %v1118 = vunpack.c.h.b16 %v1030
      %v1119 = vunpack.c.l.b16 %v1031
      %v1120 = vunpack.c.h.b16 %v1031
      %v1121 = vunpack.c.l.b16 %v1032
      %v1122 = vunpack.c.h.b16 %v1032
      %v1123 = vunpack.c.l.b16 %v1033
      %v1124 = vunpack.c.h.b16 %v1033
      %v1125 = vunpack.c.l.b16 %v1034
      %v1126 = vunpack.c.h.b16 %v1034
      %v1127 = vunpack.c.l.b16 %v1035
      %v1128 = vunpack.c.h.b16 %v1035
      %v1129 = vunpack.c.l.b16 %v1036
      %v1130 = vunpack.c.h.b16 %v1036
      %v1131 = vunpack.c.l.b16 %v1037
      %v1132 = vunpack.c.h.b16 %v1037
      %v1133 = vunpack.c.l.b16 %v1038
      %v1134 = vunpack.c.h.b16 %v1038
      %v1135 = vpack.c.b16 %v1071, %v1071
      %v1136 = vpack.c.b16 %v1072, %v1072
      %v1137 = vpack.c.b16 %v1073, %v1073
      %v1138 = vpack.c.b16 %v1074, %v1074
      %v1139 = vpack.c.b16 %v1075, %v1075
      %v1140 = vpack.c.b16 %v1076, %v1076
      %v1141 = vpack.c.b16 %v1077, %v1077
      %v1142 = vpack.c.b16 %v1078, %v1078
      %v1143 = vpack.c.b16 %v1079, %v1079
      %v1144 = vpack.c.b16 %v1080, %v1080
      %v1145 = vpack.c.b16 %v1081, %v1081
      %v1146 = vpack.c.b16 %v1082, %v1082
      %v1147 = vpack.c.b16 %v1083, %v1083
      %v1148 = vpack.c.b16 %v1084, %v1084
      %v1149 = vpack.c.b16 %v1085, %v1085
      %v1150 = vpack.c.b16 %v1086, %v1086
      %v1151 = vpack.c.b16 %v1087, %v1087
      %v1152 = vpack.c.b16 %v1088, %v1088
      %v1153 = vpack.c.b16 %v1089, %v1089
      %v1154 = vpack.c.b16 %v1090, %v1090
      %v1155 = vpack.c.b16 %v1091, %v1091
      %v1156 = vpack.c.b16 %v1092, %v1092
      %v1157 = vpack.c.b16 %v1093, %v1093
      %v1158 = vpack.c.b16 %v1094, %v1094
      %v1159 = vpack.c.b16 %v1095, %v1095
      %v1160 = vpack.c.b16 %v1096, %v1096
      %v1161 = vpack.c.b16 %v1097, %v1097
      %v1162 = vpack.c.b16 %v1098, %v1098
      %v1163 = vpack.c.b16 %v1099, %v1099
      %v1164 = vpack.c.b16 %v1100, %v1100
      %v1165 = vpack.c.b16 %v1101, %v1101
      %v1166 = vpack.c.b16 %v1102, %v1102
      %v1167 = vpack.c.b16 %v1103, %v1103
      %v1168 = vpack.c.b16 %v1104, %v1104
      %v1169 = vpack.c.b16 %v1105, %v1105
      %v1170 = vpack.c.b16 %v1106, %v1106
      %v1171 = vpack.c.b16 %v1107, %v1107
      %v1172 = vpack.c.b16 %v1108, %v1108
      %v1173 = vpack.c.b16 %v1109, %v1109
      %v1174 = vpack.c.b16 %v1110, %v1110
      %v1175 = vpack.c.b16 %v1111, %v1111
      %v1176 = vpack.c.b16 %v1112, %v1112
      %v1177 = vpack.c.b16 %v1113, %v1113
      %v1178 = vpack.c.b16 %v1114, %v1114
      %v1179 = vpack.c.b16 %v1115, %v1115
      %v1180 = vpack.c.b16 %v1116, %v1116
      %v1181 = vpack.c.b16 %v1117, %v1117
      %v1182 = vpack.c.b16 %v1118, %v1118
      %v1183 = vpack.c.b16 %v1119, %v1119
      %v1184 = vpack.c.b16 %v1120, %v1120
      %v1185 = vpack.c.b16 %v1121, %v1121
      %v1186 = vpack.c.b16 %v1122, %v1122
      %v1187 = vpack.c.b16 %v1123, %v1123
      %v1188 = vpack.c.b16 %v1124, %v1124
      %v1189 = vpack.c.b16 %v1125, %v1125
      %v1190 = vpack.c.b16 %v1126, %v1126
      %v1191 = vpack.c.b16 %v1127, %v1127
      %v1192 = vpack.c.b16 %v1128, %v1128
      %v1193 = vpack.c.b16 %v1129, %v1129
      %v1194 = vpack.c.b16 %v1130, %v1130
      %v1195 = vpack.c.b16 %v1131, %v1131
      %v1196 = vpack.c.b16 %v1132, %v1132
      %v1197 = vpack.c.b16 %v1133, %v1133
      %v1198 = vpack.c.b16 %v1134, %v1134
      %vm1263 = vcmask 519168
      %1264 = vst.msk [vmem:[%s331] sm:$0xf] %vm1263, %v1135
      %1265 = vst.msk [vmem:[%s331 + $0x4] sm:$0xf] %vm1263, %v1136
      %1266 = vst.msk [vmem:[%s331 + $0x8] sm:$0xf] %vm1263, %v1137
      %1267 = vst.msk [vmem:[%s331 + $0xc] sm:$0xf] %vm1263, %v1138
      %1268 = vst.msk [vmem:[%s331 + $0x10] sm:$0xf] %vm1263, %v1139
      %1269 = vst.msk [vmem:[%s331 + $0x14] sm:$0xf] %vm1263, %v1140
      %1270 = vst.msk [vmem:[%s331 + $0x18] sm:$0xf] %vm1263, %v1141
      %1271 = vst.msk [vmem:[%s331 + $0x1c] sm:$0xf] %vm1263, %v1142
      %1272 = vst.msk [vmem:[%s331 + $0x20] sm:$0xf] %vm1263, %v1143
      %1273 = vst.msk [vmem:[%s331 + $0x24] sm:$0xf] %vm1263, %v1144
      %1274 = vst.msk [vmem:[%s331 + $0x28] sm:$0xf] %vm1263, %v1145
      %1275 = vst.msk [vmem:[%s331 + $0x2c] sm:$0xf] %vm1263, %v1146
      %1276 = vst.msk [vmem:[%s331 + $0x30] sm:$0xf] %vm1263, %v1147
      %1277 = vst.msk [vmem:[%s331 + $0x34] sm:$0xf] %vm1263, %v1148
      %1278 = vst.msk [vmem:[%s331 + $0x38] sm:$0xf] %vm1263, %v1149
      %1279 = vst.msk [vmem:[%s331 + $0x3c] sm:$0xf] %vm1263, %v1150
      %1280 = vst.msk [vmem:[%s331 + $0x40] sm:$0xf] %vm1263, %v1151
      %1281 = vst.msk [vmem:[%s331 + $0x44] sm:$0xf] %vm1263, %v1152
      %1282 = vst.msk [vmem:[%s331 + $0x48] sm:$0xf] %vm1263, %v1153
      %1283 = vst.msk [vmem:[%s331 + $0x4c] sm:$0xf] %vm1263, %v1154
      %1284 = vst.msk [vmem:[%s331 + $0x50] sm:$0xf] %vm1263, %v1155
      %1285 = vst.msk [vmem:[%s331 + $0x54] sm:$0xf] %vm1263, %v1156
      %1286 = vst.msk [vmem:[%s331 + $0x58] sm:$0xf] %vm1263, %v1157
      %1287 = vst.msk [vmem:[%s331 + $0x5c] sm:$0xf] %vm1263, %v1158
      %1288 = vst.msk [vmem:[%s331 + $0x60] sm:$0xf] %vm1263, %v1159
      %1289 = vst.msk [vmem:[%s331 + $0x64] sm:$0xf] %vm1263, %v1160
      %1290 = vst.msk [vmem:[%s331 + $0x68] sm:$0xf] %vm1263, %v1161
      %1291 = vst.msk [vmem:[%s331 + $0x6c] sm:$0xf] %vm1263, %v1162
      %1292 = vst.msk [vmem:[%s331 + $0x70] sm:$0xf] %vm1263, %v1163
      %1293 = vst.msk [vmem:[%s331 + $0x74] sm:$0xf] %vm1263, %v1164
      %1294 = vst.msk [vmem:[%s331 + $0x78] sm:$0xf] %vm1263, %v1165
      %1295 = vst.msk [vmem:[%s331 + $0x7c] sm:$0xf] %vm1263, %v1166
      %1296 = vst.msk [vmem:[%s331 + $0x80] sm:$0xf] %vm1263, %v1167
      %1297 = vst.msk [vmem:[%s331 + $0x84] sm:$0xf] %vm1263, %v1168
      %1298 = vst.msk [vmem:[%s331 + $0x88] sm:$0xf] %vm1263, %v1169
      %1299 = vst.msk [vmem:[%s331 + $0x8c] sm:$0xf] %vm1263, %v1170
      %1300 = vst.msk [vmem:[%s331 + $0x90] sm:$0xf] %vm1263, %v1171
      %1301 = vst.msk [vmem:[%s331 + $0x94] sm:$0xf] %vm1263, %v1172
      %1302 = vst.msk [vmem:[%s331 + $0x98] sm:$0xf] %vm1263, %v1173
      %1303 = vst.msk [vmem:[%s331 + $0x9c] sm:$0xf] %vm1263, %v1174
      %1304 = vst.msk [vmem:[%s331 + $0xa0] sm:$0xf] %vm1263, %v1175
      %1305 = vst.msk [vmem:[%s331 + $0xa4] sm:$0xf] %vm1263, %v1176
      %1306 = vst.msk [vmem:[%s331 + $0xa8] sm:$0xf] %vm1263, %v1177
      %1307 = vst.msk [vmem:[%s331 + $0xac] sm:$0xf] %vm1263, %v1178
      %1308 = vst.msk [vmem:[%s331 + $0xb0] sm:$0xf] %vm1263, %v1179
      %1309 = vst.msk [vmem:[%s331 + $0xb4] sm:$0xf] %vm1263, %v1180
      %1310 = vst.msk [vmem:[%s331 + $0xb8] sm:$0xf] %vm1263, %v1181
      %1311 = vst.msk [vmem:[%s331 + $0xbc] sm:$0xf] %vm1263, %v1182
      %1312 = vst.msk [vmem:[%s331 + $0xc0] sm:$0xf] %vm1263, %v1183
      %1313 = vst.msk [vmem:[%s331 + $0xc4] sm:$0xf] %vm1263, %v1184
      %1314 = vst.msk [vmem:[%s331 + $0xc8] sm:$0xf] %vm1263, %v1185
      %1315 = vst.msk [vmem:[%s331 + $0xcc] sm:$0xf] %vm1263, %v1186
      %1316 = vst.msk [vmem:[%s331 + $0xd0] sm:$0xf] %vm1263, %v1187
      %1317 = vst.msk [vmem:[%s331 + $0xd4] sm:$0xf] %vm1263, %v1188
      %1318 = vst.msk [vmem:[%s331 + $0xd8] sm:$0xf] %vm1263, %v1189
      %1319 = vst.msk [vmem:[%s331 + $0xdc] sm:$0xf] %vm1263, %v1190
      %1320 = vst.msk [vmem:[%s331 + $0xe0] sm:$0xf] %vm1263, %v1191
      %1321 = vst.msk [vmem:[%s331 + $0xe4] sm:$0xf] %vm1263, %v1192
      %1322 = vst.msk [vmem:[%s331 + $0xe8] sm:$0xf] %vm1263, %v1193
      %1323 = vst.msk [vmem:[%s331 + $0xec] sm:$0xf] %vm1263, %v1194
      %1324 = vst.msk [vmem:[%s331 + $0xf0] sm:$0xf] %vm1263, %v1195
      %1325 = vst.msk [vmem:[%s331 + $0xf4] sm:$0xf] %vm1263, %v1196
      %1326 = vst.msk [vmem:[%s331 + $0xf8] sm:$0xf] %vm1263, %v1197
      %1327 = vst.msk [vmem:[%s331 + $0xfc] sm:$0xf] %vm1263, %v1198
      %1328 = vrot.lane.b32.xlu0 %v1135, 64
      %v1329 = vpop.permute.xlu0 %1328
      %1330 = vrot.lane.b32.xlu0 %v1136, 64
      %v1331 = vpop.permute.xlu0 %1330
      %1332 = vrot.lane.b32.xlu0 %v1137, 64
      %v1333 = vpop.permute.xlu0 %1332
      %1334 = vrot.lane.b32.xlu0 %v1138, 64
      %v1335 = vpop.permute.xlu0 %1334
      %1336 = vrot.lane.b32.xlu0 %v1139, 64
      %v1337 = vpop.permute.xlu0 %1336
      %1338 = vrot.lane.b32.xlu0 %v1140, 64
      %v1339 = vpop.permute.xlu0 %1338
      %1340 = vrot.lane.b32.xlu0 %v1141, 64
      %v1341 = vpop.permute.xlu0 %1340
      %1342 = vrot.lane.b32.xlu0 %v1142, 64
      %v1343 = vpop.permute.xlu0 %1342
      %1344 = vrot.lane.b32.xlu0 %v1143, 64
      %v1345 = vpop.permute.xlu0 %1344
      %1346 = vrot.lane.b32.xlu0 %v1144, 64
      %v1347 = vpop.permute.xlu0 %1346
      %1348 = vrot.lane.b32.xlu0 %v1145, 64
      %v1349 = vpop.permute.xlu0 %1348
      %1350 = vrot.lane.b32.xlu0 %v1146, 64
      %v1351 = vpop.permute.xlu0 %1350
      %1352 = vrot.lane.b32.xlu0 %v1147, 64
      %v1353 = vpop.permute.xlu0 %1352
      %1354 = vrot.lane.b32.xlu0 %v1148, 64
      %v1355 = vpop.permute.xlu0 %1354
      %1356 = vrot.lane.b32.xlu0 %v1149, 64
      %v1357 = vpop.permute.xlu0 %1356
      %1358 = vrot.lane.b32.xlu0 %v1150, 64
      %v1359 = vpop.permute.xlu0 %1358
      %1360 = vrot.lane.b32.xlu0 %v1151, 64
      %v1361 = vpop.permute.xlu0 %1360
      %1362 = vrot.lane.b32.xlu0 %v1152, 64
      %v1363 = vpop.permute.xlu0 %1362
      %1364 = vrot.lane.b32.xlu0 %v1153, 64
      %v1365 = vpop.permute.xlu0 %1364
      %1366 = vrot.lane.b32.xlu0 %v1154, 64
      %v1367 = vpop.permute.xlu0 %1366
      %1368 = vrot.lane.b32.xlu0 %v1155, 64
      %v1369 = vpop.permute.xlu0 %1368
      %1370 = vrot.lane.b32.xlu0 %v1156, 64
      %v1371 = vpop.permute.xlu0 %1370
      %1372 = vrot.lane.b32.xlu0 %v1157, 64
      %v1373 = vpop.permute.xlu0 %1372
      %1374 = vrot.lane.b32.xlu0 %v1158, 64
      %v1375 = vpop.permute.xlu0 %1374
      %1376 = vrot.lane.b32.xlu0 %v1159, 64
      %v1377 = vpop.permute.xlu0 %1376
      %1378 = vrot.lane.b32.xlu0 %v1160, 64
      %v1379 = vpop.permute.xlu0 %1378
      %1380 = vrot.lane.b32.xlu0 %v1161, 64
      %v1381 = vpop.permute.xlu0 %1380
      %1382 = vrot.lane.b32.xlu0 %v1162, 64
      %v1383 = vpop.permute.xlu0 %1382
      %1384 = vrot.lane.b32.xlu0 %v1163, 64
      %v1385 = vpop.permute.xlu0 %1384
      %1386 = vrot.lane.b32.xlu0 %v1164, 64
      %v1387 = vpop.permute.xlu0 %1386
      %1388 = vrot.lane.b32.xlu0 %v1165, 64
      %v1389 = vpop.permute.xlu0 %1388
      %1390 = vrot.lane.b32.xlu0 %v1166, 64
      %v1391 = vpop.permute.xlu0 %1390
      %1392 = vrot.lane.b32.xlu0 %v1167, 64
      %v1393 = vpop.permute.xlu0 %1392
      %1394 = vrot.lane.b32.xlu0 %v1168, 64
      %v1395 = vpop.permute.xlu0 %1394
      %1396 = vrot.lane.b32.xlu0 %v1169, 64
      %v1397 = vpop.permute.xlu0 %1396
      %1398 = vrot.lane.b32.xlu0 %v1170, 64
      %v1399 = vpop.permute.xlu0 %1398
      %1400 = vrot.lane.b32.xlu0 %v1171, 64
      %v1401 = vpop.permute.xlu0 %1400
      %1402 = vrot.lane.b32.xlu0 %v1172, 64
      %v1403 = vpop.permute.xlu0 %1402
      %1404 = vrot.lane.b32.xlu0 %v1173, 64
      %v1405 = vpop.permute.xlu0 %1404
      %1406 = vrot.lane.b32.xlu0 %v1174, 64
      %v1407 = vpop.permute.xlu0 %1406
      %1408 = vrot.lane.b32.xlu0 %v1175, 64
      %v1409 = vpop.permute.xlu0 %1408
      %1410 = vrot.lane.b32.xlu0 %v1176, 64
      %v1411 = vpop.permute.xlu0 %1410
      %1412 = vrot.lane.b32.xlu0 %v1177, 64
      %v1413 = vpop.permute.xlu0 %1412
      %1414 = vrot.lane.b32.xlu0 %v1178, 64
      %v1415 = vpop.permute.xlu0 %1414
      %1416 = vrot.lane.b32.xlu0 %v1179, 64
      %v1417 = vpop.permute.xlu0 %1416
      %1418 = vrot.lane.b32.xlu0 %v1180, 64
      %v1419 = vpop.permute.xlu0 %1418
      %1420 = vrot.lane.b32.xlu0 %v1181, 64
      %v1421 = vpop.permute.xlu0 %1420
      %1422 = vrot.lane.b32.xlu0 %v1182, 64
      %v1423 = vpop.permute.xlu0 %1422
      %1424 = vrot.lane.b32.xlu0 %v1183, 64
      %v1425 = vpop.permute.xlu0 %1424
      %1426 = vrot.lane.b32.xlu0 %v1184, 64
      %v1427 = vpop.permute.xlu0 %1426
      %1428 = vrot.lane.b32.xlu0 %v1185, 64
      %v1429 = vpop.permute.xlu0 %1428
      %1430 = vrot.lane.b32.xlu0 %v1186, 64
      %v1431 = vpop.permute.xlu0 %1430
      %1432 = vrot.lane.b32.xlu0 %v1187, 64
      %v1433 = vpop.permute.xlu0 %1432
      %1434 = vrot.lane.b32.xlu0 %v1188, 64
      %v1435 = vpop.permute.xlu0 %1434
      %1436 = vrot.lane.b32.xlu0 %v1189, 64
      %v1437 = vpop.permute.xlu0 %1436
      %1438 = vrot.lane.b32.xlu0 %v1190, 64
      %v1439 = vpop.permute.xlu0 %1438
      %1440 = vrot.lane.b32.xlu0 %v1191, 64
      %v1441 = vpop.permute.xlu0 %1440
      %1442 = vrot.lane.b32.xlu0 %v1192, 64
      %v1443 = vpop.permute.xlu0 %1442
      %1444 = vrot.lane.b32.xlu0 %v1193, 64
      %v1445 = vpop.permute.xlu0 %1444
      %1446 = vrot.lane.b32.xlu0 %v1194, 64
      %v1447 = vpop.permute.xlu0 %1446
      %1448 = vrot.lane.b32.xlu0 %v1195, 64
      %v1449 = vpop.permute.xlu0 %1448
      %1450 = vrot.lane.b32.xlu0 %v1196, 64
      %v1451 = vpop.permute.xlu0 %1450
      %1452 = vrot.lane.b32.xlu0 %v1197, 64
      %v1453 = vpop.permute.xlu0 %1452
      %1454 = vrot.lane.b32.xlu0 %v1198, 64
      %v1455 = vpop.permute.xlu0 %1454
      %1520 = vst.msk [vmem:[%s341] sm:$0xf] %vm1263, %v1329
      %1521 = vst.msk [vmem:[%s341 + $0x4] sm:$0xf] %vm1263, %v1331
      %1522 = vst.msk [vmem:[%s341 + $0x8] sm:$0xf] %vm1263, %v1333
      %1523 = vst.msk [vmem:[%s341 + $0xc] sm:$0xf] %vm1263, %v1335
      %1524 = vst.msk [vmem:[%s341 + $0x10] sm:$0xf] %vm1263, %v1337
      %1525 = vst.msk [vmem:[%s341 + $0x14] sm:$0xf] %vm1263, %v1339
      %1526 = vst.msk [vmem:[%s341 + $0x18] sm:$0xf] %vm1263, %v1341
      %1527 = vst.msk [vmem:[%s341 + $0x1c] sm:$0xf] %vm1263, %v1343
      %1528 = vst.msk [vmem:[%s341 + $0x20] sm:$0xf] %vm1263, %v1345
      %1529 = vst.msk [vmem:[%s341 + $0x24] sm:$0xf] %vm1263, %v1347
      %1530 = vst.msk [vmem:[%s341 + $0x28] sm:$0xf] %vm1263, %v1349
      %1531 = vst.msk [vmem:[%s341 + $0x2c] sm:$0xf] %vm1263, %v1351
      %1532 = vst.msk [vmem:[%s341 + $0x30] sm:$0xf] %vm1263, %v1353
      %1533 = vst.msk [vmem:[%s341 + $0x34] sm:$0xf] %vm1263, %v1355
      %1534 = vst.msk [vmem:[%s341 + $0x38] sm:$0xf] %vm1263, %v1357
      %1535 = vst.msk [vmem:[%s341 + $0x3c] sm:$0xf] %vm1263, %v1359
      %1536 = vst.msk [vmem:[%s341 + $0x40] sm:$0xf] %vm1263, %v1361
      %1537 = vst.msk [vmem:[%s341 + $0x44] sm:$0xf] %vm1263, %v1363
      %1538 = vst.msk [vmem:[%s341 + $0x48] sm:$0xf] %vm1263, %v1365
      %1539 = vst.msk [vmem:[%s341 + $0x4c] sm:$0xf] %vm1263, %v1367
      %1540 = vst.msk [vmem:[%s341 + $0x50] sm:$0xf] %vm1263, %v1369
      %1541 = vst.msk [vmem:[%s341 + $0x54] sm:$0xf] %vm1263, %v1371
      %1542 = vst.msk [vmem:[%s341 + $0x58] sm:$0xf] %vm1263, %v1373
      %1543 = vst.msk [vmem:[%s341 + $0x5c] sm:$0xf] %vm1263, %v1375
      %1544 = vst.msk [vmem:[%s341 + $0x60] sm:$0xf] %vm1263, %v1377
      %1545 = vst.msk [vmem:[%s341 + $0x64] sm:$0xf] %vm1263, %v1379
      %1546 = vst.msk [vmem:[%s341 + $0x68] sm:$0xf] %vm1263, %v1381
      %1547 = vst.msk [vmem:[%s341 + $0x6c] sm:$0xf] %vm1263, %v1383
      %1548 = vst.msk [vmem:[%s341 + $0x70] sm:$0xf] %vm1263, %v1385
      %1549 = vst.msk [vmem:[%s341 + $0x74] sm:$0xf] %vm1263, %v1387
      %1550 = vst.msk [vmem:[%s341 + $0x78] sm:$0xf] %vm1263, %v1389
      %1551 = vst.msk [vmem:[%s341 + $0x7c] sm:$0xf] %vm1263, %v1391
      %1552 = vst.msk [vmem:[%s341 + $0x80] sm:$0xf] %vm1263, %v1393
      %1553 = vst.msk [vmem:[%s341 + $0x84] sm:$0xf] %vm1263, %v1395
      %1554 = vst.msk [vmem:[%s341 + $0x88] sm:$0xf] %vm1263, %v1397
      %1555 = vst.msk [vmem:[%s341 + $0x8c] sm:$0xf] %vm1263, %v1399
      %1556 = vst.msk [vmem:[%s341 + $0x90] sm:$0xf] %vm1263, %v1401
      %1557 = vst.msk [vmem:[%s341 + $0x94] sm:$0xf] %vm1263, %v1403
      %1558 = vst.msk [vmem:[%s341 + $0x98] sm:$0xf] %vm1263, %v1405
      %1559 = vst.msk [vmem:[%s341 + $0x9c] sm:$0xf] %vm1263, %v1407
      %1560 = vst.msk [vmem:[%s341 + $0xa0] sm:$0xf] %vm1263, %v1409
      %1561 = vst.msk [vmem:[%s341 + $0xa4] sm:$0xf] %vm1263, %v1411
      %1562 = vst.msk [vmem:[%s341 + $0xa8] sm:$0xf] %vm1263, %v1413
      %1563 = vst.msk [vmem:[%s341 + $0xac] sm:$0xf] %vm1263, %v1415
      %1564 = vst.msk [vmem:[%s341 + $0xb0] sm:$0xf] %vm1263, %v1417
      %1565 = vst.msk [vmem:[%s341 + $0xb4] sm:$0xf] %vm1263, %v1419
      %1566 = vst.msk [vmem:[%s341 + $0xb8] sm:$0xf] %vm1263, %v1421
      %1567 = vst.msk [vmem:[%s341 + $0xbc] sm:$0xf] %vm1263, %v1423
      %1568 = vst.msk [vmem:[%s341 + $0xc0] sm:$0xf] %vm1263, %v1425
      %1569 = vst.msk [vmem:[%s341 + $0xc4] sm:$0xf] %vm1263, %v1427
      %1570 = vst.msk [vmem:[%s341 + $0xc8] sm:$0xf] %vm1263, %v1429
      %1571 = vst.msk [vmem:[%s341 + $0xcc] sm:$0xf] %vm1263, %v1431
      %1572 = vst.msk [vmem:[%s341 + $0xd0] sm:$0xf] %vm1263, %v1433
      %1573 = vst.msk [vmem:[%s341 + $0xd4] sm:$0xf] %vm1263, %v1435
      %1574 = vst.msk [vmem:[%s341 + $0xd8] sm:$0xf] %vm1263, %v1437
      %1575 = vst.msk [vmem:[%s341 + $0xdc] sm:$0xf] %vm1263, %v1439
      %1576 = vst.msk [vmem:[%s341 + $0xe0] sm:$0xf] %vm1263, %v1441
      %1577 = vst.msk [vmem:[%s341 + $0xe4] sm:$0xf] %vm1263, %v1443
      %1578 = vst.msk [vmem:[%s341 + $0xe8] sm:$0xf] %vm1263, %v1445
      %1579 = vst.msk [vmem:[%s341 + $0xec] sm:$0xf] %vm1263, %v1447
      %1580 = vst.msk [vmem:[%s341 + $0xf0] sm:$0xf] %vm1263, %v1449
      %1581 = vst.msk [vmem:[%s341 + $0xf4] sm:$0xf] %vm1263, %v1451
      %1582 = vst.msk [vmem:[%s341 + $0xf8] sm:$0xf] %vm1263, %v1453
      %1583 = vst.msk [vmem:[%s341 + $0xfc] sm:$0xf] %vm1263, %v1455
      %s1584 = smul.u32 64, %s23
      %p1585 = scmp.lt.s32.totalorder %s22, 1
      %s1586 = scalar_select %p1585, %s22, 1
      %p1587 = scmp.lt.s32.totalorder %s1584, 127
      %s1588 = scalar_select %p1587, %s1584, 127
      %s1589 = smul.addr %s1586, 128
      %s1590 = sadd.s32 %s1588, %s1589
      %s1591 = smul.addr %s1590, 4
      %s1592 = scalar_lea.vmem %s5, %s1591
      %s1593 = smul.u32 64, %s23
      %p1594 = scmp.lt.s32.totalorder %s22, 1
      %s1595 = scalar_select %p1594, %s22, 1
      %p1596 = scmp.lt.s32.totalorder %s1593, 127
      %s1597 = scalar_select %p1596, %s1593, 127
      %s1598 = smul.addr %s1595, 128
      %s1599 = sadd.s32 %s1597, %s1598
      %s1600 = smul.addr %s1599, 4
      %s1601 = scalar_lea.vmem %s6, %s1600
      // Predicated region
      $region41: #{vae_attention_block.4} parent=39 // pred_check
        %p1602 = pneg %p172
      $region42: #{vae_attention_block.4} parent=39 // pred_check_branch
        %1604 = sbr.rel (%p1602) target = $region44
      $region43: #{vae_attention_block.4} parent=39 // pred_region
        %s1605 = smul.u32 64, %s23
      $region44: #{vae_attention_block.4} parent=39 // pred_fallthru
        _
      // Predicated region
      $region45: #{vae_attention_block.4} parent=39 // pred_check
        %p1606 = pneg %p200
      $region46: #{vae_attention_block.4} parent=39 // pred_check_branch
        %1608 = sbr.rel (%p1606) target = $region48
      $region47: #{vae_attention_block.4} parent=39 // pred_region
        %s1609 = smul.u32 64, %s23
      $region48: #{vae_attention_block.4} parent=39 // pred_fallthru
        _
    $region40: #{vae_attention_block.4} parent=5 // pred_fallthru
      _
    %p1610 = scmp.le.s32.totalorder 2, %s13
    // Predicated region
    $region49: #{vae_attention_block.4} parent=5 // pred_check
      %p1611 = pneg %p1610
    $region50: #{vae_attention_block.4} parent=5 // pred_check_branch
      %1613 = sbr.rel (%p1611) target = $region52
    $region51: #{vae_attention_block.4} parent=5 // pred_region
      %s1614 = ssub.s32 %s13, 2
      // Predicated region
      $region53: #{vae_attention_block.4} parent=51 // pred_check
        %p1615 = pneg %p178
      $region54: #{vae_attention_block.4} parent=51 // pred_check_branch
        %1617 = sbr.rel (%p1615) target = $region56
      $region55: #{vae_attention_block.4} parent=51 // pred_region
        %s1618 = smul.u32 64, %s25
        %p1619 = scmp.lt.s32.totalorder %s24, 1
        %s1620 = scalar_select %p1619, %s24, 1
        %p1621 = scmp.lt.s32.totalorder %s1618, 127
        %s1622 = scalar_select %p1621, %s1618, 127
        %s1623 = smul.addr %s1620, 128
        %s1624 = sadd.s32 %s1622, %s1623
        %s1625 = smul.addr %s1624, 4
        %s1626 = scalar_lea.vmem %s5, %s1625
      $region56: #{vae_attention_block.4} parent=51 // pred_fallthru
        _
      // Predicated region
      $region57: #{vae_attention_block.4} parent=51 // pred_check
        %p1627 = pneg %p206
      $region58: #{vae_attention_block.4} parent=51 // pred_check_branch
        %1629 = sbr.rel (%p1627) target = $region60
      $region59: #{vae_attention_block.4} parent=51 // pred_region
        %s1630 = smul.u32 64, %s25
        %p1631 = scmp.lt.s32.totalorder %s24, 1
        %s1632 = scalar_select %p1631, %s24, 1
        %p1633 = scmp.lt.s32.totalorder %s1630, 127
        %s1634 = scalar_select %p1633, %s1630, 127
        %s1635 = smul.addr %s1632, 128
        %s1636 = sadd.s32 %s1634, %s1635
        %s1637 = smul.addr %s1636, 4
        %s1638 = scalar_lea.vmem %s6, %s1637
      $region60: #{vae_attention_block.4} parent=51 // pred_fallthru
        _
    $region52: #{vae_attention_block.4} parent=5 // pred_fallthru
      _
  $region6: #{vae_attention_block.4} parent=0 // loop_footer
    %s17 = sadd.s32 1, %s13
  $region7: #{vae_attention_block.4} parent=0 // loop_footer_branch
    %12 = sbr.rel target = $region3
  $region8: #{vae_attention_block.4} parent=0 // loop_exit
    _

// kernel: vae_attention_block.5
$region0: #{vae_attention_block.5}
  #allocation0 [shape = 'u32[]', space=smem, size = 0x4, offset = 0x4, fixed_abs, tag = 'smem constant byte address 0x4 - core index']
  #allocation1 [shape = 'u32[144,128]{1,0:T(1,128)}', space=vmem, size = 0x12000, scoped, tag = 'internal scratch']
  #allocation2 [shape = 'bf16[256,64]{1,0:T(16,128)(2,1)}', space=vmem, size = 0x10000, scoped, tag = 'scratch operand']
  #allocation3 [shape = 'f32[256,1]{1,0:T(8,128)}', space=vmem, size = 0x20000, scoped, tag = 'scratch operand']
  #allocation4 [shape = 'f32[256,1]{1,0:T(8,128)}', space=vmem, size = 0x20000, scoped, tag = 'scratch operand']
  #allocation5 [shape = 'f32[256,64]{1,0:T(8,128)}', space=vmem, size = 0x20000, scoped, tag = 'scratch operand']
  %s0 = inlined_call_operand.vmem [shape: f32[2,1024,64], index: 0, kind: input, shape index: {}]
  %s1 = inlined_call_operand.vmem [shape: f32[2,1,64], index: 1, kind: input, shape index: {}]
  %s2 = inlined_call_operand.vmem [shape: f32[2,1,64], index: 2, kind: input, shape index: {}]
  %s3 = inlined_call_operand.vmem [shape: bf16[64,64], index: 3, kind: input, shape index: {}]
  %s4 = inlined_call_operand.vmem [shape: f32[1,64], index: 4, kind: input, shape index: {}]
  %s5 = inlined_call_operand.vmem [shape: bf16[2,1024,64], index: 5, kind: input, shape index: {}]
  %s6 = inlined_call_operand.vmem [shape: bf16[2,1024,64], index: 6, kind: input, shape index: {}]
  %s7 = inlined_call_operand.vmem [shape: bf16[64,64], index: 7, kind: input, shape index: {}]
  %s8 = inlined_call_operand.vmem [shape: f32[1,64], index: 8, kind: input, shape index: {}]
  %s9 = inlined_call_operand.vmem [shape: f32[2,64,1024], index: 9, kind: output, shape index: {}]
  %s10 = sld [smem:[#allocation0]]
  $region96: #{vae_attention_block.5} parent=0
    _
  %s12 = ssub.s32 1, %s10
  %s13 = scalar_select 0, %s12, %s10
  $region1: #{vae_attention_block.5} parent=0
    #allocation6 [shape = 'u8[131072]{0}', space=vmem, size = 0x20000, scoped, tag = 'output window, operand 0']
    loop: start=0, step=1, limit=18
    $region2: #{vae_attention_block.5} parent=1 // loop_pre_header
      _
    $region3: #{vae_attention_block.5} parent=1 // loop_header
      %s15 = sphi 0, %s19
      %p16 = scmp.ge.s32.totalorder %s15, 18
      %s22 = sphi 0, %s41
      %s23 = sphi 0, %s37
      %s24 = sphi 0, %s33
      %s25 = sphi 0, %s22
      %s26 = sphi 0, %s23
      %s27 = sphi 0, %s24
      %s28 = sphi 0, %s25
      %s29 = sphi 0, %s26
      %s30 = sphi 0, %s27
      %s46 = sphi 0, %s48
      %s49 = sphi 0, %s46
      %s50 = sphi 0, %s49
      %s66 = sphi 0, %s50
      %s72 = sphi 0, %s74
      %s75 = sphi 0, %s72
      %s76 = sphi 0, %s75
      %s92 = sphi 0, %s76
      %s98 = sphi 0, %s100
      %s101 = sphi 0, %s98
      %s102 = sphi 0, %s101
      %s118 = sphi 0, %s102
      %s122 = sphi 0, %s122
      %s124 = sphi 0, %s122
      %s125 = sphi 0, %s124
      %s139 = sphi 0, %s125
      %s143 = sphi 0, %s143
      %s145 = sphi 0, %s143
      %s146 = sphi 0, %s145
      %s160 = sphi 0, %s146
      %s166 = sphi 0, %s168
      %s169 = sphi 0, %s166
      %s170 = sphi 0, %s169
      %s186 = sphi 0, %s170
      %s192 = sphi 0, %s194
      %s195 = sphi 0, %s192
      %s196 = sphi 0, %s195
      %s212 = sphi 0, %s196
      %s216 = sphi 0, %s216
      %s218 = sphi 0, %s216
      %s219 = sphi 0, %s218
      %s233 = sphi 0, %s219
      %s237 = sphi 0, %s237
      %s239 = sphi 0, %s237
      %s240 = sphi 0, %s239
      %s254 = sphi 0, %s240
      %s262 = sphi 0, %s264
      %s265 = sphi 0, %s262
      %s266 = sphi 0, %s265
      %s282 = sphi 0, %s266
    $region4: #{vae_attention_block.5} parent=1 // loop_header_branch
      %18 = sbr.rel (%p16) target = $region8
    $region5: #{vae_attention_block.5} parent=1 // loop_body
      %s20 = ssub.s32 %s15, 1
      %s21 = ssub.s32 %s15, 2
      %s31 = sadd.s32 1, %s24
      %p32 = scmp.ge.s32.totalorder %s31, 2
      %s33 = scalar_select %p32, 0, %s31
      %s34 = sadd.s32 1, %s23
      %s35 = scalar_select %p32, %s34, %s23
      %p36 = scmp.ge.s32.totalorder %s35, 4
      %s37 = scalar_select %p36, 0, %s35
      %s38 = sadd.s32 1, %s22
      %s39 = scalar_select %p36, %s38, %s22
      %p40 = scmp.ge.s32.totalorder %s39, 2
      %s41 = scalar_select %p40, 0, %s39
      %s42 = ssub.s32 %s22, %s41
      %s43 = ssub.s32 %s23, %s37
      %s44 = sor.u32 %s42, %s43
      %p45 = scmp.eq.s32.totalorder %s44, 0
      %s47 = sadd.s32 %s46, 1
      %s48 = scalar_select %p45, %s46, %s47
      %p51 = pneg %p45
      %p52 = scmp.eq.s32.totalorder %s15, 15
      %p53 = por %p51, %p52
      %p54 = scmp.ne.s32.totalorder %s46, %s49
      %p55 = scmp.eq.s32.totalorder %s15, 0
      %p56 = por %p54, %p55
      %p57 = scmp.ne.s32.totalorder %s46, %s49
      %p58 = scmp.eq.s32.totalorder %s20, 15
      %p59 = por %p57, %p58
      %p60 = scmp.ne.s32.totalorder %s49, %s50
      %p61 = scmp.eq.s32.totalorder %s20, 0
      %p62 = por %p60, %p61
      %p63 = scmp.ne.s32.totalorder %s49, %s50
      %p64 = scmp.eq.s32.totalorder %s21, 15
      %p65 = por %p63, %p64
      %p67 = scmp.ne.s32.totalorder %s50, %s66
      %p68 = scmp.eq.s32.totalorder %s21, 0
      %p69 = por %p67, %p68
      %s70 = ssub.s32 %s22, %s41
      %p71 = scmp.eq.s32.totalorder %s70, 0
      %s73 = sadd.s32 %s72, 1
      %s74 = scalar_select %p71, %s72, %s73
      %p77 = pneg %p71
      %p78 = scmp.eq.s32.totalorder %s15, 15
      %p79 = por %p77, %p78
      %p80 = scmp.ne.s32.totalorder %s72, %s75
      %p81 = scmp.eq.s32.totalorder %s15, 0
      %p82 = por %p80, %p81
      %p83 = scmp.ne.s32.totalorder %s72, %s75
      %p84 = scmp.eq.s32.totalorder %s20, 15
      %p85 = por %p83, %p84
      %p86 = scmp.ne.s32.totalorder %s75, %s76
      %p87 = scmp.eq.s32.totalorder %s20, 0
      %p88 = por %p86, %p87
      %p89 = scmp.ne.s32.totalorder %s75, %s76
      %p90 = scmp.eq.s32.totalorder %s21, 15
      %p91 = por %p89, %p90
      %p93 = scmp.ne.s32.totalorder %s76, %s92
      %p94 = scmp.eq.s32.totalorder %s21, 0
      %p95 = por %p93, %p94
      %s96 = ssub.s32 %s22, %s41
      %p97 = scmp.eq.s32.totalorder %s96, 0
      %s99 = sadd.s32 %s98, 1
      %s100 = scalar_select %p97, %s98, %s99
      %p103 = pneg %p97
      %p104 = scmp.eq.s32.totalorder %s15, 15
      %p105 = por %p103, %p104
      %p106 = scmp.ne.s32.totalorder %s98, %s101
      %p107 = scmp.eq.s32.totalorder %s15, 0
      %p108 = por %p106, %p107
      %p109 = scmp.ne.s32.totalorder %s98, %s101
      %p110 = scmp.eq.s32.totalorder %s20, 15
      %p111 = por %p109, %p110
      %p112 = scmp.ne.s32.totalorder %s101, %s102
      %p113 = scmp.eq.s32.totalorder %s20, 0
      %p114 = por %p112, %p113
      %p115 = scmp.ne.s32.totalorder %s101, %s102
      %p116 = scmp.eq.s32.totalorder %s21, 15
      %p117 = por %p115, %p116
      %p119 = scmp.ne.s32.totalorder %s102, %s118
      %p120 = scmp.eq.s32.totalorder %s21, 0
      %p121 = por %p119, %p120
      %s123 = sadd.s32 %s122, 1
      %p126 = scmp.eq.s32.totalorder %s15, 15
      %p127 = scmp.ne.s32.totalorder %s122, %s124
      %p128 = scmp.eq.s32.totalorder %s15, 0
      %p129 = por %p127, %p128
      %p130 = scmp.ne.s32.totalorder %s122, %s124
      %p131 = scmp.eq.s32.totalorder %s20, 15
      %p132 = por %p130, %p131
      %p133 = scmp.ne.s32.totalorder %s124, %s125
      %p134 = scmp.eq.s32.totalorder %s20, 0
      %p135 = por %p133, %p134
      %p136 = scmp.ne.s32.totalorder %s124, %s125
      %p137 = scmp.eq.s32.totalorder %s21, 15
      %p138 = por %p136, %p137
      %p140 = scmp.ne.s32.totalorder %s125, %s139
      %p141 = scmp.eq.s32.totalorder %s21, 0
      %p142 = por %p140, %p141
      %s144 = sadd.s32 %s143, 1
      %p147 = scmp.eq.s32.totalorder %s15, 15
      %p148 = scmp.ne.s32.totalorder %s143, %s145
      %p149 = scmp.eq.s32.totalorder %s15, 0
      %p150 = por %p148, %p149
      %p151 = scmp.ne.s32.totalorder %s143, %s145
      %p152 = scmp.eq.s32.totalorder %s20, 15
      %p153 = por %p151, %p152
      %p154 = scmp.ne.s32.totalorder %s145, %s146
      %p155 = scmp.eq.s32.totalorder %s20, 0
      %p156 = por %p154, %p155
      %p157 = scmp.ne.s32.totalorder %s145, %s146
      %p158 = scmp.eq.s32.totalorder %s21, 15
      %p159 = por %p157, %p158
      %p161 = scmp.ne.s32.totalorder %s146, %s160
      %p162 = scmp.eq.s32.totalorder %s21, 0
      %p163 = por %p161, %p162
      %s164 = ssub.s32 %s22, %s41
      %p165 = scmp.eq.s32.totalorder %s164, 0
      %s167 = sadd.s32 %s166, 1
      %s168 = scalar_select %p165, %s166, %s167
      %p171 = pneg %p165
      %p172 = scmp.eq.s32.totalorder %s15, 15
      %p173 = por %p171, %p172
      %p174 = scmp.ne.s32.totalorder %s166, %s169
      %p175 = scmp.eq.s32.totalorder %s15, 0
      %p176 = por %p174, %p175
      %p177 = scmp.ne.s32.totalorder %s166, %s169
      %p178 = scmp.eq.s32.totalorder %s20, 15
      %p179 = por %p177, %p178
      %p180 = scmp.ne.s32.totalorder %s169, %s170
      %p181 = scmp.eq.s32.totalorder %s20, 0
      %p182 = por %p180, %p181
      %p183 = scmp.ne.s32.totalorder %s169, %s170
      %p184 = scmp.eq.s32.totalorder %s21, 15
      %p185 = por %p183, %p184
      %p187 = scmp.ne.s32.totalorder %s170, %s186
      %p188 = scmp.eq.s32.totalorder %s21, 0
      %p189 = por %p187, %p188
      %s190 = ssub.s32 %s22, %s41
      %p191 = scmp.eq.s32.totalorder %s190, 0
      %s193 = sadd.s32 %s192, 1
      %s194 = scalar_select %p191, %s192, %s193
      %p197 = pneg %p191
      %p198 = scmp.eq.s32.totalorder %s15, 15
      %p199 = por %p197, %p198
      %p200 = scmp.ne.s32.totalorder %s192, %s195
      %p201 = scmp.eq.s32.totalorder %s15, 0
      %p202 = por %p200, %p201
      %p203 = scmp.ne.s32.totalorder %s192, %s195
      %p204 = scmp.eq.s32.totalorder %s20, 15
      %p205 = por %p203, %p204
      %p206 = scmp.ne.s32.totalorder %s195, %s196
      %p207 = scmp.eq.s32.totalorder %s20, 0
      %p208 = por %p206, %p207
      %p209 = scmp.ne.s32.totalorder %s195, %s196
      %p210 = scmp.eq.s32.totalorder %s21, 15
      %p211 = por %p209, %p210
      %p213 = scmp.ne.s32.totalorder %s196, %s212
      %p214 = scmp.eq.s32.totalorder %s21, 0
      %p215 = por %p213, %p214
      %s217 = sadd.s32 %s216, 1
      %p220 = scmp.eq.s32.totalorder %s15, 15
      %p221 = scmp.ne.s32.totalorder %s216, %s218
      %p222 = scmp.eq.s32.totalorder %s15, 0
      %p223 = por %p221, %p222
      %p224 = scmp.ne.s32.totalorder %s216, %s218
      %p225 = scmp.eq.s32.totalorder %s20, 15
      %p226 = por %p224, %p225
      %p227 = scmp.ne.s32.totalorder %s218, %s219
      %p228 = scmp.eq.s32.totalorder %s20, 0
      %p229 = por %p227, %p228
      %p230 = scmp.ne.s32.totalorder %s218, %s219
      %p231 = scmp.eq.s32.totalorder %s21, 15
      %p232 = por %p230, %p231
      %p234 = scmp.ne.s32.totalorder %s219, %s233
      %p235 = scmp.eq.s32.totalorder %s21, 0
      %p236 = por %p234, %p235
      %s238 = sadd.s32 %s237, 1
      %p241 = scmp.eq.s32.totalorder %s15, 15
      %p242 = scmp.ne.s32.totalorder %s237, %s239
      %p243 = scmp.eq.s32.totalorder %s15, 0
      %p244 = por %p242, %p243
      %p245 = scmp.ne.s32.totalorder %s237, %s239
      %p246 = scmp.eq.s32.totalorder %s20, 15
      %p247 = por %p245, %p246
      %p248 = scmp.ne.s32.totalorder %s239, %s240
      %p249 = scmp.eq.s32.totalorder %s20, 0
      %p250 = por %p248, %p249
      %p251 = scmp.ne.s32.totalorder %s239, %s240
      %p252 = scmp.eq.s32.totalorder %s21, 15
      %p253 = por %p251, %p252
      %p255 = scmp.ne.s32.totalorder %s240, %s254
      %p256 = scmp.eq.s32.totalorder %s21, 0
      %p257 = por %p255, %p256
      %s258 = ssub.s32 %s22, %s41
      %s259 = ssub.s32 %s23, %s37
      %s260 = sor.u32 %s258, %s259
      %p261 = scmp.eq.s32.totalorder %s260, 0
      %s263 = sadd.s32 %s262, 1
      %s264 = scalar_select %p261, %s262, %s263
      %p267 = pneg %p261
      %p268 = scmp.eq.s32.totalorder %s15, 15
      %p269 = por %p267, %p268
      %p270 = scmp.ne.s32.totalorder %s262, %s265
      %p271 = scmp.eq.s32.totalorder %s15, 0
      %p272 = por %p270, %p271
      %p273 = scmp.ne.s32.totalorder %s262, %s265
      %p274 = scmp.eq.s32.totalorder %s20, 15
      %p275 = por %p273, %p274
      %p276 = scmp.ne.s32.totalorder %s265, %s266
      %p277 = scmp.eq.s32.totalorder %s20, 0
      %p278 = por %p276, %p277
      %p279 = scmp.ne.s32.totalorder %s265, %s266
      %p280 = scmp.eq.s32.totalorder %s21, 15
      %p281 = por %p279, %p280
      %p283 = scmp.ne.s32.totalorder %s266, %s282
      %p284 = scmp.eq.s32.totalorder %s21, 0
      %p285 = por %p283, %p284
      %p286 = scmp.le.s32.totalorder 1, %s15
      %p287 = scmp.lt.s32.totalorder %s15, 17
      %p288 = pnand %p286, %p287
      %p289 = pneg %p288
      // Predicated region
      $region9: #{vae_attention_block.5} parent=5 // pred_check
        _
      $region10: #{vae_attention_block.5} parent=5 // pred_check_branch
        %291 = sbr.rel (%p288) target = $region12
      $region11: #{vae_attention_block.5} parent=5 // pred_region
        %s292 = ssub.s32 %s15, 1
        // Predicated region
        $region13: #{vae_attention_block.5} parent=11 // pred_check
          %p293 = pneg %p135
        $region14: #{vae_attention_block.5} parent=11 // pred_check_branch
          %295 = sbr.rel (%p293) target = $region16
        $region15: #{vae_attention_block.5} parent=11 // pred_region
          _
        $region16: #{vae_attention_block.5} parent=11 // pred_fallthru
          _
        // Predicated region
        $region17: #{vae_attention_block.5} parent=11 // pred_check
          %p296 = pneg %p156
        $region18: #{vae_attention_block.5} parent=11 // pred_check_branch
          %298 = sbr.rel (%p296) target = $region20
        $region19: #{vae_attention_block.5} parent=11 // pred_region
          _
        $region20: #{vae_attention_block.5} parent=11 // pred_fallthru
          _
        // Predicated region
        $region21: #{vae_attention_block.5} parent=11 // pred_check
          %p299 = pneg %p229
        $region22: #{vae_attention_block.5} parent=11 // pred_check_branch
          %301 = sbr.rel (%p299) target = $region24
        $region23: #{vae_attention_block.5} parent=11 // pred_region
          _
        $region24: #{vae_attention_block.5} parent=11 // pred_fallthru
          _
        // Predicated region
        $region25: #{vae_attention_block.5} parent=11 // pred_check
          %p302 = pneg %p250
        $region26: #{vae_attention_block.5} parent=11 // pred_check_branch
          %304 = sbr.rel (%p302) target = $region28
        $region27: #{vae_attention_block.5} parent=11 // pred_region
          _
        $region28: #{vae_attention_block.5} parent=11 // pred_fallthru
          _
      $region12: #{vae_attention_block.5} parent=5 // pred_fallthru
        _
      %p305 = scmp.lt.s32.totalorder %s15, 16
      // Predicated region
      $region29: #{vae_attention_block.5} parent=5 // pred_check
        %p306 = pneg %p305
      $region30: #{vae_attention_block.5} parent=5 // pred_check_branch
        %308 = sbr.rel (%p306) target = $region32
      $region31: #{vae_attention_block.5} parent=5 // pred_region
        // Predicated region
        $region33: #{vae_attention_block.5} parent=31 // pred_check
          %p309 = pneg %p56
        $region34: #{vae_attention_block.5} parent=31 // pred_check_branch
          %311 = sbr.rel (%p309) target = $region36
        $region35: #{vae_attention_block.5} parent=31 // pred_region
          %s312 = smul.u32 32, %s23
          %p313 = scmp.lt.s32.totalorder %s22, 1
          %s314 = scalar_select %p313, %s22, 1
          %p315 = scmp.lt.s32.totalorder %s312, 127
          %s316 = scalar_select %p315, %s312, 127
          %s317 = smul.addr %s314, 128
          %s318 = sadd.s32 %s316, %s317
          %s319 = smul.addr %s318, 8
          %s320 = scalar_lea.vmem %s0, %s319
          %s321 = smul.u32 32, %s23
        $region36: #{vae_attention_block.5} parent=31 // pred_fallthru
          _
        // Predicated region
        $region37: #{vae_attention_block.5} parent=31 // pred_check
          %p322 = pneg %p82
        $region38: #{vae_attention_block.5} parent=31 // pred_check_branch
          %324 = sbr.rel (%p322) target = $region40
        $region39: #{vae_attention_block.5} parent=31 // pred_region
          %p325 = scmp.lt.s32.totalorder %s22, 1
          %s326 = scalar_select %p325, %s22, 1
          %s327 = scalar_lea.vmem %s1, %s326
        $region40: #{vae_attention_block.5} parent=31 // pred_fallthru
          _
        // Predicated region
        $region41: #{vae_attention_block.5} parent=31 // pred_check
          %p328 = pneg %p108
        $region42: #{vae_attention_block.5} parent=31 // pred_check_branch
          %330 = sbr.rel (%p328) target = $region44
        $region43: #{vae_attention_block.5} parent=31 // pred_region
          %p331 = scmp.lt.s32.totalorder %s22, 1
          %s332 = scalar_select %p331, %s22, 1
          %s333 = scalar_lea.vmem %s2, %s332
        $region44: #{vae_attention_block.5} parent=31 // pred_fallthru
          _
        // Predicated region
        $region45: #{vae_attention_block.5} parent=31 // pred_check
          %p334 = pneg %p176
        $region46: #{vae_attention_block.5} parent=31 // pred_check_branch
          %336 = sbr.rel (%p334) target = $region48
        $region47: #{vae_attention_block.5} parent=31 // pred_region
          %p337 = scmp.lt.s32.totalorder %s22, 1
          %s338 = scalar_select %p337, %s22, 1
          %s339 = smul.addr %s338, 128
          %s340 = smul.addr %s339, 4
          %s341 = scalar_lea.vmem %s5, %s340
        $region48: #{vae_attention_block.5} parent=31 // pred_fallthru
          _
        // Predicated region
        $region49: #{vae_attention_block.5} parent=31 // pred_check
          %p342 = pneg %p202
        $region50: #{vae_attention_block.5} parent=31 // pred_check_branch
          %344 = sbr.rel (%p342) target = $region52
        $region51: #{vae_attention_block.5} parent=31 // pred_region
          %p345 = scmp.lt.s32.totalorder %s22, 1
          %s346 = scalar_select %p345, %s22, 1
          %s347 = smul.addr %s346, 128
          %s348 = smul.addr %s347, 4
          %s349 = scalar_lea.vmem %s6, %s348
        $region52: #{vae_attention_block.5} parent=31 // pred_fallthru
          _
      $region32: #{vae_attention_block.5} parent=5 // pred_fallthru
        _
      %p350 = scmp.le.s32.totalorder 1, %s15
      %p351 = scmp.lt.s32.totalorder %s15, 17
      %p352 = pnand %p350, %p351
      %p353 = pneg %p352
      // Predicated region
      $region53: #{vae_attention_block.5} parent=5 // pred_check
        _
      $region54: #{vae_attention_block.5} parent=5 // pred_check_branch
        %355 = sbr.rel (%p352) target = $region56
      $region55: #{vae_attention_block.5} parent=5 // pred_region
        %s356 = ssub.s32 %s15, 1
        %s357 = smul.u32 32, %s26
        %p358 = scmp.lt.s32.totalorder %s25, 1
        %s359 = scalar_select %p358, %s25, 1
        %p360 = scmp.lt.s32.totalorder %s357, 127
        %s361 = scalar_select %p360, %s357, 127
        %s362 = smul.addr %s359, 128
        %s363 = sadd.s32 %s361, %s362
        %s364 = smul.addr %s363, 8
        %s365 = scalar_lea.vmem %s0, %s364
        %p366 = pneg %p62
        %p367 = pneg %p59
        %p368 = scmp.lt.s32.totalorder %s25, 1
        %s369 = scalar_select %p368, %s25, 1
        %s370 = scalar_lea.vmem %s1, %s369
        %p371 = pneg %p88
        %p372 = pneg %p85
        %p373 = scmp.lt.s32.totalorder %s25, 1
        %s374 = scalar_select %p373, %s25, 1
        %s375 = scalar_lea.vmem %s2, %s374
        %p376 = pneg %p114
        %p377 = pneg %p111
        %p378 = pneg %p135
        %p379 = pneg %p132
        %p380 = pneg %p156
        %p381 = pneg %p153
        %p382 = scmp.lt.s32.totalorder %s25, 1
        %s383 = scalar_select %p382, %s25, 1
        %s384 = smul.addr %s383, 128
        %s385 = smul.addr %s384, 4
        %s386 = scalar_lea.vmem %s5, %s385
        %p387 = pneg %p182
        %p388 = pneg %p179
        %p389 = scmp.lt.s32.totalorder %s25, 1
        %s390 = scalar_select %p389, %s25, 1
        %s391 = smul.addr %s390, 128
        %s392 = smul.addr %s391, 4
        %s393 = scalar_lea.vmem %s6, %s392
        %p394 = pneg %p208
        %p395 = pneg %p205
        %p396 = pneg %p229
        %p397 = pneg %p226
        %p398 = pneg %p250
        %p399 = pneg %p247
        %p400 = pneg %p278
        %p401 = pneg %p275
        %s402 = sand.u32 %s265, 1
        %s403 = sand.u32 %s265, 1
        %s404 = smul.addr %s403, 128
        %s405 = scalar_lea.vmem [#allocation6], %s404
        %s406 = smul.u32 32, %s26
        %p407 = scmp.lt.s32.totalorder %s25, 1
        %s408 = scalar_select %p407, %s25, 1
        %p409 = scmp.lt.s32.totalorder %s406, 127
        %s410 = scalar_select %p409, %s406, 127
        %s411 = smul.addr %s408, 128
        %s412 = sadd.s32 %s410, %s411
        %s413 = smul.addr %s412, 8
        %s414 = scalar_lea.vmem %s0, %s413
        %s415 = smul.u32 32, %s26
        %p416 = scmp.lt.s32.totalorder %s25, 1
        %s417 = scalar_select %p416, %s25, 1
        %s418 = scalar_lea.vmem %s1, %s417
        %p419 = scmp.lt.s32.totalorder %s25, 1
        %s420 = scalar_select %p419, %s25, 1
        %s421 = scalar_lea.vmem %s2, %s420
        %p422 = scmp.lt.s32.totalorder %s25, 1
        %s423 = scalar_select %p422, %s25, 1
        %s424 = smul.addr %s423, 128
        %s425 = smul.addr %s424, 4
        %s426 = scalar_lea.vmem %s5, %s425
        %p427 = scmp.lt.s32.totalorder %s25, 1
        %s428 = scalar_select %p427, %s25, 1
        %s429 = smul.addr %s428, 128
        %s430 = smul.addr %s429, 4
        %s431 = scalar_lea.vmem %s6, %s430
        %s432 = smul.u32 2, %s26
        %p434 = scmp.eq.s32.totalorder %s27, 0
        // Predicated region
        $region57: #{vae_attention_block.5} parent=55 // pred_check
          %p435 = pneg %p434
        $region58: #{vae_attention_block.5} parent=55 // pred_check_branch
          %437 = sbr.rel (%p435) target = $region60
        $region59: #{vae_attention_block.5} parent=55 // pred_region
          %v438 = vld [vmem:[%s414] sm:$0xff]
          %v439 = vld [vmem:[%s414 + $0x8] sm:$0xff]
          %v440 = vld [vmem:[%s414 + $0x10] sm:$0xff]
          %v441 = vld [vmem:[%s414 + $0x18] sm:$0xff]
          %v442 = vld [vmem:[%s414 + $0x20] sm:$0xff]
          %v443 = vld [vmem:[%s414 + $0x28] sm:$0xff]
          %v444 = vld [vmem:[%s414 + $0x30] sm:$0xff]
          %v445 = vld [vmem:[%s414 + $0x38] sm:$0xff]
          %v446 = vld [vmem:[%s414 + $0x40] sm:$0xff]
          %v447 = vld [vmem:[%s414 + $0x48] sm:$0xff]
          %v448 = vld [vmem:[%s414 + $0x50] sm:$0xff]
          %v449 = vld [vmem:[%s414 + $0x58] sm:$0xff]
          %v450 = vld [vmem:[%s414 + $0x60] sm:$0xff]
          %v451 = vld [vmem:[%s414 + $0x68] sm:$0xff]
          %v452 = vld [vmem:[%s414 + $0x70] sm:$0xff]
          %v453 = vld [vmem:[%s414 + $0x78] sm:$0xff]
          %v454 = vld [vmem:[%s414 + $0x80] sm:$0xff]
          %v455 = vld [vmem:[%s414 + $0x88] sm:$0xff]
          %v456 = vld [vmem:[%s414 + $0x90] sm:$0xff]
          %v457 = vld [vmem:[%s414 + $0x98] sm:$0xff]
          %v458 = vld [vmem:[%s414 + $0xa0] sm:$0xff]
          %v459 = vld [vmem:[%s414 + $0xa8] sm:$0xff]
          %v460 = vld [vmem:[%s414 + $0xb0] sm:$0xff]
          %v461 = vld [vmem:[%s414 + $0xb8] sm:$0xff]
          %v462 = vld [vmem:[%s414 + $0xc0] sm:$0xff]
          %v463 = vld [vmem:[%s414 + $0xc8] sm:$0xff]
          %v464 = vld [vmem:[%s414 + $0xd0] sm:$0xff]
          %v465 = vld [vmem:[%s414 + $0xd8] sm:$0xff]
          %v466 = vld [vmem:[%s414 + $0xe0] sm:$0xff]
          %v467 = vld [vmem:[%s414 + $0xe8] sm:$0xff]
          %v468 = vld [vmem:[%s414 + $0xf0] sm:$0xff]
          %v469 = vld [vmem:[%s414 + $0xf8] sm:$0xff]
          %v470 = vld [vmem:[%s418] sm:$0x1]
          %v472 = vlaneseq
          %v473 = vshrl.u32 %v472, 7
          %v474 = vsub.s32 0, %v473
          %v475 = vrot.slane %v470, %v474
          %v477 = vmul.f32 %v438, %v475
          %v478 = vmul.f32 %v439, %v475
          %v479 = vmul.f32 %v440, %v475
          %v480 = vmul.f32 %v441, %v475
          %v481 = vmul.f32 %v442, %v475
          %v482 = vmul.f32 %v443, %v475
          %v483 = vmul.f32 %v444, %v475
          %v484 = vmul.f32 %v445, %v475
          %v485 = vmul.f32 %v446, %v475
          %v486 = vmul.f32 %v447, %v475
          %v487 = vmul.f32 %v448, %v475
          %v488 = vmul.f32 %v449, %v475
          %v489 = vmul.f32 %v450, %v475
          %v490 = vmul.f32 %v451, %v475
          %v491 = vmul.f32 %v452, %v475
          %v492 = vmul.f32 %v453, %v475
          %v493 = vmul.f32 %v454, %v475
          %v494 = vmul.f32 %v455, %v475
          %v495 = vmul.f32 %v456, %v475
          %v496 = vmul.f32 %v457, %v475
          %v497 = vmul.f32 %v458, %v475
          %v498 = vmul.f32 %v459, %v475
          %v499 = vmul.f32 %v460, %v475
          %v500 = vmul.f32 %v461, %v475
          %v501 = vmul.f32 %v462, %v475
          %v502 = vmul.f32 %v463, %v475
          %v503 = vmul.f32 %v464, %v475
          %v504 = vmul.f32 %v465, %v475
          %v505 = vmul.f32 %v466, %v475
          %v506 = vmul.f32 %v467, %v475
          %v507 = vmul.f32 %v468, %v475
          %v508 = vmul.f32 %v469, %v475
          %v509 = vld [vmem:[%s421] sm:$0x1]
          %v511 = vlaneseq
          %v512 = vshrl.u32 %v511, 7
          %v513 = vsub.s32 0, %v512
          %v514 = vrot.slane %v509, %v513
          %v516 = vadd.f32 %v477, %v514
          %v517 = vadd.f32 %v478, %v514
          %v518 = vadd.f32 %v479, %v514
          %v519 = vadd.f32 %v480, %v514
          %v520 = vadd.f32 %v481, %v514
          %v521 = vadd.f32 %v482, %v514
          %v522 = vadd.f32 %v483, %v514
          %v523 = vadd.f32 %v484, %v514
          %v524 = vadd.f32 %v485, %v514
          %v525 = vadd.f32 %v486, %v514
          %v526 = vadd.f32 %v487, %v514
          %v527 = vadd.f32 %v488, %v514
          %v528 = vadd.f32 %v489, %v514
          %v529 = vadd.f32 %v490, %v514
          %v530 = vadd.f32 %v491, %v514
          %v531 = vadd.f32 %v492, %v514
          %v532 = vadd.f32 %v493, %v514
          %v533 = vadd.f32 %v494, %v514
          %v534 = vadd.f32 %v495, %v514
          %v535 = vadd.f32 %v496, %v514
          %v536 = vadd.f32 %v497, %v514
          %v537 = vadd.f32 %v498, %v514
          %v538 = vadd.f32 %v499, %v514
          %v539 = vadd.f32 %v500, %v514
          %v540 = vadd.f32 %v501, %v514
          %v541 = vadd.f32 %v502, %v514
          %v542 = vadd.f32 %v503, %v514
          %v543 = vadd.f32 %v504, %v514
          %v544 = vadd.f32 %v505, %v514
          %v545 = vadd.f32 %v506, %v514
          %v546 = vadd.f32 %v507, %v514
          %v547 = vadd.f32 %v508, %v514
          %v548 = vpack.c.bf16 %v517, %v516
          %v549 = vpack.c.bf16 %v519, %v518
          %v550 = vpack.c.bf16 %v521, %v520
          %v551 = vpack.c.bf16 %v523, %v522
          %v552 = vpack.c.bf16 %v525, %v524
          %v553 = vpack.c.bf16 %v527, %v526
          %v554 = vpack.c.bf16 %v529, %v528
          %v555 = vpack.c.bf16 %v531, %v530
          %v556 = vpack.c.bf16 %v533, %v532
          %v557 = vpack.c.bf16 %v535, %v534
          %v558 = vpack.c.bf16 %v537, %v536
          %v559 = vpack.c.bf16 %v539, %v538
          %v560 = vpack.c.bf16 %v541, %v540
          %v561 = vpack.c.bf16 %v543, %v542
          %v562 = vpack.c.bf16 %v545, %v544
          %v563 = vpack.c.bf16 %v547, %v546
          %v564 = vld [vmem:[%s3] sm:$0xf]
          %v565 = vld [vmem:[%s3 + $0x4] sm:$0xf]
          %v566 = vld [vmem:[%s3 + $0x8] sm:$0xf]
          %v567 = vld [vmem:[%s3 + $0xc] sm:$0xf]
          %v568 = vld [vmem:[%s3 + $0x10] sm:$0xf]
          %v569 = vld [vmem:[%s3 + $0x14] sm:$0xf]
          %v570 = vld [vmem:[%s3 + $0x18] sm:$0xf]
          %v571 = vld [vmem:[%s3 + $0x1c] sm:$0xf]
          %v572 = vld [vmem:[%s4] sm:$0x1]
          %v574 = vlaneseq
          %v575 = vshrl.u32 %v574, 7
          %v576 = vsub.s32 0, %v575
          %v577 = vrot.slane %v572, %v576
          %v587 = vunpack.c.l.b16 %v564
          %v588 = vunpack.c.l.b16 %v565
          %v589 = vunpack.c.l.b16 %v566
          %v590 = vunpack.c.l.b16 %v567
          %v591 = vunpack.c.l.b16 %v568
          %v592 = vunpack.c.l.b16 %v569
          %v593 = vunpack.c.l.b16 %v570
          %v594 = vunpack.c.l.b16 %v571
          %v595 = vpack.c.b16 %v588, %v587
          %v596 = vpack.c.b16 %v590, %v589
          %v597 = vpack.c.b16 %v592, %v591
          %v598 = vpack.c.b16 %v594, %v593
          %vm603 = vcmask 523264
          %v605 = vsel %vm603, %v548, 0
          %v608 = vsel %vm603, %v549, 0
          %v611 = vsel %vm603, %v550, 0
          %v614 = vsel %vm603, %v551, 0
          %v617 = vsel %vm603, %v552, 0
          %v620 = vsel %vm603, %v553, 0
          %v623 = vsel %vm603, %v554, 0
          %v626 = vsel %vm603, %v555, 0
          %v629 = vsel %vm603, %v556, 0
          %v632 = vsel %vm603, %v557, 0
          %v635 = vsel %vm603, %v558, 0
          %v638 = vsel %vm603, %v559, 0
          %v641 = vsel %vm603, %v560, 0
          %v644 = vsel %vm603, %v561, 0
          %v647 = vsel %vm603, %v562, 0
          %v650 = vsel %vm603, %v563, 0
          %652 = vmatprep.subr.bf16.mxu0 0
          %653 = vmatpush1.bf16.msra.mxu0 %v595
          %654 = vmatprep.subr.bf16.mxu0 0
          %655 = vmatpush1.bf16.msra.mxu0 %v596
          %656 = vmatprep.subr.bf16.mxu0 0
          %657 = vmatpush1.bf16.msra.mxu0 %v597
          %658 = vmatprep.subr.bf16.mxu0 0
          %659 = vmatpush1.bf16.msra.mxu0 %v598
          %660 = vmatprep.subr.bf16.mxu0 0
          %661 = vmatpush1.bf16.msra.mxu0 0
          %662 = vmatprep.subr.bf16.mxu0 0
          %663 = vmatpush1.bf16.msra.mxu0 0
          %664 = vmatprep.subr.bf16.mxu0 0
          %665 = vmatpush1.bf16.msra.mxu0 0
          %666 = vmatprep.subr.bf16.mxu0 0
          %667 = vmatpush1.bf16.msra.mxu0 0
          %668 = vmatprep.subr.bf16.mxu0 0
          %669 = vmatpush1.bf16.msra.mxu0 0
          %670 = vmatprep.subr.bf16.mxu0 0
          %671 = vmatpush1.bf16.msra.mxu0 0
          %672 = vmatprep.subr.bf16.mxu0 0
          %673 = vmatpush1.bf16.msra.mxu0 0
          %674 = vmatprep.subr.bf16.mxu0 0
          %675 = vmatpush1.bf16.msra.mxu0 0
          %676 = vmatprep.subr.bf16.mxu0 0
          %677 = vmatpush1.bf16.msra.mxu0 0
          %678 = vmatprep.subr.bf16.mxu0 0
          %679 = vmatpush1.bf16.msra.mxu0 0
          %680 = vmatprep.subr.bf16.mxu0 0
          %681 = vmatpush1.bf16.msra.mxu0 0
          %682 = vmatprep.subr.bf16.mxu0 0
          %683 = vmatpush1.bf16.msra.mxu0 0
          %684 = vmatprep.mubr.bf16.mxu0 0
          %685 = vmatmul.mubr.bf16.gmra.mrb[0].mxu0 %v605
          %v686 = vpop.f32.mrb[0].mxu0
          %v687 = vadd.f32 %v577, %v686
          %v688 = vpop.f32.mrb[0].mxu0
          %v689 = vpop.f32.mrb[0].mxu0
          %v690 = vadd.f32 %v577, %v689
          %v691 = vpop.f32.mrb[0].mxu0
          %692 = vmatprep.mubr.bf16.mxu0 0
          %693 = vmatmul.mubr.bf16.gmra.mrb[0].mxu0 %v608
          %v694 = vpop.f32.mrb[0].mxu0
          %v695 = vadd.f32 %v577, %v694
          %v696 = vpop.f32.mrb[0].mxu0
          %v697 = vpop.f32.mrb[0].mxu0
          %v698 = vadd.f32 %v577, %v697
          %v699 = vpop.f32.mrb[0].mxu0
          %700 = vmatprep.mubr.bf16.mxu0 0
          %701 = vmatmul.mubr.bf16.gmra.mrb[0].mxu0 %v611
          %v702 = vpop.f32.mrb[0].mxu0
          %v703 = vadd.f32 %v577, %v702
          %v704 = vpop.f32.mrb[0].mxu0
          %v705 = vpop.f32.mrb[0].mxu0
          %v706 = vadd.f32 %v577, %v705
          %v707 = vpop.f32.mrb[0].mxu0
          %708 = vmatprep.mubr.bf16.mxu0 0
          %709 = vmatmul.mubr.bf16.gmra.mrb[0].mxu0 %v614
          %v710 = vpop.f32.mrb[0].mxu0
          %v711 = vadd.f32 %v577, %v710
          %v712 = vpop.f32.mrb[0].mxu0
          %v713 = vpop.f32.mrb[0].mxu0
          %v714 = vadd.f32 %v577, %v713
          %v715 = vpop.f32.mrb[0].mxu0
          %716 = vmatprep.mubr.bf16.mxu0 0
          %717 = vmatmul.mubr.bf16.gmra.mrb[0].mxu0 %v617
          %v718 = vpop.f32.mrb[0].mxu0
          %v719 = vadd.f32 %v577, %v718
          %v720 = vpop.f32.mrb[0].mxu0
          %v721 = vpop.f32.mrb[0].mxu0
          %v722 = vadd.f32 %v577, %v721
          %v723 = vpop.f32.mrb[0].mxu0
          %724 = vmatprep.mubr.bf16.mxu0 0
          %725 = vmatmul.mubr.bf16.gmra.mrb[0].mxu0 %v620
          %v726 = vpop.f32.mrb[0].mxu0
          %v727 = vadd.f32 %v577, %v726
          %v728 = vpop.f32.mrb[0].mxu0
          %v729 = vpop.f32.mrb[0].mxu0
          %v730 = vadd.f32 %v577, %v729
          %v731 = vpop.f32.mrb[0].mxu0
          %732 = vmatprep.mubr.bf16.mxu0 0
          %733 = vmatmul.mubr.bf16.gmra.mrb[0].mxu0 %v623
          %v734 = vpop.f32.mrb[0].mxu0
          %v735 = vadd.f32 %v577, %v734
          %v736 = vpop.f32.mrb[0].mxu0
          %v737 = vpop.f32.mrb[0].mxu0
          %v738 = vadd.f32 %v577, %v737
          %v739 = vpop.f32.mrb[0].mxu0
          %740 = vmatprep.mubr.bf16.mxu0 0
          %741 = vmatmul.mubr.bf16.gmra.mrb[0].mxu0 %v626
          %v742 = vpop.f32.mrb[0].mxu0
          %v743 = vadd.f32 %v577, %v742
          %v744 = vpop.f32.mrb[0].mxu0
          %v745 = vpop.f32.mrb[0].mxu0
          %v746 = vadd.f32 %v577, %v745
          %v747 = vpop.f32.mrb[0].mxu0
          %748 = vmatprep.mubr.bf16.mxu0 0
          %749 = vmatmul.mubr.bf16.gmra.mrb[0].mxu0 %v629
          %v750 = vpop.f32.mrb[0].mxu0
          %v751 = vadd.f32 %v577, %v750
          %v752 = vpop.f32.mrb[0].mxu0
          %v753 = vpop.f32.mrb[0].mxu0
          %v754 = vadd.f32 %v577, %v753
          %v755 = vpop.f32.mrb[0].mxu0
          %756 = vmatprep.mubr.bf16.mxu0 0
          %757 = vmatmul.mubr.bf16.gmra.mrb[0].mxu0 %v632
          %v758 = vpop.f32.mrb[0].mxu0
          %v759 = vadd.f32 %v577, %v758
          %v760 = vpop.f32.mrb[0].mxu0
          %v761 = vpop.f32.mrb[0].mxu0
          %v762 = vadd.f32 %v577, %v761
          %v763 = vpop.f32.mrb[0].mxu0
          %764 = vmatprep.mubr.bf16.mxu0 0
          %765 = vmatmul.mubr.bf16.gmra.mrb[0].mxu0 %v635
          %v766 = vpop.f32.mrb[0].mxu0
          %v767 = vadd.f32 %v577, %v766
          %v768 = vpop.f32.mrb[0].mxu0
          %v769 = vpop.f32.mrb[0].mxu0
          %v770 = vadd.f32 %v577, %v769
          %v771 = vpop.f32.mrb[0].mxu0
          %772 = vmatprep.mubr.bf16.mxu0 0
          %773 = vmatmul.mubr.bf16.gmra.mrb[0].mxu0 %v638
          %v774 = vpop.f32.mrb[0].mxu0
          %v775 = vadd.f32 %v577, %v774
          %v776 = vpop.f32.mrb[0].mxu0
          %v777 = vpop.f32.mrb[0].mxu0
          %v778 = vadd.f32 %v577, %v777
          %v779 = vpop.f32.mrb[0].mxu0
          %780 = vmatprep.mubr.bf16.mxu0 0
          %781 = vmatmul.mubr.bf16.gmra.mrb[0].mxu0 %v641
          %v782 = vpop.f32.mrb[0].mxu0
          %v783 = vadd.f32 %v577, %v782
          %v784 = vpop.f32.mrb[0].mxu0
          %v785 = vpop.f32.mrb[0].mxu0
          %v786 = vadd.f32 %v577, %v785
          %v787 = vpop.f32.mrb[0].mxu0
          %788 = vmatprep.mubr.bf16.mxu0 0
          %789 = vmatmul.mubr.bf16.gmra.mrb[0].mxu0 %v644
          %v790 = vpop.f32.mrb[0].mxu0
          %v791 = vadd.f32 %v577, %v790
          %v792 = vpop.f32.mrb[0].mxu0
          %v793 = vpop.f32.mrb[0].mxu0
          %v794 = vadd.f32 %v577, %v793
          %v795 = vpop.f32.mrb[0].mxu0
          %796 = vmatprep.mubr.bf16.mxu0 0
          %797 = vmatmul.mubr.bf16.gmra.mrb[0].mxu0 %v647
          %v798 = vpop.f32.mrb[0].mxu0
          %v799 = vadd.f32 %v577, %v798
          %v800 = vpop.f32.mrb[0].mxu0
          %v801 = vpop.f32.mrb[0].mxu0
          %v802 = vadd.f32 %v577, %v801
          %v803 = vpop.f32.mrb[0].mxu0
          %804 = vmatprep.mubr.bf16.mxu0 0
          %805 = vmatmul.mubr.bf16.gmra.mrb[0].mxu0 %v650
          %v806 = vpop.f32.mrb[0].mxu0
          %v807 = vadd.f32 %v577, %v806
          %v808 = vpop.f32.mrb[0].mxu0
          %v809 = vpop.f32.mrb[0].mxu0
          %v810 = vadd.f32 %v577, %v809
          %v811 = vpop.f32.mrb[0].mxu0
          %812 = vdwg.mxu0
          %v813 = vpack.c.bf16 %v690, %v687
          %v814 = vpack.c.bf16 %v698, %v695
          %v815 = vpack.c.bf16 %v706, %v703
          %v816 = vpack.c.bf16 %v714, %v711
          %v817 = vpack.c.bf16 %v722, %v719
          %v818 = vpack.c.bf16 %v730, %v727
          %v819 = vpack.c.bf16 %v738, %v735
          %v820 = vpack.c.bf16 %v746, %v743
          %v821 = vpack.c.bf16 %v754, %v751
          %v822 = vpack.c.bf16 %v762, %v759
          %v823 = vpack.c.bf16 %v770, %v767
          %v824 = vpack.c.bf16 %v778, %v775
          %v825 = vpack.c.bf16 %v786, %v783
          %v826 = vpack.c.bf16 %v794, %v791
          %v827 = vpack.c.bf16 %v802, %v799
          %v828 = vpack.c.bf16 %v810, %v807
          %829 = vst.msk [vmem:[#allocation2] sm:$0xff] %vm603, %v813
          %830 = vst.msk [vmem:[#allocation2 + $0x8] sm:$0xff] %vm603, %v814
          %831 = vst.msk [vmem:[#allocation2 + $0x10] sm:$0xff] %vm603, %v815
          %832 = vst.msk [vmem:[#allocation2 + $0x18] sm:$0xff] %vm603, %v816
          %833 = vst.msk [vmem:[#allocation2 + $0x20] sm:$0xff] %vm603, %v817
          %834 = vst.msk [vmem:[#allocation2 + $0x28] sm:$0xff] %vm603, %v818
          %835 = vst.msk [vmem:[#allocation2 + $0x30] sm:$0xff] %vm603, %v819
          %836 = vst.msk [vmem:[#allocation2 + $0x38] sm:$0xff] %vm603, %v820
          %837 = vst.msk [vmem:[#allocation2 + $0x40] sm:$0xff] %vm603, %v821
          %838 = vst.msk [vmem:[#allocation2 + $0x48] sm:$0xff] %vm603, %v822
          %839 = vst.msk [vmem:[#allocation2 + $0x50] sm:$0xff] %vm603, %v823
          %840 = vst.msk [vmem:[#allocation2 + $0x58] sm:$0xff] %vm603, %v824
          %841 = vst.msk [vmem:[#allocation2 + $0x60] sm:$0xff] %vm603, %v825
          %842 = vst.msk [vmem:[#allocation2 + $0x68] sm:$0xff] %vm603, %v826
          %843 = vst.msk [vmem:[#allocation2 + $0x70] sm:$0xff] %vm603, %v827
          %844 = vst.msk [vmem:[#allocation2 + $0x78] sm:$0xff] %vm603, %v828
          %vm845 = vcmask 7168
          %846 = vst.msk [vmem:[#allocation3] sm:$0xff] %vm845, -inf
          %847 = vst.msk [vmem:[#allocation3 + $0x8] sm:$0xff] %vm845, -inf
          %848 = vst.msk [vmem:[#allocation3 + $0x10] sm:$0xff] %vm845, -inf
          %849 = vst.msk [vmem:[#allocation3 + $0x18] sm:$0xff] %vm845, -inf
          %850 = vst.msk [vmem:[#allocation3 + $0x20] sm:$0xff] %vm845, -inf
          %851 = vst.msk [vmem:[#allocation3 + $0x28] sm:$0xff] %vm845, -inf
          %852 = vst.msk [vmem:[#allocation3 + $0x30] sm:$0xff] %vm845, -inf
          %853 = vst.msk [vmem:[#allocation3 + $0x38] sm:$0xff] %vm845, -inf
          %854 = vst.msk [vmem:[#allocation3 + $0x40] sm:$0xff] %vm845, -inf
          %855 = vst.msk [vmem:[#allocation3 + $0x48] sm:$0xff] %vm845, -inf
          %856 = vst.msk [vmem:[#allocation3 + $0x50] sm:$0xff] %vm845, -inf
          %857 = vst.msk [vmem:[#allocation3 + $0x58] sm:$0xff] %vm845, -inf
          %858 = vst.msk [vmem:[#allocation3 + $0x60] sm:$0xff] %vm845, -inf
          %859 = vst.msk [vmem:[#allocation3 + $0x68] sm:$0xff] %vm845, -inf
          %860 = vst.msk [vmem:[#allocation3 + $0x70] sm:$0xff] %vm845, -inf
          %861 = vst.msk [vmem:[#allocation3 + $0x78] sm:$0xff] %vm845, -inf
          %862 = vst.msk [vmem:[#allocation3 + $0x80] sm:$0xff] %vm845, -inf
          %863 = vst.msk [vmem:[#allocation3 + $0x88] sm:$0xff] %vm845, -inf
          %864 = vst.msk [vmem:[#allocation3 + $0x90] sm:$0xff] %vm845, -inf
          %865 = vst.msk [vmem:[#allocation3 + $0x98] sm:$0xff] %vm845, -inf
          %866 = vst.msk [vmem:[#allocation3 + $0xa0] sm:$0xff] %vm845, -inf
          %867 = vst.msk [vmem:[#allocation3 + $0xa8] sm:$0xff] %vm845, -inf
          %868 = vst.msk [vmem:[#allocation3 + $0xb0] sm:$0xff] %vm845, -inf
          %869 = vst.msk [vmem:[#allocation3 + $0xb8] sm:$0xff] %vm845, -inf
          %870 = vst.msk [vmem:[#allocation3 + $0xc0] sm:$0xff] %vm845, -inf
          %871 = vst.msk [vmem:[#allocation3 + $0xc8] sm:$0xff] %vm845, -inf
          %872 = vst.msk [vmem:[#allocation3 + $0xd0] sm:$0xff] %vm845, -inf
          %873 = vst.msk [vmem:[#allocation3 + $0xd8] sm:$0xff] %vm845, -inf
          %874 = vst.msk [vmem:[#allocation3 + $0xe0] sm:$0xff] %vm845, -inf
          %875 = vst.msk [vmem:[#allocation3 + $0xe8] sm:$0xff] %vm845, -inf
          %876 = vst.msk [vmem:[#allocation3 + $0xf0] sm:$0xff] %vm845, -inf
          %877 = vst.msk [vmem:[#allocation3 + $0xf8] sm:$0xff] %vm845, -inf
          %878 = vst.msk [vmem:[#allocation4] sm:$0xff] %vm845, 0.0
          %879 = vst.msk [vmem:[#allocation4 + $0x8] sm:$0xff] %vm845, 0.0
          %880 = vst.msk [vmem:[#allocation4 + $0x10] sm:$0xff] %vm845, 0.0
          %881 = vst.msk [vmem:[#allocation4 + $0x18] sm:$0xff] %vm845, 0.0
          %882 = vst.msk [vmem:[#allocation4 + $0x20] sm:$0xff] %vm845, 0.0
          %883 = vst.msk [vmem:[#allocation4 + $0x28] sm:$0xff] %vm845, 0.0
          %884 = vst.msk [vmem:[#allocation4 + $0x30] sm:$0xff] %vm845, 0.0
          %885 = vst.msk [vmem:[#allocation4 + $0x38] sm:$0xff] %vm845, 0.0
          %886 = vst.msk [vmem:[#allocation4 + $0x40] sm:$0xff] %vm845, 0.0
          %887 = vst.msk [vmem:[#allocation4 + $0x48] sm:$0xff] %vm845, 0.0
          %888 = vst.msk [vmem:[#allocation4 + $0x50] sm:$0xff] %vm845, 0.0
          %889 = vst.msk [vmem:[#allocation4 + $0x58] sm:$0xff] %vm845, 0.0
          %890 = vst.msk [vmem:[#allocation4 + $0x60] sm:$0xff] %vm845, 0.0
          %891 = vst.msk [vmem:[#allocation4 + $0x68] sm:$0xff] %vm845, 0.0
          %892 = vst.msk [vmem:[#allocation4 + $0x70] sm:$0xff] %vm845, 0.0
          %893 = vst.msk [vmem:[#allocation4 + $0x78] sm:$0xff] %vm845, 0.0
          %894 = vst.msk [vmem:[#allocation4 + $0x80] sm:$0xff] %vm845, 0.0
          %895 = vst.msk [vmem:[#allocation4 + $0x88] sm:$0xff] %vm845, 0.0
          %896 = vst.msk [vmem:[#allocation4 + $0x90] sm:$0xff] %vm845, 0.0
          %897 = vst.msk [vmem:[#allocation4 + $0x98] sm:$0xff] %vm845, 0.0
          %898 = vst.msk [vmem:[#allocation4 + $0xa0] sm:$0xff] %vm845, 0.0
          %899 = vst.msk [vmem:[#allocation4 + $0xa8] sm:$0xff] %vm845, 0.0
          %900 = vst.msk [vmem:[#allocation4 + $0xb0] sm:$0xff] %vm845, 0.0
          %901 = vst.msk [vmem:[#allocation4 + $0xb8] sm:$0xff] %vm845, 0.0
          %902 = vst.msk [vmem:[#allocation4 + $0xc0] sm:$0xff] %vm845, 0.0
          %903 = vst.msk [vmem:[#allocation4 + $0xc8] sm:$0xff] %vm845, 0.0
          %904 = vst.msk [vmem:[#allocation4 + $0xd0] sm:$0xff] %vm845, 0.0
          %905 = vst.msk [vmem:[#allocation4 + $0xd8] sm:$0xff] %vm845, 0.0
          %906 = vst.msk [vmem:[#allocation4 + $0xe0] sm:$0xff] %vm845, 0.0
          %907 = vst.msk [vmem:[#allocation4 + $0xe8] sm:$0xff] %vm845, 0.0
          %908 = vst.msk [vmem:[#allocation4 + $0xf0] sm:$0xff] %vm845, 0.0
          %909 = vst.msk [vmem:[#allocation4 + $0xf8] sm:$0xff] %vm845, 0.0
          %910 = vst.msk [vmem:[#allocation5] sm:$0xff] %vm603, 0.0
          %911 = vst.msk [vmem:[#allocation5 + $0x8] sm:$0xff] %vm603, 0.0
          %912 = vst.msk [vmem:[#allocation5 + $0x10] sm:$0xff] %vm603, 0.0
          %913 = vst.msk [vmem:[#allocation5 + $0x18] sm:$0xff] %vm603, 0.0
          %914 = vst.msk [vmem:[#allocation5 + $0x20] sm:$0xff] %vm603, 0.0
          %915 = vst.msk [vmem:[#allocation5 + $0x28] sm:$0xff] %vm603, 0.0
          %916 = vst.msk [vmem:[#allocation5 + $0x30] sm:$0xff] %vm603, 0.0
          %917 = vst.msk [vmem:[#allocation5 + $0x38] sm:$0xff] %vm603, 0.0
          %918 = vst.msk [vmem:[#allocation5 + $0x40] sm:$0xff] %vm603, 0.0
          %919 = vst.msk [vmem:[#allocation5 + $0x48] sm:$0xff] %vm603, 0.0
          %920 = vst.msk [vmem:[#allocation5 + $0x50] sm:$0xff] %vm603, 0.0
          %921 = vst.msk [vmem:[#allocation5 + $0x58] sm:$0xff] %vm603, 0.0
          %922 = vst.msk [vmem:[#allocation5 + $0x60] sm:$0xff] %vm603, 0.0
          %923 = vst.msk [vmem:[#allocation5 + $0x68] sm:$0xff] %vm603, 0.0
          %924 = vst.msk [vmem:[#allocation5 + $0x70] sm:$0xff] %vm603, 0.0
          %925 = vst.msk [vmem:[#allocation5 + $0x78] sm:$0xff] %vm603, 0.0
          %926 = vst.msk [vmem:[#allocation5 + $0x80] sm:$0xff] %vm603, 0.0
          %927 = vst.msk [vmem:[#allocation5 + $0x88] sm:$0xff] %vm603, 0.0
          %928 = vst.msk [vmem:[#allocation5 + $0x90] sm:$0xff] %vm603, 0.0
          %929 = vst.msk [vmem:[#allocation5 + $0x98] sm:$0xff] %vm603, 0.0
          %930 = vst.msk [vmem:[#allocation5 + $0xa0] sm:$0xff] %vm603, 0.0
          %931 = vst.msk [vmem:[#allocation5 + $0xa8] sm:$0xff] %vm603, 0.0
          %932 = vst.msk [vmem:[#allocation5 + $0xb0] sm:$0xff] %vm603, 0.0
          %933 = vst.msk [vmem:[#allocation5 + $0xb8] sm:$0xff] %vm603, 0.0
          %934 = vst.msk [vmem:[#allocation5 + $0xc0] sm:$0xff] %vm603, 0.0
          %935 = vst.msk [vmem:[#allocation5 + $0xc8] sm:$0xff] %vm603, 0.0
          %936 = vst.msk [vmem:[#allocation5 + $0xd0] sm:$0xff] %vm603, 0.0
          %937 = vst.msk [vmem:[#allocation5 + $0xd8] sm:$0xff] %vm603, 0.0
          %938 = vst.msk [vmem:[#allocation5 + $0xe0] sm:$0xff] %vm603, 0.0
          %939 = vst.msk [vmem:[#allocation5 + $0xe8] sm:$0xff] %vm603, 0.0
          %940 = vst.msk [vmem:[#allocation5 + $0xf0] sm:$0xff] %vm603, 0.0
          %941 = vst.msk [vmem:[#allocation5 + $0xf8] sm:$0xff] %vm603, 0.0
        $region60: #{vae_attention_block.5} parent=55 // pred_fallthru
          _
        %s942 = smul.u32 %s27, 512
        %s943 = sshra.s32 %s942, 3
        %s944 = sand.u32 %s942, 7
        %s945 = smul.addr %s943, 4
        %s946 = scalar_lea.vmem %s426, %s945
        %v947 = vld [vmem:[%s946] sm:$0xf]
        %v948 = vld [vmem:[%s946 + $0x4] sm:$0xf]
        %v949 = vld [vmem:[%s946 + $0x8] sm:$0xf]
        %v950 = vld [vmem:[%s946 + $0xc] sm:$0xf]
        %v951 = vld [vmem:[%s946 + $0x10] sm:$0xf]
        %v952 = vld [vmem:[%s946 + $0x14] sm:$0xf]
        %v953 = vld [vmem:[%s946 + $0x18] sm:$0xf]
        %v954 = vld [vmem:[%s946 + $0x1c] sm:$0xf]
        %v955 = vld [vmem:[%s946 + $0x20] sm:$0xf]
        %v956 = vld [vmem:[%s946 + $0x24] sm:$0xf]
        %v957 = vld [vmem:[%s946 + $0x28] sm:$0xf]
        %v958 = vld [vmem:[%s946 + $0x2c] sm:$0xf]
        %v959 = vld [vmem:[%s946 + $0x30] sm:$0xf]
        %v960 = vld [vmem:[%s946 + $0x34] sm:$0xf]
        %v961 = vld [vmem:[%s946 + $0x38] sm:$0xf]
        %v962 = vld [vmem:[%s946 + $0x3c] sm:$0xf]
        %v963 = vld [vmem:[%s946 + $0x40] sm:$0xf]
        %v964 = vld [vmem:[%s946 + $0x44] sm:$0xf]
        %v965 = vld [vmem:[%s946 + $0x48] sm:$0xf]
        %v966 = vld [vmem:[%s946 + $0x4c] sm:$0xf]
        %v967 = vld [vmem:[%s946 + $0x50] sm:$0xf]
        %v968 = vld [vmem:[%s946 + $0x54] sm:$0xf]
        %v969 = vld [vmem:[%s946 + $0x58] sm:$0xf]
        %v970 = vld [vmem:[%s946 + $0x5c] sm:$0xf]
        %v971 = vld [vmem:[%s946 + $0x60] sm:$0xf]
        %v972 = vld [vmem:[%s946 + $0x64] sm:$0xf]
        %v973 = vld [vmem:[%s946 + $0x68] sm:$0xf]
        %v974 = vld [vmem:[%s946 + $0x6c] sm:$0xf]
        %v975 = vld [vmem:[%s946 + $0x70] sm:$0xf]
        %v976 = vld [vmem:[%s946 + $0x74] sm:$0xf]
        %v977 = vld [vmem:[%s946 + $0x78] sm:$0xf]
        %v978 = vld [vmem:[%s946 + $0x7c] sm:$0xf]
        %v979 = vld [vmem:[%s946 + $0x80] sm:$0xf]
        %v980 = vld [vmem:[%s946 + $0x84] sm:$0xf]
        %v981 = vld [vmem:[%s946 + $0x88] sm:$0xf]
        %v982 = vld [vmem:[%s946 + $0x8c] sm:$0xf]
        %v983 = vld [vmem:[%s946 + $0x90] sm:$0xf]
        %v984 = vld [vmem:[%s946 + $0x94] sm:$0xf]
        %v985 = vld [vmem:[%s946 + $0x98] sm:$0xf]
        %v986 = vld [vmem:[%s946 + $0x9c] sm:$0xf]
        %v987 = vld [vmem:[%s946 + $0xa0] sm:$0xf]
        %v988 = vld [vmem:[%s946 + $0xa4] sm:$0xf]
        %v989 = vld [vmem:[%s946 + $0xa8] sm:$0xf]
        %v990 = vld [vmem:[%s946 + $0xac] sm:$0xf]
        %v991 = vld [vmem:[%s946 + $0xb0] sm:$0xf]
        %v992 = vld [vmem:[%s946 + $0xb4] sm:$0xf]
        %v993 = vld [vmem:[%s946 + $0xb8] sm:$0xf]
        %v994 = vld [vmem:[%s946 + $0xbc] sm:$0xf]
        %v995 = vld [vmem:[%s946 + $0xc0] sm:$0xf]
        %v996 = vld [vmem:[%s946 + $0xc4] sm:$0xf]
        %v997 = vld [vmem:[%s946 + $0xc8] sm:$0xf]
        %v998 = vld [vmem:[%s946 + $0xcc] sm:$0xf]
        %v999 = vld [vmem:[%s946 + $0xd0] sm:$0xf]
        %v1000 = vld [vmem:[%s946 + $0xd4] sm:$0xf]
        %v1001 = vld [vmem:[%s946 + $0xd8] sm:$0xf]
        %v1002 = vld [vmem:[%s946 + $0xdc] sm:$0xf]
        %v1003 = vld [vmem:[%s946 + $0xe0] sm:$0xf]
        %v1004 = vld [vmem:[%s946 + $0xe4] sm:$0xf]
        %v1005 = vld [vmem:[%s946 + $0xe8] sm:$0xf]
        %v1006 = vld [vmem:[%s946 + $0xec] sm:$0xf]
        %v1007 = vld [vmem:[%s946 + $0xf0] sm:$0xf]
        %v1008 = vld [vmem:[%s946 + $0xf4] sm:$0xf]
        %v1009 = vld [vmem:[%s946 + $0xf8] sm:$0xf]
        %v1010 = vld [vmem:[%s946 + $0xfc] sm:$0xf]
        %s1011 = smul.addr %s943, 4
        %s1012 = scalar_lea.vmem %s431, %s1011
        %v1013 = vld [vmem:[%s1012] sm:$0xf]
        %v1014 = vld [vmem:[%s1012 + $0x4] sm:$0xf]
        %v1015 = vld [vmem:[%s1012 + $0x8] sm:$0xf]
        %v1016 = vld [vmem:[%s1012 + $0xc] sm:$0xf]
        %v1017 = vld [vmem:[%s1012 + $0x10] sm:$0xf]
        %v1018 = vld [vmem:[%s1012 + $0x14] sm:$0xf]
        %v1019 = vld [vmem:[%s1012 + $0x18] sm:$0xf]
        %v1020 = vld [vmem:[%s1012 + $0x1c] sm:$0xf]
        %v1021 = vld [vmem:[%s1012 + $0x20] sm:$0xf]
        %v1022 = vld [vmem:[%s1012 + $0x24] sm:$0xf]
        %v1023 = vld [vmem:[%s1012 + $0x28] sm:$0xf]
        %v1024 = vld [vmem:[%s1012 + $0x2c] sm:$0xf]
        %v1025 = vld [vmem:[%s1012 + $0x30] sm:$0xf]
        %v1026 = vld [vmem:[%s1012 + $0x34] sm:$0xf]
        %v1027 = vld [vmem:[%s1012 + $0x38] sm:$0xf]
        %v1028 = vld [vmem:[%s1012 + $0x3c] sm:$0xf]
        %v1029 = vld [vmem:[%s1012 + $0x40] sm:$0xf]
        %v1030 = vld [vmem:[%s1012 + $0x44] sm:$0xf]
        %v1031 = vld [vmem:[%s1012 + $0x48] sm:$0xf]
        %v1032 = vld [vmem:[%s1012 + $0x4c] sm:$0xf]
        %v1033 = vld [vmem:[%s1012 + $0x50] sm:$0xf]
        %v1034 = vld [vmem:[%s1012 + $0x54] sm:$0xf]
        %v1035 = vld [vmem:[%s1012 + $0x58] sm:$0xf]
        %v1036 = vld [vmem:[%s1012 + $0x5c] sm:$0xf]
        %v1037 = vld [vmem:[%s1012 + $0x60] sm:$0xf]
        %v1038 = vld [vmem:[%s1012 + $0x64] sm:$0xf]
        %v1039 = vld [vmem:[%s1012 + $0x68] sm:$0xf]
        %v1040 = vld [vmem:[%s1012 + $0x6c] sm:$0xf]
        %v1041 = vld [vmem:[%s1012 + $0x70] sm:$0xf]
        %v1042 = vld [vmem:[%s1012 + $0x74] sm:$0xf]
        %v1043 = vld [vmem:[%s1012 + $0x78] sm:$0xf]
        %v1044 = vld [vmem:[%s1012 + $0x7c] sm:$0xf]
        %v1045 = vld [vmem:[%s1012 + $0x80] sm:$0xf]
        %v1046 = vld [vmem:[%s1012 + $0x84] sm:$0xf]
        %v1047 = vld [vmem:[%s1012 + $0x88] sm:$0xf]
        %v1048 = vld [vmem:[%s1012 + $0x8c] sm:$0xf]
        %v1049 = vld [vmem:[%s1012 + $0x90] sm:$0xf]
        %v1050 = vld [vmem:[%s1012 + $0x94] sm:$0xf]
        %v1051 = vld [vmem:[%s1012 + $0x98] sm:$0xf]
        %v1052 = vld [vmem:[%s1012 + $0x9c] sm:$0xf]
        %v1053 = vld [vmem:[%s1012 + $0xa0] sm:$0xf]
        %v1054 = vld [vmem:[%s1012 + $0xa4] sm:$0xf]
        %v1055 = vld [vmem:[%s1012 + $0xa8] sm:$0xf]
        %v1056 = vld [vmem:[%s1012 + $0xac] sm:$0xf]
        %v1057 = vld [vmem:[%s1012 + $0xb0] sm:$0xf]
        %v1058 = vld [vmem:[%s1012 + $0xb4] sm:$0xf]
        %v1059 = vld [vmem:[%s1012 + $0xb8] sm:$0xf]
        %v1060 = vld [vmem:[%s1012 + $0xbc] sm:$0xf]
        %v1061 = vld [vmem:[%s1012 + $0xc0] sm:$0xf]
        %v1062 = vld [vmem:[%s1012 + $0xc4] sm:$0xf]
        %v1063 = vld [vmem:[%s1012 + $0xc8] sm:$0xf]
        %v1064 = vld [vmem:[%s1012 + $0xcc] sm:$0xf]
        %v1065 = vld [vmem:[%s1012 + $0xd0] sm:$0xf]
        %v1066 = vld [vmem:[%s1012 + $0xd4] sm:$0xf]
        %v1067 = vld [vmem:[%s1012 + $0xd8] sm:$0xf]
        %v1068 = vld [vmem:[%s1012 + $0xdc] sm:$0xf]
        %v1069 = vld [vmem:[%s1012 + $0xe0] sm:$0xf]
        %v1070 = vld [vmem:[%s1012 + $0xe4] sm:$0xf]
        %v1071 = vld [vmem:[%s1012 + $0xe8] sm:$0xf]
        %v1072 = vld [vmem:[%s1012 + $0xec] sm:$0xf]
        %v1073 = vld [vmem:[%s1012 + $0xf0] sm:$0xf]
        %v1074 = vld [vmem:[%s1012 + $0xf4] sm:$0xf]
        %v1075 = vld [vmem:[%s1012 + $0xf8] sm:$0xf]
        %v1076 = vld [vmem:[%s1012 + $0xfc] sm:$0xf]
        %v1077 = vld [vmem:[#allocation2] sm:$0xff]
        %v1078 = vld [vmem:[#allocation2 + $0x8] sm:$0xff]
        %v1079 = vld [vmem:[#allocation2 + $0x10] sm:$0xff]
        %v1080 = vld [vmem:[#allocation2 + $0x18] sm:$0xff]
        %v1081 = vld [vmem:[#allocation2 + $0x20] sm:$0xff]
        %v1082 = vld [vmem:[#allocation2 + $0x28] sm:$0xff]
        %v1083 = vld [vmem:[#allocation2 + $0x30] sm:$0xff]
        %v1084 = vld [vmem:[#allocation2 + $0x38] sm:$0xff]
        %v1085 = vld [vmem:[#allocation2 + $0x40] sm:$0xff]
        %v1086 = vld [vmem:[#allocation2 + $0x48] sm:$0xff]
        %v1087 = vld [vmem:[#allocation2 + $0x50] sm:$0xff]
        %v1088 = vld [vmem:[#allocation2 + $0x58] sm:$0xff]
        %v1089 = vld [vmem:[#allocation2 + $0x60] sm:$0xff]
        %v1090 = vld [vmem:[#allocation2 + $0x68] sm:$0xff]
        %v1091 = vld [vmem:[#allocation2 + $0x70] sm:$0xff]
        %v1092 = vld [vmem:[#allocation2 + $0x78] sm:$0xff]
        %v1157 = vunpack.c.l.b16 %v947
        %v1158 = vunpack.c.l.b16 %v948
        %v1159 = vunpack.c.l.b16 %v949
        %v1160 = vunpack.c.l.b16 %v950
        %v1161 = vunpack.c.l.b16 %v951
        %v1162 = vunpack.c.l.b16 %v952
        %v1163 = vunpack.c.l.b16 %v953
        %v1164 = vunpack.c.l.b16 %v954
        %v1165 = vunpack.c.l.b16 %v955
        %v1166 = vunpack.c.l.b16 %v956
        %v1167 = vunpack.c.l.b16 %v957
        %v1168 = vunpack.c.l.b16 %v958
        %v1169 = vunpack.c.l.b16 %v959
        %v1170 = vunpack.c.l.b16 %v960
        %v1171 = vunpack.c.l.b16 %v961
        %v1172 = vunpack.c.l.b16 %v962
        %v1173 = vunpack.c.l.b16 %v963
        %v1174 = vunpack.c.l.b16 %v964
        %v1175 = vunpack.c.l.b16 %v965
        %v1176 = vunpack.c.l.b16 %v966
        %v1177 = vunpack.c.l.b16 %v967
        %v1178 = vunpack.c.l.b16 %v968
        %v1179 = vunpack.c.l.b16 %v969
        %v1180 = vunpack.c.l.b16 %v970
        %v1181 = vunpack.c.l.b16 %v971
        %v1182 = vunpack.c.l.b16 %v972
        %v1183 = vunpack.c.l.b16 %v973
        %v1184 = vunpack.c.l.b16 %v974
        %v1185 = vunpack.c.l.b16 %v975
        %v1186 = vunpack.c.l.b16 %v976
        %v1187 = vunpack.c.l.b16 %v977
        %v1188 = vunpack.c.l.b16 %v978
        %v1189 = vunpack.c.l.b16 %v979
        %v1190 = vunpack.c.l.b16 %v980
        %v1191 = vunpack.c.l.b16 %v981
        %v1192 = vunpack.c.l.b16 %v982
        %v1193 = vunpack.c.l.b16 %v983
        %v1194 = vunpack.c.l.b16 %v984
        %v1195 = vunpack.c.l.b16 %v985
        %v1196 = vunpack.c.l.b16 %v986
        %v1197 = vunpack.c.l.b16 %v987
        %v1198 = vunpack.c.l.b16 %v988
        %v1199 = vunpack.c.l.b16 %v989
        %v1200 = vunpack.c.l.b16 %v990
        %v1201 = vunpack.c.l.b16 %v991
        %v1202 = vunpack.c.l.b16 %v992
        %v1203 = vunpack.c.l.b16 %v993
        %v1204 = vunpack.c.l.b16 %v994
        %v1205 = vunpack.c.l.b16 %v995
        %v1206 = vunpack.c.l.b16 %v996
        %v1207 = vunpack.c.l.b16 %v997
        %v1208 = vunpack.c.l.b16 %v998
        %v1209 = vunpack.c.l.b16 %v999
        %v1210 = vunpack.c.l.b16 %v1000
        %v1211 = vunpack.c.l.b16 %v1001
        %v1212 = vunpack.c.l.b16 %v1002
        %v1213 = vunpack.c.l.b16 %v1003
        %v1214 = vunpack.c.l.b16 %v1004
        %v1215 = vunpack.c.l.b16 %v1005
        %v1216 = vunpack.c.l.b16 %v1006
        %v1217 = vunpack.c.l.b16 %v1007
        %v1218 = vunpack.c.l.b16 %v1008
        %v1219 = vunpack.c.l.b16 %v1009
        %v1220 = vunpack.c.l.b16 %v1010
        %v1221 = vpack.c.b16 %v1158, %v1157
        %v1222 = vpack.c.b16 %v1160, %v1159
        %v1223 = vpack.c.b16 %v1162, %v1161
        %v1224 = vpack.c.b16 %v1164, %v1163
        %v1225 = vpack.c.b16 %v1166, %v1165
        %v1226 = vpack.c.b16 %v1168, %v1167
        %v1227 = vpack.c.b16 %v1170, %v1169
        %v1228 = vpack.c.b16 %v1172, %v1171
        %v1229 = vpack.c.b16 %v1174, %v1173
        %v1230 = vpack.c.b16 %v1176, %v1175
        %v1231 = vpack.c.b16 %v1178, %v1177
        %v1232 = vpack.c.b16 %v1180, %v1179
        %v1233 = vpack.c.b16 %v1182, %v1181
        %v1234 = vpack.c.b16 %v1184, %v1183
        %v1235 = vpack.c.b16 %v1186, %v1185
        %v1236 = vpack.c.b16 %v1188, %v1187
        %v1237 = vpack.c.b16 %v1190, %v1189
        %v1238 = vpack.c.b16 %v1192, %v1191
        %v1239 = vpack.c.b16 %v1194, %v1193
        %v1240 = vpack.c.b16 %v1196, %v1195
        %v1241 = vpack.c.b16 %v1198, %v1197
        %v1242 = vpack.c.b16 %v1200, %v1199
        %v1243 = vpack.c.b16 %v1202, %v1201
        %v1244 = vpack.c.b16 %v1204, %v1203
        %v1245 = vpack.c.b16 %v1206, %v1205
        %v1246 = vpack.c.b16 %v1208, %v1207
        %v1247 = vpack.c.b16 %v1210, %v1209
        %v1248 = vpack.c.b16 %v1212, %v1211
        %v1249 = vpack.c.b16 %v1214, %v1213
        %v1250 = vpack.c.b16 %v1216, %v1215
        %v1251 = vpack.c.b16 %v1218, %v1217
        %v1252 = vpack.c.b16 %v1220, %v1219
        %vm1253 = vcmask 523264
        %v1255 = vsel %vm1253, %v1077, 0
        %v1258 = vsel %vm1253, %v1078, 0
        %v1261 = vsel %vm1253, %v1079, 0
        %v1264 = vsel %vm1253, %v1080, 0
        %v1267 = vsel %vm1253, %v1081, 0
        %v1270 = vsel %vm1253, %v1082, 0
        %v1273 = vsel %vm1253, %v1083, 0
        %v1276 = vsel %vm1253, %v1084, 0
        %v1279 = vsel %vm1253, %v1085, 0
        %v1282 = vsel %vm1253, %v1086, 0
        %v1285 = vsel %vm1253, %v1087, 0
        %v1288 = vsel %vm1253, %v1088, 0
        %v1291 = vsel %vm1253, %v1089, 0
        %v1294 = vsel %vm1253, %v1090, 0
        %v1297 = vsel %vm1253, %v1091, 0
        %v1300 = vsel %vm1253, %v1092, 0
        %v1303 = vsel %vm1253, %v1221, 0
        %v1306 = vsel %vm1253, %v1222, 0
        %v1309 = vsel %vm1253, %v1223, 0
        %v1312 = vsel %vm1253, %v1224, 0
        %v1315 = vsel %vm1253, %v1225, 0
        %v1318 = vsel %vm1253, %v1226, 0
        %v1321 = vsel %vm1253, %v1227, 0
        %v1324 = vsel %vm1253, %v1228, 0
        %v1327 = vsel %vm1253, %v1229, 0
        %v1330 = vsel %vm1253, %v1230, 0
        %v1333 = vsel %vm1253, %v1231, 0
        %v1336 = vsel %vm1253, %v1232, 0
        %v1339 = vsel %vm1253, %v1233, 0
        %v1342 = vsel %vm1253, %v1234, 0
        %v1345 = vsel %vm1253, %v1235, 0
        %v1348 = vsel %vm1253, %v1236, 0
        %v1351 = vsel %vm1253, %v1237, 0
        %v1354 = vsel %vm1253, %v1238, 0
        %v1357 = vsel %vm1253, %v1239, 0
        %v1360 = vsel %vm1253, %v1240, 0
        %v1363 = vsel %vm1253, %v1241, 0
        %v1366 = vsel %vm1253, %v1242, 0
        %v1369 = vsel %vm1253, %v1243, 0
        %v1372 = vsel %vm1253, %v1244, 0
        %v1375 = vsel %vm1253, %v1245, 0
        %v1378 = vsel %vm1253, %v1246, 0
        %v1381 = vsel %vm1253, %v1247, 0
        %v1384 = vsel %vm1253, %v1248, 0
        %v1387 = vsel %vm1253, %v1249, 0
        %v1390 = vsel %vm1253, %v1250, 0
        %v1393 = vsel %vm1253, %v1251, 0
        %v1396 = vsel %vm1253, %v1252, 0
        %1398 = vmatprep.subr.bf16.mxu0 0
        %1399 = vmatpush1.bf16.xpose.msra.mxu0 %v1303
        %1400 = vmatprep.subr.bf16.mxu0 0
        %1401 = vmatpush1.bf16.xpose.msra.mxu0 %v1306
        %1402 = vmatprep.subr.bf16.mxu0 0
        %1403 = vmatpush1.bf16.xpose.msra.mxu0 %v1309
        %1404 = vmatprep.subr.bf16.mxu0 0
        %1405 = vmatpush1.bf16.xpose.msra.mxu0 %v1312
        %1406 = vmatprep.subr.bf16.mxu0 0
        %1407 = vmatpush1.bf16.xpose.msra.mxu0 %v1315
        %1408 = vmatprep.subr.bf16.mxu0 0
        %1409 = vmatpush1.bf16.xpose.msra.mxu0 %v1318
        %1410 = vmatprep.subr.bf16.mxu0 0
        %1411 = vmatpush1.bf16.xpose.msra.mxu0 %v1321
        %1412 = vmatprep.subr.bf16.mxu0 0
        %1413 = vmatpush1.bf16.xpose.msra.mxu0 %v1324
        %1414 = vmatprep.subr.bf16.mxu0 0
        %1415 = vmatpush1.bf16.xpose.msra.mxu0 %v1327
        %1416 = vmatprep.subr.bf16.mxu0 0
        %1417 = vmatpush1.bf16.xpose.msra.mxu0 %v1330
        %1418 = vmatprep.subr.bf16.mxu0 0
        %1419 = vmatpush1.bf16.xpose.msra.mxu0 %v1333
        %1420 = vmatprep.subr.bf16.mxu0 0
        %1421 = vmatpush1.bf16.xpose.msra.mxu0 %v1336
        %1422 = vmatprep.subr.bf16.mxu0 0
        %1423 = vmatpush1.bf16.xpose.msra.mxu0 %v1339
        %1424 = vmatprep.subr.bf16.mxu0 0
        %1425 = vmatpush1.bf16.xpose.msra.mxu0 %v1342
        %1426 = vmatprep.subr.bf16.mxu0 0
        %1427 = vmatpush1.bf16.xpose.msra.mxu0 %v1345
        %1428 = vmatprep.subr.bf16.mxu0 0
        %1429 = vmatpush1.bf16.xpose.msra.mxu0 %v1348
        %1430 = vmatprep.mubr.bf16.mxu0 0
        %1431 = vmatmul.mubr.bf16.gmra.mrb[0].mxu0 %v1255
        %v1432 = vpop.f32.mrb[0].mxu0
        %v1433 = vadd.f32 0.0, %v1432
        %v1434 = vpop.f32.mrb[0].mxu0
        %v1435 = vadd.f32 0.0, %v1434
        %v1436 = vpop.f32.mrb[0].mxu0
        %v1437 = vadd.f32 0.0, %v1436
        %v1438 = vpop.f32.mrb[0].mxu0
        %v1439 = vadd.f32 0.0, %v1438
        %1440 = vmatprep.mubr.bf16.mxu0 0
        %1441 = vmatmul.mubr.bf16.gmra.mrb[0].mxu0 %v1258
        %v1442 = vpop.f32.mrb[0].mxu0
        %v1443 = vadd.f32 0.0, %v1442
        %v1444 = vpop.f32.mrb[0].mxu0
        %v1445 = vadd.f32 0.0, %v1444
        %v1446 = vpop.f32.mrb[0].mxu0
        %v1447 = vadd.f32 0.0, %v1446
        %v1448 = vpop.f32.mrb[0].mxu0
        %v1449 = vadd.f32 0.0, %v1448
        %1450 = vmatprep.mubr.bf16.mxu0 0
        %1451 = vmatmul.mubr.bf16.gmra.mrb[0].mxu0 %v1261
        %v1452 = vpop.f32.mrb[0].mxu0
        %v1453 = vadd.f32 0.0, %v1452
        %v1454 = vpop.f32.mrb[0].mxu0
        %v1455 = vadd.f32 0.0, %v1454
        %v1456 = vpop.f32.mrb[0].mxu0
        %v1457 = vadd.f32 0.0, %v1456
        %v1458 = vpop.f32.mrb[0].mxu0
        %v1459 = vadd.f32 0.0, %v1458
        %1460 = vmatprep.mubr.bf16.mxu0 0
        %1461 = vmatmul.mubr.bf16.gmra.mrb[0].mxu0 %v1264
        %v1462 = vpop.f32.mrb[0].mxu0
        %v1463 = vadd.f32 0.0, %v1462
        %v1464 = vpop.f32.mrb[0].mxu0
        %v1465 = vadd.f32 0.0, %v1464
        %v1466 = vpop.f32.mrb[0].mxu0
        %v1467 = vadd.f32 0.0, %v1466
        %v1468 = vpop.f32.mrb[0].mxu0
        %v1469 = vadd.f32 0.0, %v1468
        %1470 = vmatprep.mubr.bf16.mxu0 0
        %1471 = vmatmul.mubr.bf16.gmra.mrb[0].mxu0 %v1267
        %v1472 = vpop.f32.mrb[0].mxu0
        %v1473 = vadd.f32 0.0, %v1472
        %v1474 = vpop.f32.mrb[0].mxu0
        %v1475 = vadd.f32 0.0, %v1474
        %v1476 = vpop.f32.mrb[0].mxu0
        %v1477 = vadd.f32 0.0, %v1476
        %v1478 = vpop.f32.mrb[0].mxu0
        %v1479 = vadd.f32 0.0, %v1478
        %1480 = vmatprep.mubr.bf16.mxu0 0
        %1481 = vmatmul.mubr.bf16.gmra.mrb[0].mxu0 %v1270
        %v1482 = vpop.f32.mrb[0].mxu0
        %v1483 = vadd.f32 0.0, %v1482
        %v1484 = vpop.f32.mrb[0].mxu0
        %v1485 = vadd.f32 0.0, %v1484
        %v1486 = vpop.f32.mrb[0].mxu0
        %v1487 = vadd.f32 0.0, %v1486
        %v1488 = vpop.f32.mrb[0].mxu0
        %v1489 = vadd.f32 0.0, %v1488
        %1490 = vmatprep.mubr.bf16.mxu0 0
        %1491 = vmatmul.mubr.bf16.gmra.mrb[0].mxu0 %v1273
        %v1492 = vpop.f32.mrb[0].mxu0
        %v1493 = vadd.f32 0.0, %v1492
        %v1494 = vpop.f32.mrb[0].mxu0
        %v1495 = vadd.f32 0.0, %v1494
        %v1496 = vpop.f32.mrb[0].mxu0
        %v1497 = vadd.f32 0.0, %v1496
        %v1498 = vpop.f32.mrb[0].mxu0
        %v1499 = vadd.f32 0.0, %v1498
        %1500 = vmatprep.mubr.bf16.mxu0 0
        %1501 = vmatmul.mubr.bf16.gmra.mrb[0].mxu0 %v1276
        %v1502 = vpop.f32.mrb[0].mxu0
        %v1503 = vadd.f32 0.0, %v1502
        %v1504 = vpop.f32.mrb[0].mxu0
        %v1505 = vadd.f32 0.0, %v1504
        %v1506 = vpop.f32.mrb[0].mxu0
        %v1507 = vadd.f32 0.0, %v1506
        %v1508 = vpop.f32.mrb[0].mxu0
        %v1509 = vadd.f32 0.0, %v1508
        %1510 = vmatprep.mubr.bf16.mxu0 0
        %1511 = vmatmul.mubr.bf16.gmra.mrb[0].mxu0 %v1279
        %v1512 = vpop.f32.mrb[0].mxu0
        %v1513 = vadd.f32 0.0, %v1512
        %v1514 = vpop.f32.mrb[0].mxu0
        %v1515 = vadd.f32 0.0, %v1514
        %v1516 = vpop.f32.mrb[0].mxu0
        %v1517 = vadd.f32 0.0, %v1516
        %v1518 = vpop.f32.mrb[0].mxu0
        %v1519 = vadd.f32 0.0, %v1518
        %1520 = vmatprep.mubr.bf16.mxu0 0
        %1521 = vmatmul.mubr.bf16.gmra.mrb[0].mxu0 %v1282
        %v1522 = vpop.f32.mrb[0].mxu0
        %v1523 = vadd.f32 0.0, %v1522
        %v1524 = vpop.f32.mrb[0].mxu0
        %v1525 = vadd.f32 0.0, %v1524
        %v1526 = vpop.f32.mrb[0].mxu0
        %v1527 = vadd.f32 0.0, %v1526
        %v1528 = vpop.f32.mrb[0].mxu0
        %v1529 = vadd.f32 0.0, %v1528
        %1530 = vmatprep.mubr.bf16.mxu0 0
        %1531 = vmatmul.mubr.bf16.gmra.mrb[0].mxu0 %v1285
        %v1532 = vpop.f32.mrb[0].mxu0
        %v1533 = vadd.f32 0.0, %v1532
        %v1534 = vpop.f32.mrb[0].mxu0
        %v1535 = vadd.f32 0.0, %v1534
        %v1536 = vpop.f32.mrb[0].mxu0
        %v1537 = vadd.f32 0.0, %v1536
        %v1538 = vpop.f32.mrb[0].mxu0
        %v1539 = vadd.f32 0.0, %v1538
        %1540 = vmatprep.mubr.bf16.mxu0 0
        %1541 = vmatmul.mubr.bf16.gmra.mrb[0].mxu0 %v1288
        %v1542 = vpop.f32.mrb[0].mxu0
        %v1543 = vadd.f32 0.0, %v1542
        %v1544 = vpop.f32.mrb[0].mxu0
        %v1545 = vadd.f32 0.0, %v1544
        %v1546 = vpop.f32.mrb[0].mxu0
        %v1547 = vadd.f32 0.0, %v1546
        %v1548 = vpop.f32.mrb[0].mxu0
        %v1549 = vadd.f32 0.0, %v1548
        %1550 = vmatprep.mubr.bf16.mxu0 0
        %1551 = vmatmul.mubr.bf16.gmra.mrb[0].mxu0 %v1291
        %v1552 = vpop.f32.mrb[0].mxu0
        %v1553 = vadd.f32 0.0, %v1552
        %v1554 = vpop.f32.mrb[0].mxu0
        %v1555 = vadd.f32 0.0, %v1554
        %v1556 = vpop.f32.mrb[0].mxu0
        %v1557 = vadd.f32 0.0, %v1556
        %v1558 = vpop.f32.mrb[0].mxu0
        %v1559 = vadd.f32 0.0, %v1558
        %1560 = vmatprep.mubr.bf16.mxu0 0
        %1561 = vmatmul.mubr.bf16.gmra.mrb[0].mxu0 %v1294
        %v1562 = vpop.f32.mrb[0].mxu0
        %v1563 = vadd.f32 0.0, %v1562
        %v1564 = vpop.f32.mrb[0].mxu0
        %v1565 = vadd.f32 0.0, %v1564
        %v1566 = vpop.f32.mrb[0].mxu0
        %v1567 = vadd.f32 0.0, %v1566
        %v1568 = vpop.f32.mrb[0].mxu0
        %v1569 = vadd.f32 0.0, %v1568
        %1570 = vmatprep.mubr.bf16.mxu0 0
        %1571 = vmatmul.mubr.bf16.gmra.mrb[0].mxu0 %v1297
        %v1572 = vpop.f32.mrb[0].mxu0
        %v1573 = vadd.f32 0.0, %v1572
        %v1574 = vpop.f32.mrb[0].mxu0
        %v1575 = vadd.f32 0.0, %v1574
        %v1576 = vpop.f32.mrb[0].mxu0
        %v1577 = vadd.f32 0.0, %v1576
        %v1578 = vpop.f32.mrb[0].mxu0
        %v1579 = vadd.f32 0.0, %v1578
        %1580 = vmatprep.mubr.bf16.mxu0 0
        %1581 = vmatmul.mubr.bf16.gmra.mrb[0].mxu0 %v1300
        %v1582 = vpop.f32.mrb[0].mxu0
        %v1583 = vadd.f32 0.0, %v1582
        %v1584 = vpop.f32.mrb[0].mxu0
        %v1585 = vadd.f32 0.0, %v1584
        %v1586 = vpop.f32.mrb[0].mxu0
        %v1587 = vadd.f32 0.0, %v1586
        %v1588 = vpop.f32.mrb[0].mxu0
        %v1589 = vadd.f32 0.0, %v1588
        %1590 = vdwg.mxu0
        %1591 = vmatprep.subr.bf16.mxu0 0
        %1592 = vmatpush1.bf16.xpose.msra.mxu0 %v1351
        %1593 = vmatprep.subr.bf16.mxu0 0
        %1594 = vmatpush1.bf16.xpose.msra.mxu0 %v1354
        %1595 = vmatprep.subr.bf16.mxu0 0
        %1596 = vmatpush1.bf16.xpose.msra.mxu0 %v1357
        %1597 = vmatprep.subr.bf16.mxu0 0
        %1598 = vmatpush1.bf16.xpose.msra.mxu0 %v1360
        %1599 = vmatprep.subr.bf16.mxu0 0
        %1600 = vmatpush1.bf16.xpose.msra.mxu0 %v1363
        %1601 = vmatprep.subr.bf16.mxu0 0
        %1602 = vmatpush1.bf16.xpose.msra.mxu0 %v1366
        %1603 = vmatprep.subr.bf16.mxu0 0
        %1604 = vmatpush1.bf16.xpose.msra.mxu0 %v1369
        %1605 = vmatprep.subr.bf16.mxu0 0
        %1606 = vmatpush1.bf16.xpose.msra.mxu0 %v1372
        %1607 = vmatprep.subr.bf16.mxu0 0
        %1608 = vmatpush1.bf16.xpose.msra.mxu0 %v1375
        %1609 = vmatprep.subr.bf16.mxu0 0
        %1610 = vmatpush1.bf16.xpose.msra.mxu0 %v1378
        %1611 = vmatprep.subr.bf16.mxu0 0
        %1612 = vmatpush1.bf16.xpose.msra.mxu0 %v1381
        %1613 = vmatprep.subr.bf16.mxu0 0
        %1614 = vmatpush1.bf16.xpose.msra.mxu0 %v1384
        %1615 = vmatprep.subr.bf16.mxu0 0
        %1616 = vmatpush1.bf16.xpose.msra.mxu0 %v1387
        %1617 = vmatprep.subr.bf16.mxu0 0
        %1618 = vmatpush1.bf16.xpose.msra.mxu0 %v1390
        %1619 = vmatprep.subr.bf16.mxu0 0
        %1620 = vmatpush1.bf16.xpose.msra.mxu0 %v1393
        %1621 = vmatprep.subr.bf16.mxu0 0
        %1622 = vmatpush1.bf16.xpose.msra.mxu0 %v1396
        %1623 = vmatprep.mubr.bf16.mxu0 0
        %1624 = vmatmul.mubr.bf16.gmra.mrb[0].mxu0 %v1255
        %v1625 = vpop.f32.mrb[0].mxu0
        %v1626 = vadd.f32 0.0, %v1625
        %v1627 = vpop.f32.mrb[0].mxu0
        %v1628 = vadd.f32 0.0, %v1627
        %v1629 = vpop.f32.mrb[0].mxu0
        %v1630 = vadd.f32 0.0, %v1629
        %v1631 = vpop.f32.mrb[0].mxu0
        %v1632 = vadd.f32 0.0, %v1631
        %1633 = vmatprep.mubr.bf16.mxu0 0
        %1634 = vmatmul.mubr.bf16.gmra.mrb[0].mxu0 %v1258
        %v1635 = vpop.f32.mrb[0].mxu0
        %v1636 = vadd.f32 0.0, %v1635
        %v1637 = vpop.f32.mrb[0].mxu0
        %v1638 = vadd.f32 0.0, %v1637
        %v1639 = vpop.f32.mrb[0].mxu0
        %v1640 = vadd.f32 0.0, %v1639
        %v1641 = vpop.f32.mrb[0].mxu0
        %v1642 = vadd.f32 0.0, %v1641
        %1643 = vmatprep.mubr.bf16.mxu0 0
        %1644 = vmatmul.mubr.bf16.gmra.mrb[0].mxu0 %v1261
        %v1645 = vpop.f32.mrb[0].mxu0
        %v1646 = vadd.f32 0.0, %v1645
        %v1647 = vpop.f32.mrb[0].mxu0
        %v1648 = vadd.f32 0.0, %v1647
        %v1649 = vpop.f32.mrb[0].mxu0
        %v1650 = vadd.f32 0.0, %v1649
        %v1651 = vpop.f32.mrb[0].mxu0
        %v1652 = vadd.f32 0.0, %v1651
        %1653 = vmatprep.mubr.bf16.mxu0 0
        %1654 = vmatmul.mubr.bf16.gmra.mrb[0].mxu0 %v1264
        %v1655 = vpop.f32.mrb[0].mxu0
        %v1656 = vadd.f32 0.0, %v1655
        %v1657 = vpop.f32.mrb[0].mxu0
        %v1658 = vadd.f32 0.0, %v1657
        %v1659 = vpop.f32.mrb[0].mxu0
        %v1660 = vadd.f32 0.0, %v1659
        %v1661 = vpop.f32.mrb[0].mxu0
        %v1662 = vadd.f32 0.0, %v1661
        %1663 = vmatprep.mubr.bf16.mxu0 0
        %1664 = vmatmul.mubr.bf16.gmra.mrb[0].mxu0 %v1267
        %v1665 = vpop.f32.mrb[0].mxu0
        %v1666 = vadd.f32 0.0, %v1665
        %v1667 = vpop.f32.mrb[0].mxu0
        %v1668 = vadd.f32 0.0, %v1667
        %v1669 = vpop.f32.mrb[0].mxu0
        %v1670 = vadd.f32 0.0, %v1669
        %v1671 = vpop.f32.mrb[0].mxu0
        %v1672 = vadd.f32 0.0, %v1671
        %1673 = vmatprep.mubr.bf16.mxu0 0
        %1674 = vmatmul.mubr.bf16.gmra.mrb[0].mxu0 %v1270
        %v1675 = vpop.f32.mrb[0].mxu0
        %v1676 = vadd.f32 0.0, %v1675
        %v1677 = vpop.f32.mrb[0].mxu0
        %v1678 = vadd.f32 0.0, %v1677
        %v1679 = vpop.f32.mrb[0].mxu0
        %v1680 = vadd.f32 0.0, %v1679
        %v1681 = vpop.f32.mrb[0].mxu0
        %v1682 = vadd.f32 0.0, %v1681
        %1683 = vmatprep.mubr.bf16.mxu0 0
        %1684 = vmatmul.mubr.bf16.gmra.mrb[0].mxu0 %v1273
        %v1685 = vpop.f32.mrb[0].mxu0
        %v1686 = vadd.f32 0.0, %v1685
        %v1687 = vpop.f32.mrb[0].mxu0
        %v1688 = vadd.f32 0.0, %v1687
        %v1689 = vpop.f32.mrb[0].mxu0
        %v1690 = vadd.f32 0.0, %v1689
        %v1691 = vpop.f32.mrb[0].mxu0
        %v1692 = vadd.f32 0.0, %v1691
        %1693 = vmatprep.mubr.bf16.mxu0 0
        %1694 = vmatmul.mubr.bf16.gmra.mrb[0].mxu0 %v1276
        %v1695 = vpop.f32.mrb[0].mxu0
        %v1696 = vadd.f32 0.0, %v1695
        %v1697 = vpop.f32.mrb[0].mxu0
        %v1698 = vadd.f32 0.0, %v1697
        %v1699 = vpop.f32.mrb[0].mxu0
        %v1700 = vadd.f32 0.0, %v1699
        %v1701 = vpop.f32.mrb[0].mxu0
        %v1702 = vadd.f32 0.0, %v1701
        %1703 = vmatprep.mubr.bf16.mxu0 0
        %1704 = vmatmul.mubr.bf16.gmra.mrb[0].mxu0 %v1279
        %v1705 = vpop.f32.mrb[0].mxu0
        %v1706 = vadd.f32 0.0, %v1705
        %v1707 = vpop.f32.mrb[0].mxu0
        %v1708 = vadd.f32 0.0, %v1707
        %v1709 = vpop.f32.mrb[0].mxu0
        %v1710 = vadd.f32 0.0, %v1709
        %v1711 = vpop.f32.mrb[0].mxu0
        %v1712 = vadd.f32 0.0, %v1711
        %1713 = vmatprep.mubr.bf16.mxu0 0
        %1714 = vmatmul.mubr.bf16.gmra.mrb[0].mxu0 %v1282
        %v1715 = vpop.f32.mrb[0].mxu0
        %v1716 = vadd.f32 0.0, %v1715
        %v1717 = vpop.f32.mrb[0].mxu0
        %v1718 = vadd.f32 0.0, %v1717
        %v1719 = vpop.f32.mrb[0].mxu0
        %v1720 = vadd.f32 0.0, %v1719
        %v1721 = vpop.f32.mrb[0].mxu0
        %v1722 = vadd.f32 0.0, %v1721
        %1723 = vmatprep.mubr.bf16.mxu0 0
        %1724 = vmatmul.mubr.bf16.gmra.mrb[0].mxu0 %v1285
        %v1725 = vpop.f32.mrb[0].mxu0
        %v1726 = vadd.f32 0.0, %v1725
        %v1727 = vpop.f32.mrb[0].mxu0
        %v1728 = vadd.f32 0.0, %v1727
        %v1729 = vpop.f32.mrb[0].mxu0
        %v1730 = vadd.f32 0.0, %v1729
        %v1731 = vpop.f32.mrb[0].mxu0
        %v1732 = vadd.f32 0.0, %v1731
        %1733 = vmatprep.mubr.bf16.mxu0 0
        %1734 = vmatmul.mubr.bf16.gmra.mrb[0].mxu0 %v1288
        %v1735 = vpop.f32.mrb[0].mxu0
        %v1736 = vadd.f32 0.0, %v1735
        %v1737 = vpop.f32.mrb[0].mxu0
        %v1738 = vadd.f32 0.0, %v1737
        %v1739 = vpop.f32.mrb[0].mxu0
        %v1740 = vadd.f32 0.0, %v1739
        %v1741 = vpop.f32.mrb[0].mxu0
        %v1742 = vadd.f32 0.0, %v1741
        %1743 = vmatprep.mubr.bf16.mxu0 0
        %1744 = vmatmul.mubr.bf16.gmra.mrb[0].mxu0 %v1291
        %v1745 = vpop.f32.mrb[0].mxu0
        %v1746 = vadd.f32 0.0, %v1745
        %v1747 = vpop.f32.mrb[0].mxu0
        %v1748 = vadd.f32 0.0, %v1747
        %v1749 = vpop.f32.mrb[0].mxu0
        %v1750 = vadd.f32 0.0, %v1749
        %v1751 = vpop.f32.mrb[0].mxu0
        %v1752 = vadd.f32 0.0, %v1751
        %1753 = vmatprep.mubr.bf16.mxu0 0
        %1754 = vmatmul.mubr.bf16.gmra.mrb[0].mxu0 %v1294
        %v1755 = vpop.f32.mrb[0].mxu0
        %v1756 = vadd.f32 0.0, %v1755
        %v1757 = vpop.f32.mrb[0].mxu0
        %v1758 = vadd.f32 0.0, %v1757
        %v1759 = vpop.f32.mrb[0].mxu0
        %v1760 = vadd.f32 0.0, %v1759
        %v1761 = vpop.f32.mrb[0].mxu0
        %v1762 = vadd.f32 0.0, %v1761
        %1763 = vmatprep.mubr.bf16.mxu0 0
        %1764 = vmatmul.mubr.bf16.gmra.mrb[0].mxu0 %v1297
        %v1765 = vpop.f32.mrb[0].mxu0
        %v1766 = vadd.f32 0.0, %v1765
        %v1767 = vpop.f32.mrb[0].mxu0
        %v1768 = vadd.f32 0.0, %v1767
        %v1769 = vpop.f32.mrb[0].mxu0
        %v1770 = vadd.f32 0.0, %v1769
        %v1771 = vpop.f32.mrb[0].mxu0
        %v1772 = vadd.f32 0.0, %v1771
        %1773 = vmatprep.mubr.bf16.mxu0 0
        %1774 = vmatmul.mubr.bf16.gmra.mrb[0].mxu0 %v1300
        %v1775 = vpop.f32.mrb[0].mxu0
        %v1776 = vadd.f32 0.0, %v1775
        %v1777 = vpop.f32.mrb[0].mxu0
        %v1778 = vadd.f32 0.0, %v1777
        %v1779 = vpop.f32.mrb[0].mxu0
        %v1780 = vadd.f32 0.0, %v1779
        %v1781 = vpop.f32.mrb[0].mxu0
        %v1782 = vadd.f32 0.0, %v1781
        %1783 = vdwg.mxu0
        %v1784 = vld [vmem:[#allocation3] sm:$0xff]
        %v1785 = vld [vmem:[#allocation3 + $0x8] sm:$0xff]
        %v1786 = vld [vmem:[#allocation3 + $0x10] sm:$0xff]
        %v1787 = vld [vmem:[#allocation3 + $0x18] sm:$0xff]
        %v1788 = vld [vmem:[#allocation3 + $0x20] sm:$0xff]
        %v1789 = vld [vmem:[#allocation3 + $0x28] sm:$0xff]
        %v1790 = vld [vmem:[#allocation3 + $0x30] sm:$0xff]
        %v1791 = vld [vmem:[#allocation3 + $0x38] sm:$0xff]
        %v1792 = vld [vmem:[#allocation3 + $0x40] sm:$0xff]
        %v1793 = vld [vmem:[#allocation3 + $0x48] sm:$0xff]
        %v1794 = vld [vmem:[#allocation3 + $0x50] sm:$0xff]
        %v1795 = vld [vmem:[#allocation3 + $0x58] sm:$0xff]
        %v1796 = vld [vmem:[#allocation3 + $0x60] sm:$0xff]
        %v1797 = vld [vmem:[#allocation3 + $0x68] sm:$0xff]
        %v1798 = vld [vmem:[#allocation3 + $0x70] sm:$0xff]
        %v1799 = vld [vmem:[#allocation3 + $0x78] sm:$0xff]
        %v1800 = vld [vmem:[#allocation3 + $0x80] sm:$0xff]
        %v1801 = vld [vmem:[#allocation3 + $0x88] sm:$0xff]
        %v1802 = vld [vmem:[#allocation3 + $0x90] sm:$0xff]
        %v1803 = vld [vmem:[#allocation3 + $0x98] sm:$0xff]
        %v1804 = vld [vmem:[#allocation3 + $0xa0] sm:$0xff]
        %v1805 = vld [vmem:[#allocation3 + $0xa8] sm:$0xff]
        %v1806 = vld [vmem:[#allocation3 + $0xb0] sm:$0xff]
        %v1807 = vld [vmem:[#allocation3 + $0xb8] sm:$0xff]
        %v1808 = vld [vmem:[#allocation3 + $0xc0] sm:$0xff]
        %v1809 = vld [vmem:[#allocation3 + $0xc8] sm:$0xff]
        %v1810 = vld [vmem:[#allocation3 + $0xd0] sm:$0xff]
        %v1811 = vld [vmem:[#allocation3 + $0xd8] sm:$0xff]
        %v1812 = vld [vmem:[#allocation3 + $0xe0] sm:$0xff]
        %v1813 = vld [vmem:[#allocation3 + $0xe8] sm:$0xff]
        %v1814 = vld [vmem:[#allocation3 + $0xf0] sm:$0xff]
        %v1815 = vld [vmem:[#allocation3 + $0xf8] sm:$0xff]
        %v1816 = vmax.f32 %v1433, %v1435
        %v1817 = vmax.f32 %v1816, %v1626
        %v1818 = vmax.f32 %v1817, %v1628
        %1819 = vmax.xlane.f32.xlu0 %v1818
        %v1820 = vpop.xlane.xlu0 %1819
        %v1821 = vmax.f32 %v1437, %v1439
        %v1822 = vmax.f32 %v1821, %v1630
        %v1823 = vmax.f32 %v1822, %v1632
        %1824 = vmax.xlane.f32.xlu0 %v1823
        %v1825 = vpop.xlane.xlu0 %1824
        %v1826 = vmax.f32 %v1443, %v1445
        %v1827 = vmax.f32 %v1826, %v1636
        %v1828 = vmax.f32 %v1827, %v1638
        %1829 = vmax.xlane.f32.xlu0 %v1828
        %v1830 = vpop.xlane.xlu0 %1829
        %v1831 = vmax.f32 %v1447, %v1449
        %v1832 = vmax.f32 %v1831, %v1640
        %v1833 = vmax.f32 %v1832, %v1642
        %1834 = vmax.xlane.f32.xlu0 %v1833
        %v1835 = vpop.xlane.xlu0 %1834
        %v1836 = vmax.f32 %v1453, %v1455
        %v1837 = vmax.f32 %v1836, %v1646
        %v1838 = vmax.f32 %v1837, %v1648
        %1839 = vmax.xlane.f32.xlu0 %v1838
        %v1840 = vpop.xlane.xlu0 %1839
        %v1841 = vmax.f32 %v1457, %v1459
        %v1842 = vmax.f32 %v1841, %v1650
        %v1843 = vmax.f32 %v1842, %v1652
        %1844 = vmax.xlane.f32.xlu0 %v1843
        %v1845 = vpop.xlane.xlu0 %1844
        %v1846 = vmax.f32 %v1463, %v1465
        %v1847 = vmax.f32 %v1846, %v1656
        %v1848 = vmax.f32 %v1847, %v1658
        %1849 = vmax.xlane.f32.xlu0 %v1848
        %v1850 = vpop.xlane.xlu0 %1849
        %v1851 = vmax.f32 %v1467, %v1469
        %v1852 = vmax.f32 %v1851, %v1660
        %v1853 = vmax.f32 %v1852, %v1662
        %1854 = vmax.xlane.f32.xlu0 %v1853
        %v1855 = vpop.xlane.xlu0 %1854
        %v1856 = vmax.f32 %v1473, %v1475
        %v1857 = vmax.f32 %v1856, %v1666
        %v1858 = vmax.f32 %v1857, %v1668
        %1859 = vmax.xlane.f32.xlu0 %v1858
        %v1860 = vpop.xlane.xlu0 %1859
        %v1861 = vmax.f32 %v1477, %v1479
        %v1862 = vmax.f32 %v1861, %v1670
        %v1863 = vmax.f32 %v1862, %v1672
        %1864 = vmax.xlane.f32.xlu0 %v1863
        %v1865 = vpop.xlane.xlu0 %1864
        %v1866 = vmax.f32 %v1483, %v1485
        %v1867 = vmax.f32 %v1866, %v1676
        %v1868 = vmax.f32 %v1867, %v1678
        %1869 = vmax.xlane.f32.xlu0 %v1868
        %v1870 = vpop.xlane.xlu0 %1869
        %v1871 = vmax.f32 %v1487, %v1489
        %v1872 = vmax.f32 %v1871, %v1680
        %v1873 = vmax.f32 %v1872, %v1682
        %1874 = vmax.xlane.f32.xlu0 %v1873
        %v1875 = vpop.xlane.xlu0 %1874
        %v1876 = vmax.f32 %v1493, %v1495
        %v1877 = vmax.f32 %v1876, %v1686
        %v1878 = vmax.f32 %v1877, %v1688
        %1879 = vmax.xlane.f32.xlu0 %v1878
        %v1880 = vpop.xlane.xlu0 %1879
        %v1881 = vmax.f32 %v1497, %v1499
        %v1882 = vmax.f32 %v1881, %v1690
        %v1883 = vmax.f32 %v1882, %v1692
        %1884 = vmax.xlane.f32.xlu0 %v1883
        %v1885 = vpop.xlane.xlu0 %1884
        %v1886 = vmax.f32 %v1503, %v1505
        %v1887 = vmax.f32 %v1886, %v1696
        %v1888 = vmax.f32 %v1887, %v1698
        %1889 = vmax.xlane.f32.xlu0 %v1888
        %v1890 = vpop.xlane.xlu0 %1889
        %v1891 = vmax.f32 %v1507, %v1509
        %v1892 = vmax.f32 %v1891, %v1700
        %v1893 = vmax.f32 %v1892, %v1702
        %1894 = vmax.xlane.f32.xlu0 %v1893
        %v1895 = vpop.xlane.xlu0 %1894
        %v1896 = vmax.f32 %v1513, %v1515
        %v1897 = vmax.f32 %v1896, %v1706
        %v1898 = vmax.f32 %v1897, %v1708
        %1899 = vmax.xlane.f32.xlu0 %v1898
        %v1900 = vpop.xlane.xlu0 %1899
        %v1901 = vmax.f32 %v1517, %v1519
        %v1902 = vmax.f32 %v1901, %v1710
        %v1903 = vmax.f32 %v1902, %v1712
        %1904 = vmax.xlane.f32.xlu0 %v1903
        %v1905 = vpop.xlane.xlu0 %1904
        %v1906 = vmax.f32 %v1523, %v1525
        %v1907 = vmax.f32 %v1906, %v1716
        %v1908 = vmax.f32 %v1907, %v1718
        %1909 = vmax.xlane.f32.xlu0 %v1908
        %v1910 = vpop.xlane.xlu0 %1909
        %v1911 = vmax.f32 %v1527, %v1529
        %v1912 = vmax.f32 %v1911, %v1720
        %v1913 = vmax.f32 %v1912, %v1722
        %1914 = vmax.xlane.f32.xlu0 %v1913
        %v1915 = vpop.xlane.xlu0 %1914
        %v1916 = vmax.f32 %v1533, %v1535
        %v1917 = vmax.f32 %v1916, %v1726
        %v1918 = vmax.f32 %v1917, %v1728
        %1919 = vmax.xlane.f32.xlu0 %v1918
        %v1920 = vpop.xlane.xlu0 %1919
        %v1921 = vmax.f32 %v1537, %v1539
        %v1922 = vmax.f32 %v1921, %v1730
        %v1923 = vmax.f32 %v1922, %v1732
        %1924 = vmax.xlane.f32.xlu0 %v1923
        %v1925 = vpop.xlane.xlu0 %1924
        %v1926 = vmax.f32 %v1543, %v1545
        %v1927 = vmax.f32 %v1926, %v1736
        %v1928 = vmax.f32 %v1927, %v1738
        %1929 = vmax.xlane.f32.xlu0 %v1928
        %v1930 = vpop.xlane.xlu0 %1929
        %v1931 = vmax.f32 %v1547, %v1549
        %v1932 = vmax.f32 %v1931, %v1740
        %v1933 = vmax.f32 %v1932, %v1742
        %1934 = vmax.xlane.f32.xlu0 %v1933
        %v1935 = vpop.xlane.xlu0 %1934
        %v1936 = vmax.f32 %v1553, %v1555
        %v1937 = vmax.f32 %v1936, %v1746
        %v1938 = vmax.f32 %v1937, %v1748
        %1939 = vmax.xlane.f32.xlu0 %v1938
        %v1940 = vpop.xlane.xlu0 %1939
        %v1941 = vmax.f32 %v1557, %v1559
        %v1942 = vmax.f32 %v1941, %v1750
        %v1943 = vmax.f32 %v1942, %v1752
        %1944 = vmax.xlane.f32.xlu0 %v1943
        %v1945 = vpop.xlane.xlu0 %1944
        %v1946 = vmax.f32 %v1563, %v1565
        %v1947 = vmax.f32 %v1946, %v1756
        %v1948 = vmax.f32 %v1947, %v1758
        %1949 = vmax.xlane.f32.xlu0 %v1948
        %v1950 = vpop.xlane.xlu0 %1949
        %v1951 = vmax.f32 %v1567, %v1569
        %v1952 = vmax.f32 %v1951, %v1760
        %v1953 = vmax.f32 %v1952, %v1762
        %1954 = vmax.xlane.f32.xlu0 %v1953
        %v1955 = vpop.xlane.xlu0 %1954
        %v1956 = vmax.f32 %v1573, %v1575
        %v1957 = vmax.f32 %v1956, %v1766
        %v1958 = vmax.f32 %v1957, %v1768
        %1959 = vmax.xlane.f32.xlu0 %v1958
        %v1960 = vpop.xlane.xlu0 %1959
        %v1961 = vmax.f32 %v1577, %v1579
        %v1962 = vmax.f32 %v1961, %v1770
        %v1963 = vmax.f32 %v1962, %v1772
        %1964 = vmax.xlane.f32.xlu0 %v1963
        %v1965 = vpop.xlane.xlu0 %1964
        %v1966 = vmax.f32 %v1583, %v1585
        %v1967 = vmax.f32 %v1966, %v1776
        %v1968 = vmax.f32 %v1967, %v1778
        %1969 = vmax.xlane.f32.xlu0 %v1968
        %v1970 = vpop.xlane.xlu0 %1969
        %v1971 = vmax.f32 %v1587, %v1589
        %v1972 = vmax.f32 %v1971, %v1780
        %v1973 = vmax.f32 %v1972, %v1782
        %1974 = vmax.xlane.f32.xlu0 %v1973
        %v1975 = vpop.xlane.xlu0 %1974
        %v1976 = vmax.f32 %v1784, %v1820
        %v1977 = vmax.f32 %v1785, %v1825
        %v1978 = vmax.f32 %v1786, %v1830
        %v1979 = vmax.f32 %v1787, %v1835
        %v1980 = vmax.f32 %v1788, %v1840
        %v1981 = vmax.f32 %v1789, %v1845
        %v1982 = vmax.f32 %v1790, %v1850
        %v1983 = vmax.f32 %v1791, %v1855
        %v1984 = vmax.f32 %v1792, %v1860
        %v1985 = vmax.f32 %v1793, %v1865
        %v1986 = vmax.f32 %v1794, %v1870
        %v1987 = vmax.f32 %v1795, %v1875
        %v1988 = vmax.f32 %v1796, %v1880
        %v1989 = vmax.f32 %v1797, %v1885
        %v1990 = vmax.f32 %v1798, %v1890
        %v1991 = vmax.f32 %v1799, %v1895
        %v1992 = vmax.f32 %v1800, %v1900
        %v1993 = vmax.f32 %v1801, %v1905
        %v1994 = vmax.f32 %v1802, %v1910
        %v1995 = vmax.f32 %v1803, %v1915
        %v1996 = vmax.f32 %v1804, %v1920
        %v1997 = vmax.f32 %v1805, %v1925
        %v1998 = vmax.f32 %v1806, %v1930
        %v1999 = vmax.f32 %v1807, %v1935
        %v2000 = vmax.f32 %v1808, %v1940
        %v2001 = vmax.f32 %v1809, %v1945
        %v2002 = vmax.f32 %v1810, %v1950
        %v2003 = vmax.f32 %v1811, %v1955
        %v2004 = vmax.f32 %v1812, %v1960
        %v2005 = vmax.f32 %v1813, %v1965
        %v2006 = vmax.f32 %v1814, %v1970
        %v2007 = vmax.f32 %v1815, %v1975
        %v2008 = vsub.f32 %v1784, %v1976
        %v2009 = vsub.f32 %v1785, %v1977
        %v2010 = vsub.f32 %v1786, %v1978
        %v2011 = vsub.f32 %v1787, %v1979
        %v2012 = vsub.f32 %v1788, %v1980
        %v2013 = vsub.f32 %v1789, %v1981
        %v2014 = vsub.f32 %v1790, %v1982
        %v2015 = vsub.f32 %v1791, %v1983
        %v2016 = vsub.f32 %v1792, %v1984
        %v2017 = vsub.f32 %v1793, %v1985
        %v2018 = vsub.f32 %v1794, %v1986
        %v2019 = vsub.f32 %v1795, %v1987
        %v2020 = vsub.f32 %v1796, %v1988
        %v2021 = vsub.f32 %v1797, %v1989
        %v2022 = vsub.f32 %v1798, %v1990
        %v2023 = vsub.f32 %v1799, %v1991
        %v2024 = vsub.f32 %v1800, %v1992
        %v2025 = vsub.f32 %v1801, %v1993
        %v2026 = vsub.f32 %v1802, %v1994
        %v2027 = vsub.f32 %v1803, %v1995
        %v2028 = vsub.f32 %v1804, %v1996
        %v2029 = vsub.f32 %v1805, %v1997
        %v2030 = vsub.f32 %v1806, %v1998
        %v2031 = vsub.f32 %v1807, %v1999
        %v2032 = vsub.f32 %v1808, %v2000
        %v2033 = vsub.f32 %v1809, %v2001
        %v2034 = vsub.f32 %v1810, %v2002
        %v2035 = vsub.f32 %v1811, %v2003
        %v2036 = vsub.f32 %v1812, %v2004
        %v2037 = vsub.f32 %v1813, %v2005
        %v2038 = vsub.f32 %v1814, %v2006
        %v2039 = vsub.f32 %v1815, %v2007
        %v2040 = vmul.f32 %v2008, 1.442695
        %v2041 = vpow.pop %v2040
        %v2042 = vmul.f32 %v2009, 1.442695
        %v2043 = vpow.pop %v2042
        %v2044 = vmul.f32 %v2010, 1.442695
        %v2045 = vpow.pop %v2044
        %v2046 = vmul.f32 %v2011, 1.442695
        %v2047 = vpow.pop %v2046
        %v2048 = vmul.f32 %v2012, 1.442695
        %v2049 = vpow.pop %v2048
        %v2050 = vmul.f32 %v2013, 1.442695
        %v2051 = vpow.pop %v2050
        %v2052 = vmul.f32 %v2014, 1.442695
        %v2053 = vpow.pop %v2052
        %v2054 = vmul.f32 %v2015, 1.442695
        %v2055 = vpow.pop %v2054
        %v2056 = vmul.f32 %v2016, 1.442695
        %v2057 = vpow.pop %v2056
        %v2058 = vmul.f32 %v2017, 1.442695
        %v2059 = vpow.pop %v2058
        %v2060 = vmul.f32 %v2018, 1.442695
        %v2061 = vpow.pop %v2060
        %v2062 = vmul.f32 %v2019, 1.442695
        %v2063 = vpow.pop %v2062
        %v2064 = vmul.f32 %v2020, 1.442695
        %v2065 = vpow.pop %v2064
        %v2066 = vmul.f32 %v2021, 1.442695
        %v2067 = vpow.pop %v2066
        %v2068 = vmul.f32 %v2022, 1.442695
        %v2069 = vpow.pop %v2068
        %v2070 = vmul.f32 %v2023, 1.442695
        %v2071 = vpow.pop %v2070
        %v2072 = vmul.f32 %v2024, 1.442695
        %v2073 = vpow.pop %v2072
        %v2074 = vmul.f32 %v2025, 1.442695
        %v2075 = vpow.pop %v2074
        %v2076 = vmul.f32 %v2026, 1.442695
        %v2077 = vpow.pop %v2076
        %v2078 = vmul.f32 %v2027, 1.442695
        %v2079 = vpow.pop %v2078
        %v2080 = vmul.f32 %v2028, 1.442695
        %v2081 = vpow.pop %v2080
        %v2082 = vmul.f32 %v2029, 1.442695
        %v2083 = vpow.pop %v2082
        %v2084 = vmul.f32 %v2030, 1.442695
        %v2085 = vpow.pop %v2084
        %v2086 = vmul.f32 %v2031, 1.442695
        %v2087 = vpow.pop %v2086
        %v2088 = vmul.f32 %v2032, 1.442695
        %v2089 = vpow.pop %v2088
        %v2090 = vmul.f32 %v2033, 1.442695
        %v2091 = vpow.pop %v2090
        %v2092 = vmul.f32 %v2034, 1.442695
        %v2093 = vpow.pop %v2092
        %v2094 = vmul.f32 %v2035, 1.442695
        %v2095 = vpow.pop %v2094
        %v2096 = vmul.f32 %v2036, 1.442695
        %v2097 = vpow.pop %v2096
        %v2098 = vmul.f32 %v2037, 1.442695
        %v2099 = vpow.pop %v2098
        %v2100 = vmul.f32 %v2038, 1.442695
        %v2101 = vpow.pop %v2100
        %v2102 = vmul.f32 %v2039, 1.442695
        %v2103 = vpow.pop %v2102
        %2105 = vset.pattern.permute.xlu0 0
        %2106 = vperm.xlu0 %2105, %v1976
        %v2107 = vpop.permute.xlu0 %2106
        %2110 = vset.pattern.permute.xlu0 0
        %2111 = vperm.xlu0 %2110, %v1977
        %v2112 = vpop.permute.xlu0 %2111
        %2115 = vset.pattern.permute.xlu0 0
        %2116 = vperm.xlu0 %2115, %v1978
        %v2117 = vpop.permute.xlu0 %2116
        %2120 = vset.pattern.permute.xlu0 0
        %2121 = vperm.xlu0 %2120, %v1979
        %v2122 = vpop.permute.xlu0 %2121
        %2125 = vset.pattern.permute.xlu0 0
        %2126 = vperm.xlu0 %2125, %v1980
        %v2127 = vpop.permute.xlu0 %2126
        %2130 = vset.pattern.permute.xlu0 0
        %2131 = vperm.xlu0 %2130, %v1981
        %v2132 = vpop.permute.xlu0 %2131
        %2135 = vset.pattern.permute.xlu0 0
        %2136 = vperm.xlu0 %2135, %v1982
        %v2137 = vpop.permute.xlu0 %2136
        %2140 = vset.pattern.permute.xlu0 0
        %2141 = vperm.xlu0 %2140, %v1983
        %v2142 = vpop.permute.xlu0 %2141
        %2145 = vset.pattern.permute.xlu0 0
        %2146 = vperm.xlu0 %2145, %v1984
        %v2147 = vpop.permute.xlu0 %2146
        %2150 = vset.pattern.permute.xlu0 0
        %2151 = vperm.xlu0 %2150, %v1985
        %v2152 = vpop.permute.xlu0 %2151
        %2155 = vset.pattern.permute.xlu0 0
        %2156 = vperm.xlu0 %2155, %v1986
        %v2157 = vpop.permute.xlu0 %2156
        %2160 = vset.pattern.permute.xlu0 0
        %2161 = vperm.xlu0 %2160, %v1987
        %v2162 = vpop.permute.xlu0 %2161
        %2165 = vset.pattern.permute.xlu0 0
        %2166 = vperm.xlu0 %2165, %v1988
        %v2167 = vpop.permute.xlu0 %2166
        %2170 = vset.pattern.permute.xlu0 0
        %2171 = vperm.xlu0 %2170, %v1989
        %v2172 = vpop.permute.xlu0 %2171
        %2175 = vset.pattern.permute.xlu0 0
        %2176 = vperm.xlu0 %2175, %v1990
        %v2177 = vpop.permute.xlu0 %2176
        %2180 = vset.pattern.permute.xlu0 0
        %2181 = vperm.xlu0 %2180, %v1991
        %v2182 = vpop.permute.xlu0 %2181
        %2185 = vset.pattern.permute.xlu0 0
        %2186 = vperm.xlu0 %2185, %v1992
        %v2187 = vpop.permute.xlu0 %2186
        %2190 = vset.pattern.permute.xlu0 0
        %2191 = vperm.xlu0 %2190, %v1993
        %v2192 = vpop.permute.xlu0 %2191
        %2195 = vset.pattern.permute.xlu0 0
        %2196 = vperm.xlu0 %2195, %v1994
        %v2197 = vpop.permute.xlu0 %2196
        %2200 = vset.pattern.permute.xlu0 0
        %2201 = vperm.xlu0 %2200, %v1995
        %v2202 = vpop.permute.xlu0 %2201
        %2205 = vset.pattern.permute.xlu0 0
        %2206 = vperm.xlu0 %2205, %v1996
        %v2207 = vpop.permute.xlu0 %2206
        %2210 = vset.pattern.permute.xlu0 0
        %2211 = vperm.xlu0 %2210, %v1997
        %v2212 = vpop.permute.xlu0 %2211
        %2215 = vset.pattern.permute.xlu0 0
        %2216 = vperm.xlu0 %2215, %v1998
        %v2217 = vpop.permute.xlu0 %2216
        %2220 = vset.pattern.permute.xlu0 0
        %2221 = vperm.xlu0 %2220, %v1999
        %v2222 = vpop.permute.xlu0 %2221
        %2225 = vset.pattern.permute.xlu0 0
        %2226 = vperm.xlu0 %2225, %v2000
        %v2227 = vpop.permute.xlu0 %2226
        %2230 = vset.pattern.permute.xlu0 0
        %2231 = vperm.xlu0 %2230, %v2001
        %v2232 = vpop.permute.xlu0 %2231
        %2235 = vset.pattern.permute.xlu0 0
        %2236 = vperm.xlu0 %2235, %v2002
        %v2237 = vpop.permute.xlu0 %2236
        %2240 = vset.pattern.permute.xlu0 0
        %2241 = vperm.xlu0 %2240, %v2003
        %v2242 = vpop.permute.xlu0 %2241
        %2245 = vset.pattern.permute.xlu0 0
        %2246 = vperm.xlu0 %2245, %v2004
        %v2247 = vpop.permute.xlu0 %2246
        %2250 = vset.pattern.permute.xlu0 0
        %2251 = vperm.xlu0 %2250, %v2005
        %v2252 = vpop.permute.xlu0 %2251
        %2255 = vset.pattern.permute.xlu0 0
        %2256 = vperm.xlu0 %2255, %v2006
        %v2257 = vpop.permute.xlu0 %2256
        %2260 = vset.pattern.permute.xlu0 0
        %2261 = vperm.xlu0 %2260, %v2007
        %v2262 = vpop.permute.xlu0 %2261
        %v2264 = vsub.f32 %v1433, %v2107
        %v2265 = vsub.f32 %v1435, %v2107
        %v2266 = vsub.f32 %v1626, %v2107
        %v2267 = vsub.f32 %v1628, %v2107
        %v2268 = vsub.f32 %v1437, %v2112
        %v2269 = vsub.f32 %v1439, %v2112
        %v2270 = vsub.f32 %v1630, %v2112
        %v2271 = vsub.f32 %v1632, %v2112
        %v2272 = vsub.f32 %v1443, %v2117
        %v2273 = vsub.f32 %v1445, %v2117
        %v2274 = vsub.f32 %v1636, %v2117
        %v2275 = vsub.f32 %v1638, %v2117
        %v2276 = vsub.f32 %v1447, %v2122
        %v2277 = vsub.f32 %v1449, %v2122
        %v2278 = vsub.f32 %v1640, %v2122
        %v2279 = vsub.f32 %v1642, %v2122
        %v2280 = vsub.f32 %v1453, %v2127
        %v2281 = vsub.f32 %v1455, %v2127
        %v2282 = vsub.f32 %v1646, %v2127
        %v2283 = vsub.f32 %v1648, %v2127
        %v2284 = vsub.f32 %v1457, %v2132
        %v2285 = vsub.f32 %v1459, %v2132
        %v2286 = vsub.f32 %v1650, %v2132
        %v2287 = vsub.f32 %v1652, %v2132
        %v2288 = vsub.f32 %v1463, %v2137
        %v2289 = vsub.f32 %v1465, %v2137
        %v2290 = vsub.f32 %v1656, %v2137
        %v2291 = vsub.f32 %v1658, %v2137
        %v2292 = vsub.f32 %v1467, %v2142
        %v2293 = vsub.f32 %v1469, %v2142
        %v2294 = vsub.f32 %v1660, %v2142
        %v2295 = vsub.f32 %v1662, %v2142
        %v2296 = vsub.f32 %v1473, %v2147
        %v2297 = vsub.f32 %v1475, %v2147
        %v2298 = vsub.f32 %v1666, %v2147
        %v2299 = vsub.f32 %v1668, %v2147
        %v2300 = vsub.f32 %v1477, %v2152
        %v2301 = vsub.f32 %v1479, %v2152
        %v2302 = vsub.f32 %v1670, %v2152
        %v2303 = vsub.f32 %v1672, %v2152
        %v2304 = vsub.f32 %v1483, %v2157
        %v2305 = vsub.f32 %v1485, %v2157
        %v2306 = vsub.f32 %v1676, %v2157
        %v2307 = vsub.f32 %v1678, %v2157
        %v2308 = vsub.f32 %v1487, %v2162
        %v2309 = vsub.f32 %v1489, %v2162
        %v2310 = vsub.f32 %v1680, %v2162
        %v2311 = vsub.f32 %v1682, %v2162
        %v2312 = vsub.f32 %v1493, %v2167
        %v2313 = vsub.f32 %v1495, %v2167
        %v2314 = vsub.f32 %v1686, %v2167
        %v2315 = vsub.f32 %v1688, %v2167
        %v2316 = vsub.f32 %v1497, %v2172
        %v2317 = vsub.f32 %v1499, %v2172
        %v2318 = vsub.f32 %v1690, %v2172
        %v2319 = vsub.f32 %v1692, %v2172
        %v2320 = vsub.f32 %v1503, %v2177
        %v2321 = vsub.f32 %v1505, %v2177
        %v2322 = vsub.f32 %v1696, %v2177
        %v2323 = vsub.f32 %v1698, %v2177
        %v2324 = vsub.f32 %v1507, %v2182
        %v2325 = vsub.f32 %v1509, %v2182
        %v2326 = vsub.f32 %v1700, %v2182
        %v2327 = vsub.f32 %v1702, %v2182
        %v2328 = vsub.f32 %v1513, %v2187
        %v2329 = vsub.f32 %v1515, %v2187
        %v2330 = vsub.f32 %v1706, %v2187
        %v2331 = vsub.f32 %v1708, %v2187
        %v2332 = vsub.f32 %v1517, %v2192
        %v2333 = vsub.f32 %v1519, %v2192
        %v2334 = vsub.f32 %v1710, %v2192
        %v2335 = vsub.f32 %v1712, %v2192
        %v2336 = vsub.f32 %v1523, %v2197
        %v2337 = vsub.f32 %v1525, %v2197
        %v2338 = vsub.f32 %v1716, %v2197
        %v2339 = vsub.f32 %v1718, %v2197
        %v2340 = vsub.f32 %v1527, %v2202
        %v2341 = vsub.f32 %v1529, %v2202
        %v2342 = vsub.f32 %v1720, %v2202
        %v2343 = vsub.f32 %v1722, %v2202
        %v2344 = vsub.f32 %v1533, %v2207
        %v2345 = vsub.f32 %v1535, %v2207
        %v2346 = vsub.f32 %v1726, %v2207
        %v2347 = vsub.f32 %v1728, %v2207
        %v2348 = vsub.f32 %v1537, %v2212
        %v2349 = vsub.f32 %v1539, %v2212
        %v2350 = vsub.f32 %v1730, %v2212
        %v2351 = vsub.f32 %v1732, %v2212
        %v2352 = vsub.f32 %v1543, %v2217
        %v2353 = vsub.f32 %v1545, %v2217
        %v2354 = vsub.f32 %v1736, %v2217
        %v2355 = vsub.f32 %v1738, %v2217
        %v2356 = vsub.f32 %v1547, %v2222
        %v2357 = vsub.f32 %v1549, %v2222
        %v2358 = vsub.f32 %v1740, %v2222
        %v2359 = vsub.f32 %v1742, %v2222
        %v2360 = vsub.f32 %v1553, %v2227
        %v2361 = vsub.f32 %v1555, %v2227
        %v2362 = vsub.f32 %v1746, %v2227
        %v2363 = vsub.f32 %v1748, %v2227
        %v2364 = vsub.f32 %v1557, %v2232
        %v2365 = vsub.f32 %v1559, %v2232
        %v2366 = vsub.f32 %v1750, %v2232
        %v2367 = vsub.f32 %v1752, %v2232
        %v2368 = vsub.f32 %v1563, %v2237
        %v2369 = vsub.f32 %v1565, %v2237
        %v2370 = vsub.f32 %v1756, %v2237
        %v2371 = vsub.f32 %v1758, %v2237
        %v2372 = vsub.f32 %v1567, %v2242
        %v2373 = vsub.f32 %v1569, %v2242
        %v2374 = vsub.f32 %v1760, %v2242
        %v2375 = vsub.f32 %v1762, %v2242
        %v2376 = vsub.f32 %v1573, %v2247
        %v2377 = vsub.f32 %v1575, %v2247
        %v2378 = vsub.f32 %v1766, %v2247
        %v2379 = vsub.f32 %v1768, %v2247
        %v2380 = vsub.f32 %v1577, %v2252
        %v2381 = vsub.f32 %v1579, %v2252
        %v2382 = vsub.f32 %v1770, %v2252
        %v2383 = vsub.f32 %v1772, %v2252
        %v2384 = vsub.f32 %v1583, %v2257
        %v2385 = vsub.f32 %v1585, %v2257
        %v2386 = vsub.f32 %v1776, %v2257
        %v2387 = vsub.f32 %v1778, %v2257
        %v2388 = vsub.f32 %v1587, %v2262
        %v2389 = vsub.f32 %v1589, %v2262
        %v2390 = vsub.f32 %v1780, %v2262
        %v2391 = vsub.f32 %v1782, %v2262
        %v2392 = vmul.f32 %v2264, 1.442695
        %v2393 = vpow.pop %v2392
        %v2394 = vmul.f32 %v2265, 1.442695
        %v2395 = vpow.pop %v2394
        %v2396 = vmul.f32 %v2266, 1.442695
        %v2397 = vpow.pop %v2396
        %v2398 = vmul.f32 %v2267, 1.442695
        %v2399 = vpow.pop %v2398
        %v2400 = vmul.f32 %v2268, 1.442695
        %v2401 = vpow.pop %v2400
        %v2402 = vmul.f32 %v2269, 1.442695
        %v2403 = vpow.pop %v2402
        %v2404 = vmul.f32 %v2270, 1.442695
        %v2405 = vpow.pop %v2404
        %v2406 = vmul.f32 %v2271, 1.442695
        %v2407 = vpow.pop %v2406
        %v2408 = vmul.f32 %v2272, 1.442695
        %v2409 = vpow.pop %v2408
        %v2410 = vmul.f32 %v2273, 1.442695
        %v2411 = vpow.pop %v2410
        %v2412 = vmul.f32 %v2274, 1.442695
        %v2413 = vpow.pop %v2412
        %v2414 = vmul.f32 %v2275, 1.442695
        %v2415 = vpow.pop %v2414
        %v2416 = vmul.f32 %v2276, 1.442695
        %v2417 = vpow.pop %v2416
        %v2418 = vmul.f32 %v2277, 1.442695
        %v2419 = vpow.pop %v2418
        %v2420 = vmul.f32 %v2278, 1.442695
        %v2421 = vpow.pop %v2420
        %v2422 = vmul.f32 %v2279, 1.442695
        %v2423 = vpow.pop %v2422
        %v2424 = vmul.f32 %v2280, 1.442695
        %v2425 = vpow.pop %v2424
        %v2426 = vmul.f32 %v2281, 1.442695
        %v2427 = vpow.pop %v2426
        %v2428 = vmul.f32 %v2282, 1.442695
        %v2429 = vpow.pop %v2428
        %v2430 = vmul.f32 %v2283, 1.442695
        %v2431 = vpow.pop %v2430
        %v2432 = vmul.f32 %v2284, 1.442695
        %v2433 = vpow.pop %v2432
        %v2434 = vmul.f32 %v2285, 1.442695
        %v2435 = vpow.pop %v2434
        %v2436 = vmul.f32 %v2286, 1.442695
        %v2437 = vpow.pop %v2436
        %v2438 = vmul.f32 %v2287, 1.442695
        %v2439 = vpow.pop %v2438
        %v2440 = vmul.f32 %v2288, 1.442695
        %v2441 = vpow.pop %v2440
        %v2442 = vmul.f32 %v2289, 1.442695
        %v2443 = vpow.pop %v2442
        %v2444 = vmul.f32 %v2290, 1.442695
        %v2445 = vpow.pop %v2444
        %v2446 = vmul.f32 %v2291, 1.442695
        %v2447 = vpow.pop %v2446
        %v2448 = vmul.f32 %v2292, 1.442695
        %v2449 = vpow.pop %v2448
        %v2450 = vmul.f32 %v2293, 1.442695
        %v2451 = vpow.pop %v2450
        %v2452 = vmul.f32 %v2294, 1.442695
        %v2453 = vpow.pop %v2452
        %v2454 = vmul.f32 %v2295, 1.442695
        %v2455 = vpow.pop %v2454
        %v2456 = vmul.f32 %v2296, 1.442695
        %v2457 = vpow.pop %v2456
        %v2458 = vmul.f32 %v2297, 1.442695
        %v2459 = vpow.pop %v2458
        %v2460 = vmul.f32 %v2298, 1.442695
        %v2461 = vpow.pop %v2460
        %v2462 = vmul.f32 %v2299, 1.442695
        %v2463 = vpow.pop %v2462
        %v2464 = vmul.f32 %v2300, 1.442695
        %v2465 = vpow.pop %v2464
        %v2466 = vmul.f32 %v2301, 1.442695
        %v2467 = vpow.pop %v2466
        %v2468 = vmul.f32 %v2302, 1.442695
        %v2469 = vpow.pop %v2468
        %v2470 = vmul.f32 %v2303, 1.442695
        %v2471 = vpow.pop %v2470
        %v2472 = vmul.f32 %v2304, 1.442695
        %v2473 = vpow.pop %v2472
        %v2474 = vmul.f32 %v2305, 1.442695
        %v2475 = vpow.pop %v2474
        %v2476 = vmul.f32 %v2306, 1.442695
        %v2477 = vpow.pop %v2476
        %v2478 = vmul.f32 %v2307, 1.442695
        %v2479 = vpow.pop %v2478
        %v2480 = vmul.f32 %v2308, 1.442695
        %v2481 = vpow.pop %v2480
        %v2482 = vmul.f32 %v2309, 1.442695
        %v2483 = vpow.pop %v2482
        %v2484 = vmul.f32 %v2310, 1.442695
        %v2485 = vpow.pop %v2484
        %v2486 = vmul.f32 %v2311, 1.442695
        %v2487 = vpow.pop %v2486
        %v2488 = vmul.f32 %v2312, 1.442695
        %v2489 = vpow.pop %v2488
        %v2490 = vmul.f32 %v2313, 1.442695
        %v2491 = vpow.pop %v2490
        %v2492 = vmul.f32 %v2314, 1.442695
        %v2493 = vpow.pop %v2492
        %v2494 = vmul.f32 %v2315, 1.442695
        %v2495 = vpow.pop %v2494
        %v2496 = vmul.f32 %v2316, 1.442695
        %v2497 = vpow.pop %v2496
        %v2498 = vmul.f32 %v2317, 1.442695
        %v2499 = vpow.pop %v2498
        %v2500 = vmul.f32 %v2318, 1.442695
        %v2501 = vpow.pop %v2500
        %v2502 = vmul.f32 %v2319, 1.442695
        %v2503 = vpow.pop %v2502
        %v2504 = vmul.f32 %v2320, 1.442695
        %v2505 = vpow.pop %v2504
        %v2506 = vmul.f32 %v2321, 1.442695
        %v2507 = vpow.pop %v2506
        %v2508 = vmul.f32 %v2322, 1.442695
        %v2509 = vpow.pop %v2508
        %v2510 = vmul.f32 %v2323, 1.442695
        %v2511 = vpow.pop %v2510
        %v2512 = vmul.f32 %v2324, 1.442695
        %v2513 = vpow.pop %v2512
        %v2514 = vmul.f32 %v2325, 1.442695
        %v2515 = vpow.pop %v2514
        %v2516 = vmul.f32 %v2326, 1.442695
        %v2517 = vpow.pop %v2516
        %v2518 = vmul.f32 %v2327, 1.442695
        %v2519 = vpow.pop %v2518
        %v2520 = vmul.f32 %v2328, 1.442695
        %v2521 = vpow.pop %v2520
        %v2522 = vmul.f32 %v2329, 1.442695
        %v2523 = vpow.pop %v2522
        %v2524 = vmul.f32 %v2330, 1.442695
        %v2525 = vpow.pop %v2524
        %v2526 = vmul.f32 %v2331, 1.442695
        %v2527 = vpow.pop %v2526
        %v2528 = vmul.f32 %v2332, 1.442695
        %v2529 = vpow.pop %v2528
        %v2530 = vmul.f32 %v2333, 1.442695
        %v2531 = vpow.pop %v2530
        %v2532 = vmul.f32 %v2334, 1.442695
        %v2533 = vpow.pop %v2532
        %v2534 = vmul.f32 %v2335, 1.442695
        %v2535 = vpow.pop %v2534
        %v2536 = vmul.f32 %v2336, 1.442695
        %v2537 = vpow.pop %v2536
        %v2538 = vmul.f32 %v2337, 1.442695
        %v2539 = vpow.pop %v2538
        %v2540 = vmul.f32 %v2338, 1.442695
        %v2541 = vpow.pop %v2540
        %v2542 = vmul.f32 %v2339, 1.442695
        %v2543 = vpow.pop %v2542
        %v2544 = vmul.f32 %v2340, 1.442695
        %v2545 = vpow.pop %v2544
        %v2546 = vmul.f32 %v2341, 1.442695
        %v2547 = vpow.pop %v2546
        %v2548 = vmul.f32 %v2342, 1.442695
        %v2549 = vpow.pop %v2548
        %v2550 = vmul.f32 %v2343, 1.442695
        %v2551 = vpow.pop %v2550
        %v2552 = vmul.f32 %v2344, 1.442695
        %v2553 = vpow.pop %v2552
        %v2554 = vmul.f32 %v2345, 1.442695
        %v2555 = vpow.pop %v2554
        %v2556 = vmul.f32 %v2346, 1.442695
        %v2557 = vpow.pop %v2556
        %v2558 = vmul.f32 %v2347, 1.442695
        %v2559 = vpow.pop %v2558
        %v2560 = vmul.f32 %v2348, 1.442695
        %v2561 = vpow.pop %v2560
        %v2562 = vmul.f32 %v2349, 1.442695
        %v2563 = vpow.pop %v2562
        %v2564 = vmul.f32 %v2350, 1.442695
        %v2565 = vpow.pop %v2564
        %v2566 = vmul.f32 %v2351, 1.442695
        %v2567 = vpow.pop %v2566
        %v2568 = vmul.f32 %v2352, 1.442695
        %v2569 = vpow.pop %v2568
        %v2570 = vmul.f32 %v2353, 1.442695
        %v2571 = vpow.pop %v2570
        %v2572 = vmul.f32 %v2354, 1.442695
        %v2573 = vpow.pop %v2572
        %v2574 = vmul.f32 %v2355, 1.442695
        %v2575 = vpow.pop %v2574
        %v2576 = vmul.f32 %v2356, 1.442695
        %v2577 = vpow.pop %v2576
        %v2578 = vmul.f32 %v2357, 1.442695
        %v2579 = vpow.pop %v2578
        %v2580 = vmul.f32 %v2358, 1.442695
        %v2581 = vpow.pop %v2580
        %v2582 = vmul.f32 %v2359, 1.442695
        %v2583 = vpow.pop %v2582
        %v2584 = vmul.f32 %v2360, 1.442695
        %v2585 = vpow.pop %v2584
        %v2586 = vmul.f32 %v2361, 1.442695
        %v2587 = vpow.pop %v2586
        %v2588 = vmul.f32 %v2362, 1.442695
        %v2589 = vpow.pop %v2588
        %v2590 = vmul.f32 %v2363, 1.442695
        %v2591 = vpow.pop %v2590
        %v2592 = vmul.f32 %v2364, 1.442695
        %v2593 = vpow.pop %v2592
        %v2594 = vmul.f32 %v2365, 1.442695
        %v2595 = vpow.pop %v2594
        %v2596 = vmul.f32 %v2366, 1.442695
        %v2597 = vpow.pop %v2596
        %v2598 = vmul.f32 %v2367, 1.442695
        %v2599 = vpow.pop %v2598
        %v2600 = vmul.f32 %v2368, 1.442695
        %v2601 = vpow.pop %v2600
        %v2602 = vmul.f32 %v2369, 1.442695
        %v2603 = vpow.pop %v2602
        %v2604 = vmul.f32 %v2370, 1.442695
        %v2605 = vpow.pop %v2604
        %v2606 = vmul.f32 %v2371, 1.442695
        %v2607 = vpow.pop %v2606
        %v2608 = vmul.f32 %v2372, 1.442695
        %v2609 = vpow.pop %v2608
        %v2610 = vmul.f32 %v2373, 1.442695
        %v2611 = vpow.pop %v2610
        %v2612 = vmul.f32 %v2374, 1.442695
        %v2613 = vpow.pop %v2612
        %v2614 = vmul.f32 %v2375, 1.442695
        %v2615 = vpow.pop %v2614
        %v2616 = vmul.f32 %v2376, 1.442695
        %v2617 = vpow.pop %v2616
        %v2618 = vmul.f32 %v2377, 1.442695
        %v2619 = vpow.pop %v2618
        %v2620 = vmul.f32 %v2378, 1.442695
        %v2621 = vpow.pop %v2620
        %v2622 = vmul.f32 %v2379, 1.442695
        %v2623 = vpow.pop %v2622
        %v2624 = vmul.f32 %v2380, 1.442695
        %v2625 = vpow.pop %v2624
        %v2626 = vmul.f32 %v2381, 1.442695
        %v2627 = vpow.pop %v2626
        %v2628 = vmul.f32 %v2382, 1.442695
        %v2629 = vpow.pop %v2628
        %v2630 = vmul.f32 %v2383, 1.442695
        %v2631 = vpow.pop %v2630
        %v2632 = vmul.f32 %v2384, 1.442695
        %v2633 = vpow.pop %v2632
        %v2634 = vmul.f32 %v2385, 1.442695
        %v2635 = vpow.pop %v2634
        %v2636 = vmul.f32 %v2386, 1.442695
        %v2637 = vpow.pop %v2636
        %v2638 = vmul.f32 %v2387, 1.442695
        %v2639 = vpow.pop %v2638
        %v2640 = vmul.f32 %v2388, 1.442695
        %v2641 = vpow.pop %v2640
        %v2642 = vmul.f32 %v2389, 1.442695
        %v2643 = vpow.pop %v2642
        %v2644 = vmul.f32 %v2390, 1.442695
        %v2645 = vpow.pop %v2644
        %v2646 = vmul.f32 %v2391, 1.442695
        %v2647 = vpow.pop %v2646
        %v2648 = vld [vmem:[#allocation4] sm:$0xff]
        %v2649 = vld [vmem:[#allocation4 + $0x8] sm:$0xff]
        %v2650 = vld [vmem:[#allocation4 + $0x10] sm:$0xff]
        %v2651 = vld [vmem:[#allocation4 + $0x18] sm:$0xff]
        %v2652 = vld [vmem:[#allocation4 + $0x20] sm:$0xff]
        %v2653 = vld [vmem:[#allocation4 + $0x28] sm:$0xff]
        %v2654 = vld [vmem:[#allocation4 + $0x30] sm:$0xff]
        %v2655 = vld [vmem:[#allocation4 + $0x38] sm:$0xff]
        %v2656 = vld [vmem:[#allocation4 + $0x40] sm:$0xff]
        %v2657 = vld [vmem:[#allocation4 + $0x48] sm:$0xff]
        %v2658 = vld [vmem:[#allocation4 + $0x50] sm:$0xff]
        %v2659 = vld [vmem:[#allocation4 + $0x58] sm:$0xff]
        %v2660 = vld [vmem:[#allocation4 + $0x60] sm:$0xff]
        %v2661 = vld [vmem:[#allocation4 + $0x68] sm:$0xff]
        %v2662 = vld [vmem:[#allocation4 + $0x70] sm:$0xff]
        %v2663 = vld [vmem:[#allocation4 + $0x78] sm:$0xff]
        %v2664 = vld [vmem:[#allocation4 + $0x80] sm:$0xff]
        %v2665 = vld [vmem:[#allocation4 + $0x88] sm:$0xff]
        %v2666 = vld [vmem:[#allocation4 + $0x90] sm:$0xff]
        %v2667 = vld [vmem:[#allocation4 + $0x98] sm:$0xff]
        %v2668 = vld [vmem:[#allocation4 + $0xa0] sm:$0xff]
        %v2669 = vld [vmem:[#allocation4 + $0xa8] sm:$0xff]
        %v2670 = vld [vmem:[#allocation4 + $0xb0] sm:$0xff]
        %v2671 = vld [vmem:[#allocation4 + $0xb8] sm:$0xff]
        %v2672 = vld [vmem:[#allocation4 + $0xc0] sm:$0xff]
        %v2673 = vld [vmem:[#allocation4 + $0xc8] sm:$0xff]
        %v2674 = vld [vmem:[#allocation4 + $0xd0] sm:$0xff]
        %v2675 = vld [vmem:[#allocation4 + $0xd8] sm:$0xff]
        %v2676 = vld [vmem:[#allocation4 + $0xe0] sm:$0xff]
        %v2677 = vld [vmem:[#allocation4 + $0xe8] sm:$0xff]
        %v2678 = vld [vmem:[#allocation4 + $0xf0] sm:$0xff]
        %v2679 = vld [vmem:[#allocation4 + $0xf8] sm:$0xff]
        %v2680 = vmul.f32 %v2041, %v2648
        %v2681 = vmul.f32 %v2043, %v2649
        %v2682 = vmul.f32 %v2045, %v2650
        %v2683 = vmul.f32 %v2047, %v2651
        %v2684 = vmul.f32 %v2049, %v2652
        %v2685 = vmul.f32 %v2051, %v2653
        %v2686 = vmul.f32 %v2053, %v2654
        %v2687 = vmul.f32 %v2055, %v2655
        %v2688 = vmul.f32 %v2057, %v2656
        %v2689 = vmul.f32 %v2059, %v2657
        %v2690 = vmul.f32 %v2061, %v2658
        %v2691 = vmul.f32 %v2063, %v2659
        %v2692 = vmul.f32 %v2065, %v2660
        %v2693 = vmul.f32 %v2067, %v2661
        %v2694 = vmul.f32 %v2069, %v2662
        %v2695 = vmul.f32 %v2071, %v2663
        %v2696 = vmul.f32 %v2073, %v2664
        %v2697 = vmul.f32 %v2075, %v2665
        %v2698 = vmul.f32 %v2077, %v2666
        %v2699 = vmul.f32 %v2079, %v2667
        %v2700 = vmul.f32 %v2081, %v2668
        %v2701 = vmul.f32 %v2083, %v2669
        %v2702 = vmul.f32 %v2085, %v2670
        %v2703 = vmul.f32 %v2087, %v2671
        %v2704 = vmul.f32 %v2089, %v2672
        %v2705 = vmul.f32 %v2091, %v2673
        %v2706 = vmul.f32 %v2093, %v2674
        %v2707 = vmul.f32 %v2095, %v2675
        %v2708 = vmul.f32 %v2097, %v2676
        %v2709 = vmul.f32 %v2099, %v2677
        %v2710 = vmul.f32 %v2101, %v2678
        %v2711 = vmul.f32 %v2103, %v2679
        %v2712 = vadd.f32 %v2393, %v2395
        %v2713 = vadd.f32 %v2712, %v2397
        %v2714 = vadd.f32 %v2713, %v2399
        %2715 = vadd.xlane.f32.xlu0 %v2714
        %v2716 = vpop.xlane.xlu0 %2715
        %v2717 = vadd.f32 %v2401, %v2403
        %v2718 = vadd.f32 %v2717, %v2405
        %v2719 = vadd.f32 %v2718, %v2407
        %2720 = vadd.xlane.f32.xlu0 %v2719
        %v2721 = vpop.xlane.xlu0 %2720
        %v2722 = vadd.f32 %v2409, %v2411
        %v2723 = vadd.f32 %v2722, %v2413
        %v2724 = vadd.f32 %v2723, %v2415
        %2725 = vadd.xlane.f32.xlu0 %v2724
        %v2726 = vpop.xlane.xlu0 %2725
        %v2727 = vadd.f32 %v2417, %v2419
        %v2728 = vadd.f32 %v2727, %v2421
        %v2729 = vadd.f32 %v2728, %v2423
        %2730 = vadd.xlane.f32.xlu0 %v2729
        %v2731 = vpop.xlane.xlu0 %2730
        %v2732 = vadd.f32 %v2425, %v2427
        %v2733 = vadd.f32 %v2732, %v2429
        %v2734 = vadd.f32 %v2733, %v2431
        %2735 = vadd.xlane.f32.xlu0 %v2734
        %v2736 = vpop.xlane.xlu0 %2735
        %v2737 = vadd.f32 %v2433, %v2435
        %v2738 = vadd.f32 %v2737, %v2437
        %v2739 = vadd.f32 %v2738, %v2439
        %2740 = vadd.xlane.f32.xlu0 %v2739
        %v2741 = vpop.xlane.xlu0 %2740
        %v2742 = vadd.f32 %v2441, %v2443
        %v2743 = vadd.f32 %v2742, %v2445
        %v2744 = vadd.f32 %v2743, %v2447
        %2745 = vadd.xlane.f32.xlu0 %v2744
        %v2746 = vpop.xlane.xlu0 %2745
        %v2747 = vadd.f32 %v2449, %v2451
        %v2748 = vadd.f32 %v2747, %v2453
        %v2749 = vadd.f32 %v2748, %v2455
        %2750 = vadd.xlane.f32.xlu0 %v2749
        %v2751 = vpop.xlane.xlu0 %2750
        %v2752 = vadd.f32 %v2457, %v2459
        %v2753 = vadd.f32 %v2752, %v2461
        %v2754 = vadd.f32 %v2753, %v2463
        %2755 = vadd.xlane.f32.xlu0 %v2754
        %v2756 = vpop.xlane.xlu0 %2755
        %v2757 = vadd.f32 %v2465, %v2467
        %v2758 = vadd.f32 %v2757, %v2469
        %v2759 = vadd.f32 %v2758, %v2471
        %2760 = vadd.xlane.f32.xlu0 %v2759
        %v2761 = vpop.xlane.xlu0 %2760
        %v2762 = vadd.f32 %v2473, %v2475
        %v2763 = vadd.f32 %v2762, %v2477
        %v2764 = vadd.f32 %v2763, %v2479
        %2765 = vadd.xlane.f32.xlu0 %v2764
        %v2766 = vpop.xlane.xlu0 %2765
        %v2767 = vadd.f32 %v2481, %v2483
        %v2768 = vadd.f32 %v2767, %v2485
        %v2769 = vadd.f32 %v2768, %v2487
        %2770 = vadd.xlane.f32.xlu0 %v2769
        %v2771 = vpop.xlane.xlu0 %2770
        %v2772 = vadd.f32 %v2489, %v2491
        %v2773 = vadd.f32 %v2772, %v2493
        %v2774 = vadd.f32 %v2773, %v2495
        %2775 = vadd.xlane.f32.xlu0 %v2774
        %v2776 = vpop.xlane.xlu0 %2775
        %v2777 = vadd.f32 %v2497, %v2499
        %v2778 = vadd.f32 %v2777, %v2501
        %v2779 = vadd.f32 %v2778, %v2503
        %2780 = vadd.xlane.f32.xlu0 %v2779
        %v2781 = vpop.xlane.xlu0 %2780
        %v2782 = vadd.f32 %v2505, %v2507
        %v2783 = vadd.f32 %v2782, %v2509
        %v2784 = vadd.f32 %v2783, %v2511
        %2785 = vadd.xlane.f32.xlu0 %v2784
        %v2786 = vpop.xlane.xlu0 %2785
        %v2787 = vadd.f32 %v2513, %v2515
        %v2788 = vadd.f32 %v2787, %v2517
        %v2789 = vadd.f32 %v2788, %v2519
        %2790 = vadd.xlane.f32.xlu0 %v2789
        %v2791 = vpop.xlane.xlu0 %2790
        %v2792 = vadd.f32 %v2521, %v2523
        %v2793 = vadd.f32 %v2792, %v2525
        %v2794 = vadd.f32 %v2793, %v2527
        %2795 = vadd.xlane.f32.xlu0 %v2794
        %v2796 = vpop.xlane.xlu0 %2795
        %v2797 = vadd.f32 %v2529, %v2531
        %v2798 = vadd.f32 %v2797, %v2533
        %v2799 = vadd.f32 %v2798, %v2535
        %2800 = vadd.xlane.f32.xlu0 %v2799
        %v2801 = vpop.xlane.xlu0 %2800
        %v2802 = vadd.f32 %v2537, %v2539
        %v2803 = vadd.f32 %v2802, %v2541
        %v2804 = vadd.f32 %v2803, %v2543
        %2805 = vadd.xlane.f32.xlu0 %v2804
        %v2806 = vpop.xlane.xlu0 %2805
        %v2807 = vadd.f32 %v2545, %v2547
        %v2808 = vadd.f32 %v2807, %v2549
        %v2809 = vadd.f32 %v2808, %v2551
        %2810 = vadd.xlane.f32.xlu0 %v2809
        %v2811 = vpop.xlane.xlu0 %2810
        %v2812 = vadd.f32 %v2553, %v2555
        %v2813 = vadd.f32 %v2812, %v2557
        %v2814 = vadd.f32 %v2813, %v2559
        %2815 = vadd.xlane.f32.xlu0 %v2814
        %v2816 = vpop.xlane.xlu0 %2815
        %v2817 = vadd.f32 %v2561, %v2563
        %v2818 = vadd.f32 %v2817, %v2565
        %v2819 = vadd.f32 %v2818, %v2567
        %2820 = vadd.xlane.f32.xlu0 %v2819
        %v2821 = vpop.xlane.xlu0 %2820
        %v2822 = vadd.f32 %v2569, %v2571
        %v2823 = vadd.f32 %v2822, %v2573
        %v2824 = vadd.f32 %v2823, %v2575
        %2825 = vadd.xlane.f32.xlu0 %v2824
        %v2826 = vpop.xlane.xlu0 %2825
        %v2827 = vadd.f32 %v2577, %v2579
        %v2828 = vadd.f32 %v2827, %v2581
        %v2829 = vadd.f32 %v2828, %v2583
        %2830 = vadd.xlane.f32.xlu0 %v2829
        %v2831 = vpop.xlane.xlu0 %2830
        %v2832 = vadd.f32 %v2585, %v2587
        %v2833 = vadd.f32 %v2832, %v2589
        %v2834 = vadd.f32 %v2833, %v2591
        %2835 = vadd.xlane.f32.xlu0 %v2834
        %v2836 = vpop.xlane.xlu0 %2835
        %v2837 = vadd.f32 %v2593, %v2595
        %v2838 = vadd.f32 %v2837, %v2597
        %v2839 = vadd.f32 %v2838, %v2599
        %2840 = vadd.xlane.f32.xlu0 %v2839
        %v2841 = vpop.xlane.xlu0 %2840
        %v2842 = vadd.f32 %v2601, %v2603
        %v2843 = vadd.f32 %v2842, %v2605
        %v2844 = vadd.f32 %v2843, %v2607
        %2845 = vadd.xlane.f32.xlu0 %v2844
        %v2846 = vpop.xlane.xlu0 %2845
        %v2847 = vadd.f32 %v2609, %v2611
        %v2848 = vadd.f32 %v2847, %v2613
        %v2849 = vadd.f32 %v2848, %v2615
        %2850 = vadd.xlane.f32.xlu0 %v2849
        %v2851 = vpop.xlane.xlu0 %2850
        %v2852 = vadd.f32 %v2617, %v2619
        %v2853 = vadd.f32 %v2852, %v2621
        %v2854 = vadd.f32 %v2853, %v2623
        %2855 = vadd.xlane.f32.xlu0 %v2854
        %v2856 = vpop.xlane.xlu0 %2855
        %v2857 = vadd.f32 %v2625, %v2627
        %v2858 = vadd.f32 %v2857, %v2629
        %v2859 = vadd.f32 %v2858, %v2631
        %2860 = vadd.xlane.f32.xlu0 %v2859
        %v2861 = vpop.xlane.xlu0 %2860
        %v2862 = vadd.f32 %v2633, %v2635
        %v2863 = vadd.f32 %v2862, %v2637
        %v2864 = vadd.f32 %v2863, %v2639
        %2865 = vadd.xlane.f32.xlu0 %v2864
        %v2866 = vpop.xlane.xlu0 %2865
        %v2867 = vadd.f32 %v2641, %v2643
        %v2868 = vadd.f32 %v2867, %v2645
        %v2869 = vadd.f32 %v2868, %v2647
        %2870 = vadd.xlane.f32.xlu0 %v2869
        %v2871 = vpop.xlane.xlu0 %2870
        %v2872 = vadd.f32 %v2680, %v2716
        %v2873 = vadd.f32 %v2681, %v2721
        %v2874 = vadd.f32 %v2682, %v2726
        %v2875 = vadd.f32 %v2683, %v2731
        %v2876 = vadd.f32 %v2684, %v2736
        %v2877 = vadd.f32 %v2685, %v2741
        %v2878 = vadd.f32 %v2686, %v2746
        %v2879 = vadd.f32 %v2687, %v2751
        %v2880 = vadd.f32 %v2688, %v2756
        %v2881 = vadd.f32 %v2689, %v2761
        %v2882 = vadd.f32 %v2690, %v2766
        %v2883 = vadd.f32 %v2691, %v2771
        %v2884 = vadd.f32 %v2692, %v2776
        %v2885 = vadd.f32 %v2693, %v2781
        %v2886 = vadd.f32 %v2694, %v2786
        %v2887 = vadd.f32 %v2695, %v2791
        %v2888 = vadd.f32 %v2696, %v2796
        %v2889 = vadd.f32 %v2697, %v2801
        %v2890 = vadd.f32 %v2698, %v2806
        %v2891 = vadd.f32 %v2699, %v2811
        %v2892 = vadd.f32 %v2700, %v2816
        %v2893 = vadd.f32 %v2701, %v2821
        %v2894 = vadd.f32 %v2702, %v2826
        %v2895 = vadd.f32 %v2703, %v2831
        %v2896 = vadd.f32 %v2704, %v2836
        %v2897 = vadd.f32 %v2705, %v2841
        %v2898 = vadd.f32 %v2706, %v2846
        %v2899 = vadd.f32 %v2707, %v2851
        %v2900 = vadd.f32 %v2708, %v2856
        %v2901 = vadd.f32 %v2709, %v2861
        %v2902 = vadd.f32 %v2710, %v2866
        %v2903 = vadd.f32 %v2711, %v2871
        %vm2904 = vcmask 7168
        %2905 = vst.msk [vmem:[#allocation4] sm:$0xff] %vm2904, %v2872
        %2906 = vst.msk [vmem:[#allocation4 + $0x8] sm:$0xff] %vm2904, %v2873
        %2907 = vst.msk [vmem:[#allocation4 + $0x10] sm:$0xff] %vm2904, %v2874
        %2908 = vst.msk [vmem:[#allocation4 + $0x18] sm:$0xff] %vm2904, %v2875
        %2909 = vst.msk [vmem:[#allocation4 + $0x20] sm:$0xff] %vm2904, %v2876
        %2910 = vst.msk [vmem:[#allocation4 + $0x28] sm:$0xff] %vm2904, %v2877
        %2911 = vst.msk [vmem:[#allocation4 + $0x30] sm:$0xff] %vm2904, %v2878
        %2912 = vst.msk [vmem:[#allocation4 + $0x38] sm:$0xff] %vm2904, %v2879
        %2913 = vst.msk [vmem:[#allocation4 + $0x40] sm:$0xff] %vm2904, %v2880
        %2914 = vst.msk [vmem:[#allocation4 + $0x48] sm:$0xff] %vm2904, %v2881
        %2915 = vst.msk [vmem:[#allocation4 + $0x50] sm:$0xff] %vm2904, %v2882
        %2916 = vst.msk [vmem:[#allocation4 + $0x58] sm:$0xff] %vm2904, %v2883
        %2917 = vst.msk [vmem:[#allocation4 + $0x60] sm:$0xff] %vm2904, %v2884
        %2918 = vst.msk [vmem:[#allocation4 + $0x68] sm:$0xff] %vm2904, %v2885
        %2919 = vst.msk [vmem:[#allocation4 + $0x70] sm:$0xff] %vm2904, %v2886
        %2920 = vst.msk [vmem:[#allocation4 + $0x78] sm:$0xff] %vm2904, %v2887
        %2921 = vst.msk [vmem:[#allocation4 + $0x80] sm:$0xff] %vm2904, %v2888
        %2922 = vst.msk [vmem:[#allocation4 + $0x88] sm:$0xff] %vm2904, %v2889
        %2923 = vst.msk [vmem:[#allocation4 + $0x90] sm:$0xff] %vm2904, %v2890
        %2924 = vst.msk [vmem:[#allocation4 + $0x98] sm:$0xff] %vm2904, %v2891
        %2925 = vst.msk [vmem:[#allocation4 + $0xa0] sm:$0xff] %vm2904, %v2892
        %2926 = vst.msk [vmem:[#allocation4 + $0xa8] sm:$0xff] %vm2904, %v2893
        %2927 = vst.msk [vmem:[#allocation4 + $0xb0] sm:$0xff] %vm2904, %v2894
        %2928 = vst.msk [vmem:[#allocation4 + $0xb8] sm:$0xff] %vm2904, %v2895
        %2929 = vst.msk [vmem:[#allocation4 + $0xc0] sm:$0xff] %vm2904, %v2896
        %2930 = vst.msk [vmem:[#allocation4 + $0xc8] sm:$0xff] %vm2904, %v2897
        %2931 = vst.msk [vmem:[#allocation4 + $0xd0] sm:$0xff] %vm2904, %v2898
        %2932 = vst.msk [vmem:[#allocation4 + $0xd8] sm:$0xff] %vm2904, %v2899
        %2933 = vst.msk [vmem:[#allocation4 + $0xe0] sm:$0xff] %vm2904, %v2900
        %2934 = vst.msk [vmem:[#allocation4 + $0xe8] sm:$0xff] %vm2904, %v2901
        %2935 = vst.msk [vmem:[#allocation4 + $0xf0] sm:$0xff] %vm2904, %v2902
        %2936 = vst.msk [vmem:[#allocation4 + $0xf8] sm:$0xff] %vm2904, %v2903
        %v2937 = vld [vmem:[#allocation5] sm:$0xff]
        %v2938 = vld [vmem:[#allocation5 + $0x8] sm:$0xff]
        %v2939 = vld [vmem:[#allocation5 + $0x10] sm:$0xff]
        %v2940 = vld [vmem:[#allocation5 + $0x18] sm:$0xff]
        %v2941 = vld [vmem:[#allocation5 + $0x20] sm:$0xff]
        %v2942 = vld [vmem:[#allocation5 + $0x28] sm:$0xff]
        %v2943 = vld [vmem:[#allocation5 + $0x30] sm:$0xff]
        %v2944 = vld [vmem:[#allocation5 + $0x38] sm:$0xff]
        %v2945 = vld [vmem:[#allocation5 + $0x40] sm:$0xff]
        %v2946 = vld [vmem:[#allocation5 + $0x48] sm:$0xff]
        %v2947 = vld [vmem:[#allocation5 + $0x50] sm:$0xff]
        %v2948 = vld [vmem:[#allocation5 + $0x58] sm:$0xff]
        %v2949 = vld [vmem:[#allocation5 + $0x60] sm:$0xff]
        %v2950 = vld [vmem:[#allocation5 + $0x68] sm:$0xff]
        %v2951 = vld [vmem:[#allocation5 + $0x70] sm:$0xff]
        %v2952 = vld [vmem:[#allocation5 + $0x78] sm:$0xff]
        %v2953 = vld [vmem:[#allocation5 + $0x80] sm:$0xff]
        %v2954 = vld [vmem:[#allocation5 + $0x88] sm:$0xff]
        %v2955 = vld [vmem:[#allocation5 + $0x90] sm:$0xff]
        %v2956 = vld [vmem:[#allocation5 + $0x98] sm:$0xff]
        %v2957 = vld [vmem:[#allocation5 + $0xa0] sm:$0xff]
        %v2958 = vld [vmem:[#allocation5 + $0xa8] sm:$0xff]
        %v2959 = vld [vmem:[#allocation5 + $0xb0] sm:$0xff]
        %v2960 = vld [vmem:[#allocation5 + $0xb8] sm:$0xff]
        %v2961 = vld [vmem:[#allocation5 + $0xc0] sm:$0xff]
        %v2962 = vld [vmem:[#allocation5 + $0xc8] sm:$0xff]
        %v2963 = vld [vmem:[#allocation5 + $0xd0] sm:$0xff]
        %v2964 = vld [vmem:[#allocation5 + $0xd8] sm:$0xff]
        %v2965 = vld [vmem:[#allocation5 + $0xe0] sm:$0xff]
        %v2966 = vld [vmem:[#allocation5 + $0xe8] sm:$0xff]
        %v2967 = vld [vmem:[#allocation5 + $0xf0] sm:$0xff]
        %v2968 = vld [vmem:[#allocation5 + $0xf8] sm:$0xff]
        %2970 = vset.pattern.permute.xlu0 0
        %2971 = vperm.xlu0 %2970, %v2041
        %v2972 = vpop.permute.xlu0 %2971
        %2975 = vset.pattern.permute.xlu0 0
        %2976 = vperm.xlu0 %2975, %v2043
        %v2977 = vpop.permute.xlu0 %2976
        %2980 = vset.pattern.permute.xlu0 0
        %2981 = vperm.xlu0 %2980, %v2045
        %v2982 = vpop.permute.xlu0 %2981
        %2985 = vset.pattern.permute.xlu0 0
        %2986 = vperm.xlu0 %2985, %v2047
        %v2987 = vpop.permute.xlu0 %2986
        %2990 = vset.pattern.permute.xlu0 0
        %2991 = vperm.xlu0 %2990, %v2049
        %v2992 = vpop.permute.xlu0 %2991
        %2995 = vset.pattern.permute.xlu0 0
        %2996 = vperm.xlu0 %2995, %v2051
        %v2997 = vpop.permute.xlu0 %2996
        %3000 = vset.pattern.permute.xlu0 0
        %3001 = vperm.xlu0 %3000, %v2053
        %v3002 = vpop.permute.xlu0 %3001
        %3005 = vset.pattern.permute.xlu0 0
        %3006 = vperm.xlu0 %3005, %v2055
        %v3007 = vpop.permute.xlu0 %3006
        %3010 = vset.pattern.permute.xlu0 0
        %3011 = vperm.xlu0 %3010, %v2057
        %v3012 = vpop.permute.xlu0 %3011
        %3015 = vset.pattern.permute.xlu0 0
        %3016 = vperm.xlu0 %3015, %v2059
        %v3017 = vpop.permute.xlu0 %3016
        %3020 = vset.pattern.permute.xlu0 0
        %3021 = vperm.xlu0 %3020, %v2061
        %v3022 = vpop.permute.xlu0 %3021
        %3025 = vset.pattern.permute.xlu0 0
        %3026 = vperm.xlu0 %3025, %v2063
        %v3027 = vpop.permute.xlu0 %3026
        %3030 = vset.pattern.permute.xlu0 0
        %3031 = vperm.xlu0 %3030, %v2065
        %v3032 = vpop.permute.xlu0 %3031
        %3035 = vset.pattern.permute.xlu0 0
        %3036 = vperm.xlu0 %3035, %v2067
        %v3037 = vpop.permute.xlu0 %3036
        %3040 = vset.pattern.permute.xlu0 0
        %3041 = vperm.xlu0 %3040, %v2069
        %v3042 = vpop.permute.xlu0 %3041
        %3045 = vset.pattern.permute.xlu0 0
        %3046 = vperm.xlu0 %3045, %v2071
        %v3047 = vpop.permute.xlu0 %3046
        %3050 = vset.pattern.permute.xlu0 0
        %3051 = vperm.xlu0 %3050, %v2073
        %v3052 = vpop.permute.xlu0 %3051
        %3055 = vset.pattern.permute.xlu0 0
        %3056 = vperm.xlu0 %3055, %v2075
        %v3057 = vpop.permute.xlu0 %3056
        %3060 = vset.pattern.permute.xlu0 0
        %3061 = vperm.xlu0 %3060, %v2077
        %v3062 = vpop.permute.xlu0 %3061
        %3065 = vset.pattern.permute.xlu0 0
        %3066 = vperm.xlu0 %3065, %v2079
        %v3067 = vpop.permute.xlu0 %3066
        %3070 = vset.pattern.permute.xlu0 0
        %3071 = vperm.xlu0 %3070, %v2081
        %v3072 = vpop.permute.xlu0 %3071
        %3075 = vset.pattern.permute.xlu0 0
        %3076 = vperm.xlu0 %3075, %v2083
        %v3077 = vpop.permute.xlu0 %3076
        %3080 = vset.pattern.permute.xlu0 0
        %3081 = vperm.xlu0 %3080, %v2085
        %v3082 = vpop.permute.xlu0 %3081
        %3085 = vset.pattern.permute.xlu0 0
        %3086 = vperm.xlu0 %3085, %v2087
        %v3087 = vpop.permute.xlu0 %3086
        %3090 = vset.pattern.permute.xlu0 0
        %3091 = vperm.xlu0 %3090, %v2089
        %v3092 = vpop.permute.xlu0 %3091
        %3095 = vset.pattern.permute.xlu0 0
        %3096 = vperm.xlu0 %3095, %v2091
        %v3097 = vpop.permute.xlu0 %3096
        %3100 = vset.pattern.permute.xlu0 0
        %3101 = vperm.xlu0 %3100, %v2093
        %v3102 = vpop.permute.xlu0 %3101
        %3105 = vset.pattern.permute.xlu0 0
        %3106 = vperm.xlu0 %3105, %v2095
        %v3107 = vpop.permute.xlu0 %3106
        %3110 = vset.pattern.permute.xlu0 0
        %3111 = vperm.xlu0 %3110, %v2097
        %v3112 = vpop.permute.xlu0 %3111
        %3115 = vset.pattern.permute.xlu0 0
        %3116 = vperm.xlu0 %3115, %v2099
        %v3117 = vpop.permute.xlu0 %3116
        %3120 = vset.pattern.permute.xlu0 0
        %3121 = vperm.xlu0 %3120, %v2101
        %v3122 = vpop.permute.xlu0 %3121
        %3125 = vset.pattern.permute.xlu0 0
        %3126 = vperm.xlu0 %3125, %v2103
        %v3127 = vpop.permute.xlu0 %3126
        %v3129 = vmul.f32 %v2972, %v2937
        %v3130 = vmul.f32 %v2977, %v2938
        %v3131 = vmul.f32 %v2982, %v2939
        %v3132 = vmul.f32 %v2987, %v2940
        %v3133 = vmul.f32 %v2992, %v2941
        %v3134 = vmul.f32 %v2997, %v2942
        %v3135 = vmul.f32 %v3002, %v2943
        %v3136 = vmul.f32 %v3007, %v2944
        %v3137 = vmul.f32 %v3012, %v2945
        %v3138 = vmul.f32 %v3017, %v2946
        %v3139 = vmul.f32 %v3022, %v2947
        %v3140 = vmul.f32 %v3027, %v2948
        %v3141 = vmul.f32 %v3032, %v2949
        %v3142 = vmul.f32 %v3037, %v2950
        %v3143 = vmul.f32 %v3042, %v2951
        %v3144 = vmul.f32 %v3047, %v2952
        %v3145 = vmul.f32 %v3052, %v2953
        %v3146 = vmul.f32 %v3057, %v2954
        %v3147 = vmul.f32 %v3062, %v2955
        %v3148 = vmul.f32 %v3067, %v2956
        %v3149 = vmul.f32 %v3072, %v2957
        %v3150 = vmul.f32 %v3077, %v2958
        %v3151 = vmul.f32 %v3082, %v2959
        %v3152 = vmul.f32 %v3087, %v2960
        %v3153 = vmul.f32 %v3092, %v2961
        %v3154 = vmul.f32 %v3097, %v2962
        %v3155 = vmul.f32 %v3102, %v2963
        %v3156 = vmul.f32 %v3107, %v2964
        %v3157 = vmul.f32 %v3112, %v2965
        %v3158 = vmul.f32 %v3117, %v2966
        %v3159 = vmul.f32 %v3122, %v2967
        %v3160 = vmul.f32 %v3127, %v2968
        %v3161 = vpack.c.bf16 %v2401, %v2393
        %v3162 = vpack.c.bf16 %v2403, %v2395
        %v3163 = vpack.c.bf16 %v2405, %v2397
        %v3164 = vpack.c.bf16 %v2407, %v2399
        %v3165 = vpack.c.bf16 %v2417, %v2409
        %v3166 = vpack.c.bf16 %v2419, %v2411
        %v3167 = vpack.c.bf16 %v2421, %v2413
        %v3168 = vpack.c.bf16 %v2423, %v2415
        %v3169 = vpack.c.bf16 %v2433, %v2425
        %v3170 = vpack.c.bf16 %v2435, %v2427
        %v3171 = vpack.c.bf16 %v2437, %v2429
        %v3172 = vpack.c.bf16 %v2439, %v2431
        %v3173 = vpack.c.bf16 %v2449, %v2441
        %v3174 = vpack.c.bf16 %v2451, %v2443
        %v3175 = vpack.c.bf16 %v2453, %v2445
        %v3176 = vpack.c.bf16 %v2455, %v2447
        %v3177 = vpack.c.bf16 %v2465, %v2457
        %v3178 = vpack.c.bf16 %v2467, %v2459
        %v3179 = vpack.c.bf16 %v2469, %v2461
        %v3180 = vpack.c.bf16 %v2471, %v2463
        %v3181 = vpack.c.bf16 %v2481, %v2473
        %v3182 = vpack.c.bf16 %v2483, %v2475
        %v3183 = vpack.c.bf16 %v2485, %v2477
        %v3184 = vpack.c.bf16 %v2487, %v2479
        %v3185 = vpack.c.bf16 %v2497, %v2489
        %v3186 = vpack.c.bf16 %v2499, %v2491
        %v3187 = vpack.c.bf16 %v2501, %v2493
        %v3188 = vpack.c.bf16 %v2503, %v2495
        %v3189 = vpack.c.bf16 %v2513, %v2505
        %v3190 = vpack.c.bf16 %v2515, %v2507
        %v3191 = vpack.c.bf16 %v2517, %v2509
        %v3192 = vpack.c.bf16 %v2519, %v2511
        %v3193 = vpack.c.bf16 %v2529, %v2521
        %v3194 = vpack.c.bf16 %v2531, %v2523
        %v3195 = vpack.c.bf16 %v2533, %v2525
        %v3196 = vpack.c.bf16 %v2535, %v2527
        %v3197 = vpack.c.bf16 %v2545, %v2537
        %v3198 = vpack.c.bf16 %v2547, %v2539
        %v3199 = vpack.c.bf16 %v2549, %v2541
        %v3200 = vpack.c.bf16 %v2551, %v2543
        %v3201 = vpack.c.bf16 %v2561, %v2553
        %v3202 = vpack.c.bf16 %v2563, %v2555
        %v3203 = vpack.c.bf16 %v2565, %v2557
        %v3204 = vpack.c.bf16 %v2567, %v2559
        %v3205 = vpack.c.bf16 %v2577, %v2569
        %v3206 = vpack.c.bf16 %v2579, %v2571
        %v3207 = vpack.c.bf16 %v2581, %v2573
        %v3208 = vpack.c.bf16 %v2583, %v2575
        %v3209 = vpack.c.bf16 %v2593, %v2585
        %v3210 = vpack.c.bf16 %v2595, %v2587
        %v3211 = vpack.c.bf16 %v2597, %v2589
        %v3212 = vpack.c.bf16 %v2599, %v2591
        %v3213 = vpack.c.bf16 %v2609, %v2601
        %v3214 = vpack.c.bf16 %v2611, %v2603
        %v3215 = vpack.c.bf16 %v2613, %v2605
        %v3216 = vpack.c.bf16 %v2615, %v2607
        %v3217 = vpack.c.bf16 %v2625, %v2617
        %v3218 = vpack.c.bf16 %v2627, %v2619
        %v3219 = vpack.c.bf16 %v2629, %v2621
        %v3220 = vpack.c.bf16 %v2631, %v2623
        %v3221 = vpack.c.bf16 %v2641, %v2633
        %v3222 = vpack.c.bf16 %v2643, %v2635
        %v3223 = vpack.c.bf16 %v2645, %v2637
        %v3224 = vpack.c.bf16 %v2647, %v2639
        %v3289 = vunpack.c.l.b16 %v1013
        %v3290 = vunpack.c.l.b16 %v1014
        %v3291 = vunpack.c.l.b16 %v1015
        %v3292 = vunpack.c.l.b16 %v1016
        %v3293 = vunpack.c.l.b16 %v1017
        %v3294 = vunpack.c.l.b16 %v1018
        %v3295 = vunpack.c.l.b16 %v1019
        %v3296 = vunpack.c.l.b16 %v1020
        %v3297 = vunpack.c.l.b16 %v1021
        %v3298 = vunpack.c.l.b16 %v1022
        %v3299 = vunpack.c.l.b16 %v1023
        %v3300 = vunpack.c.l.b16 %v1024
        %v3301 = vunpack.c.l.b16 %v1025
        %v3302 = vunpack.c.l.b16 %v1026
        %v3303 = vunpack.c.l.b16 %v1027
        %v3304 = vunpack.c.l.b16 %v1028
        %v3305 = vunpack.c.l.b16 %v1029
        %v3306 = vunpack.c.l.b16 %v1030
        %v3307 = vunpack.c.l.b16 %v1031
        %v3308 = vunpack.c.l.b16 %v1032
        %v3309 = vunpack.c.l.b16 %v1033
        %v3310 = vunpack.c.l.b16 %v1034
        %v3311 = vunpack.c.l.b16 %v1035
        %v3312 = vunpack.c.l.b16 %v1036
        %v3313 = vunpack.c.l.b16 %v1037
        %v3314 = vunpack.c.l.b16 %v1038
        %v3315 = vunpack.c.l.b16 %v1039
        %v3316 = vunpack.c.l.b16 %v1040
        %v3317 = vunpack.c.l.b16 %v1041
        %v3318 = vunpack.c.l.b16 %v1042
        %v3319 = vunpack.c.l.b16 %v1043
        %v3320 = vunpack.c.l.b16 %v1044
        %v3321 = vunpack.c.l.b16 %v1045
        %v3322 = vunpack.c.l.b16 %v1046
        %v3323 = vunpack.c.l.b16 %v1047
        %v3324 = vunpack.c.l.b16 %v1048
        %v3325 = vunpack.c.l.b16 %v1049
        %v3326 = vunpack.c.l.b16 %v1050
        %v3327 = vunpack.c.l.b16 %v1051
        %v3328 = vunpack.c.l.b16 %v1052
        %v3329 = vunpack.c.l.b16 %v1053
        %v3330 = vunpack.c.l.b16 %v1054
        %v3331 = vunpack.c.l.b16 %v1055
        %v3332 = vunpack.c.l.b16 %v1056
        %v3333 = vunpack.c.l.b16 %v1057
        %v3334 = vunpack.c.l.b16 %v1058
        %v3335 = vunpack.c.l.b16 %v1059
        %v3336 = vunpack.c.l.b16 %v1060
        %v3337 = vunpack.c.l.b16 %v1061
        %v3338 = vunpack.c.l.b16 %v1062
        %v3339 = vunpack.c.l.b16 %v1063
        %v3340 = vunpack.c.l.b16 %v1064
        %v3341 = vunpack.c.l.b16 %v1065
        %v3342 = vunpack.c.l.b16 %v1066
        %v3343 = vunpack.c.l.b16 %v1067
        %v3344 = vunpack.c.l.b16 %v1068
        %v3345 = vunpack.c.l.b16 %v1069
        %v3346 = vunpack.c.l.b16 %v1070
        %v3347 = vunpack.c.l.b16 %v1071
        %v3348 = vunpack.c.l.b16 %v1072
        %v3349 = vunpack.c.l.b16 %v1073
        %v3350 = vunpack.c.l.b16 %v1074
        %v3351 = vunpack.c.l.b16 %v1075
        %v3352 = vunpack.c.l.b16 %v1076
        %v3353 = vpack.c.b16 %v3290, %v3289
        %v3354 = vpack.c.b16 %v3292, %v3291
        %v3355 = vpack.c.b16 %v3294, %v3293
        %v3356 = vpack.c.b16 %v3296, %v3295
        %v3357 = vpack.c.b16 %v3298, %v3297
        %v3358 = vpack.c.b16 %v3300, %v3299
        %v3359 = vpack.c.b16 %v3302, %v3301
        %v3360 = vpack.c.b16 %v3304, %v3303
        %v3361 = vpack.c.b16 %v3306, %v3305
        %v3362 = vpack.c.b16 %v3308, %v3307
        %v3363 = vpack.c.b16 %v3310, %v3309
        %v3364 = vpack.c.b16 %v3312, %v3311
        %v3365 = vpack.c.b16 %v3314, %v3313
        %v3366 = vpack.c.b16 %v3316, %v3315
        %v3367 = vpack.c.b16 %v3318, %v3317
        %v3368 = vpack.c.b16 %v3320, %v3319
        %v3369 = vpack.c.b16 %v3322, %v3321
        %v3370 = vpack.c.b16 %v3324, %v3323
        %v3371 = vpack.c.b16 %v3326, %v3325
        %v3372 = vpack.c.b16 %v3328, %v3327
        %v3373 = vpack.c.b16 %v3330, %v3329
        %v3374 = vpack.c.b16 %v3332, %v3331
        %v3375 = vpack.c.b16 %v3334, %v3333
        %v3376 = vpack.c.b16 %v3336, %v3335
        %v3377 = vpack.c.b16 %v3338, %v3337
        %v3378 = vpack.c.b16 %v3340, %v3339
        %v3379 = vpack.c.b16 %v3342, %v3341
        %v3380 = vpack.c.b16 %v3344, %v3343
        %v3381 = vpack.c.b16 %v3346, %v3345
        %v3382 = vpack.c.b16 %v3348, %v3347
        %v3383 = vpack.c.b16 %v3350, %v3349
        %v3384 = vpack.c.b16 %v3352, %v3351
        %3417 = vmatprep.subr.bf16.mxu0 0
        %3418 = vmatpush1.bf16.msra.mxu0 %v3353
        %3419 = vmatprep.subr.bf16.mxu0 0
        %3420 = vmatpush1.bf16.msra.mxu0 %v3354
        %3421 = vmatprep.subr.bf16.mxu0 0
        %3422 = vmatpush1.bf16.msra.mxu0 %v3355
        %3423 = vmatprep.subr.bf16.mxu0 0
        %3424 = vmatpush1.bf16.msra.mxu0 %v3356
        %3425 = vmatprep.subr.bf16.mxu0 0
        %3426 = vmatpush1.bf16.msra.mxu0 %v3357
        %3427 = vmatprep.subr.bf16.mxu0 0
        %3428 = vmatpush1.bf16.msra.mxu0 %v3358
        %3429 = vmatprep.subr.bf16.mxu0 0
        %3430 = vmatpush1.bf16.msra.mxu0 %v3359
        %3431 = vmatprep.subr.bf16.mxu0 0
        %3432 = vmatpush1.bf16.msra.mxu0 %v3360
        %3433 = vmatprep.subr.bf16.mxu0 0
        %3434 = vmatpush1.bf16.msra.mxu0 %v3361
        %3435 = vmatprep.subr.bf16.mxu0 0
        %3436 = vmatpush1.bf16.msra.mxu0 %v3362
        %3437 = vmatprep.subr.bf16.mxu0 0
        %3438 = vmatpush1.bf16.msra.mxu0 %v3363
        %3439 = vmatprep.subr.bf16.mxu0 0
        %3440 = vmatpush1.bf16.msra.mxu0 %v3364
        %3441 = vmatprep.subr.bf16.mxu0 0
        %3442 = vmatpush1.bf16.msra.mxu0 %v3365
        %3443 = vmatprep.subr.bf16.mxu0 0
        %3444 = vmatpush1.bf16.msra.mxu0 %v3366
        %3445 = vmatprep.subr.bf16.mxu0 0
        %3446 = vmatpush1.bf16.msra.mxu0 %v3367
        %3447 = vmatprep.subr.bf16.mxu0 0
        %3448 = vmatpush1.bf16.msra.mxu0 %v3368
        %3449 = vmatprep.mubr.bf16.mxu0 %v3162
        %3450 = vmatmul.mubr.bf16.gmra.mrb[0].mxu0 %v3161
        %v3451 = vpop.f32.mrb[0].mxu0
        %v3452 = vadd.f32 0.0, %v3451
        %v3453 = vpop.f32.mrb[0].mxu0
        %v3454 = vpop.f32.mrb[0].mxu0
        %v3455 = vadd.f32 0.0, %v3454
        %v3456 = vpop.f32.mrb[0].mxu0
        %3457 = vmatprep.mubr.bf16.mxu0 %v3166
        %3458 = vmatmul.mubr.bf16.gmra.mrb[0].mxu0 %v3165
        %v3459 = vpop.f32.mrb[0].mxu0
        %v3460 = vadd.f32 0.0, %v3459
        %v3461 = vpop.f32.mrb[0].mxu0
        %v3462 = vpop.f32.mrb[0].mxu0
        %v3463 = vadd.f32 0.0, %v3462
        %v3464 = vpop.f32.mrb[0].mxu0
        %3465 = vmatprep.mubr.bf16.mxu0 %v3170
        %3466 = vmatmul.mubr.bf16.gmra.mrb[0].mxu0 %v3169
        %v3467 = vpop.f32.mrb[0].mxu0
        %v3468 = vadd.f32 0.0, %v3467
        %v3469 = vpop.f32.mrb[0].mxu0
        %v3470 = vpop.f32.mrb[0].mxu0
        %v3471 = vadd.f32 0.0, %v3470
        %v3472 = vpop.f32.mrb[0].mxu0
        %3473 = vmatprep.mubr.bf16.mxu0 %v3174
        %3474 = vmatmul.mubr.bf16.gmra.mrb[0].mxu0 %v3173
        %v3475 = vpop.f32.mrb[0].mxu0
        %v3476 = vadd.f32 0.0, %v3475
        %v3477 = vpop.f32.mrb[0].mxu0
        %v3478 = vpop.f32.mrb[0].mxu0
        %v3479 = vadd.f32 0.0, %v3478
        %v3480 = vpop.f32.mrb[0].mxu0
        %3481 = vmatprep.mubr.bf16.mxu0 %v3178
        %3482 = vmatmul.mubr.bf16.gmra.mrb[0].mxu0 %v3177
        %v3483 = vpop.f32.mrb[0].mxu0
        %v3484 = vadd.f32 0.0, %v3483
        %v3485 = vpop.f32.mrb[0].mxu0
        %v3486 = vpop.f32.mrb[0].mxu0
        %v3487 = vadd.f32 0.0, %v3486
        %v3488 = vpop.f32.mrb[0].mxu0
        %3489 = vmatprep.mubr.bf16.mxu0 %v3182
        %3490 = vmatmul.mubr.bf16.gmra.mrb[0].mxu0 %v3181
        %v3491 = vpop.f32.mrb[0].mxu0
        %v3492 = vadd.f32 0.0, %v3491
        %v3493 = vpop.f32.mrb[0].mxu0
        %v3494 = vpop.f32.mrb[0].mxu0
        %v3495 = vadd.f32 0.0, %v3494
        %v3496 = vpop.f32.mrb[0].mxu0
        %3497 = vmatprep.mubr.bf16.mxu0 %v3186
        %3498 = vmatmul.mubr.bf16.gmra.mrb[0].mxu0 %v3185
        %v3499 = vpop.f32.mrb[0].mxu0
        %v3500 = vadd.f32 0.0, %v3499
        %v3501 = vpop.f32.mrb[0].mxu0
        %v3502 = vpop.f32.mrb[0].mxu0
        %v3503 = vadd.f32 0.0, %v3502
        %v3504 = vpop.f32.mrb[0].mxu0
        %3505 = vmatprep.mubr.bf16.mxu0 %v3190
        %3506 = vmatmul.mubr.bf16.gmra.mrb[0].mxu0 %v3189
        %v3507 = vpop.f32.mrb[0].mxu0
        %v3508 = vadd.f32 0.0, %v3507
        %v3509 = vpop.f32.mrb[0].mxu0
        %v3510 = vpop.f32.mrb[0].mxu0
        %v3511 = vadd.f32 0.0, %v3510
        %v3512 = vpop.f32.mrb[0].mxu0
        %3513 = vmatprep.mubr.bf16.mxu0 %v3194
        %3514 = vmatmul.mubr.bf16.gmra.mrb[0].mxu0 %v3193
        %v3515 = vpop.f32.mrb[0].mxu0
        %v3516 = vadd.f32 0.0, %v3515
        %v3517 = vpop.f32.mrb[0].mxu0
        %v3518 = vpop.f32.mrb[0].mxu0
        %v3519 = vadd.f32 0.0, %v3518
        %v3520 = vpop.f32.mrb[0].mxu0
        %3521 = vmatprep.mubr.bf16.mxu0 %v3198
        %3522 = vmatmul.mubr.bf16.gmra.mrb[0].mxu0 %v3197
        %v3523 = vpop.f32.mrb[0].mxu0
        %v3524 = vadd.f32 0.0, %v3523
        %v3525 = vpop.f32.mrb[0].mxu0
        %v3526 = vpop.f32.mrb[0].mxu0
        %v3527 = vadd.f32 0.0, %v3526
        %v3528 = vpop.f32.mrb[0].mxu0
        %3529 = vmatprep.mubr.bf16.mxu0 %v3202
        %3530 = vmatmul.mubr.bf16.gmra.mrb[0].mxu0 %v3201
        %v3531 = vpop.f32.mrb[0].mxu0
        %v3532 = vadd.f32 0.0, %v3531
        %v3533 = vpop.f32.mrb[0].mxu0
        %v3534 = vpop.f32.mrb[0].mxu0
        %v3535 = vadd.f32 0.0, %v3534
        %v3536 = vpop.f32.mrb[0].mxu0
        %3537 = vmatprep.mubr.bf16.mxu0 %v3206
        %3538 = vmatmul.mubr.bf16.gmra.mrb[0].mxu0 %v3205
        %v3539 = vpop.f32.mrb[0].mxu0
        %v3540 = vadd.f32 0.0, %v3539
        %v3541 = vpop.f32.mrb[0].mxu0
        %v3542 = vpop.f32.mrb[0].mxu0
        %v3543 = vadd.f32 0.0, %v3542
        %v3544 = vpop.f32.mrb[0].mxu0
        %3545 = vmatprep.mubr.bf16.mxu0 %v3210
        %3546 = vmatmul.mubr.bf16.gmra.mrb[0].mxu0 %v3209
        %v3547 = vpop.f32.mrb[0].mxu0
        %v3548 = vadd.f32 0.0, %v3547
        %v3549 = vpop.f32.mrb[0].mxu0
        %v3550 = vpop.f32.mrb[0].mxu0
        %v3551 = vadd.f32 0.0, %v3550
        %v3552 = vpop.f32.mrb[0].mxu0
        %3553 = vmatprep.mubr.bf16.mxu0 %v3214
        %3554 = vmatmul.mubr.bf16.gmra.mrb[0].mxu0 %v3213
        %v3555 = vpop.f32.mrb[0].mxu0
        %v3556 = vadd.f32 0.0, %v3555
        %v3557 = vpop.f32.mrb[0].mxu0
        %v3558 = vpop.f32.mrb[0].mxu0
        %v3559 = vadd.f32 0.0, %v3558
        %v3560 = vpop.f32.mrb[0].mxu0
        %3561 = vmatprep.mubr.bf16.mxu0 %v3218
        %3562 = vmatmul.mubr.bf16.gmra.mrb[0].mxu0 %v3217
        %v3563 = vpop.f32.mrb[0].mxu0
        %v3564 = vadd.f32 0.0, %v3563
        %v3565 = vpop.f32.mrb[0].mxu0
        %v3566 = vpop.f32.mrb[0].mxu0
        %v3567 = vadd.f32 0.0, %v3566
        %v3568 = vpop.f32.mrb[0].mxu0
        %3569 = vmatprep.mubr.bf16.mxu0 %v3222
        %3570 = vmatmul.mubr.bf16.gmra.mrb[0].mxu0 %v3221
        %v3571 = vpop.f32.mrb[0].mxu0
        %v3572 = vadd.f32 0.0, %v3571
        %v3573 = vpop.f32.mrb[0].mxu0
        %v3574 = vpop.f32.mrb[0].mxu0
        %v3575 = vadd.f32 0.0, %v3574
        %v3576 = vpop.f32.mrb[0].mxu0
        %3577 = vdwg.mxu0
        %3578 = vmatprep.subr.bf16.mxu0 0
        %3579 = vmatpush1.bf16.msra.mxu0 %v3369
        %3580 = vmatprep.subr.bf16.mxu0 0
        %3581 = vmatpush1.bf16.msra.mxu0 %v3370
        %3582 = vmatprep.subr.bf16.mxu0 0
        %3583 = vmatpush1.bf16.msra.mxu0 %v3371
        %3584 = vmatprep.subr.bf16.mxu0 0
        %3585 = vmatpush1.bf16.msra.mxu0 %v3372
        %3586 = vmatprep.subr.bf16.mxu0 0
        %3587 = vmatpush1.bf16.msra.mxu0 %v3373
        %3588 = vmatprep.subr.bf16.mxu0 0
        %3589 = vmatpush1.bf16.msra.mxu0 %v3374
        %3590 = vmatprep.subr.bf16.mxu0 0
        %3591 = vmatpush1.bf16.msra.mxu0 %v3375
        %3592 = vmatprep.subr.bf16.mxu0 0
        %3593 = vmatpush1.bf16.msra.mxu0 %v3376
        %3594 = vmatprep.subr.bf16.mxu0 0
        %3595 = vmatpush1.bf16.msra.mxu0 %v3377
        %3596 = vmatprep.subr.bf16.mxu0 0
        %3597 = vmatpush1.bf16.msra.mxu0 %v3378
        %3598 = vmatprep.subr.bf16.mxu0 0
        %3599 = vmatpush1.bf16.msra.mxu0 %v3379
        %3600 = vmatprep.subr.bf16.mxu0 0
        %3601 = vmatpush1.bf16.msra.mxu0 %v3380
        %3602 = vmatprep.subr.bf16.mxu0 0
        %3603 = vmatpush1.bf16.msra.mxu0 %v3381
        %3604 = vmatprep.subr.bf16.mxu0 0
        %3605 = vmatpush1.bf16.msra.mxu0 %v3382
        %3606 = vmatprep.subr.bf16.mxu0 0
        %3607 = vmatpush1.bf16.msra.mxu0 %v3383
        %3608 = vmatprep.subr.bf16.mxu0 0
        %3609 = vmatpush1.bf16.msra.mxu0 %v3384
        %3610 = vmatprep.mubr.bf16.mxu0 %v3164
        %3611 = vmatmul.mubr.bf16.gmra.mrb[0].mxu0 %v3163
        %v3612 = vpop.f32.mrb[0].mxu0
        %v3613 = vadd.f32 %v3452, %v3612
        %v3614 = vpop.f32.mrb[0].mxu0
        %v3615 = vpop.f32.mrb[0].mxu0
        %v3616 = vadd.f32 %v3455, %v3615
        %v3617 = vpop.f32.mrb[0].mxu0
        %3618 = vmatprep.mubr.bf16.mxu0 %v3168
        %3619 = vmatmul.mubr.bf16.gmra.mrb[0].mxu0 %v3167
        %v3620 = vpop.f32.mrb[0].mxu0
        %v3621 = vadd.f32 %v3460, %v3620
        %v3622 = vpop.f32.mrb[0].mxu0
        %v3623 = vpop.f32.mrb[0].mxu0
        %v3624 = vadd.f32 %v3463, %v3623
        %v3625 = vpop.f32.mrb[0].mxu0
        %3626 = vmatprep.mubr.bf16.mxu0 %v3172
        %3627 = vmatmul.mubr.bf16.gmra.mrb[0].mxu0 %v3171
        %v3628 = vpop.f32.mrb[0].mxu0
        %v3629 = vadd.f32 %v3468, %v3628
        %v3630 = vpop.f32.mrb[0].mxu0
        %v3631 = vpop.f32.mrb[0].mxu0
        %v3632 = vadd.f32 %v3471, %v3631
        %v3633 = vpop.f32.mrb[0].mxu0
        %3634 = vmatprep.mubr.bf16.mxu0 %v3176
        %3635 = vmatmul.mubr.bf16.gmra.mrb[0].mxu0 %v3175
        %v3636 = vpop.f32.mrb[0].mxu0
        %v3637 = vadd.f32 %v3476, %v3636
        %v3638 = vpop.f32.mrb[0].mxu0
        %v3639 = vpop.f32.mrb[0].mxu0
        %v3640 = vadd.f32 %v3479, %v3639
        %v3641 = vpop.f32.mrb[0].mxu0
        %3642 = vmatprep.mubr.bf16.mxu0 %v3180
        %3643 = vmatmul.mubr.bf16.gmra.mrb[0].mxu0 %v3179
        %v3644 = vpop.f32.mrb[0].mxu0
        %v3645 = vadd.f32 %v3484, %v3644
        %v3646 = vpop.f32.mrb[0].mxu0
        %v3647 = vpop.f32.mrb[0].mxu0
        %v3648 = vadd.f32 %v3487, %v3647
        %v3649 = vpop.f32.mrb[0].mxu0
        %3650 = vmatprep.mubr.bf16.mxu0 %v3184
        %3651 = vmatmul.mubr.bf16.gmra.mrb[0].mxu0 %v3183
        %v3652 = vpop.f32.mrb[0].mxu0
        %v3653 = vadd.f32 %v3492, %v3652
        %v3654 = vpop.f32.mrb[0].mxu0
        %v3655 = vpop.f32.mrb[0].mxu0
        %v3656 = vadd.f32 %v3495, %v3655
        %v3657 = vpop.f32.mrb[0].mxu0
        %3658 = vmatprep.mubr.bf16.mxu0 %v3188
        %3659 = vmatmul.mubr.bf16.gmra.mrb[0].mxu0 %v3187
        %v3660 = vpop.f32.mrb[0].mxu0
        %v3661 = vadd.f32 %v3500, %v3660
        %v3662 = vpop.f32.mrb[0].mxu0
        %v3663 = vpop.f32.mrb[0].mxu0
        %v3664 = vadd.f32 %v3503, %v3663
        %v3665 = vpop.f32.mrb[0].mxu0
        %3666 = vmatprep.mubr.bf16.mxu0 %v3192
        %3667 = vmatmul.mubr.bf16.gmra.mrb[0].mxu0 %v3191
        %v3668 = vpop.f32.mrb[0].mxu0
        %v3669 = vadd.f32 %v3508, %v3668
        %v3670 = vpop.f32.mrb[0].mxu0
        %v3671 = vpop.f32.mrb[0].mxu0
        %v3672 = vadd.f32 %v3511, %v3671
        %v3673 = vpop.f32.mrb[0].mxu0
        %3674 = vmatprep.mubr.bf16.mxu0 %v3196
        %3675 = vmatmul.mubr.bf16.gmra.mrb[0].mxu0 %v3195
        %v3676 = vpop.f32.mrb[0].mxu0
        %v3677 = vadd.f32 %v3516, %v3676
        %v3678 = vpop.f32.mrb[0].mxu0
        %v3679 = vpop.f32.mrb[0].mxu0
        %v3680 = vadd.f32 %v3519, %v3679
        %v3681 = vpop.f32.mrb[0].mxu0
        %3682 = vmatprep.mubr.bf16.mxu0 %v3200
        %3683 = vmatmul.mubr.bf16.gmra.mrb[0].mxu0 %v3199
        %v3684 = vpop.f32.mrb[0].mxu0
        %v3685 = vadd.f32 %v3524, %v3684
        %v3686 = vpop.f32.mrb[0].mxu0
        %v3687 = vpop.f32.mrb[0].mxu0
        %v3688 = vadd.f32 %v3527, %v3687
        %v3689 = vpop.f32.mrb[0].mxu0
        %3690 = vmatprep.mubr.bf16.mxu0 %v3204
        %3691 = vmatmul.mubr.bf16.gmra.mrb[0].mxu0 %v3203
        %v3692 = vpop.f32.mrb[0].mxu0
        %v3693 = vadd.f32 %v3532, %v3692
        %v3694 = vpop.f32.mrb[0].mxu0
        %v3695 = vpop.f32.mrb[0].mxu0
        %v3696 = vadd.f32 %v3535, %v3695
        %v3697 = vpop.f32.mrb[0].mxu0
        %3698 = vmatprep.mubr.bf16.mxu0 %v3208
        %3699 = vmatmul.mubr.bf16.gmra.mrb[0].mxu0 %v3207
        %v3700 = vpop.f32.mrb[0].mxu0
        %v3701 = vadd.f32 %v3540, %v3700
        %v3702 = vpop.f32.mrb[0].mxu0
        %v3703 = vpop.f32.mrb[0].mxu0
        %v3704 = vadd.f32 %v3543, %v3703
        %v3705 = vpop.f32.mrb[0].mxu0
        %3706 = vmatprep.mubr.bf16.mxu0 %v3212
        %3707 = vmatmul.mubr.bf16.gmra.mrb[0].mxu0 %v3211
        %v3708 = vpop.f32.mrb[0].mxu0
        %v3709 = vadd.f32 %v3548, %v3708
        %v3710 = vpop.f32.mrb[0].mxu0
        %v3711 = vpop.f32.mrb[0].mxu0
        %v3712 = vadd.f32 %v3551, %v3711
        %v3713 = vpop.f32.mrb[0].mxu0
        %3714 = vmatprep.mubr.bf16.mxu0 %v3216
        %3715 = vmatmul.mubr.bf16.gmra.mrb[0].mxu0 %v3215
        %v3716 = vpop.f32.mrb[0].mxu0
        %v3717 = vadd.f32 %v3556, %v3716
        %v3718 = vpop.f32.mrb[0].mxu0
        %v3719 = vpop.f32.mrb[0].mxu0
        %v3720 = vadd.f32 %v3559, %v3719
        %v3721 = vpop.f32.mrb[0].mxu0
        %3722 = vmatprep.mubr.bf16.mxu0 %v3220
        %3723 = vmatmul.mubr.bf16.gmra.mrb[0].mxu0 %v3219
        %v3724 = vpop.f32.mrb[0].mxu0
        %v3725 = vadd.f32 %v3564, %v3724
        %v3726 = vpop.f32.mrb[0].mxu0
        %v3727 = vpop.f32.mrb[0].mxu0
        %v3728 = vadd.f32 %v3567, %v3727
        %v3729 = vpop.f32.mrb[0].mxu0
        %3730 = vmatprep.mubr.bf16.mxu0 %v3224
        %3731 = vmatmul.mubr.bf16.gmra.mrb[0].mxu0 %v3223
        %v3732 = vpop.f32.mrb[0].mxu0
        %v3733 = vadd.f32 %v3572, %v3732
        %v3734 = vpop.f32.mrb[0].mxu0
        %v3735 = vpop.f32.mrb[0].mxu0
        %v3736 = vadd.f32 %v3575, %v3735
        %v3737 = vpop.f32.mrb[0].mxu0
        %3738 = vdwg.mxu0
        %v3739 = vadd.f32 %v3129, %v3613
        %v3740 = vadd.f32 %v3130, %v3616
        %v3741 = vadd.f32 %v3131, %v3621
        %v3742 = vadd.f32 %v3132, %v3624
        %v3743 = vadd.f32 %v3133, %v3629
        %v3744 = vadd.f32 %v3134, %v3632
        %v3745 = vadd.f32 %v3135, %v3637
        %v3746 = vadd.f32 %v3136, %v3640
        %v3747 = vadd.f32 %v3137, %v3645
        %v3748 = vadd.f32 %v3138, %v3648
        %v3749 = vadd.f32 %v3139, %v3653
        %v3750 = vadd.f32 %v3140, %v3656
        %v3751 = vadd.f32 %v3141, %v3661
        %v3752 = vadd.f32 %v3142, %v3664
        %v3753 = vadd.f32 %v3143, %v3669
        %v3754 = vadd.f32 %v3144, %v3672
        %v3755 = vadd.f32 %v3145, %v3677
        %v3756 = vadd.f32 %v3146, %v3680
        %v3757 = vadd.f32 %v3147, %v3685
        %v3758 = vadd.f32 %v3148, %v3688
        %v3759 = vadd.f32 %v3149, %v3693
        %v3760 = vadd.f32 %v3150, %v3696
        %v3761 = vadd.f32 %v3151, %v3701
        %v3762 = vadd.f32 %v3152, %v3704
        %v3763 = vadd.f32 %v3153, %v3709
        %v3764 = vadd.f32 %v3154, %v3712
        %v3765 = vadd.f32 %v3155, %v3717
        %v3766 = vadd.f32 %v3156, %v3720
        %v3767 = vadd.f32 %v3157, %v3725
        %v3768 = vadd.f32 %v3158, %v3728
        %v3769 = vadd.f32 %v3159, %v3733
        %v3770 = vadd.f32 %v3160, %v3736
        %3771 = vst.msk [vmem:[#allocation5] sm:$0xff] %vm1253, %v3739
        %3772 = vst.msk [vmem:[#allocation5 + $0x8] sm:$0xff] %vm1253, %v3740
        %3773 = vst.msk [vmem:[#allocation5 + $0x10] sm:$0xff] %vm1253, %v3741
        %3774 = vst.msk [vmem:[#allocation5 + $0x18] sm:$0xff] %vm1253, %v3742
        %3775 = vst.msk [vmem:[#allocation5 + $0x20] sm:$0xff] %vm1253, %v3743
        %3776 = vst.msk [vmem:[#allocation5 + $0x28] sm:$0xff] %vm1253, %v3744
        %3777 = vst.msk [vmem:[#allocation5 + $0x30] sm:$0xff] %vm1253, %v3745
        %3778 = vst.msk [vmem:[#allocation5 + $0x38] sm:$0xff] %vm1253, %v3746
        %3779 = vst.msk [vmem:[#allocation5 + $0x40] sm:$0xff] %vm1253, %v3747
        %3780 = vst.msk [vmem:[#allocation5 + $0x48] sm:$0xff] %vm1253, %v3748
        %3781 = vst.msk [vmem:[#allocation5 + $0x50] sm:$0xff] %vm1253, %v3749
        %3782 = vst.msk [vmem:[#allocation5 + $0x58] sm:$0xff] %vm1253, %v3750
        %3783 = vst.msk [vmem:[#allocation5 + $0x60] sm:$0xff] %vm1253, %v3751
        %3784 = vst.msk [vmem:[#allocation5 + $0x68] sm:$0xff] %vm1253, %v3752
        %3785 = vst.msk [vmem:[#allocation5 + $0x70] sm:$0xff] %vm1253, %v3753
        %3786 = vst.msk [vmem:[#allocation5 + $0x78] sm:$0xff] %vm1253, %v3754
        %3787 = vst.msk [vmem:[#allocation5 + $0x80] sm:$0xff] %vm1253, %v3755
        %3788 = vst.msk [vmem:[#allocation5 + $0x88] sm:$0xff] %vm1253, %v3756
        %3789 = vst.msk [vmem:[#allocation5 + $0x90] sm:$0xff] %vm1253, %v3757
        %3790 = vst.msk [vmem:[#allocation5 + $0x98] sm:$0xff] %vm1253, %v3758
        %3791 = vst.msk [vmem:[#allocation5 + $0xa0] sm:$0xff] %vm1253, %v3759
        %3792 = vst.msk [vmem:[#allocation5 + $0xa8] sm:$0xff] %vm1253, %v3760
        %3793 = vst.msk [vmem:[#allocation5 + $0xb0] sm:$0xff] %vm1253, %v3761
        %3794 = vst.msk [vmem:[#allocation5 + $0xb8] sm:$0xff] %vm1253, %v3762
        %3795 = vst.msk [vmem:[#allocation5 + $0xc0] sm:$0xff] %vm1253, %v3763
        %3796 = vst.msk [vmem:[#allocation5 + $0xc8] sm:$0xff] %vm1253, %v3764
        %3797 = vst.msk [vmem:[#allocation5 + $0xd0] sm:$0xff] %vm1253, %v3765
        %3798 = vst.msk [vmem:[#allocation5 + $0xd8] sm:$0xff] %vm1253, %v3766
        %3799 = vst.msk [vmem:[#allocation5 + $0xe0] sm:$0xff] %vm1253, %v3767
        %3800 = vst.msk [vmem:[#allocation5 + $0xe8] sm:$0xff] %vm1253, %v3768
        %3801 = vst.msk [vmem:[#allocation5 + $0xf0] sm:$0xff] %vm1253, %v3769
        %3802 = vst.msk [vmem:[#allocation5 + $0xf8] sm:$0xff] %vm1253, %v3770
        %3803 = vst.msk [vmem:[#allocation3] sm:$0xff] %vm2904, %v1976
        %3804 = vst.msk [vmem:[#allocation3 + $0x8] sm:$0xff] %vm2904, %v1977
        %3805 = vst.msk [vmem:[#allocation3 + $0x10] sm:$0xff] %vm2904, %v1978
        %3806 = vst.msk [vmem:[#allocation3 + $0x18] sm:$0xff] %vm2904, %v1979
        %3807 = vst.msk [vmem:[#allocation3 + $0x20] sm:$0xff] %vm2904, %v1980
        %3808 = vst.msk [vmem:[#allocation3 + $0x28] sm:$0xff] %vm2904, %v1981
        %3809 = vst.msk [vmem:[#allocation3 + $0x30] sm:$0xff] %vm2904, %v1982
        %3810 = vst.msk [vmem:[#allocation3 + $0x38] sm:$0xff] %vm2904, %v1983
        %3811 = vst.msk [vmem:[#allocation3 + $0x40] sm:$0xff] %vm2904, %v1984
        %3812 = vst.msk [vmem:[#allocation3 + $0x48] sm:$0xff] %vm2904, %v1985
        %3813 = vst.msk [vmem:[#allocation3 + $0x50] sm:$0xff] %vm2904, %v1986
        %3814 = vst.msk [vmem:[#allocation3 + $0x58] sm:$0xff] %vm2904, %v1987
        %3815 = vst.msk [vmem:[#allocation3 + $0x60] sm:$0xff] %vm2904, %v1988
        %3816 = vst.msk [vmem:[#allocation3 + $0x68] sm:$0xff] %vm2904, %v1989
        %3817 = vst.msk [vmem:[#allocation3 + $0x70] sm:$0xff] %vm2904, %v1990
        %3818 = vst.msk [vmem:[#allocation3 + $0x78] sm:$0xff] %vm2904, %v1991
        %3819 = vst.msk [vmem:[#allocation3 + $0x80] sm:$0xff] %vm2904, %v1992
        %3820 = vst.msk [vmem:[#allocation3 + $0x88] sm:$0xff] %vm2904, %v1993
        %3821 = vst.msk [vmem:[#allocation3 + $0x90] sm:$0xff] %vm2904, %v1994
        %3822 = vst.msk [vmem:[#allocation3 + $0x98] sm:$0xff] %vm2904, %v1995
        %3823 = vst.msk [vmem:[#allocation3 + $0xa0] sm:$0xff] %vm2904, %v1996
        %3824 = vst.msk [vmem:[#allocation3 + $0xa8] sm:$0xff] %vm2904, %v1997
        %3825 = vst.msk [vmem:[#allocation3 + $0xb0] sm:$0xff] %vm2904, %v1998
        %3826 = vst.msk [vmem:[#allocation3 + $0xb8] sm:$0xff] %vm2904, %v1999
        %3827 = vst.msk [vmem:[#allocation3 + $0xc0] sm:$0xff] %vm2904, %v2000
        %3828 = vst.msk [vmem:[#allocation3 + $0xc8] sm:$0xff] %vm2904, %v2001
        %3829 = vst.msk [vmem:[#allocation3 + $0xd0] sm:$0xff] %vm2904, %v2002
        %3830 = vst.msk [vmem:[#allocation3 + $0xd8] sm:$0xff] %vm2904, %v2003
        %3831 = vst.msk [vmem:[#allocation3 + $0xe0] sm:$0xff] %vm2904, %v2004
        %3832 = vst.msk [vmem:[#allocation3 + $0xe8] sm:$0xff] %vm2904, %v2005
        %3833 = vst.msk [vmem:[#allocation3 + $0xf0] sm:$0xff] %vm2904, %v2006
        %3834 = vst.msk [vmem:[#allocation3 + $0xf8] sm:$0xff] %vm2904, %v2007
        %p3835 = scmp.eq.s32.totalorder %s27, 1
        // Predicated region
        $region61: #{vae_attention_block.5} parent=55 // pred_check
          %p3836 = pneg %p3835
        $region62: #{vae_attention_block.5} parent=55 // pred_check_branch
          %3838 = sbr.rel (%p3836) target = $region64
        $region63: #{vae_attention_block.5} parent=55 // pred_region
          %v3839 = vld [vmem:[#allocation4] sm:$0xff]
          %v3840 = vld [vmem:[#allocation4 + $0x8] sm:$0xff]
          %v3841 = vld [vmem:[#allocation4 + $0x10] sm:$0xff]
          %v3842 = vld [vmem:[#allocation4 + $0x18] sm:$0xff]
          %v3843 = vld [vmem:[#allocation4 + $0x20] sm:$0xff]
          %v3844 = vld [vmem:[#allocation4 + $0x28] sm:$0xff]
          %v3845 = vld [vmem:[#allocation4 + $0x30] sm:$0xff]
          %v3846 = vld [vmem:[#allocation4 + $0x38] sm:$0xff]
          %v3847 = vld [vmem:[#allocation4 + $0x40] sm:$0xff]
          %v3848 = vld [vmem:[#allocation4 + $0x48] sm:$0xff]
          %v3849 = vld [vmem:[#allocation4 + $0x50] sm:$0xff]
          %v3850 = vld [vmem:[#allocation4 + $0x58] sm:$0xff]
          %v3851 = vld [vmem:[#allocation4 + $0x60] sm:$0xff]
          %v3852 = vld [vmem:[#allocation4 + $0x68] sm:$0xff]
          %v3853 = vld [vmem:[#allocation4 + $0x70] sm:$0xff]
          %v3854 = vld [vmem:[#allocation4 + $0x78] sm:$0xff]
          %v3855 = vld [vmem:[#allocation4 + $0x80] sm:$0xff]
          %v3856 = vld [vmem:[#allocation4 + $0x88] sm:$0xff]
          %v3857 = vld [vmem:[#allocation4 + $0x90] sm:$0xff]
          %v3858 = vld [vmem:[#allocation4 + $0x98] sm:$0xff]
          %v3859 = vld [vmem:[#allocation4 + $0xa0] sm:$0xff]
          %v3860 = vld [vmem:[#allocation4 + $0xa8] sm:$0xff]
          %v3861 = vld [vmem:[#allocation4 + $0xb0] sm:$0xff]
          %v3862 = vld [vmem:[#allocation4 + $0xb8] sm:$0xff]
          %v3863 = vld [vmem:[#allocation4 + $0xc0] sm:$0xff]
          %v3864 = vld [vmem:[#allocation4 + $0xc8] sm:$0xff]
          %v3865 = vld [vmem:[#allocation4 + $0xd0] sm:$0xff]
          %v3866 = vld [vmem:[#allocation4 + $0xd8] sm:$0xff]
          %v3867 = vld [vmem:[#allocation4 + $0xe0] sm:$0xff]
          %v3868 = vld [vmem:[#allocation4 + $0xe8] sm:$0xff]
          %v3869 = vld [vmem:[#allocation4 + $0xf0] sm:$0xff]
          %v3870 = vld [vmem:[#allocation4 + $0xf8] sm:$0xff]
          %v3871 = vrcp.pop %v3839
          %v3872 = vrcp.pop %v3840
          %v3873 = vrcp.pop %v3841
          %v3874 = vrcp.pop %v3842
          %v3875 = vrcp.pop %v3843
          %v3876 = vrcp.pop %v3844
          %v3877 = vrcp.pop %v3845
          %v3878 = vrcp.pop %v3846
          %v3879 = vrcp.pop %v3847
          %v3880 = vrcp.pop %v3848
          %v3881 = vrcp.pop %v3849
          %v3882 = vrcp.pop %v3850
          %v3883 = vrcp.pop %v3851
          %v3884 = vrcp.pop %v3852
          %v3885 = vrcp.pop %v3853
          %v3886 = vrcp.pop %v3854
          %v3887 = vrcp.pop %v3855
          %v3888 = vrcp.pop %v3856
          %v3889 = vrcp.pop %v3857
          %v3890 = vrcp.pop %v3858
          %v3891 = vrcp.pop %v3859
          %v3892 = vrcp.pop %v3860
          %v3893 = vrcp.pop %v3861
          %v3894 = vrcp.pop %v3862
          %v3895 = vrcp.pop %v3863
          %v3896 = vrcp.pop %v3864
          %v3897 = vrcp.pop %v3865
          %v3898 = vrcp.pop %v3866
          %v3899 = vrcp.pop %v3867
          %v3900 = vrcp.pop %v3868
          %v3901 = vrcp.pop %v3869
          %v3902 = vrcp.pop %v3870
          %v3903 = vld [vmem:[#allocation5] sm:$0xff]
          %v3904 = vld [vmem:[#allocation5 + $0x8] sm:$0xff]
          %v3905 = vld [vmem:[#allocation5 + $0x10] sm:$0xff]
          %v3906 = vld [vmem:[#allocation5 + $0x18] sm:$0xff]
          %v3907 = vld [vmem:[#allocation5 + $0x20] sm:$0xff]
          %v3908 = vld [vmem:[#allocation5 + $0x28] sm:$0xff]
          %v3909 = vld [vmem:[#allocation5 + $0x30] sm:$0xff]
          %v3910 = vld [vmem:[#allocation5 + $0x38] sm:$0xff]
          %v3911 = vld [vmem:[#allocation5 + $0x40] sm:$0xff]
          %v3912 = vld [vmem:[#allocation5 + $0x48] sm:$0xff]
          %v3913 = vld [vmem:[#allocation5 + $0x50] sm:$0xff]
          %v3914 = vld [vmem:[#allocation5 + $0x58] sm:$0xff]
          %v3915 = vld [vmem:[#allocation5 + $0x60] sm:$0xff]
          %v3916 = vld [vmem:[#allocation5 + $0x68] sm:$0xff]
          %v3917 = vld [vmem:[#allocation5 + $0x70] sm:$0xff]
          %v3918 = vld [vmem:[#allocation5 + $0x78] sm:$0xff]
          %v3919 = vld [vmem:[#allocation5 + $0x80] sm:$0xff]
          %v3920 = vld [vmem:[#allocation5 + $0x88] sm:$0xff]
          %v3921 = vld [vmem:[#allocation5 + $0x90] sm:$0xff]
          %v3922 = vld [vmem:[#allocation5 + $0x98] sm:$0xff]
          %v3923 = vld [vmem:[#allocation5 + $0xa0] sm:$0xff]
          %v3924 = vld [vmem:[#allocation5 + $0xa8] sm:$0xff]
          %v3925 = vld [vmem:[#allocation5 + $0xb0] sm:$0xff]
          %v3926 = vld [vmem:[#allocation5 + $0xb8] sm:$0xff]
          %v3927 = vld [vmem:[#allocation5 + $0xc0] sm:$0xff]
          %v3928 = vld [vmem:[#allocation5 + $0xc8] sm:$0xff]
          %v3929 = vld [vmem:[#allocation5 + $0xd0] sm:$0xff]
          %v3930 = vld [vmem:[#allocation5 + $0xd8] sm:$0xff]
          %v3931 = vld [vmem:[#allocation5 + $0xe0] sm:$0xff]
          %v3932 = vld [vmem:[#allocation5 + $0xe8] sm:$0xff]
          %v3933 = vld [vmem:[#allocation5 + $0xf0] sm:$0xff]
          %v3934 = vld [vmem:[#allocation5 + $0xf8] sm:$0xff]
          %3936 = vset.pattern.permute.xlu0 0
          %3937 = vperm.xlu0 %3936, %v3871
          %v3938 = vpop.permute.xlu0 %3937
          %3941 = vset.pattern.permute.xlu0 0
          %3942 = vperm.xlu0 %3941, %v3872
          %v3943 = vpop.permute.xlu0 %3942
          %3946 = vset.pattern.permute.xlu0 0
          %3947 = vperm.xlu0 %3946, %v3873
          %v3948 = vpop.permute.xlu0 %3947
          %3951 = vset.pattern.permute.xlu0 0
          %3952 = vperm.xlu0 %3951, %v3874
          %v3953 = vpop.permute.xlu0 %3952
          %3956 = vset.pattern.permute.xlu0 0
          %3957 = vperm.xlu0 %3956, %v3875
          %v3958 = vpop.permute.xlu0 %3957
          %3961 = vset.pattern.permute.xlu0 0
          %3962 = vperm.xlu0 %3961, %v3876
          %v3963 = vpop.permute.xlu0 %3962
          %3966 = vset.pattern.permute.xlu0 0
          %3967 = vperm.xlu0 %3966, %v3877
          %v3968 = vpop.permute.xlu0 %3967
          %3971 = vset.pattern.permute.xlu0 0
          %3972 = vperm.xlu0 %3971, %v3878
          %v3973 = vpop.permute.xlu0 %3972
          %3976 = vset.pattern.permute.xlu0 0
          %3977 = vperm.xlu0 %3976, %v3879
          %v3978 = vpop.permute.xlu0 %3977
          %3981 = vset.pattern.permute.xlu0 0
          %3982 = vperm.xlu0 %3981, %v3880
          %v3983 = vpop.permute.xlu0 %3982
          %3986 = vset.pattern.permute.xlu0 0
          %3987 = vperm.xlu0 %3986, %v3881
          %v3988 = vpop.permute.xlu0 %3987
          %3991 = vset.pattern.permute.xlu0 0
          %3992 = vperm.xlu0 %3991, %v3882
          %v3993 = vpop.permute.xlu0 %3992
          %3996 = vset.pattern.permute.xlu0 0
          %3997 = vperm.xlu0 %3996, %v3883
          %v3998 = vpop.permute.xlu0 %3997
          %4001 = vset.pattern.permute.xlu0 0
          %4002 = vperm.xlu0 %4001, %v3884
          %v4003 = vpop.permute.xlu0 %4002
          %4006 = vset.pattern.permute.xlu0 0
          %4007 = vperm.xlu0 %4006, %v3885
          %v4008 = vpop.permute.xlu0 %4007
          %4011 = vset.pattern.permute.xlu0 0
          %4012 = vperm.xlu0 %4011, %v3886
          %v4013 = vpop.permute.xlu0 %4012
          %4016 = vset.pattern.permute.xlu0 0
          %4017 = vperm.xlu0 %4016, %v3887
          %v4018 = vpop.permute.xlu0 %4017
          %4021 = vset.pattern.permute.xlu0 0
          %4022 = vperm.xlu0 %4021, %v3888
          %v4023 = vpop.permute.xlu0 %4022
          %4026 = vset.pattern.permute.xlu0 0
          %4027 = vperm.xlu0 %4026, %v3889
          %v4028 = vpop.permute.xlu0 %4027
          %4031 = vset.pattern.permute.xlu0 0
          %4032 = vperm.xlu0 %4031, %v3890
          %v4033 = vpop.permute.xlu0 %4032
          %4036 = vset.pattern.permute.xlu0 0
          %4037 = vperm.xlu0 %4036, %v3891
          %v4038 = vpop.permute.xlu0 %4037
          %4041 = vset.pattern.permute.xlu0 0
          %4042 = vperm.xlu0 %4041, %v3892
          %v4043 = vpop.permute.xlu0 %4042
          %4046 = vset.pattern.permute.xlu0 0
          %4047 = vperm.xlu0 %4046, %v3893
          %v4048 = vpop.permute.xlu0 %4047
          %4051 = vset.pattern.permute.xlu0 0
          %4052 = vperm.xlu0 %4051, %v3894
          %v4053 = vpop.permute.xlu0 %4052
          %4056 = vset.pattern.permute.xlu0 0
          %4057 = vperm.xlu0 %4056, %v3895
          %v4058 = vpop.permute.xlu0 %4057
          %4061 = vset.pattern.permute.xlu0 0
          %4062 = vperm.xlu0 %4061, %v3896
          %v4063 = vpop.permute.xlu0 %4062
          %4066 = vset.pattern.permute.xlu0 0
          %4067 = vperm.xlu0 %4066, %v3897
          %v4068 = vpop.permute.xlu0 %4067
          %4071 = vset.pattern.permute.xlu0 0
          %4072 = vperm.xlu0 %4071, %v3898
          %v4073 = vpop.permute.xlu0 %4072
          %4076 = vset.pattern.permute.xlu0 0
          %4077 = vperm.xlu0 %4076, %v3899
          %v4078 = vpop.permute.xlu0 %4077
          %4081 = vset.pattern.permute.xlu0 0
          %4082 = vperm.xlu0 %4081, %v3900
          %v4083 = vpop.permute.xlu0 %4082
          %4086 = vset.pattern.permute.xlu0 0
          %4087 = vperm.xlu0 %4086, %v3901
          %v4088 = vpop.permute.xlu0 %4087
          %4091 = vset.pattern.permute.xlu0 0
          %4092 = vperm.xlu0 %4091, %v3902
          %v4093 = vpop.permute.xlu0 %4092
          %v4095 = vmul.f32 %v3903, %v3938
          %v4096 = vmul.f32 %v3904, %v3943
          %v4097 = vmul.f32 %v3905, %v3948
          %v4098 = vmul.f32 %v3906, %v3953
          %v4099 = vmul.f32 %v3907, %v3958
          %v4100 = vmul.f32 %v3908, %v3963
          %v4101 = vmul.f32 %v3909, %v3968
          %v4102 = vmul.f32 %v3910, %v3973
          %v4103 = vmul.f32 %v3911, %v3978
          %v4104 = vmul.f32 %v3912, %v3983
          %v4105 = vmul.f32 %v3913, %v3988
          %v4106 = vmul.f32 %v3914, %v3993
          %v4107 = vmul.f32 %v3915, %v3998
          %v4108 = vmul.f32 %v3916, %v4003
          %v4109 = vmul.f32 %v3917, %v4008
          %v4110 = vmul.f32 %v3918, %v4013
          %v4111 = vmul.f32 %v3919, %v4018
          %v4112 = vmul.f32 %v3920, %v4023
          %v4113 = vmul.f32 %v3921, %v4028
          %v4114 = vmul.f32 %v3922, %v4033
          %v4115 = vmul.f32 %v3923, %v4038
          %v4116 = vmul.f32 %v3924, %v4043
          %v4117 = vmul.f32 %v3925, %v4048
          %v4118 = vmul.f32 %v3926, %v4053
          %v4119 = vmul.f32 %v3927, %v4058
          %v4120 = vmul.f32 %v3928, %v4063
          %v4121 = vmul.f32 %v3929, %v4068
          %v4122 = vmul.f32 %v3930, %v4073
          %v4123 = vmul.f32 %v3931, %v4078
          %v4124 = vmul.f32 %v3932, %v4083
          %v4125 = vmul.f32 %v3933, %v4088
          %v4126 = vmul.f32 %v3934, %v4093
          %v4127 = vpack.c.bf16 %v4096, %v4095
          %v4128 = vpack.c.bf16 %v4098, %v4097
          %v4129 = vpack.c.bf16 %v4100, %v4099
          %v4130 = vpack.c.bf16 %v4102, %v4101
          %v4131 = vpack.c.bf16 %v4104, %v4103
          %v4132 = vpack.c.bf16 %v4106, %v4105
          %v4133 = vpack.c.bf16 %v4108, %v4107
          %v4134 = vpack.c.bf16 %v4110, %v4109
          %v4135 = vpack.c.bf16 %v4112, %v4111
          %v4136 = vpack.c.bf16 %v4114, %v4113
          %v4137 = vpack.c.bf16 %v4116, %v4115
          %v4138 = vpack.c.bf16 %v4118, %v4117
          %v4139 = vpack.c.bf16 %v4120, %v4119
          %v4140 = vpack.c.bf16 %v4122, %v4121
          %v4141 = vpack.c.bf16 %v4124, %v4123
          %v4142 = vpack.c.bf16 %v4126, %v4125
          %v4143 = vld [vmem:[%s7] sm:$0xf]
          %v4144 = vld [vmem:[%s7 + $0x4] sm:$0xf]
          %v4145 = vld [vmem:[%s7 + $0x8] sm:$0xf]
          %v4146 = vld [vmem:[%s7 + $0xc] sm:$0xf]
          %v4147 = vld [vmem:[%s7 + $0x10] sm:$0xf]
          %v4148 = vld [vmem:[%s7 + $0x14] sm:$0xf]
          %v4149 = vld [vmem:[%s7 + $0x18] sm:$0xf]
          %v4150 = vld [vmem:[%s7 + $0x1c] sm:$0xf]
          %v4151 = vld [vmem:[%s8] sm:$0x1]
          %v4153 = vlaneseq
          %v4154 = vshrl.u32 %v4153, 7
          %v4155 = vsub.s32 0, %v4154
          %v4156 = vrot.slane %v4151, %v4155
          %v4166 = vunpack.c.l.b16 %v4143
          %v4167 = vunpack.c.l.b16 %v4144
          %v4168 = vunpack.c.l.b16 %v4145
          %v4169 = vunpack.c.l.b16 %v4146
          %v4170 = vunpack.c.l.b16 %v4147
          %v4171 = vunpack.c.l.b16 %v4148
          %v4172 = vunpack.c.l.b16 %v4149
          %v4173 = vunpack.c.l.b16 %v4150
          %v4174 = vpack.c.b16 %v4167, %v4166
          %v4175 = vpack.c.b16 %v4169, %v4168
          %v4176 = vpack.c.b16 %v4171, %v4170
          %v4177 = vpack.c.b16 %v4173, %v4172
          %v4183 = vsel %vm1253, %v4127, 0
          %v4186 = vsel %vm1253, %v4128, 0
          %v4189 = vsel %vm1253, %v4129, 0
          %v4192 = vsel %vm1253, %v4130, 0
          %v4195 = vsel %vm1253, %v4131, 0
          %v4198 = vsel %vm1253, %v4132, 0
          %v4201 = vsel %vm1253, %v4133, 0
          %v4204 = vsel %vm1253, %v4134, 0
          %v4207 = vsel %vm1253, %v4135, 0
          %v4210 = vsel %vm1253, %v4136, 0
          %v4213 = vsel %vm1253, %v4137, 0
          %v4216 = vsel %vm1253, %v4138, 0
          %v4219 = vsel %vm1253, %v4139, 0
          %v4222 = vsel %vm1253, %v4140, 0
          %v4225 = vsel %vm1253, %v4141, 0
          %v4228 = vsel %vm1253, %v4142, 0
          %4230 = vmatprep.subr.bf16.mxu0 0
          %4231 = vmatpush1.bf16.msra.mxu0 %v4174
          %4232 = vmatprep.subr.bf16.mxu0 0
          %4233 = vmatpush1.bf16.msra.mxu0 %v4175
          %4234 = vmatprep.subr.bf16.mxu0 0
          %4235 = vmatpush1.bf16.msra.mxu0 %v4176
          %4236 = vmatprep.subr.bf16.mxu0 0
          %4237 = vmatpush1.bf16.msra.mxu0 %v4177
          %4238 = vmatprep.subr.bf16.mxu0 0
          %4239 = vmatpush1.bf16.msra.mxu0 0
          %4240 = vmatprep.subr.bf16.mxu0 0
          %4241 = vmatpush1.bf16.msra.mxu0 0
          %4242 = vmatprep.subr.bf16.mxu0 0
          %4243 = vmatpush1.bf16.msra.mxu0 0
          %4244 = vmatprep.subr.bf16.mxu0 0
          %4245 = vmatpush1.bf16.msra.mxu0 0
          %4246 = vmatprep.subr.bf16.mxu0 0
          %4247 = vmatpush1.bf16.msra.mxu0 0
          %4248 = vmatprep.subr.bf16.mxu0 0
          %4249 = vmatpush1.bf16.msra.mxu0 0
          %4250 = vmatprep.subr.bf16.mxu0 0
          %4251 = vmatpush1.bf16.msra.mxu0 0
          %4252 = vmatprep.subr.bf16.mxu0 0
          %4253 = vmatpush1.bf16.msra.mxu0 0
          %4254 = vmatprep.subr.bf16.mxu0 0
          %4255 = vmatpush1.bf16.msra.mxu0 0
          %4256 = vmatprep.subr.bf16.mxu0 0
          %4257 = vmatpush1.bf16.msra.mxu0 0
          %4258 = vmatprep.subr.bf16.mxu0 0
          %4259 = vmatpush1.bf16.msra.mxu0 0
          %4260 = vmatprep.subr.bf16.mxu0 0
          %4261 = vmatpush1.bf16.msra.mxu0 0
          %4262 = vmatprep.mubr.bf16.mxu0 0
          %4263 = vmatmul.mubr.bf16.gmra.mrb[0].mxu0 %v4183
          %v4264 = vpop.f32.mrb[0].mxu0
          %v4265 = vadd.f32 %v4156, %v4264
          %v4266 = vpop.f32.mrb[0].mxu0
          %v4267 = vpop.f32.mrb[0].mxu0
          %v4268 = vadd.f32 %v4156, %v4267
          %v4269 = vpop.f32.mrb[0].mxu0
          %4270 = vmatprep.mubr.bf16.mxu0 0
          %4271 = vmatmul.mubr.bf16.gmra.mrb[0].mxu0 %v4186
          %v4272 = vpop.f32.mrb[0].mxu0
          %v4273 = vadd.f32 %v4156, %v4272
          %v4274 = vpop.f32.mrb[0].mxu0
          %v4275 = vpop.f32.mrb[0].mxu0
          %v4276 = vadd.f32 %v4156, %v4275
          %v4277 = vpop.f32.mrb[0].mxu0
          %4278 = vmatprep.mubr.bf16.mxu0 0
          %4279 = vmatmul.mubr.bf16.gmra.mrb[0].mxu0 %v4189
          %v4280 = vpop.f32.mrb[0].mxu0
          %v4281 = vadd.f32 %v4156, %v4280
          %v4282 = vpop.f32.mrb[0].mxu0
          %v4283 = vpop.f32.mrb[0].mxu0
          %v4284 = vadd.f32 %v4156, %v4283
          %v4285 = vpop.f32.mrb[0].mxu0
          %4286 = vmatprep.mubr.bf16.mxu0 0
          %4287 = vmatmul.mubr.bf16.gmra.mrb[0].mxu0 %v4192
          %v4288 = vpop.f32.mrb[0].mxu0
          %v4289 = vadd.f32 %v4156, %v4288
          %v4290 = vpop.f32.mrb[0].mxu0
          %v4291 = vpop.f32.mrb[0].mxu0
          %v4292 = vadd.f32 %v4156, %v4291
          %v4293 = vpop.f32.mrb[0].mxu0
          %4294 = vmatprep.mubr.bf16.mxu0 0
          %4295 = vmatmul.mubr.bf16.gmra.mrb[0].mxu0 %v4195
          %v4296 = vpop.f32.mrb[0].mxu0
          %v4297 = vadd.f32 %v4156, %v4296
          %v4298 = vpop.f32.mrb[0].mxu0
          %v4299 = vpop.f32.mrb[0].mxu0
          %v4300 = vadd.f32 %v4156, %v4299
          %v4301 = vpop.f32.mrb[0].mxu0
          %4302 = vmatprep.mubr.bf16.mxu0 0
          %4303 = vmatmul.mubr.bf16.gmra.mrb[0].mxu0 %v4198
          %v4304 = vpop.f32.mrb[0].mxu0
          %v4305 = vadd.f32 %v4156, %v4304
          %v4306 = vpop.f32.mrb[0].mxu0
          %v4307 = vpop.f32.mrb[0].mxu0
          %v4308 = vadd.f32 %v4156, %v4307
          %v4309 = vpop.f32.mrb[0].mxu0
          %4310 = vmatprep.mubr.bf16.mxu0 0
          %4311 = vmatmul.mubr.bf16.gmra.mrb[0].mxu0 %v4201
          %v4312 = vpop.f32.mrb[0].mxu0
          %v4313 = vadd.f32 %v4156, %v4312
          %v4314 = vpop.f32.mrb[0].mxu0
          %v4315 = vpop.f32.mrb[0].mxu0
          %v4316 = vadd.f32 %v4156, %v4315
          %v4317 = vpop.f32.mrb[0].mxu0
          %4318 = vmatprep.mubr.bf16.mxu0 0
          %4319 = vmatmul.mubr.bf16.gmra.mrb[0].mxu0 %v4204
          %v4320 = vpop.f32.mrb[0].mxu0
          %v4321 = vadd.f32 %v4156, %v4320
          %v4322 = vpop.f32.mrb[0].mxu0
          %v4323 = vpop.f32.mrb[0].mxu0
          %v4324 = vadd.f32 %v4156, %v4323
          %v4325 = vpop.f32.mrb[0].mxu0
          %4326 = vmatprep.mubr.bf16.mxu0 0
          %4327 = vmatmul.mubr.bf16.gmra.mrb[0].mxu0 %v4207
          %v4328 = vpop.f32.mrb[0].mxu0
          %v4329 = vadd.f32 %v4156, %v4328
          %v4330 = vpop.f32.mrb[0].mxu0
          %v4331 = vpop.f32.mrb[0].mxu0
          %v4332 = vadd.f32 %v4156, %v4331
          %v4333 = vpop.f32.mrb[0].mxu0
          %4334 = vmatprep.mubr.bf16.mxu0 0
          %4335 = vmatmul.mubr.bf16.gmra.mrb[0].mxu0 %v4210
          %v4336 = vpop.f32.mrb[0].mxu0
          %v4337 = vadd.f32 %v4156, %v4336
          %v4338 = vpop.f32.mrb[0].mxu0
          %v4339 = vpop.f32.mrb[0].mxu0
          %v4340 = vadd.f32 %v4156, %v4339
          %v4341 = vpop.f32.mrb[0].mxu0
          %4342 = vmatprep.mubr.bf16.mxu0 0
          %4343 = vmatmul.mubr.bf16.gmra.mrb[0].mxu0 %v4213
          %v4344 = vpop.f32.mrb[0].mxu0
          %v4345 = vadd.f32 %v4156, %v4344
          %v4346 = vpop.f32.mrb[0].mxu0
          %v4347 = vpop.f32.mrb[0].mxu0
          %v4348 = vadd.f32 %v4156, %v4347
          %v4349 = vpop.f32.mrb[0].mxu0
          %4350 = vmatprep.mubr.bf16.mxu0 0
          %4351 = vmatmul.mubr.bf16.gmra.mrb[0].mxu0 %v4216
          %v4352 = vpop.f32.mrb[0].mxu0
          %v4353 = vadd.f32 %v4156, %v4352
          %v4354 = vpop.f32.mrb[0].mxu0
          %v4355 = vpop.f32.mrb[0].mxu0
          %v4356 = vadd.f32 %v4156, %v4355
          %v4357 = vpop.f32.mrb[0].mxu0
          %4358 = vmatprep.mubr.bf16.mxu0 0
          %4359 = vmatmul.mubr.bf16.gmra.mrb[0].mxu0 %v4219
          %v4360 = vpop.f32.mrb[0].mxu0
          %v4361 = vadd.f32 %v4156, %v4360
          %v4362 = vpop.f32.mrb[0].mxu0
          %v4363 = vpop.f32.mrb[0].mxu0
          %v4364 = vadd.f32 %v4156, %v4363
          %v4365 = vpop.f32.mrb[0].mxu0
          %4366 = vmatprep.mubr.bf16.mxu0 0
          %4367 = vmatmul.mubr.bf16.gmra.mrb[0].mxu0 %v4222
          %v4368 = vpop.f32.mrb[0].mxu0
          %v4369 = vadd.f32 %v4156, %v4368
          %v4370 = vpop.f32.mrb[0].mxu0
          %v4371 = vpop.f32.mrb[0].mxu0
          %v4372 = vadd.f32 %v4156, %v4371
          %v4373 = vpop.f32.mrb[0].mxu0
          %4374 = vmatprep.mubr.bf16.mxu0 0
          %4375 = vmatmul.mubr.bf16.gmra.mrb[0].mxu0 %v4225
          %v4376 = vpop.f32.mrb[0].mxu0
          %v4377 = vadd.f32 %v4156, %v4376
          %v4378 = vpop.f32.mrb[0].mxu0
          %v4379 = vpop.f32.mrb[0].mxu0
          %v4380 = vadd.f32 %v4156, %v4379
          %v4381 = vpop.f32.mrb[0].mxu0
          %4382 = vmatprep.mubr.bf16.mxu0 0
          %4383 = vmatmul.mubr.bf16.gmra.mrb[0].mxu0 %v4228
          %v4384 = vpop.f32.mrb[0].mxu0
          %v4385 = vadd.f32 %v4156, %v4384
          %v4386 = vpop.f32.mrb[0].mxu0
          %v4387 = vpop.f32.mrb[0].mxu0
          %v4388 = vadd.f32 %v4156, %v4387
          %v4389 = vpop.f32.mrb[0].mxu0
          %4390 = vdwg.mxu0
          %v4391 = vld [vmem:[%s414] sm:$0xff]
          %v4392 = vld [vmem:[%s414 + $0x8] sm:$0xff]
          %v4393 = vld [vmem:[%s414 + $0x10] sm:$0xff]
          %v4394 = vld [vmem:[%s414 + $0x18] sm:$0xff]
          %v4395 = vld [vmem:[%s414 + $0x20] sm:$0xff]
          %v4396 = vld [vmem:[%s414 + $0x28] sm:$0xff]
          %v4397 = vld [vmem:[%s414 + $0x30] sm:$0xff]
          %v4398 = vld [vmem:[%s414 + $0x38] sm:$0xff]
          %v4399 = vld [vmem:[%s414 + $0x40] sm:$0xff]
          %v4400 = vld [vmem:[%s414 + $0x48] sm:$0xff]
          %v4401 = vld [vmem:[%s414 + $0x50] sm:$0xff]
          %v4402 = vld [vmem:[%s414 + $0x58] sm:$0xff]
          %v4403 = vld [vmem:[%s414 + $0x60] sm:$0xff]
          %v4404 = vld [vmem:[%s414 + $0x68] sm:$0xff]
          %v4405 = vld [vmem:[%s414 + $0x70] sm:$0xff]
          %v4406 = vld [vmem:[%s414 + $0x78] sm:$0xff]
          %v4407 = vld [vmem:[%s414 + $0x80] sm:$0xff]
          %v4408 = vld [vmem:[%s414 + $0x88] sm:$0xff]
          %v4409 = vld [vmem:[%s414 + $0x90] sm:$0xff]
          %v4410 = vld [vmem:[%s414 + $0x98] sm:$0xff]
          %v4411 = vld [vmem:[%s414 + $0xa0] sm:$0xff]
          %v4412 = vld [vmem:[%s414 + $0xa8] sm:$0xff]
          %v4413 = vld [vmem:[%s414 + $0xb0] sm:$0xff]
          %v4414 = vld [vmem:[%s414 + $0xb8] sm:$0xff]
          %v4415 = vld [vmem:[%s414 + $0xc0] sm:$0xff]
          %v4416 = vld [vmem:[%s414 + $0xc8] sm:$0xff]
          %v4417 = vld [vmem:[%s414 + $0xd0] sm:$0xff]
          %v4418 = vld [vmem:[%s414 + $0xd8] sm:$0xff]
          %v4419 = vld [vmem:[%s414 + $0xe0] sm:$0xff]
          %v4420 = vld [vmem:[%s414 + $0xe8] sm:$0xff]
          %v4421 = vld [vmem:[%s414 + $0xf0] sm:$0xff]
          %v4422 = vld [vmem:[%s414 + $0xf8] sm:$0xff]
          %v4423 = vadd.f32 %v4265, %v4391
          %v4424 = vadd.f32 %v4268, %v4392
          %v4425 = vadd.f32 %v4273, %v4393
          %v4426 = vadd.f32 %v4276, %v4394
          %v4427 = vadd.f32 %v4281, %v4395
          %v4428 = vadd.f32 %v4284, %v4396
          %v4429 = vadd.f32 %v4289, %v4397
          %v4430 = vadd.f32 %v4292, %v4398
          %v4431 = vadd.f32 %v4297, %v4399
          %v4432 = vadd.f32 %v4300, %v4400
          %v4433 = vadd.f32 %v4305, %v4401
          %v4434 = vadd.f32 %v4308, %v4402
          %v4435 = vadd.f32 %v4313, %v4403
          %v4436 = vadd.f32 %v4316, %v4404
          %v4437 = vadd.f32 %v4321, %v4405
          %v4438 = vadd.f32 %v4324, %v4406
          %v4439 = vadd.f32 %v4329, %v4407
          %v4440 = vadd.f32 %v4332, %v4408
          %v4441 = vadd.f32 %v4337, %v4409
          %v4442 = vadd.f32 %v4340, %v4410
          %v4443 = vadd.f32 %v4345, %v4411
          %v4444 = vadd.f32 %v4348, %v4412
          %v4445 = vadd.f32 %v4353, %v4413
          %v4446 = vadd.f32 %v4356, %v4414
          %v4447 = vadd.f32 %v4361, %v4415
          %v4448 = vadd.f32 %v4364, %v4416
          %v4449 = vadd.f32 %v4369, %v4417
          %v4450 = vadd.f32 %v4372, %v4418
          %v4451 = vadd.f32 %v4377, %v4419
          %v4452 = vadd.f32 %v4380, %v4420
          %v4453 = vadd.f32 %v4385, %v4421
          %v4454 = vadd.f32 %v4388, %v4422
          %4455 = vxpose.xlu0.b32.start [1/16] %v4423, 128
          %4456 = vxpose.xlu0.b32.cont [2/16] %v4424, 128
          %4457 = vxpose.xlu0.b32.cont [3/16] %v4425, 128
          %4458 = vxpose.xlu0.b32.cont [4/16] %v4426, 128
          %4459 = vxpose.xlu0.b32.cont [5/16] %v4427, 128
          %4460 = vxpose.xlu0.b32.cont [6/16] %v4428, 128
          %4461 = vxpose.xlu0.b32.cont [7/16] %v4429, 128
          %4462 = vxpose.xlu0.b32.cont [8/16] %v4430, 128
          %4463 = vxpose.xlu0.b32.cont [9/16] %v4431, 128
          %4464 = vxpose.xlu0.b32.cont [10/16] %v4432, 128
          %4465 = vxpose.xlu0.b32.cont [11/16] %v4433, 128
          %4466 = vxpose.xlu0.b32.cont [12/16] %v4434, 128
          %4467 = vxpose.xlu0.b32.cont [13/16] %v4435, 128
          %4468 = vxpose.xlu0.b32.cont [14/16] %v4436, 128
          %4469 = vxpose.xlu0.b32.cont [15/16] %v4437, 128
          %4470 = vxpose.xlu0.b32.end [16/16] %v4438, 128
          %v4471 = vpop.trf.xlu0
          %v4472 = vpop.trf.xlu0
          %v4473 = vpop.trf.xlu0
          %v4474 = vpop.trf.xlu0
          %v4475 = vpop.trf.xlu0
          %v4476 = vpop.trf.xlu0
          %v4477 = vpop.trf.xlu0
          %v4478 = vpop.trf.xlu0
          %v4479 = vpop.trf.xlu0
          %v4480 = vpop.trf.xlu0
          %v4481 = vpop.trf.xlu0
          %v4482 = vpop.trf.xlu0
          %v4483 = vpop.trf.xlu0
          %v4484 = vpop.trf.xlu0
          %v4485 = vpop.trf.xlu0
          %v4486 = vpop.trf.xlu0
          %4487 = vxpose.xlu0.b32.start [1/16] %v4439, 128
          %4488 = vxpose.xlu0.b32.cont [2/16] %v4440, 128
          %4489 = vxpose.xlu0.b32.cont [3/16] %v4441, 128
          %4490 = vxpose.xlu0.b32.cont [4/16] %v4442, 128
          %4491 = vxpose.xlu0.b32.cont [5/16] %v4443, 128
          %4492 = vxpose.xlu0.b32.cont [6/16] %v4444, 128
          %4493 = vxpose.xlu0.b32.cont [7/16] %v4445, 128
          %4494 = vxpose.xlu0.b32.cont [8/16] %v4446, 128
          %4495 = vxpose.xlu0.b32.cont [9/16] %v4447, 128
          %4496 = vxpose.xlu0.b32.cont [10/16] %v4448, 128
          %4497 = vxpose.xlu0.b32.cont [11/16] %v4449, 128
          %4498 = vxpose.xlu0.b32.cont [12/16] %v4450, 128
          %4499 = vxpose.xlu0.b32.cont [13/16] %v4451, 128
          %4500 = vxpose.xlu0.b32.cont [14/16] %v4452, 128
          %4501 = vxpose.xlu0.b32.cont [15/16] %v4453, 128
          %4502 = vxpose.xlu0.b32.end [16/16] %v4454, 128
          %v4503 = vpop.trf.xlu0
          %v4504 = vpop.trf.xlu0
          %v4505 = vpop.trf.xlu0
          %v4506 = vpop.trf.xlu0
          %v4507 = vpop.trf.xlu0
          %v4508 = vpop.trf.xlu0
          %v4509 = vpop.trf.xlu0
          %v4510 = vpop.trf.xlu0
          %v4511 = vpop.trf.xlu0
          %v4512 = vpop.trf.xlu0
          %v4513 = vpop.trf.xlu0
          %v4514 = vpop.trf.xlu0
          %v4515 = vpop.trf.xlu0
          %v4516 = vpop.trf.xlu0
          %v4517 = vpop.trf.xlu0
          %v4518 = vpop.trf.xlu0
          %4519 = vst [vmem:[%s405] sm:$0xff] %v4471
          %4520 = vst [vmem:[%s405 + $0x8] sm:$0xff] %v4503
          %4521 = vst [vmem:[%s405 + $0x10] sm:$0xff] %v4472
          %4522 = vst [vmem:[%s405 + $0x18] sm:$0xff] %v4504
          %4523 = vst [vmem:[%s405 + $0x20] sm:$0xff] %v4473
          %4524 = vst [vmem:[%s405 + $0x28] sm:$0xff] %v4505
          %4525 = vst [vmem:[%s405 + $0x30] sm:$0xff] %v4474
          %4526 = vst [vmem:[%s405 + $0x38] sm:$0xff] %v4506
          %4527 = vst [vmem:[%s405 + $0x40] sm:$0xff] %v4475
          %4528 = vst [vmem:[%s405 + $0x48] sm:$0xff] %v4507
          %4529 = vst [vmem:[%s405 + $0x50] sm:$0xff] %v4476
          %4530 = vst [vmem:[%s405 + $0x58] sm:$0xff] %v4508
          %4531 = vst [vmem:[%s405 + $0x60] sm:$0xff] %v4477
          %4532 = vst [vmem:[%s405 + $0x68] sm:$0xff] %v4509
          %4533 = vst [vmem:[%s405 + $0x70] sm:$0xff] %v4478
          %4534 = vst [vmem:[%s405 + $0x78] sm:$0xff] %v4510
        $region64: #{vae_attention_block.5} parent=55 // pred_fallthru
          _
        %s4535 = sand.u32 %s265, 1
        %s4536 = sand.u32 %s265, 1
        %s4537 = smul.addr %s4536, 128
        %s4538 = scalar_lea.vmem [#allocation6], %s4537
        // Predicated region
        $region65: #{vae_attention_block.5} parent=55 // pred_check
          %p4539 = pneg %p275
        $region66: #{vae_attention_block.5} parent=55 // pred_check_branch
          %4541 = sbr.rel (%p4539) target = $region68
        $region67: #{vae_attention_block.5} parent=55 // pred_region
          %s4542 = smul.u32 2, %s26
          %s4543 = smul.addr %s25, 64
          %s4544 = sadd.s32 %s4542, %s4543
          %s4545 = smul.addr %s4544, 8
          %s4546 = scalar_lea.vmem %s9, %s4545
          // Predicated region
          $region69: #{vae_attention_block.5} parent=67 // pred_check
            _
          $region70: #{vae_attention_block.5} parent=67 // pred_check_branch
            %4548 = sbr.rel (0) target = $region72
          $region71: #{vae_attention_block.5} parent=67 // pred_region
            // Predicated region
            $region73: #{vae_attention_block.5} parent=71 // pred_check
              _
            $region74: #{vae_attention_block.5} parent=71 // pred_check_branch
              %4550 = sbr.rel (0) target = $region76
            $region75: #{vae_attention_block.5} parent=71 // pred_region
              loop: start=0, step=1, limit=1
              $region77: #{vae_attention_block.5} parent=75 // loop_pre_header
                _
              $region78: #{vae_attention_block.5} parent=75 // loop_header
                %s4552 = sphi 0, %s4556
                %p4553 = scmp.ge.s32.totalorder %s4552, 1
                %s4557 = sphi %s4538, %s4538
                %s4558 = sphi %s4546, %s4546
              $region79: #{vae_attention_block.5} parent=75 // loop_header_branch
                %4555 = sbr.rel (%p4553) target = $region83
              $region80: #{vae_attention_block.5} parent=75 // loop_body
                %v4559 = vld [vmem:[%s4557] sm:$0xff]
                %4560 = vst [vmem:[%s4558] sm:$0xff] %v4559
                %v4561 = vld [vmem:[%s4557 + $0x8] sm:$0xff]
                %4562 = vst [vmem:[%s4558 + $0x8] sm:$0xff] %v4561
                %v4563 = vld [vmem:[%s4557 + $0x10] sm:$0xff]
                %4564 = vst [vmem:[%s4558 + $0x40] sm:$0xff] %v4563
                %v4565 = vld [vmem:[%s4557 + $0x18] sm:$0xff]
                %4566 = vst [vmem:[%s4558 + $0x48] sm:$0xff] %v4565
                %v4567 = vld [vmem:[%s4557 + $0x20] sm:$0xff]
                %4568 = vst [vmem:[%s4558 + $0x80] sm:$0xff] %v4567
                %v4569 = vld [vmem:[%s4557 + $0x28] sm:$0xff]
                %4570 = vst [vmem:[%s4558 + $0x88] sm:$0xff] %v4569
                %v4571 = vld [vmem:[%s4557 + $0x30] sm:$0xff]
                %4572 = vst [vmem:[%s4558 + $0xc0] sm:$0xff] %v4571
                %v4573 = vld [vmem:[%s4557 + $0x38] sm:$0xff]
                %4574 = vst [vmem:[%s4558 + $0xc8] sm:$0xff] %v4573
                %v4575 = vld [vmem:[%s4557 + $0x40] sm:$0xff]
                %4576 = vst [vmem:[%s4558 + $0x100] sm:$0xff] %v4575
                %v4577 = vld [vmem:[%s4557 + $0x48] sm:$0xff]
                %4578 = vst [vmem:[%s4558 + $0x108] sm:$0xff] %v4577
                %v4579 = vld [vmem:[%s4557 + $0x50] sm:$0xff]
                %4580 = vst [vmem:[%s4558 + $0x140] sm:$0xff] %v4579
                %v4581 = vld [vmem:[%s4557 + $0x58] sm:$0xff]
                %4582 = vst [vmem:[%s4558 + $0x148] sm:$0xff] %v4581
                %v4583 = vld [vmem:[%s4557 + $0x60] sm:$0xff]
                %4584 = vst [vmem:[%s4558 + $0x180] sm:$0xff] %v4583
                %v4585 = vld [vmem:[%s4557 + $0x68] sm:$0xff]
                %4586 = vst [vmem:[%s4558 + $0x188] sm:$0xff] %v4585
                %v4587 = vld [vmem:[%s4557 + $0x70] sm:$0xff]
                %4588 = vst [vmem:[%s4558 + $0x1c0] sm:$0xff] %v4587
                %v4589 = vld [vmem:[%s4557 + $0x78] sm:$0xff]
                %4590 = vst [vmem:[%s4558 + $0x1c8] sm:$0xff] %v4589
              $region81: #{vae_attention_block.5} parent=75 // loop_footer
                %s4556 = sadd.s32 1, %s4552
              $region82: #{vae_attention_block.5} parent=75 // loop_footer_branch
                %4551 = sbr.rel target = $region78
              $region83: #{vae_attention_block.5} parent=75 // loop_exit
                _
            $region76: #{vae_attention_block.5} parent=71 // pred_fallthru
              _
            // Predicated region
            $region84: #{vae_attention_block.5} parent=71 // pred_check
              _
            $region85: #{vae_attention_block.5} parent=71 // pred_check_branch
              %4592 = sbr.rel target = $region87
            $region86: #{vae_attention_block.5} parent=71 // pred_region
              _
            $region87: #{vae_attention_block.5} parent=71 // pred_fallthru
              _
          $region72: #{vae_attention_block.5} parent=67 // pred_fallthru
            _
          %4593 = vnop
        $region68: #{vae_attention_block.5} parent=55 // pred_fallthru
          _
      $region56: #{vae_attention_block.5} parent=5 // pred_fallthru
        _
      %p4594 = scmp.le.s32.totalorder 2, %s15
      // Predicated region
      $region88: #{vae_attention_block.5} parent=5 // pred_check
        %p4595 = pneg %p4594
      $region89: #{vae_attention_block.5} parent=5 // pred_check_branch
        %4597 = sbr.rel (%p4595) target = $region91
      $region90: #{vae_attention_block.5} parent=5 // pred_region
        %s4598 = ssub.s32 %s15, 2
        // Predicated region
        $region92: #{vae_attention_block.5} parent=90 // pred_check
          %p4599 = pneg %p281
        $region93: #{vae_attention_block.5} parent=90 // pred_check_branch
          %4601 = sbr.rel (%p4599) target = $region95
        $region94: #{vae_attention_block.5} parent=90 // pred_region
          %s4602 = sand.u32 %s266, 1
          %s4603 = sand.u32 %s266, 1
          %s4604 = smul.addr %s4603, 128
          %s4605 = scalar_lea.vmem [#allocation6], %s4604
        $region95: #{vae_attention_block.5} parent=90 // pred_fallthru
          _
      $region91: #{vae_attention_block.5} parent=5 // pred_fallthru
        _
    $region6: #{vae_attention_block.5} parent=1 // loop_footer
      %s19 = sadd.s32 1, %s15
    $region7: #{vae_attention_block.5} parent=1 // loop_footer_branch
      %14 = sbr.rel target = $region3
    $region8: #{vae_attention_block.5} parent=1 // loop_exit
      _

</llo_original>
